<compile_context>
chip_gen: v6e
topology: v6e:2x2x1
jax: 0.10.0
libtpu: 0.0.40
codegen_flags: <defaults>
</compile_context>

<pallas_src>
import functools
import numpy as np
import jax
import jax.numpy as jnp
from jax.experimental import pallas as pl
from jax.experimental.pallas import tpu as pltpu


_VMEM_LIMIT = 48 * 1024 * 1024        # fits v7x's 64 MiB physical VMEM with headroom
_ROW_TARGET_BYTES = 12 * 1024 * 1024  # padded per-step footprint (incl. double buffers)
_MODE_TARGET_BYTES = 8 * 1024 * 1024


# ----------------------------- in-kernel math -----------------------------

def _erf(x):
    # Abramowitz & Stegun 7.1.26 rational approximation, built only from ops
    # with guaranteed Mosaic lowering.  The reciprocal rides the EUP slot.
    p = 0.3275911
    a1, a2, a3, a4, a5 = 0.254829592, -0.284496736, 1.421413741, -1.453152027, 1.061405429
    ax = jnp.abs(x)
    t = pl.reciprocal(1.0 + p * ax, approx=True)
    poly = ((((a5 * t + a4) * t + a3) * t + a2) * t + a1) * t
    y = 1.0 - poly * jnp.exp(-ax * ax)
    return jnp.where(x >= 0.0, y, -y)


def _gelu(x):
    # erf-based GELU (f32), matching torch.nn.functional.gelu default
    return 0.5 * x * (1.0 + _erf(x * 0.7071067811865476))


# ----------------------------- tile-size helpers -----------------------------

def _round_up(n, m):
    return -(-n // m) * m


def _lane_bytes(c, itemsize):
    # A (rows, c) VMEM block really occupies rows * round_up(c, 128) * itemsize.
    return _round_up(max(int(c), 1), 128) * int(itemsize)


def _pick_row_tile(n_rows, per_row_bytes, target_bytes=_ROW_TARGET_BYTES,
                   min_rows=256, max_rows=16384, row_mult=32):
    """Row tile sized against a padded-VMEM budget; multiple of 32 (covers f32/
    bf16 sublane tiling); >=4 grid steps when there is enough work so each v7x
    TensorCore gets >=2 steps and double-buffering overlaps DMA."""
    t = target_bytes // max(per_row_bytes, 1)
    t = max(min_rows, min(max_rows, t))
    if n_rows >= 4 * min_rows:
        t = min(t, _round_up(-(-n_rows // 4), row_mult))
    t = max(row_mult, (t // row_mult) * row_mult)
    if t >= n_rows:
        return n_rows
    return t


def _pick_mode_tile(n_modes, per_mode_bytes, target_bytes=_MODE_TARGET_BYTES):
    t = max(1, target_bytes // max(per_mode_bytes, 1))
    if n_modes >= 32:
        t = min(t, -(-n_modes // 4))   # >=4 grid steps (>=2 per v7x core)
    return min(t, n_modes)


# ----------------------- Pallas kernel 1: pointwise linear -----------------------
# y = x @ W + b  (+ optional residual add, + optional exact GELU)
# Used for fc0 and the fused (1x1x1 conv skip + spectral add + GELU).

def _linear_kernel(*refs, act, has_add):
    if has_add:
        x_ref, w_ref, b_ref, add_ref, o_ref = refs
    else:
        x_ref, w_ref, b_ref, o_ref = refs
        add_ref = None
    x = x_ref[...].astype(jnp.float32)          # bf16 storage, f32 compute
    y = jnp.dot(x, w_ref[...], preferred_element_type=jnp.float32) + b_ref[...]
    if add_ref is not None:
        y = y + add_ref[...].astype(jnp.float32)
    if act:
        y = _gelu(y)
    o_ref[...] = y.astype(o_ref.dtype)


def linear_pallas(x2d, w, b, add=None, act=False, out_dtype=jnp.bfloat16):
    N, Cin = x2d.shape
    Cout = w.shape[1]
    per_row = (2 * _lane_bytes(Cin, x2d.dtype.itemsize)
               + 2 * _lane_bytes(Cout, jnp.dtype(out_dtype).itemsize))
    if add is not None:
        per_row += 2 * _lane_bytes(Cout, add.dtype.itemsize)
    tile_n = _pick_row_tile(N, per_row)
    args = [x2d, w, b.reshape(1, Cout)]
    in_specs = [
        pl.BlockSpec((tile_n, Cin), lambda i: (i, 0)),
        pl.BlockSpec((Cin, Cout), lambda i: (0, 0)),
        pl.BlockSpec((1, Cout), lambda i: (0, 0)),
    ]
    if add is not None:
        args.append(add)
        in_specs.append(pl.BlockSpec((tile_n, Cout), lambda i: (i, 0)))
    # Partial last block (N % tile_n != 0) is handled by Pallas: rows are
    # independent, OOB writes are dropped -- no wrapper pad / HBM round trip.
    return pl.pallas_call(
        functools.partial(_linear_kernel, act=act, has_add=add is not None),
        out_shape=jax.ShapeDtypeStruct((N, Cout), out_dtype),
        grid=(pl.cdiv(N, tile_n),),
        in_specs=in_specs,
        out_specs=pl.BlockSpec((tile_n, Cout), lambda i: (i, 0)),
        compiler_params=pltpu.CompilerParams(
            dimension_semantics=("parallel",),
            vmem_limit_bytes=_VMEM_LIMIT),
    )(*args)


# ----------------- Pallas kernel 2: fused projection head (fc1+GELU+fc2) -----------------

def _head_kernel(x_ref, w1_ref, b1_ref, w2_ref, b2_ref, o_ref, *, cout, vpu_fc2):
    x = x_ref[...].astype(jnp.float32)
    h = jnp.dot(x, w1_ref[...], preferred_element_type=jnp.float32) + b1_ref[...]
    h = _gelu(h)
    if vpu_fc2:
        # Cout < 8: a (Ch, Cout) MXU weight push for <8 output lanes is <1%
        # utilization; VPU multiply + XLU lane-reduce has slack here.
        w2t = w2_ref[...].astype(jnp.float32)                      # (Cout, Ch)
        cols = [jnp.sum(h * w2t[o:o + 1, :], axis=-1, keepdims=True)
                for o in range(cout)]
        y = cols[0] if cout == 1 else jnp.concatenate(cols, axis=-1)
        y = y + b2_ref[...]
    else:
        y = jnp.dot(h, w2_ref[...], preferred_element_type=jnp.float32) + b2_ref[...]
    o_ref[...] = y.astype(o_ref.dtype)


def head_pallas(x2d, w1, b1, w2, b2, out_dtype=jnp.float32):
    N, Cin = x2d.shape
    Ch = w1.shape[1]
    Cout = w2.shape[1]
    vpu_fc2 = Cout < 8
    per_row = (2 * _lane_bytes(Cin, x2d.dtype.itemsize)     # input block, 2 buffers
               + _lane_bytes(Ch, 4)                          # fc1 hidden temporary
               + 2 * _lane_bytes(Cout, jnp.dtype(out_dtype).itemsize))
    tile_n = _pick_row_tile(N, per_row)
    w2_arg = w2.T if vpu_fc2 else w2
    w2_spec = (pl.BlockSpec((Cout, Ch), lambda i: (0, 0)) if vpu_fc2
               else pl.BlockSpec((Ch, Cout), lambda i: (0, 0)))
    return pl.pallas_call(
        functools.partial(_head_kernel, cout=Cout, vpu_fc2=vpu_fc2),
        out_shape=jax.ShapeDtypeStruct((N, Cout), out_dtype),
        grid=(pl.cdiv(N, tile_n),),
        in_specs=[
            pl.BlockSpec((tile_n, Cin), lambda i: (i, 0)),
            pl.BlockSpec((Cin, Ch), lambda i: (0, 0)),
            pl.BlockSpec((1, Ch), lambda i: (0, 0)),
            w2_spec,
            pl.BlockSpec((1, Cout), lambda i: (0, 0)),
        ],
        out_specs=pl.BlockSpec((tile_n, Cout), lambda i: (i, 0)),
        compiler_params=pltpu.CompilerParams(
            dimension_semantics=("parallel",),
            vmem_limit_bytes=_VMEM_LIMIT),
    )(x2d, w1, b1.reshape(1, Ch), w2_arg, b2.reshape(1, Cout))


# ------------------- Pallas kernel 3: complex spectral mode mixing -------------------
# One matmul per mode:  [xr; xi] (2B, Ci) @ [wr | wi] (Ci, 2Co)  ->  (2B, 2Co),
# real = TL - BR, imag = TR + BL.  Tiled over the mode axis M (parallel grid),
# bf16 operands, f32 accumulate, single lane-denser (B, 2Co) f32 output slab.

def _spectral_mix_kernel(x_ref, w_ref, o_ref, *, B, Co):
    y = jnp.einsum('mbi,mio->mbo', x_ref[...], w_ref[...],
                   preferred_element_type=jnp.float32)
    top = y[:, :B, :]                 # [xr@wr | xr@wi]
    bot = y[:, B:, :]                 # [xi@wr | xi@wi]
    real = top[:, :, :Co] - bot[:, :, Co:]
    imag = top[:, :, Co:] + bot[:, :, :Co]
    o_ref[...] = jnp.concatenate([real, imag], axis=-1)


def spectral_mix_pallas(x_cat, w_cat, B, Co):
    # x_cat: (M, 2B, Ci) bf16, w_cat: (M, Ci, 2Co) bf16 -> (M, B, 2Co) f32
    M, B2, Ci = x_cat.shape
    per_mode = 2 * (_round_up(B2, 16) * _lane_bytes(Ci, 2)        # x, bf16
                    + _round_up(Ci, 16) * _lane_bytes(2 * Co, 2)  # w, bf16
                    + _round_up(B, 8) * _lane_bytes(2 * Co, 4))   # out, f32
    tile_m = _pick_mode_tile(M, per_mode)
    return pl.pallas_call(
        functools.partial(_spectral_mix_kernel, B=B, Co=Co),
        out_shape=jax.ShapeDtypeStruct((M, B, 2 * Co), jnp.float32),
        grid=(pl.cdiv(M, tile_m),),
        in_specs=[pl.BlockSpec((tile_m, B2, Ci), lambda i: (i, 0, 0)),
                  pl.BlockSpec((tile_m, Ci, 2 * Co), lambda i: (i, 0, 0))],
        out_specs=pl.BlockSpec((tile_m, B, 2 * Co), lambda i: (i, 0, 0)),
        compiler_params=pltpu.CompilerParams(
            dimension_semantics=("parallel",),
            vmem_limit_bytes=_VMEM_LIMIT),
    )(x_cat, w_cat)


# ------------------------------- model glue -------------------------------

def spectral_conv3d(h, lp, modes):
    # h: (B, Xp, Yp, Tp, Ci) bf16
    B, Xp, Yp, Tp, Ci = h.shape
    m1, m2, m3 = modes
    Co = lp["w_w"].shape[1]
    # TODO(synk): 3D rFFT/irFFT have no Pallas TPU primitive; they stay in jnp.fft.
    h_ft = jnp.fft.rfftn(h.astype(jnp.float32), axes=(1, 2, 3))    # (B,Xp,Yp,Tk,Ci) c64
    Tk = h_ft.shape[3]
    assert 2 * m1 <= Xp and 2 * m2 <= Yp and m3 <= Tk, "mode corners overlap"
    corners = jnp.stack(
        [h_ft[:, :m1, :m2, :m3, :],
         h_ft[:, Xp - m1:, :m2, :m3, :],
         h_ft[:, :m1, Yp - m2:, :m3, :],
         h_ft[:, Xp - m1:, Yp - m2:, :m3, :]], axis=0)             # (4,B,m1,m2,m3,Ci)
    M4 = 4 * m1 * m2 * m3
    corners = jnp.moveaxis(corners, 1, 4).reshape(M4, B, Ci)       # mode-major layout
    x_cat = jnp.concatenate([jnp.real(corners), jnp.imag(corners)],
                            axis=1).astype(jnp.bfloat16)           # (M4, 2B, Ci)
    mix = spectral_mix_pallas(x_cat, lp["spec_w"], B, Co)          # (M4, B, 2Co) f32
    oc = (mix[..., :Co] + 1j * mix[..., Co:]).astype(jnp.complex64)
    oc = jnp.moveaxis(oc.reshape(4, m1, m2, m3, B, Co), 4, 1)      # (4,B,m1,m2,m3,Co)
    out_ft = jnp.zeros((B, Xp, Yp, Tk, Co), jnp.complex64)
    out_ft = out_ft.at[:, :m1, :m2, :m3, :].set(oc[0])
    out_ft = out_ft.at[:, Xp - m1:, :m2, :m3, :].set(oc[1])
    out_ft = out_ft.at[:, :m1, Yp - m2:, :m3, :].set(oc[2])
    out_ft = out_ft.at[:, Xp - m1:, Yp - m2:, :m3, :].set(oc[3])
    x1 = jnp.fft.irfftn(out_ft, s=(Xp, Yp, Tp), axes=(1, 2, 3))
    # Fused in one Pallas kernel: x2 = W(h) (1x1x1 conv as matmul), out = gelu(x1 + x2).
    N = B * Xp * Yp * Tp
    out = linear_pallas(h.reshape(N, Ci), lp["w_w"], lp["w_b"],
                        add=x1.astype(jnp.bfloat16).reshape(N, Co),
                        act=True, out_dtype=jnp.bfloat16)
    return out.reshape(B, Xp, Yp, Tp, Co)


def fno3d_forward(params, x, grid, *, modes, width, padding, out_dim):
    B, X, Y, T, _ = x.shape
    h = jnp.concatenate([x, grid], axis=-1)                        # (B,X,Y,T, steps*in_dim+3)
    cin0 = h.shape[-1]
    h = linear_pallas(h.reshape(-1, cin0), params["fc0_w"], params["fc0_b"],
                      out_dtype=jnp.bfloat16)
    h = h.reshape(B, X, Y, T, width)
    p = padding
    # F.pad(x, [0,p,0,p,0,p]) on NCDHW == right-pad the X, Y, T axes here.
    h = jnp.pad(h, ((0, 0), (0, p), (0, p), (0, p), (0, 0)))
    for lp in params["convs"]:
        h = spectral_conv3d(h, lp, modes)
    h = h[:, :X, :Y, :T, :]                                        # == x[..., :-p, :-p, :-p]
    # fc1 + GELU + fc2 fused (no (N,128) HBM intermediate), f32 final output
    h = head_pallas(h.reshape(-1, width), params["fc1_w"], params["fc1_b"],
                    params["fc2_w"], params["fc2_b"], out_dtype=jnp.float32)
    return h.reshape(B, X, Y, T, out_dim)


# ------------------------------- parameters -------------------------------

def _init_linear(key, fan_in, fan_out):
    k1, k2 = jax.random.split(key)
    bound = 1.0 / float(np.sqrt(fan_in))
    w = jax.random.uniform(k1, (fan_in, fan_out), jnp.float32, -bound, bound)
    b = jax.random.uniform(k2, (fan_out,), jnp.float32, -bound, bound)
    return w, b


def init_fno3d_params(key, in_dim, out_dim, modes, width, depth, steps):
    m1, m2, m3 = modes
    M4 = 4 * m1 * m2 * m3
    params = {}
    key, k = jax.random.split(key)
    params["fc0_w"], params["fc0_b"] = _init_linear(k, steps * in_dim + 3, width)
    convs = []
    scale = 1.0 / (width * width)
    for _ in range(depth):
        key, k1, k2, k3 = jax.random.split(key, 4)
        # 4 corner complex weights; real/imag pre-concatenated along the output
        # axis ([wr | wi]) and stored bf16 so the mixer streams half the bytes.
        # NOTE: a PyTorch FNO3d checkpoint stores (Ci, Co, m1, m2, m3) per
        # corner -- importing real weights requires a transpose into this layout.
        wr = scale * jax.random.uniform(k1, (4, m1, m2, m3, width, width), jnp.float32)
        wi = scale * jax.random.uniform(k2, (4, m1, m2, m3, width, width), jnp.float32)
        spec_w = jnp.concatenate([wr, wi], axis=-1).reshape(M4, width, 2 * width)
        lp = {"spec_w": spec_w.astype(jnp.bfloat16)}
        lp["w_w"], lp["w_b"] = _init_linear(k3, width, width)      # nn.Conv3d(width,width,1)
        convs.append(lp)
    params["convs"] = convs
    key, k1, k2 = jax.random.split(key, 3)
    params["fc1_w"], params["fc1_b"] = _init_linear(k1, width, 128)
    params["fc2_w"], params["fc2_b"] = _init_linear(k2, 128, out_dim)
    return params


# ---------------------------------- main ----------------------------------

if __name__ == "__main__":
    B, X, Y, T = 2, 8, 8, 8
    in_dim, out_dim, steps = 1, 1, 1
    width, depth, padding = 32, 2, 2
    modes = (4, 4, 4)

    key = jax.random.PRNGKey(0)
    key, kp, kx = jax.random.split(key, 3)
    params = init_fno3d_params(kp, in_dim, out_dim, modes, width, depth, steps)

    x = jax.random.normal(kx, (B, X, Y, T, steps * in_dim), jnp.float32)
    gx = jnp.linspace(0.0, 1.0, X)
    gy = jnp.linspace(0.0, 1.0, Y)
    gt = jnp.linspace(0.0, 1.0, T)
    grid = jnp.stack(jnp.meshgrid(gx, gy, gt, indexing="ij"), axis=-1)   # (X,Y,T,3)
    grid = jnp.broadcast_to(grid[None], (B, X, Y, T, 3)).astype(jnp.float32)

    fwd = jax.jit(functools.partial(fno3d_forward, modes=modes, width=width,
                                    padding=padding, out_dim=out_dim))
    out = fwd(params, x, grid)
    out = jax.block_until_ready(out)
    assert out.shape == (B, X, Y, T, out_dim)
    assert bool(jnp.all(jnp.isfinite(out)))
    print("KERNEL_OK")
</pallas_src>

<mosaic_0001>
module attributes {stable_mosaic.version = 11 : i64} {
  func.func @_linear_kernel(%arg0: i32, %arg1: memref<256x4xf32, #tpu.memory_space<vmem>>, %arg2: memref<4x32xf32, #tpu.memory_space<vmem>>, %arg3: memref<1x32xf32, #tpu.memory_space<vmem>>, %arg4: memref<256x32xbf16, #tpu.memory_space<vmem>>) attributes {dimension_semantics = [#tpu.dimension_semantics<parallel>], iteration_bounds = array<i64: 4>, scalar_prefetch = 0 : i64, scratch_operands = 0 : i64, tpu.core_type = #tpu.core_type<tc>, window_params = [{transform_indices = @transform_0, window_bounds = array<i64: 256, 4>}, {pipeline_mode = #tpu.pipeline_mode<synchronous>, transform_indices = @transform_1, window_bounds = array<i64: 4, 32>}, {pipeline_mode = #tpu.pipeline_mode<synchronous>, transform_indices = @transform_2, window_bounds = array<i64: 1, 32>}, {transform_indices = @transform_3, window_bounds = array<i64: 256, 32>}]} {
    %c0 = arith.constant 0 : index
    %c0_0 = arith.constant 0 : index
    %0 = vector.load %arg1[%c0, %c0_0] : memref<256x4xf32, #tpu.memory_space<vmem>>, vector<256x4xf32>
    %c0_1 = arith.constant 0 : index
    %c0_2 = arith.constant 0 : index
    %1 = vector.load %arg2[%c0_1, %c0_2] : memref<4x32xf32, #tpu.memory_space<vmem>>, vector<4x32xf32>
    %cst = arith.constant dense<0.000000e+00> : vector<256x32xf32>
    %2 = tpu.matmul %0, %1, %cst {dimension_numbers = #tpu.dot_dimension_numbers<[1], [0], [0], [1], [0, 0, 1, 1], [], []>} : vector<256x4xf32>, vector<4x32xf32>, vector<256x32xf32> -> vector<256x32xf32>
    %c0_3 = arith.constant 0 : index
    %c0_4 = arith.constant 0 : index
    %3 = vector.load %arg3[%c0_3, %c0_4] : memref<1x32xf32, #tpu.memory_space<vmem>>, vector<1x32xf32>
    %4 = vector.broadcast %3 : vector<1x32xf32> to vector<256x32xf32>
    %5 = arith.addf %2, %4 : vector<256x32xf32>
    %6 = arith.truncf %5 : vector<256x32xf32> to vector<256x32xbf16>
    %c0_5 = arith.constant 0 : index
    %c0_6 = arith.constant 0 : index
    %7 = vector.load %arg4[%c0_5, %c0_6] : memref<256x32xbf16, #tpu.memory_space<vmem>>, vector<256x32xbf16>
    tpu.vector_store %arg4[%c0_5, %c0_6], %6 {strides = array<i32>} : memref<256x32xbf16, #tpu.memory_space<vmem>>, vector<256x32xbf16>,
    return
  }
  func.func @transform_0(%arg0: i32) -> (i32, i32) {
    %c0_i32 = arith.constant 0 : i32
    %c0_i32_0 = arith.constant 0 : i32
    return %arg0, %c0_i32 : i32, i32
  }
  func.func @transform_1(%arg0: i32) -> (i32, i32) {
    %c0_i32 = arith.constant 0 : i32
    %c0_i32_0 = arith.constant 0 : i32
    %c0_i32_1 = arith.constant 0 : i32
    return %c0_i32, %c0_i32_0 : i32, i32
  }
  func.func @transform_2(%arg0: i32) -> (i32, i32) {
    %c0_i32 = arith.constant 0 : i32
    %c0_i32_0 = arith.constant 0 : i32
    %c0_i32_1 = arith.constant 0 : i32
    return %c0_i32, %c0_i32_0 : i32, i32
  }
  func.func @transform_3(%arg0: i32) -> (i32, i32) {
    %c0_i32 = arith.constant 0 : i32
    %c0_i32_0 = arith.constant 0 : i32
    return %arg0, %c0_i32 : i32, i32
  }
}

module attributes {stable_mosaic.version = 11 : i64} {
  func.func @_spectral_mix_kernel(%arg0: i32, %arg1: memref<64x4x32xbf16, #tpu.memory_space<vmem>>, %arg2: memref<64x32x64xbf16, #tpu.memory_space<vmem>>, %arg3: memref<64x2x64xf32, #tpu.memory_space<vmem>>) attributes {dimension_semantics = [#tpu.dimension_semantics<parallel>], iteration_bounds = array<i64: 4>, scalar_prefetch = 0 : i64, scratch_operands = 0 : i64, tpu.core_type = #tpu.core_type<tc>, window_params = [{transform_indices = @transform_0, window_bounds = array<i64: 64, 4, 32>}, {transform_indices = @transform_1, window_bounds = array<i64: 64, 32, 64>}, {transform_indices = @transform_2, window_bounds = array<i64: 64, 2, 64>}]} {
    %c0 = arith.constant 0 : index
    %c0_0 = arith.constant 0 : index
    %c0_1 = arith.constant 0 : index
    %0 = vector.load %arg1[%c0, %c0_0, %c0_1] : memref<64x4x32xbf16, #tpu.memory_space<vmem>>, vector<64x4x32xbf16>
    %c0_2 = arith.constant 0 : index
    %c0_3 = arith.constant 0 : index
    %c0_4 = arith.constant 0 : index
    %1 = vector.load %arg2[%c0_2, %c0_3, %c0_4] : memref<64x32x64xbf16, #tpu.memory_space<vmem>>, vector<64x32x64xbf16>
    "tpu.trace_start"() <{level = 10 : i32, message = "mbi,mio->mbo"}> : () -> ()
    %cst = arith.constant dense<0.000000e+00> : vector<64x4x64xf32>
    %2 = tpu.matmul %0, %1, %cst {dimension_numbers = #tpu.dot_dimension_numbers<[2], [1], [1], [2], [0, 0, 0, 1, 1, 2], [0], [0]>} : vector<64x4x32xbf16>, vector<64x32x64xbf16>, vector<64x4x64xf32> -> vector<64x4x64xf32>
    "tpu.trace_stop"() : () -> ()
    %3 = vector.extract_strided_slice %2 {offsets = [0, 0, 0], sizes = [64, 2, 64], strides = [1, 1, 1]} : vector<64x4x64xf32> to vector<64x2x64xf32>
    %4 = vector.extract_strided_slice %2 {offsets = [0, 2, 0], sizes = [64, 2, 64], strides = [1, 1, 1]} : vector<64x4x64xf32> to vector<64x2x64xf32>
    %5 = vector.extract_strided_slice %3 {offsets = [0, 0, 0], sizes = [64, 2, 32], strides = [1, 1, 1]} : vector<64x2x64xf32> to vector<64x2x32xf32>
    %6 = vector.extract_strided_slice %4 {offsets = [0, 0, 32], sizes = [64, 2, 32], strides = [1, 1, 1]} : vector<64x2x64xf32> to vector<64x2x32xf32>
    %7 = arith.subf %5, %6 : vector<64x2x32xf32>
    %8 = vector.extract_strided_slice %3 {offsets = [0, 0, 32], sizes = [64, 2, 32], strides = [1, 1, 1]} : vector<64x2x64xf32> to vector<64x2x32xf32>
    %9 = vector.extract_strided_slice %4 {offsets = [0, 0, 0], sizes = [64, 2, 32], strides = [1, 1, 1]} : vector<64x2x64xf32> to vector<64x2x32xf32>
    %10 = arith.addf %8, %9 : vector<64x2x32xf32>
    %11 = tpu.concatenate %7, %10 in 2 : vector<64x2x32xf32>, vector<64x2x32xf32> -> vector<64x2x64xf32>
    %c0_5 = arith.constant 0 : index
    %c0_6 = arith.constant 0 : index
    %c0_7 = arith.constant 0 : index
    %12 = vector.load %arg3[%c0_5, %c0_6, %c0_7] : memref<64x2x64xf32, #tpu.memory_space<vmem>>, vector<64x2x64xf32>
    tpu.vector_store %arg3[%c0_5, %c0_6, %c0_7], %11 {strides = array<i32>} : memref<64x2x64xf32, #tpu.memory_space<vmem>>, vector<64x2x64xf32>,
    return
  }
  func.func @transform_0(%arg0: i32) -> (i32, i32, i32) {
    %c0_i32 = arith.constant 0 : i32
    %c0_i32_0 = arith.constant 0 : i32
    %c0_i32_1 = arith.constant 0 : i32
    return %arg0, %c0_i32, %c0_i32_0 : i32, i32, i32
  }
  func.func @transform_1(%arg0: i32) -> (i32, i32, i32) {
    %c0_i32 = arith.constant 0 : i32
    %c0_i32_0 = arith.constant 0 : i32
    %c0_i32_1 = arith.constant 0 : i32
    return %arg0, %c0_i32, %c0_i32_0 : i32, i32, i32
  }
  func.func @transform_2(%arg0: i32) -> (i32, i32, i32) {
    %c0_i32 = arith.constant 0 : i32
    %c0_i32_0 = arith.constant 0 : i32
    %c0_i32_1 = arith.constant 0 : i32
    return %arg0, %c0_i32, %c0_i32_0 : i32, i32, i32
  }
}

module attributes {stable_mosaic.version = 11 : i64} {
  func.func @_linear_kernel(%arg0: i32, %arg1: memref<512x32xbf16, #tpu.memory_space<vmem>>, %arg2: memref<32x32xf32, #tpu.memory_space<vmem>>, %arg3: memref<1x32xf32, #tpu.memory_space<vmem>>, %arg4: memref<512x32xbf16, #tpu.memory_space<vmem>>, %arg5: memref<512x32xbf16, #tpu.memory_space<vmem>>) attributes {dimension_semantics = [#tpu.dimension_semantics<parallel>], iteration_bounds = array<i64: 4>, scalar_prefetch = 0 : i64, scratch_operands = 0 : i64, tpu.core_type = #tpu.core_type<tc>, window_params = [{transform_indices = @transform_0, window_bounds = array<i64: 512, 32>}, {pipeline_mode = #tpu.pipeline_mode<synchronous>, transform_indices = @transform_1, window_bounds = array<i64: 32, 32>}, {pipeline_mode = #tpu.pipeline_mode<synchronous>, transform_indices = @transform_2, window_bounds = array<i64: 1, 32>}, {transform_indices = @transform_3, window_bounds = array<i64: 512, 32>}, {transform_indices = @transform_4, window_bounds = array<i64: 512, 32>}]} {
    %c0 = arith.constant 0 : index
    %c0_0 = arith.constant 0 : index
    %0 = vector.load %arg1[%c0, %c0_0] : memref<512x32xbf16, #tpu.memory_space<vmem>>, vector<512x32xbf16>
    %1 = arith.extf %0 : vector<512x32xbf16> to vector<512x32xf32>
    %c0_1 = arith.constant 0 : index
    %c0_2 = arith.constant 0 : index
    %2 = vector.load %arg2[%c0_1, %c0_2] : memref<32x32xf32, #tpu.memory_space<vmem>>, vector<32x32xf32>
    %cst = arith.constant dense<0.000000e+00> : vector<512x32xf32>
    %3 = tpu.matmul %1, %2, %cst {dimension_numbers = #tpu.dot_dimension_numbers<[1], [0], [0], [1], [0, 0, 1, 1], [], []>} : vector<512x32xf32>, vector<32x32xf32>, vector<512x32xf32> -> vector<512x32xf32>
    %c0_3 = arith.constant 0 : index
    %c0_4 = arith.constant 0 : index
    %4 = vector.load %arg3[%c0_3, %c0_4] : memref<1x32xf32, #tpu.memory_space<vmem>>, vector<1x32xf32>
    %5 = vector.broadcast %4 : vector<1x32xf32> to vector<512x32xf32>
    %6 = arith.addf %3, %5 : vector<512x32xf32>
    %c0_5 = arith.constant 0 : index
    %c0_6 = arith.constant 0 : index
    %7 = vector.load %arg4[%c0_5, %c0_6] : memref<512x32xbf16, #tpu.memory_space<vmem>>, vector<512x32xbf16>
    %8 = arith.extf %7 : vector<512x32xbf16> to vector<512x32xf32>
    %9 = arith.addf %6, %8 : vector<512x32xf32>
    %cst_7 = arith.constant 5.000000e-01 : f32
    %10 = vector.broadcast %cst_7 : f32 to vector<512x32xf32>
    %11 = arith.mulf %10, %9 : vector<512x32xf32>
    %cst_8 = arith.constant 0.707106769 : f32
    %12 = vector.broadcast %cst_8 : f32 to vector<512x32xf32>
    %13 = arith.mulf %9, %12 : vector<512x32xf32>
    %14 = math.absf %13 : vector<512x32xf32>
    %cst_9 = arith.constant 0.327591091 : f32
    %15 = vector.broadcast %cst_9 : f32 to vector<512x32xf32>
    %16 = arith.mulf %15, %14 : vector<512x32xf32>
    %cst_10 = arith.constant 1.000000e+00 : f32
    %17 = vector.broadcast %cst_10 : f32 to vector<512x32xf32>
    %18 = arith.addf %17, %16 : vector<512x32xf32>
    %19 = tpu.reciprocal %18 {approx = true} : vector<512x32xf32> -> vector<512x32xf32>
    %cst_11 = arith.constant 1.06140542 : f32
    %20 = vector.broadcast %cst_11 : f32 to vector<512x32xf32>
    %21 = arith.mulf %20, %19 : vector<512x32xf32>
    %cst_12 = arith.constant -1.45315206 : f32
    %22 = vector.broadcast %cst_12 : f32 to vector<512x32xf32>
    %23 = arith.addf %21, %22 : vector<512x32xf32>
    %24 = arith.mulf %23, %19 : vector<512x32xf32>
    %cst_13 = arith.constant 1.42141378 : f32
    %25 = vector.broadcast %cst_13 : f32 to vector<512x32xf32>
    %26 = arith.addf %24, %25 : vector<512x32xf32>
    %27 = arith.mulf %26, %19 : vector<512x32xf32>
    %cst_14 = arith.constant -0.284496725 : f32
    %28 = vector.broadcast %cst_14 : f32 to vector<512x32xf32>
    %29 = arith.addf %27, %28 : vector<512x32xf32>
    %30 = arith.mulf %29, %19 : vector<512x32xf32>
    %cst_15 = arith.constant 0.254829586 : f32
    %31 = vector.broadcast %cst_15 : f32 to vector<512x32xf32>
    %32 = arith.addf %30, %31 : vector<512x32xf32>
    %33 = arith.mulf %32, %19 : vector<512x32xf32>
    %cst_16 = arith.constant 0.000000e+00 : f32
    %34 = vector.broadcast %cst_16 : f32 to vector<512x32xf32>
    %35 = arith.subf %34, %14 : vector<512x32xf32>
    %36 = arith.mulf %35, %14 : vector<512x32xf32>
    %37 = math.exp %36 : vector<512x32xf32>
    %38 = arith.mulf %33, %37 : vector<512x32xf32>
    %cst_17 = arith.constant 1.000000e+00 : f32
    %39 = vector.broadcast %cst_17 : f32 to vector<512x32xf32>
    %40 = arith.subf %39, %38 : vector<512x32xf32>
    %cst_18 = arith.constant 0.000000e+00 : f32
    %41 = vector.broadcast %cst_18 : f32 to vector<512x32xf32>
    %42 = arith.cmpf oge, %13, %41 : vector<512x32xf32>
    %cst_19 = arith.constant 0.000000e+00 : f32
    %43 = vector.broadcast %cst_19 : f32 to vector<512x32xf32>
    %44 = arith.subf %43, %40 : vector<512x32xf32>
    %45 = arith.select %42, %40, %44 : vector<512x32xi1>, vector<512x32xf32>
    %cst_20 = arith.constant 1.000000e+00 : f32
    %46 = vector.broadcast %cst_20 : f32 to vector<512x32xf32>
    %47 = arith.addf %46, %45 : vector<512x32xf32>
    %48 = arith.mulf %11, %47 : vector<512x32xf32>
    %49 = arith.truncf %48 : vector<512x32xf32> to vector<512x32xbf16>
    %c0_21 = arith.constant 0 : index
    %c0_22 = arith.constant 0 : index
    %50 = vector.load %arg5[%c0_21, %c0_22] : memref<512x32xbf16, #tpu.memory_space<vmem>>, vector<512x32xbf16>
    tpu.vector_store %arg5[%c0_21, %c0_22], %49 {strides = array<i32>} : memref<512x32xbf16, #tpu.memory_space<vmem>>, vector<512x32xbf16>,
    return
  }
  func.func @transform_0(%arg0: i32) -> (i32, i32) {
    %c0_i32 = arith.constant 0 : i32
    %c0_i32_0 = arith.constant 0 : i32
    return %arg0, %c0_i32 : i32, i32
  }
  func.func @transform_1(%arg0: i32) -> (i32, i32) {
    %c0_i32 = arith.constant 0 : i32
    %c0_i32_0 = arith.constant 0 : i32
    %c0_i32_1 = arith.constant 0 : i32
    return %c0_i32, %c0_i32_0 : i32, i32
  }
  func.func @transform_2(%arg0: i32) -> (i32, i32) {
    %c0_i32 = arith.constant 0 : i32
    %c0_i32_0 = arith.constant 0 : i32
    %c0_i32_1 = arith.constant 0 : i32
    return %c0_i32, %c0_i32_0 : i32, i32
  }
  func.func @transform_3(%arg0: i32) -> (i32, i32) {
    %c0_i32 = arith.constant 0 : i32
    %c0_i32_0 = arith.constant 0 : i32
    return %arg0, %c0_i32 : i32, i32
  }
  func.func @transform_4(%arg0: i32) -> (i32, i32) {
    %c0_i32 = arith.constant 0 : i32
    %c0_i32_0 = arith.constant 0 : i32
    return %arg0, %c0_i32 : i32, i32
  }
}

module attributes {stable_mosaic.version = 11 : i64} {
  func.func @_head_kernel(%arg0: i32, %arg1: memref<256x32xbf16, #tpu.memory_space<vmem>>, %arg2: memref<32x128xf32, #tpu.memory_space<vmem>>, %arg3: memref<1x128xf32, #tpu.memory_space<vmem>>, %arg4: memref<1x128xf32, #tpu.memory_space<vmem>>, %arg5: memref<1x1xf32, #tpu.memory_space<vmem>>, %arg6: memref<256x1xf32, #tpu.memory_space<vmem>>) attributes {dimension_semantics = [#tpu.dimension_semantics<parallel>], iteration_bounds = array<i64: 4>, scalar_prefetch = 0 : i64, scratch_operands = 0 : i64, tpu.core_type = #tpu.core_type<tc>, window_params = [{transform_indices = @transform_0, window_bounds = array<i64: 256, 32>}, {pipeline_mode = #tpu.pipeline_mode<synchronous>, transform_indices = @transform_1, window_bounds = array<i64: 32, 128>}, {pipeline_mode = #tpu.pipeline_mode<synchronous>, transform_indices = @transform_2, window_bounds = array<i64: 1, 128>}, {pipeline_mode = #tpu.pipeline_mode<synchronous>, transform_indices = @transform_3, window_bounds = array<i64: 1, 128>}, {pipeline_mode = #tpu.pipeline_mode<synchronous>, transform_indices = @transform_4, window_bounds = array<i64: 1, 1>}, {transform_indices = @transform_5, window_bounds = array<i64: 256, 1>}]} {
    %c0 = arith.constant 0 : index
    %c0_0 = arith.constant 0 : index
    %0 = vector.load %arg1[%c0, %c0_0] : memref<256x32xbf16, #tpu.memory_space<vmem>>, vector<256x32xbf16>
    %1 = arith.extf %0 : vector<256x32xbf16> to vector<256x32xf32>
    %c0_1 = arith.constant 0 : index
    %c0_2 = arith.constant 0 : index
    %2 = vector.load %arg2[%c0_1, %c0_2] : memref<32x128xf32, #tpu.memory_space<vmem>>, vector<32x128xf32>
    %cst = arith.constant dense<0.000000e+00> : vector<256x128xf32>
    %3 = tpu.matmul %1, %2, %cst {dimension_numbers = #tpu.dot_dimension_numbers<[1], [0], [0], [1], [0, 0, 1, 1], [], []>} : vector<256x32xf32>, vector<32x128xf32>, vector<256x128xf32> -> vector<256x128xf32>
    %c0_3 = arith.constant 0 : index
    %c0_4 = arith.constant 0 : index
    %4 = vector.load %arg3[%c0_3, %c0_4] : memref<1x128xf32, #tpu.memory_space<vmem>>, vector<1x128xf32>
    %5 = vector.broadcast %4 : vector<1x128xf32> to vector<256x128xf32>
    %6 = arith.addf %3, %5 : vector<256x128xf32>
    %cst_5 = arith.constant 5.000000e-01 : f32
    %7 = vector.broadcast %cst_5 : f32 to vector<256x128xf32>
    %8 = arith.mulf %7, %6 : vector<256x128xf32>
    %cst_6 = arith.constant 0.707106769 : f32
    %9 = vector.broadcast %cst_6 : f32 to vector<256x128xf32>
    %10 = arith.mulf %6, %9 : vector<256x128xf32>
    %11 = math.absf %10 : vector<256x128xf32>
    %cst_7 = arith.constant 0.327591091 : f32
    %12 = vector.broadcast %cst_7 : f32 to vector<256x128xf32>
    %13 = arith.mulf %12, %11 : vector<256x128xf32>
    %cst_8 = arith.constant 1.000000e+00 : f32
    %14 = vector.broadcast %cst_8 : f32 to vector<256x128xf32>
    %15 = arith.addf %14, %13 : vector<256x128xf32>
    %16 = tpu.reciprocal %15 {approx = true} : vector<256x128xf32> -> vector<256x128xf32>
    %cst_9 = arith.constant 1.06140542 : f32
    %17 = vector.broadcast %cst_9 : f32 to vector<256x128xf32>
    %18 = arith.mulf %17, %16 : vector<256x128xf32>
    %cst_10 = arith.constant -1.45315206 : f32
    %19 = vector.broadcast %cst_10 : f32 to vector<256x128xf32>
    %20 = arith.addf %18, %19 : vector<256x128xf32>
    %21 = arith.mulf %20, %16 : vector<256x128xf32>
    %cst_11 = arith.constant 1.42141378 : f32
    %22 = vector.broadcast %cst_11 : f32 to vector<256x128xf32>
    %23 = arith.addf %21, %22 : vector<256x128xf32>
    %24 = arith.mulf %23, %16 : vector<256x128xf32>
    %cst_12 = arith.constant -0.284496725 : f32
    %25 = vector.broadcast %cst_12 : f32 to vector<256x128xf32>
    %26 = arith.addf %24, %25 : vector<256x128xf32>
    %27 = arith.mulf %26, %16 : vector<256x128xf32>
    %cst_13 = arith.constant 0.254829586 : f32
    %28 = vector.broadcast %cst_13 : f32 to vector<256x128xf32>
    %29 = arith.addf %27, %28 : vector<256x128xf32>
    %30 = arith.mulf %29, %16 : vector<256x128xf32>
    %cst_14 = arith.constant 0.000000e+00 : f32
    %31 = vector.broadcast %cst_14 : f32 to vector<256x128xf32>
    %32 = arith.subf %31, %11 : vector<256x128xf32>
    %33 = arith.mulf %32, %11 : vector<256x128xf32>
    %34 = math.exp %33 : vector<256x128xf32>
    %35 = arith.mulf %30, %34 : vector<256x128xf32>
    %cst_15 = arith.constant 1.000000e+00 : f32
    %36 = vector.broadcast %cst_15 : f32 to vector<256x128xf32>
    %37 = arith.subf %36, %35 : vector<256x128xf32>
    %cst_16 = arith.constant 0.000000e+00 : f32
    %38 = vector.broadcast %cst_16 : f32 to vector<256x128xf32>
    %39 = arith.cmpf oge, %10, %38 : vector<256x128xf32>
    %cst_17 = arith.constant 0.000000e+00 : f32
    %40 = vector.broadcast %cst_17 : f32 to vector<256x128xf32>
    %41 = arith.subf %40, %37 : vector<256x128xf32>
    %42 = arith.select %39, %37, %41 : vector<256x128xi1>, vector<256x128xf32>
    %cst_18 = arith.constant 1.000000e+00 : f32
    %43 = vector.broadcast %cst_18 : f32 to vector<256x128xf32>
    %44 = arith.addf %43, %42 : vector<256x128xf32>
    %45 = arith.mulf %8, %44 : vector<256x128xf32>
    %c0_19 = arith.constant 0 : index
    %c0_20 = arith.constant 0 : index
    %46 = vector.load %arg4[%c0_19, %c0_20] : memref<1x128xf32, #tpu.memory_space<vmem>>, vector<1x128xf32>
    %47 = vector.broadcast %46 : vector<1x128xf32> to vector<256x128xf32>
    %48 = arith.mulf %45, %47 : vector<256x128xf32>
    %cst_21 = arith.constant dense<0.000000e+00> : vector<256xf32>
    %49 = vector.multi_reduction <add>, %48, %cst_21 [1] : vector<256x128xf32> to vector<256xf32>
    %50 = vector.shape_cast %49 : vector<256xf32> to vector<256x1xf32>
    %c0_22 = arith.constant 0 : index
    %c0_23 = arith.constant 0 : index
    %51 = vector.load %arg5[%c0_22, %c0_23] : memref<1x1xf32, #tpu.memory_space<vmem>>, vector<1x1xf32>
    %52 = vector.broadcast %51 : vector<1x1xf32> to vector<256x1xf32>
    %53 = arith.addf %50, %52 : vector<256x1xf32>
    %c0_24 = arith.constant 0 : index
    %c0_25 = arith.constant 0 : index
    %54 = vector.load %arg6[%c0_24, %c0_25] : memref<256x1xf32, #tpu.memory_space<vmem>>, vector<256x1xf32>
    tpu.vector_store %arg6[%c0_24, %c0_25], %53 {strides = array<i32>} : memref<256x1xf32, #tpu.memory_space<vmem>>, vector<256x1xf32>,
    return
  }
  func.func @transform_0(%arg0: i32) -> (i32, i32) {
    %c0_i32 = arith.constant 0 : i32
    %c0_i32_0 = arith.constant 0 : i32
    return %arg0, %c0_i32 : i32, i32
  }
  func.func @transform_1(%arg0: i32) -> (i32, i32) {
    %c0_i32 = arith.constant 0 : i32
    %c0_i32_0 = arith.constant 0 : i32
    %c0_i32_1 = arith.constant 0 : i32
    return %c0_i32, %c0_i32_0 : i32, i32
  }
  func.func @transform_2(%arg0: i32) -> (i32, i32) {
    %c0_i32 = arith.constant 0 : i32
    %c0_i32_0 = arith.constant 0 : i32
    %c0_i32_1 = arith.constant 0 : i32
    return %c0_i32, %c0_i32_0 : i32, i32
  }
  func.func @transform_3(%arg0: i32) -> (i32, i32) {
    %c0_i32 = arith.constant 0 : i32
    %c0_i32_0 = arith.constant 0 : i32
    %c0_i32_1 = arith.constant 0 : i32
    return %c0_i32, %c0_i32_0 : i32, i32
  }
  func.func @transform_4(%arg0: i32) -> (i32, i32) {
    %c0_i32 = arith.constant 0 : i32
    %c0_i32_0 = arith.constant 0 : i32
    %c0_i32_1 = arith.constant 0 : i32
    return %c0_i32, %c0_i32_0 : i32, i32
  }
  func.func @transform_5(%arg0: i32) -> (i32, i32) {
    %c0_i32 = arith.constant 0 : i32
    %c0_i32_0 = arith.constant 0 : i32
    return %arg0, %c0_i32 : i32, i32
  }
}

</mosaic_0001>

<llo_original>
// kernel: fno3d_forward.6
$region0: #{fno3d_forward.6}
  #allocation0 [shape = 'u32[]', space=smem, size = 0x4, offset = 0x4, fixed_abs, tag = 'smem constant byte address 0x4 - core index']
  #allocation1 [shape = 'u32[144,128]{1,0:T(1,128)}', space=vmem, size = 0x12000, scoped, tag = 'internal scratch']
  %s0 = inlined_call_operand.vmem [shape: f32[1024,4], index: 0, kind: input, shape index: {}]
  %s1 = inlined_call_operand.hbm [shape: f32[4,32], index: 1, kind: input, shape index: {}]
  %s2 = inlined_call_operand.hbm [shape: f32[1,32], index: 2, kind: input, shape index: {}]
  %s3 = inlined_call_operand.vmem [shape: bf16[1024,32], index: 3, kind: output, shape index: {}]
  %s4 = sld [smem:[#allocation0]]
  $region53: #{fno3d_forward.6} parent=0
    _
  %s6 = ssub.s32 1, %s4
  %s7 = scalar_select 0, %s6, %s4
  $region1: #{fno3d_forward.6} parent=0
    #allocation2 [shape = 'u8[2048]{0}', space=vmem, size = 0x800, scoped, tag = 'input window, operand 1, single buffered']
    #allocation3 [shape = 's32[2]{0}', space=sflag, size = 0x8, scoped, tag = 'scoped memory for fno3d_forward.6']
    #allocation4 [shape = 'u8[512]{0}', space=vmem, size = 0x400, scoped, tag = 'input window, operand 2, single buffered']
    #allocation5 [shape = 's32[1]{0}', space=sflag, size = 0x4, scoped, tag = 'scoped memory for fno3d_forward.6']
    %8 = vsyncpa [#allocation3], 0
    %9 = vsyncpa [#allocation5], 0
    loop: start=0, step=1, limit=6
    $region2: #{fno3d_forward.6} parent=1 // loop_pre_header
      _
    $region3: #{fno3d_forward.6} parent=1 // loop_header
      %s11 = sphi 0, %s15
      %p12 = scmp.ge.s32.totalorder %s11, 6
      %s21 = sphi 0, %s23
      %s24 = sphi 0, %s21
      %s25 = sphi 0, %s24
      %s41 = sphi 0, %s25
      %s45 = sphi 0, %s45
      %s47 = sphi 0, %s45
      %s48 = sphi 0, %s47
      %s62 = sphi 0, %s48
      %s66 = sphi 0, %s66
      %s68 = sphi 0, %s66
      %s69 = sphi 0, %s68
      %s83 = sphi 0, %s69
      %s89 = sphi 0, %s91
      %s92 = sphi 0, %s89
      %s93 = sphi 0, %s92
      %s109 = sphi 0, %s93
    $region4: #{fno3d_forward.6} parent=1 // loop_header_branch
      %14 = sbr.rel (%p12) target = $region8
    $region5: #{fno3d_forward.6} parent=1 // loop_body
      %s16 = ssub.s32 %s11, 1
      %s17 = ssub.s32 %s11, 2
      %s18 = sadd.s32 %s11, 1
      %s19 = ssub.s32 %s11, %s18
      %p20 = scmp.eq.s32.totalorder %s19, 0
      %s22 = sadd.s32 %s21, 1
      %s23 = scalar_select %p20, %s21, %s22
      %p26 = pneg %p20
      %p27 = scmp.eq.s32.totalorder %s11, 3
      %p28 = por %p26, %p27
      %p29 = scmp.ne.s32.totalorder %s21, %s24
      %p30 = scmp.eq.s32.totalorder %s11, 0
      %p31 = por %p29, %p30
      %p32 = scmp.ne.s32.totalorder %s21, %s24
      %p33 = scmp.eq.s32.totalorder %s16, 3
      %p34 = por %p32, %p33
      %p35 = scmp.ne.s32.totalorder %s24, %s25
      %p36 = scmp.eq.s32.totalorder %s16, 0
      %p37 = por %p35, %p36
      %p38 = scmp.ne.s32.totalorder %s24, %s25
      %p39 = scmp.eq.s32.totalorder %s17, 3
      %p40 = por %p38, %p39
      %p42 = scmp.ne.s32.totalorder %s25, %s41
      %p43 = scmp.eq.s32.totalorder %s17, 0
      %p44 = por %p42, %p43
      %s46 = sadd.s32 %s45, 1
      %p49 = scmp.eq.s32.totalorder %s11, 3
      %p50 = scmp.ne.s32.totalorder %s45, %s47
      %p51 = scmp.eq.s32.totalorder %s11, 0
      %p52 = por %p50, %p51
      %p53 = scmp.ne.s32.totalorder %s45, %s47
      %p54 = scmp.eq.s32.totalorder %s16, 3
      %p55 = por %p53, %p54
      %p56 = scmp.ne.s32.totalorder %s47, %s48
      %p57 = scmp.eq.s32.totalorder %s16, 0
      %p58 = por %p56, %p57
      %p59 = scmp.ne.s32.totalorder %s47, %s48
      %p60 = scmp.eq.s32.totalorder %s17, 3
      %p61 = por %p59, %p60
      %p63 = scmp.ne.s32.totalorder %s48, %s62
      %p64 = scmp.eq.s32.totalorder %s17, 0
      %p65 = por %p63, %p64
      %s67 = sadd.s32 %s66, 1
      %p70 = scmp.eq.s32.totalorder %s11, 3
      %p71 = scmp.ne.s32.totalorder %s66, %s68
      %p72 = scmp.eq.s32.totalorder %s11, 0
      %p73 = por %p71, %p72
      %p74 = scmp.ne.s32.totalorder %s66, %s68
      %p75 = scmp.eq.s32.totalorder %s16, 3
      %p76 = por %p74, %p75
      %p77 = scmp.ne.s32.totalorder %s68, %s69
      %p78 = scmp.eq.s32.totalorder %s16, 0
      %p79 = por %p77, %p78
      %p80 = scmp.ne.s32.totalorder %s68, %s69
      %p81 = scmp.eq.s32.totalorder %s17, 3
      %p82 = por %p80, %p81
      %p84 = scmp.ne.s32.totalorder %s69, %s83
      %p85 = scmp.eq.s32.totalorder %s17, 0
      %p86 = por %p84, %p85
      %s87 = ssub.s32 %s11, %s18
      %p88 = scmp.eq.s32.totalorder %s87, 0
      %s90 = sadd.s32 %s89, 1
      %s91 = scalar_select %p88, %s89, %s90
      %p94 = pneg %p88
      %p95 = scmp.eq.s32.totalorder %s11, 3
      %p96 = por %p94, %p95
      %p97 = scmp.ne.s32.totalorder %s89, %s92
      %p98 = scmp.eq.s32.totalorder %s11, 0
      %p99 = por %p97, %p98
      %p100 = scmp.ne.s32.totalorder %s89, %s92
      %p101 = scmp.eq.s32.totalorder %s16, 3
      %p102 = por %p100, %p101
      %p103 = scmp.ne.s32.totalorder %s92, %s93
      %p104 = scmp.eq.s32.totalorder %s16, 0
      %p105 = por %p103, %p104
      %p106 = scmp.ne.s32.totalorder %s92, %s93
      %p107 = scmp.eq.s32.totalorder %s17, 3
      %p108 = por %p106, %p107
      %p110 = scmp.ne.s32.totalorder %s93, %s109
      %p111 = scmp.eq.s32.totalorder %s17, 0
      %p112 = por %p110, %p111
      %p113 = scmp.le.s32.totalorder 1, %s11
      %p114 = scmp.lt.s32.totalorder %s11, 5
      %p115 = pnand %p113, %p114
      %p116 = pneg %p115
      // Predicated region
      $region9: #{fno3d_forward.6} parent=5 // pred_check
        _
      $region10: #{fno3d_forward.6} parent=5 // pred_check_branch
        %118 = sbr.rel (%p115) target = $region12
      $region11: #{fno3d_forward.6} parent=5 // pred_region
        %s119 = ssub.s32 %s11, 1
        // Predicated region
        $region13: #{fno3d_forward.6} parent=11 // pred_check
          %p120 = pneg %p58
        $region14: #{fno3d_forward.6} parent=11 // pred_check_branch
          %122 = sbr.rel (%p120) target = $region16
        $region15: #{fno3d_forward.6} parent=11 // pred_region
          %s124 = ssub.s32 64, 64
          %125 = vsyncadd [#allocation3], %s124
          %s127 = sshll.u32 [#allocation2], 4
          %s128 = int_to_ptr.vmem [resolvable:$true] %s127
          %130 = dma.hbm_to_vmem [thread:$0]  %s1, 64, %s128, [#allocation3]
        $region16: #{fno3d_forward.6} parent=11 // pred_fallthru
          _
        // Predicated region
        $region17: #{fno3d_forward.6} parent=11 // pred_check
          %p131 = pneg %p79
        $region18: #{fno3d_forward.6} parent=11 // pred_check_branch
          %133 = sbr.rel (%p131) target = $region20
        $region19: #{fno3d_forward.6} parent=11 // pred_region
          %s135 = ssub.s32 16, 16
          %136 = vsyncadd [#allocation5], %s135
          %s138 = sshll.u32 [#allocation4], 4
          %s139 = int_to_ptr.vmem [resolvable:$true] %s138
          %141 = dma.hbm_to_vmem [thread:$0]  %s2, 16, %s139, [#allocation5]
        $region20: #{fno3d_forward.6} parent=11 // pred_fallthru
          _
      $region12: #{fno3d_forward.6} parent=5 // pred_fallthru
        _
      %p142 = scmp.lt.s32.totalorder %s11, 4
      // Predicated region
      $region21: #{fno3d_forward.6} parent=5 // pred_check
        %p143 = pneg %p142
      $region22: #{fno3d_forward.6} parent=5 // pred_check_branch
        %145 = sbr.rel (%p143) target = $region24
      $region23: #{fno3d_forward.6} parent=5 // pred_region
        // Predicated region
        $region25: #{fno3d_forward.6} parent=23 // pred_check
          %p146 = pneg %p31
        $region26: #{fno3d_forward.6} parent=23 // pred_check_branch
          %148 = sbr.rel (%p146) target = $region28
        $region27: #{fno3d_forward.6} parent=23 // pred_region
          %s149 = smul.u32 32, %s11
          %p150 = scmp.lt.s32.totalorder %s149, 127
          %s151 = scalar_select %p150, %s149, 127
          %s152 = smul.addr %s151, 8
          %s153 = scalar_lea.vmem %s0, %s152
          %s154 = smul.u32 32, %s11
        $region28: #{fno3d_forward.6} parent=23 // pred_fallthru
          _
      $region24: #{fno3d_forward.6} parent=5 // pred_fallthru
        _
      %p155 = scmp.le.s32.totalorder 1, %s11
      %p156 = scmp.lt.s32.totalorder %s11, 5
      %p157 = pnand %p155, %p156
      %p158 = pneg %p157
      // Predicated region
      $region29: #{fno3d_forward.6} parent=5 // pred_check
        _
      $region30: #{fno3d_forward.6} parent=5 // pred_check_branch
        %160 = sbr.rel (%p157) target = $region32
      $region31: #{fno3d_forward.6} parent=5 // pred_region
        %s161 = ssub.s32 %s11, 1
        // Predicated region
        $region33: #{fno3d_forward.6} parent=31 // pred_check
          %p162 = pneg %p58
        $region34: #{fno3d_forward.6} parent=31 // pred_check_branch
          %164 = sbr.rel (%p162) target = $region36
        $region35: #{fno3d_forward.6} parent=31 // pred_region
          %165 = dma.done [#allocation3], 64
        $region36: #{fno3d_forward.6} parent=31 // pred_fallthru
          _
        // Predicated region
        $region37: #{fno3d_forward.6} parent=31 // pred_check
          %p166 = pneg %p79
        $region38: #{fno3d_forward.6} parent=31 // pred_check_branch
          %168 = sbr.rel (%p166) target = $region40
        $region39: #{fno3d_forward.6} parent=31 // pred_region
          %169 = dma.done [#allocation5], 16
        $region40: #{fno3d_forward.6} parent=31 // pred_fallthru
          _
        %s170 = smul.u32 32, %s16
        %p171 = scmp.lt.s32.totalorder %s170, 127
        %s172 = scalar_select %p171, %s170, 127
        %s173 = smul.addr %s172, 8
        %s174 = scalar_lea.vmem %s0, %s173
        %p175 = pneg %p37
        %p176 = pneg %p34
        %p177 = pneg %p58
        %p178 = pneg %p55
        %p179 = pneg %p79
        %p180 = pneg %p76
        %p181 = pneg %p105
        %p182 = pneg %p102
        %s183 = smul.u32 32, %s16
        %p184 = scmp.lt.s32.totalorder %s183, 127
        %s185 = scalar_select %p184, %s183, 127
        %s186 = smul.addr %s185, 4
        %s187 = scalar_lea.vmem %s3, %s186
        %s188 = smul.u32 32, %s16
        %p189 = scmp.lt.s32.totalorder %s188, 127
        %s190 = scalar_select %p189, %s188, 127
        %s191 = smul.addr %s190, 8
        %s192 = scalar_lea.vmem %s0, %s191
        %s193 = smul.u32 32, %s16
        %s194 = smul.u32 32, %s16
        %p195 = scmp.lt.s32.totalorder %s194, 127
        %s196 = scalar_select %p195, %s194, 127
        %s197 = smul.addr %s196, 4
        %s198 = scalar_lea.vmem %s3, %s197
        %s199 = smul.u32 32, %s16
        %v200 = vld [vmem:[%s192] sm:$0xff]
        %v201 = vld [vmem:[%s192 + $0x8] sm:$0xff]
        %v202 = vld [vmem:[%s192 + $0x10] sm:$0xff]
        %v203 = vld [vmem:[%s192 + $0x18] sm:$0xff]
        %v204 = vld [vmem:[%s192 + $0x20] sm:$0xff]
        %v205 = vld [vmem:[%s192 + $0x28] sm:$0xff]
        %v206 = vld [vmem:[%s192 + $0x30] sm:$0xff]
        %v207 = vld [vmem:[%s192 + $0x38] sm:$0xff]
        %v208 = vld [vmem:[%s192 + $0x40] sm:$0xff]
        %v209 = vld [vmem:[%s192 + $0x48] sm:$0xff]
        %v210 = vld [vmem:[%s192 + $0x50] sm:$0xff]
        %v211 = vld [vmem:[%s192 + $0x58] sm:$0xff]
        %v212 = vld [vmem:[%s192 + $0x60] sm:$0xff]
        %v213 = vld [vmem:[%s192 + $0x68] sm:$0xff]
        %v214 = vld [vmem:[%s192 + $0x70] sm:$0xff]
        %v215 = vld [vmem:[%s192 + $0x78] sm:$0xff]
        %v216 = vld [vmem:[%s192 + $0x80] sm:$0xff]
        %v217 = vld [vmem:[%s192 + $0x88] sm:$0xff]
        %v218 = vld [vmem:[%s192 + $0x90] sm:$0xff]
        %v219 = vld [vmem:[%s192 + $0x98] sm:$0xff]
        %v220 = vld [vmem:[%s192 + $0xa0] sm:$0xff]
        %v221 = vld [vmem:[%s192 + $0xa8] sm:$0xff]
        %v222 = vld [vmem:[%s192 + $0xb0] sm:$0xff]
        %v223 = vld [vmem:[%s192 + $0xb8] sm:$0xff]
        %v224 = vld [vmem:[%s192 + $0xc0] sm:$0xff]
        %v225 = vld [vmem:[%s192 + $0xc8] sm:$0xff]
        %v226 = vld [vmem:[%s192 + $0xd0] sm:$0xff]
        %v227 = vld [vmem:[%s192 + $0xd8] sm:$0xff]
        %v228 = vld [vmem:[%s192 + $0xe0] sm:$0xff]
        %v229 = vld [vmem:[%s192 + $0xe8] sm:$0xff]
        %v230 = vld [vmem:[%s192 + $0xf0] sm:$0xff]
        %v231 = vld [vmem:[%s192 + $0xf8] sm:$0xff]
        %v232 = vld [vmem:[#allocation2] sm:$0xf]
        %v233 = vld [vmem:[#allocation4] sm:$0x1]
        %v235 = vlaneseq
        %v236 = vshrl.u32 %v235, 7
        %v237 = vsub.s32 0, %v236
        %v238 = vrot.slane %v233, %v237
        %vm240 = vcmask 31744
        %v242 = vsel %vm240, %v200, 0
        %v245 = vsel %vm240, %v201, 0
        %v248 = vsel %vm240, %v202, 0
        %v251 = vsel %vm240, %v203, 0
        %v254 = vsel %vm240, %v204, 0
        %v257 = vsel %vm240, %v205, 0
        %v260 = vsel %vm240, %v206, 0
        %v263 = vsel %vm240, %v207, 0
        %v266 = vsel %vm240, %v208, 0
        %v269 = vsel %vm240, %v209, 0
        %v272 = vsel %vm240, %v210, 0
        %v275 = vsel %vm240, %v211, 0
        %v278 = vsel %vm240, %v212, 0
        %v281 = vsel %vm240, %v213, 0
        %v284 = vsel %vm240, %v214, 0
        %v287 = vsel %vm240, %v215, 0
        %v290 = vsel %vm240, %v216, 0
        %v293 = vsel %vm240, %v217, 0
        %v296 = vsel %vm240, %v218, 0
        %v299 = vsel %vm240, %v219, 0
        %v302 = vsel %vm240, %v220, 0
        %v305 = vsel %vm240, %v221, 0
        %v308 = vsel %vm240, %v222, 0
        %v311 = vsel %vm240, %v223, 0
        %v314 = vsel %vm240, %v224, 0
        %v317 = vsel %vm240, %v225, 0
        %v320 = vsel %vm240, %v226, 0
        %v323 = vsel %vm240, %v227, 0
        %v326 = vsel %vm240, %v228, 0
        %v329 = vsel %vm240, %v229, 0
        %v332 = vsel %vm240, %v230, 0
        %v335 = vsel %vm240, %v231, 0
        %vm337 = vcmask 1043456
        %v339 = vsel %vm337, %v232, 0
        %341 = vmatprep.subr.mxu0 0.0
        %342 = vmatpush1.msra.mxu0 0.0
        %343 = vmatprep.subr.mxu0 0.0
        %344 = vmatpush1.msra.mxu0 0.0
        %345 = vmatprep.subr.mxu0 0.0
        %346 = vmatpush1.msra.mxu0 0.0
        %347 = vmatprep.subr.mxu0 0.0
        %348 = vmatpush1.msra.mxu0 0.0
        %349 = vmatprep.subr.mxu0 0.0
        %350 = vmatpush1.msra.mxu0 0.0
        %351 = vmatprep.subr.mxu0 0.0
        %352 = vmatpush1.msra.mxu0 0.0
        %353 = vmatprep.subr.mxu0 0.0
        %354 = vmatpush1.msra.mxu0 0.0
        %355 = vmatprep.subr.mxu0 0.0
        %356 = vmatpush1.msra.mxu0 0.0
        %357 = vmatprep.subr.mxu0 0.0
        %358 = vmatpush1.msra.mxu0 0.0
        %359 = vmatprep.subr.mxu0 0.0
        %360 = vmatpush1.msra.mxu0 0.0
        %361 = vmatprep.subr.mxu0 0.0
        %362 = vmatpush1.msra.mxu0 0.0
        %363 = vmatprep.subr.mxu0 0.0
        %364 = vmatpush1.msra.mxu0 0.0
        %365 = vmatprep.subr.mxu0 0.0
        %366 = vmatpush1.msra.mxu0 0.0
        %367 = vmatprep.subr.mxu0 0.0
        %368 = vmatpush1.msra.mxu0 0.0
        %369 = vmatprep.subr.mxu0 0.0
        %370 = vmatpush1.msra.mxu0 0.0
        %371 = vmatprep.subr.mxu0 0.0
        %372 = vmatpush1.msra.mxu0 %v339
        %373 = vmatprep.subr.mxu0 0.0
        %374 = vmatpush2.msra.mxu0 0.0
        %375 = vmatprep.subr.mxu0 0.0
        %376 = vmatpush2.msra.mxu0 0.0
        %377 = vmatprep.subr.mxu0 0.0
        %378 = vmatpush2.msra.mxu0 0.0
        %379 = vmatprep.subr.mxu0 0.0
        %380 = vmatpush2.msra.mxu0 0.0
        %381 = vmatprep.subr.mxu0 0.0
        %382 = vmatpush2.msra.mxu0 0.0
        %383 = vmatprep.subr.mxu0 0.0
        %384 = vmatpush2.msra.mxu0 0.0
        %385 = vmatprep.subr.mxu0 0.0
        %386 = vmatpush2.msra.mxu0 0.0
        %387 = vmatprep.subr.mxu0 0.0
        %388 = vmatpush2.msra.mxu0 0.0
        %389 = vmatprep.subr.mxu0 0.0
        %390 = vmatpush2.msra.mxu0 0.0
        %391 = vmatprep.subr.mxu0 0.0
        %392 = vmatpush2.msra.mxu0 0.0
        %393 = vmatprep.subr.mxu0 0.0
        %394 = vmatpush2.msra.mxu0 0.0
        %395 = vmatprep.subr.mxu0 0.0
        %396 = vmatpush2.msra.mxu0 0.0
        %397 = vmatprep.subr.mxu0 0.0
        %398 = vmatpush2.msra.mxu0 0.0
        %399 = vmatprep.subr.mxu0 0.0
        %400 = vmatpush2.msra.mxu0 0.0
        %401 = vmatprep.subr.mxu0 0.0
        %402 = vmatpush2.msra.mxu0 0.0
        %403 = vmatprep.subr.mxu0 0.0
        %404 = vmatpush2.msra.mxu0 0.0
        %405 = vmatprep.mubr.f32.mxu0 0.0
        %406 = vmatmul.mubr.f32.gmra.mxu0 %v242
        %v407 = vpop.f32.mrf.mxu0
        %v408 = vadd.f32 %v238, %v407
        %v409 = vpop.f32.mrf.mxu0
        %410 = vmatprep.mubr.f32.mxu0 0.0
        %411 = vmatmul.mubr.f32.gmra.mxu0 %v245
        %v412 = vpop.f32.mrf.mxu0
        %v413 = vadd.f32 %v238, %v412
        %v414 = vpop.f32.mrf.mxu0
        %415 = vmatprep.mubr.f32.mxu0 0.0
        %416 = vmatmul.mubr.f32.gmra.mxu0 %v248
        %v417 = vpop.f32.mrf.mxu0
        %v418 = vadd.f32 %v238, %v417
        %v419 = vpop.f32.mrf.mxu0
        %420 = vmatprep.mubr.f32.mxu0 0.0
        %421 = vmatmul.mubr.f32.gmra.mxu0 %v251
        %v422 = vpop.f32.mrf.mxu0
        %v423 = vadd.f32 %v238, %v422
        %v424 = vpop.f32.mrf.mxu0
        %425 = vmatprep.mubr.f32.mxu0 0.0
        %426 = vmatmul.mubr.f32.gmra.mxu0 %v254
        %v427 = vpop.f32.mrf.mxu0
        %v428 = vadd.f32 %v238, %v427
        %v429 = vpop.f32.mrf.mxu0
        %430 = vmatprep.mubr.f32.mxu0 0.0
        %431 = vmatmul.mubr.f32.gmra.mxu0 %v257
        %v432 = vpop.f32.mrf.mxu0
        %v433 = vadd.f32 %v238, %v432
        %v434 = vpop.f32.mrf.mxu0
        %435 = vmatprep.mubr.f32.mxu0 0.0
        %436 = vmatmul.mubr.f32.gmra.mxu0 %v260
        %v437 = vpop.f32.mrf.mxu0
        %v438 = vadd.f32 %v238, %v437
        %v439 = vpop.f32.mrf.mxu0
        %440 = vmatprep.mubr.f32.mxu0 0.0
        %441 = vmatmul.mubr.f32.gmra.mxu0 %v263
        %v442 = vpop.f32.mrf.mxu0
        %v443 = vadd.f32 %v238, %v442
        %v444 = vpop.f32.mrf.mxu0
        %445 = vmatprep.mubr.f32.mxu0 0.0
        %446 = vmatmul.mubr.f32.gmra.mxu0 %v266
        %v447 = vpop.f32.mrf.mxu0
        %v448 = vadd.f32 %v238, %v447
        %v449 = vpop.f32.mrf.mxu0
        %450 = vmatprep.mubr.f32.mxu0 0.0
        %451 = vmatmul.mubr.f32.gmra.mxu0 %v269
        %v452 = vpop.f32.mrf.mxu0
        %v453 = vadd.f32 %v238, %v452
        %v454 = vpop.f32.mrf.mxu0
        %455 = vmatprep.mubr.f32.mxu0 0.0
        %456 = vmatmul.mubr.f32.gmra.mxu0 %v272
        %v457 = vpop.f32.mrf.mxu0
        %v458 = vadd.f32 %v238, %v457
        %v459 = vpop.f32.mrf.mxu0
        %460 = vmatprep.mubr.f32.mxu0 0.0
        %461 = vmatmul.mubr.f32.gmra.mxu0 %v275
        %v462 = vpop.f32.mrf.mxu0
        %v463 = vadd.f32 %v238, %v462
        %v464 = vpop.f32.mrf.mxu0
        %465 = vmatprep.mubr.f32.mxu0 0.0
        %466 = vmatmul.mubr.f32.gmra.mxu0 %v278
        %v467 = vpop.f32.mrf.mxu0
        %v468 = vadd.f32 %v238, %v467
        %v469 = vpop.f32.mrf.mxu0
        %470 = vmatprep.mubr.f32.mxu0 0.0
        %471 = vmatmul.mubr.f32.gmra.mxu0 %v281
        %v472 = vpop.f32.mrf.mxu0
        %v473 = vadd.f32 %v238, %v472
        %v474 = vpop.f32.mrf.mxu0
        %475 = vmatprep.mubr.f32.mxu0 0.0
        %476 = vmatmul.mubr.f32.gmra.mxu0 %v284
        %v477 = vpop.f32.mrf.mxu0
        %v478 = vadd.f32 %v238, %v477
        %v479 = vpop.f32.mrf.mxu0
        %480 = vmatprep.mubr.f32.mxu0 0.0
        %481 = vmatmul.mubr.f32.gmra.mxu0 %v287
        %v482 = vpop.f32.mrf.mxu0
        %v483 = vadd.f32 %v238, %v482
        %v484 = vpop.f32.mrf.mxu0
        %485 = vmatprep.mubr.f32.mxu0 0.0
        %486 = vmatmul.mubr.f32.gmra.mxu0 %v290
        %v487 = vpop.f32.mrf.mxu0
        %v488 = vadd.f32 %v238, %v487
        %v489 = vpop.f32.mrf.mxu0
        %490 = vmatprep.mubr.f32.mxu0 0.0
        %491 = vmatmul.mubr.f32.gmra.mxu0 %v293
        %v492 = vpop.f32.mrf.mxu0
        %v493 = vadd.f32 %v238, %v492
        %v494 = vpop.f32.mrf.mxu0
        %495 = vmatprep.mubr.f32.mxu0 0.0
        %496 = vmatmul.mubr.f32.gmra.mxu0 %v296
        %v497 = vpop.f32.mrf.mxu0
        %v498 = vadd.f32 %v238, %v497
        %v499 = vpop.f32.mrf.mxu0
        %500 = vmatprep.mubr.f32.mxu0 0.0
        %501 = vmatmul.mubr.f32.gmra.mxu0 %v299
        %v502 = vpop.f32.mrf.mxu0
        %v503 = vadd.f32 %v238, %v502
        %v504 = vpop.f32.mrf.mxu0
        %505 = vmatprep.mubr.f32.mxu0 0.0
        %506 = vmatmul.mubr.f32.gmra.mxu0 %v302
        %v507 = vpop.f32.mrf.mxu0
        %v508 = vadd.f32 %v238, %v507
        %v509 = vpop.f32.mrf.mxu0
        %510 = vmatprep.mubr.f32.mxu0 0.0
        %511 = vmatmul.mubr.f32.gmra.mxu0 %v305
        %v512 = vpop.f32.mrf.mxu0
        %v513 = vadd.f32 %v238, %v512
        %v514 = vpop.f32.mrf.mxu0
        %515 = vmatprep.mubr.f32.mxu0 0.0
        %516 = vmatmul.mubr.f32.gmra.mxu0 %v308
        %v517 = vpop.f32.mrf.mxu0
        %v518 = vadd.f32 %v238, %v517
        %v519 = vpop.f32.mrf.mxu0
        %520 = vmatprep.mubr.f32.mxu0 0.0
        %521 = vmatmul.mubr.f32.gmra.mxu0 %v311
        %v522 = vpop.f32.mrf.mxu0
        %v523 = vadd.f32 %v238, %v522
        %v524 = vpop.f32.mrf.mxu0
        %525 = vmatprep.mubr.f32.mxu0 0.0
        %526 = vmatmul.mubr.f32.gmra.mxu0 %v314
        %v527 = vpop.f32.mrf.mxu0
        %v528 = vadd.f32 %v238, %v527
        %v529 = vpop.f32.mrf.mxu0
        %530 = vmatprep.mubr.f32.mxu0 0.0
        %531 = vmatmul.mubr.f32.gmra.mxu0 %v317
        %v532 = vpop.f32.mrf.mxu0
        %v533 = vadd.f32 %v238, %v532
        %v534 = vpop.f32.mrf.mxu0
        %535 = vmatprep.mubr.f32.mxu0 0.0
        %536 = vmatmul.mubr.f32.gmra.mxu0 %v320
        %v537 = vpop.f32.mrf.mxu0
        %v538 = vadd.f32 %v238, %v537
        %v539 = vpop.f32.mrf.mxu0
        %540 = vmatprep.mubr.f32.mxu0 0.0
        %541 = vmatmul.mubr.f32.gmra.mxu0 %v323
        %v542 = vpop.f32.mrf.mxu0
        %v543 = vadd.f32 %v238, %v542
        %v544 = vpop.f32.mrf.mxu0
        %545 = vmatprep.mubr.f32.mxu0 0.0
        %546 = vmatmul.mubr.f32.gmra.mxu0 %v326
        %v547 = vpop.f32.mrf.mxu0
        %v548 = vadd.f32 %v238, %v547
        %v549 = vpop.f32.mrf.mxu0
        %550 = vmatprep.mubr.f32.mxu0 0.0
        %551 = vmatmul.mubr.f32.gmra.mxu0 %v329
        %v552 = vpop.f32.mrf.mxu0
        %v553 = vadd.f32 %v238, %v552
        %v554 = vpop.f32.mrf.mxu0
        %555 = vmatprep.mubr.f32.mxu0 0.0
        %556 = vmatmul.mubr.f32.gmra.mxu0 %v332
        %v557 = vpop.f32.mrf.mxu0
        %v558 = vadd.f32 %v238, %v557
        %v559 = vpop.f32.mrf.mxu0
        %560 = vmatprep.mubr.f32.mxu0 0.0
        %561 = vmatmul.mubr.f32.gmra.mxu0 %v335
        %v562 = vpop.f32.mrf.mxu0
        %v563 = vadd.f32 %v238, %v562
        %v564 = vpop.f32.mrf.mxu0
        %565 = vdwg.mxu0
        %v566 = vpack.c.bf16 %v413, %v408
        %v567 = vpack.c.bf16 %v423, %v418
        %v568 = vpack.c.bf16 %v433, %v428
        %v569 = vpack.c.bf16 %v443, %v438
        %v570 = vpack.c.bf16 %v453, %v448
        %v571 = vpack.c.bf16 %v463, %v458
        %v572 = vpack.c.bf16 %v473, %v468
        %v573 = vpack.c.bf16 %v483, %v478
        %v574 = vpack.c.bf16 %v493, %v488
        %v575 = vpack.c.bf16 %v503, %v498
        %v576 = vpack.c.bf16 %v513, %v508
        %v577 = vpack.c.bf16 %v523, %v518
        %v578 = vpack.c.bf16 %v533, %v528
        %v579 = vpack.c.bf16 %v543, %v538
        %v580 = vpack.c.bf16 %v553, %v548
        %v581 = vpack.c.bf16 %v563, %v558
        %v598 = vunpack.c.l.b16 %v566
        %v599 = vunpack.c.h.b16 %v566
        %v600 = vunpack.c.l.b16 %v567
        %v601 = vunpack.c.h.b16 %v567
        %v602 = vunpack.c.l.b16 %v568
        %v603 = vunpack.c.h.b16 %v568
        %v604 = vunpack.c.l.b16 %v569
        %v605 = vunpack.c.h.b16 %v569
        %v606 = vunpack.c.l.b16 %v570
        %v607 = vunpack.c.h.b16 %v570
        %v608 = vunpack.c.l.b16 %v571
        %v609 = vunpack.c.h.b16 %v571
        %v610 = vunpack.c.l.b16 %v572
        %v611 = vunpack.c.h.b16 %v572
        %v612 = vunpack.c.l.b16 %v573
        %v613 = vunpack.c.h.b16 %v573
        %v614 = vunpack.c.l.b16 %v574
        %v615 = vunpack.c.h.b16 %v574
        %v616 = vunpack.c.l.b16 %v575
        %v617 = vunpack.c.h.b16 %v575
        %v618 = vunpack.c.l.b16 %v576
        %v619 = vunpack.c.h.b16 %v576
        %v620 = vunpack.c.l.b16 %v577
        %v621 = vunpack.c.h.b16 %v577
        %v622 = vunpack.c.l.b16 %v578
        %v623 = vunpack.c.h.b16 %v578
        %v624 = vunpack.c.l.b16 %v579
        %v625 = vunpack.c.h.b16 %v579
        %v626 = vunpack.c.l.b16 %v580
        %v627 = vunpack.c.h.b16 %v580
        %v628 = vunpack.c.l.b16 %v581
        %v629 = vunpack.c.h.b16 %v581
        %v630 = vpack.c.b16 %v598, %v598
        %v631 = vpack.c.b16 %v599, %v599
        %v632 = vpack.c.b16 %v600, %v600
        %v633 = vpack.c.b16 %v601, %v601
        %v634 = vpack.c.b16 %v602, %v602
        %v635 = vpack.c.b16 %v603, %v603
        %v636 = vpack.c.b16 %v604, %v604
        %v637 = vpack.c.b16 %v605, %v605
        %v638 = vpack.c.b16 %v606, %v606
        %v639 = vpack.c.b16 %v607, %v607
        %v640 = vpack.c.b16 %v608, %v608
        %v641 = vpack.c.b16 %v609, %v609
        %v642 = vpack.c.b16 %v610, %v610
        %v643 = vpack.c.b16 %v611, %v611
        %v644 = vpack.c.b16 %v612, %v612
        %v645 = vpack.c.b16 %v613, %v613
        %v646 = vpack.c.b16 %v614, %v614
        %v647 = vpack.c.b16 %v615, %v615
        %v648 = vpack.c.b16 %v616, %v616
        %v649 = vpack.c.b16 %v617, %v617
        %v650 = vpack.c.b16 %v618, %v618
        %v651 = vpack.c.b16 %v619, %v619
        %v652 = vpack.c.b16 %v620, %v620
        %v653 = vpack.c.b16 %v621, %v621
        %v654 = vpack.c.b16 %v622, %v622
        %v655 = vpack.c.b16 %v623, %v623
        %v656 = vpack.c.b16 %v624, %v624
        %v657 = vpack.c.b16 %v625, %v625
        %v658 = vpack.c.b16 %v626, %v626
        %v659 = vpack.c.b16 %v627, %v627
        %v660 = vpack.c.b16 %v628, %v628
        %v661 = vpack.c.b16 %v629, %v629
        %vm694 = vcmask 257024
        %695 = vst.msk [vmem:[%s198] sm:$0xf] %vm694, %v630
        %696 = vst.msk [vmem:[%s198 + $0x4] sm:$0xf] %vm694, %v631
        %697 = vst.msk [vmem:[%s198 + $0x8] sm:$0xf] %vm694, %v632
        %698 = vst.msk [vmem:[%s198 + $0xc] sm:$0xf] %vm694, %v633
        %699 = vst.msk [vmem:[%s198 + $0x10] sm:$0xf] %vm694, %v634
        %700 = vst.msk [vmem:[%s198 + $0x14] sm:$0xf] %vm694, %v635
        %701 = vst.msk [vmem:[%s198 + $0x18] sm:$0xf] %vm694, %v636
        %702 = vst.msk [vmem:[%s198 + $0x1c] sm:$0xf] %vm694, %v637
        %703 = vst.msk [vmem:[%s198 + $0x20] sm:$0xf] %vm694, %v638
        %704 = vst.msk [vmem:[%s198 + $0x24] sm:$0xf] %vm694, %v639
        %705 = vst.msk [vmem:[%s198 + $0x28] sm:$0xf] %vm694, %v640
        %706 = vst.msk [vmem:[%s198 + $0x2c] sm:$0xf] %vm694, %v641
        %707 = vst.msk [vmem:[%s198 + $0x30] sm:$0xf] %vm694, %v642
        %708 = vst.msk [vmem:[%s198 + $0x34] sm:$0xf] %vm694, %v643
        %709 = vst.msk [vmem:[%s198 + $0x38] sm:$0xf] %vm694, %v644
        %710 = vst.msk [vmem:[%s198 + $0x3c] sm:$0xf] %vm694, %v645
        %711 = vst.msk [vmem:[%s198 + $0x40] sm:$0xf] %vm694, %v646
        %712 = vst.msk [vmem:[%s198 + $0x44] sm:$0xf] %vm694, %v647
        %713 = vst.msk [vmem:[%s198 + $0x48] sm:$0xf] %vm694, %v648
        %714 = vst.msk [vmem:[%s198 + $0x4c] sm:$0xf] %vm694, %v649
        %715 = vst.msk [vmem:[%s198 + $0x50] sm:$0xf] %vm694, %v650
        %716 = vst.msk [vmem:[%s198 + $0x54] sm:$0xf] %vm694, %v651
        %717 = vst.msk [vmem:[%s198 + $0x58] sm:$0xf] %vm694, %v652
        %718 = vst.msk [vmem:[%s198 + $0x5c] sm:$0xf] %vm694, %v653
        %719 = vst.msk [vmem:[%s198 + $0x60] sm:$0xf] %vm694, %v654
        %720 = vst.msk [vmem:[%s198 + $0x64] sm:$0xf] %vm694, %v655
        %721 = vst.msk [vmem:[%s198 + $0x68] sm:$0xf] %vm694, %v656
        %722 = vst.msk [vmem:[%s198 + $0x6c] sm:$0xf] %vm694, %v657
        %723 = vst.msk [vmem:[%s198 + $0x70] sm:$0xf] %vm694, %v658
        %724 = vst.msk [vmem:[%s198 + $0x74] sm:$0xf] %vm694, %v659
        %725 = vst.msk [vmem:[%s198 + $0x78] sm:$0xf] %vm694, %v660
        %726 = vst.msk [vmem:[%s198 + $0x7c] sm:$0xf] %vm694, %v661
        %s727 = smul.u32 32, %s16
        %p728 = scmp.lt.s32.totalorder %s727, 127
        %s729 = scalar_select %p728, %s727, 127
        %s730 = smul.addr %s729, 4
        %s731 = scalar_lea.vmem %s3, %s730
        // Predicated region
        $region41: #{fno3d_forward.6} parent=31 // pred_check
          %p732 = pneg %p102
        $region42: #{fno3d_forward.6} parent=31 // pred_check_branch
          %734 = sbr.rel (%p732) target = $region44
        $region43: #{fno3d_forward.6} parent=31 // pred_region
          %s735 = smul.u32 32, %s16
        $region44: #{fno3d_forward.6} parent=31 // pred_fallthru
          _
      $region32: #{fno3d_forward.6} parent=5 // pred_fallthru
        _
      %p736 = scmp.le.s32.totalorder 2, %s11
      // Predicated region
      $region45: #{fno3d_forward.6} parent=5 // pred_check
        %p737 = pneg %p736
      $region46: #{fno3d_forward.6} parent=5 // pred_check_branch
        %739 = sbr.rel (%p737) target = $region48
      $region47: #{fno3d_forward.6} parent=5 // pred_region
        %s740 = ssub.s32 %s11, 2
        // Predicated region
        $region49: #{fno3d_forward.6} parent=47 // pred_check
          %p741 = pneg %p108
        $region50: #{fno3d_forward.6} parent=47 // pred_check_branch
          %743 = sbr.rel (%p741) target = $region52
        $region51: #{fno3d_forward.6} parent=47 // pred_region
          %s744 = smul.u32 32, %s17
          %p745 = scmp.lt.s32.totalorder %s744, 127
          %s746 = scalar_select %p745, %s744, 127
          %s747 = smul.addr %s746, 4
          %s748 = scalar_lea.vmem %s3, %s747
        $region52: #{fno3d_forward.6} parent=47 // pred_fallthru
          _
      $region48: #{fno3d_forward.6} parent=5 // pred_fallthru
        _
    $region6: #{fno3d_forward.6} parent=1 // loop_footer
      %s15 = sadd.s32 1, %s11
    $region7: #{fno3d_forward.6} parent=1 // loop_footer_branch
      %10 = sbr.rel target = $region3
    $region8: #{fno3d_forward.6} parent=1 // loop_exit
      _
    %749 = vsyncpa [#allocation3], 1
    %s750 = scalar_lea.sflag [#allocation3], 1
    %751 = vsyncpa %s750, 1
    %752 = vsyncpa [#allocation5], 1

// kernel: fno3d_forward.7
$region0: #{fno3d_forward.7}
  #allocation0 [shape = 'u32[]', space=smem, size = 0x4, offset = 0x4, fixed_abs, tag = 'smem constant byte address 0x4 - core index']
  #allocation1 [shape = 'u32[144,128]{1,0:T(1,128)}', space=vmem, size = 0x12000, scoped, tag = 'internal scratch']
  %s0 = inlined_call_operand.vmem [shape: bf16[256,4,32], index: 0, kind: input, shape index: {}]
  %s1 = inlined_call_operand.vmem [shape: bf16[256,32,64], index: 1, kind: input, shape index: {}]
  %s2 = inlined_call_operand.vmem [shape: f32[256,2,64], index: 2, kind: output, shape index: {}]
  %s3 = sld [smem:[#allocation0]]
  $region41: #{fno3d_forward.7} parent=0
    _
  %s5 = ssub.s32 1, %s3
  %s6 = scalar_select 0, %s5, %s3
  loop: start=0, step=1, limit=6
  $region2: #{fno3d_forward.7} parent=0 // loop_pre_header
    _
  $region3: #{fno3d_forward.7} parent=0 // loop_header
    %s8 = sphi 0, %s12
    %p9 = scmp.ge.s32.totalorder %s8, 6
    %s18 = sphi 0, %s20
    %s21 = sphi 0, %s18
    %s22 = sphi 0, %s21
    %s38 = sphi 0, %s22
    %s44 = sphi 0, %s46
    %s47 = sphi 0, %s44
    %s48 = sphi 0, %s47
    %s64 = sphi 0, %s48
    %s70 = sphi 0, %s72
    %s73 = sphi 0, %s70
    %s74 = sphi 0, %s73
    %s90 = sphi 0, %s74
  $region4: #{fno3d_forward.7} parent=0 // loop_header_branch
    %11 = sbr.rel (%p9) target = $region8
  $region5: #{fno3d_forward.7} parent=0 // loop_body
    %s13 = ssub.s32 %s8, 1
    %s14 = ssub.s32 %s8, 2
    %s15 = sadd.s32 %s8, 1
    %s16 = ssub.s32 %s8, %s15
    %p17 = scmp.eq.s32.totalorder %s16, 0
    %s19 = sadd.s32 %s18, 1
    %s20 = scalar_select %p17, %s18, %s19
    %p23 = pneg %p17
    %p24 = scmp.eq.s32.totalorder %s8, 3
    %p25 = por %p23, %p24
    %p26 = scmp.ne.s32.totalorder %s18, %s21
    %p27 = scmp.eq.s32.totalorder %s8, 0
    %p28 = por %p26, %p27
    %p29 = scmp.ne.s32.totalorder %s18, %s21
    %p30 = scmp.eq.s32.totalorder %s13, 3
    %p31 = por %p29, %p30
    %p32 = scmp.ne.s32.totalorder %s21, %s22
    %p33 = scmp.eq.s32.totalorder %s13, 0
    %p34 = por %p32, %p33
    %p35 = scmp.ne.s32.totalorder %s21, %s22
    %p36 = scmp.eq.s32.totalorder %s14, 3
    %p37 = por %p35, %p36
    %p39 = scmp.ne.s32.totalorder %s22, %s38
    %p40 = scmp.eq.s32.totalorder %s14, 0
    %p41 = por %p39, %p40
    %s42 = ssub.s32 %s8, %s15
    %p43 = scmp.eq.s32.totalorder %s42, 0
    %s45 = sadd.s32 %s44, 1
    %s46 = scalar_select %p43, %s44, %s45
    %p49 = pneg %p43
    %p50 = scmp.eq.s32.totalorder %s8, 3
    %p51 = por %p49, %p50
    %p52 = scmp.ne.s32.totalorder %s44, %s47
    %p53 = scmp.eq.s32.totalorder %s8, 0
    %p54 = por %p52, %p53
    %p55 = scmp.ne.s32.totalorder %s44, %s47
    %p56 = scmp.eq.s32.totalorder %s13, 3
    %p57 = por %p55, %p56
    %p58 = scmp.ne.s32.totalorder %s47, %s48
    %p59 = scmp.eq.s32.totalorder %s13, 0
    %p60 = por %p58, %p59
    %p61 = scmp.ne.s32.totalorder %s47, %s48
    %p62 = scmp.eq.s32.totalorder %s14, 3
    %p63 = por %p61, %p62
    %p65 = scmp.ne.s32.totalorder %s48, %s64
    %p66 = scmp.eq.s32.totalorder %s14, 0
    %p67 = por %p65, %p66
    %s68 = ssub.s32 %s8, %s15
    %p69 = scmp.eq.s32.totalorder %s68, 0
    %s71 = sadd.s32 %s70, 1
    %s72 = scalar_select %p69, %s70, %s71
    %p75 = pneg %p69
    %p76 = scmp.eq.s32.totalorder %s8, 3
    %p77 = por %p75, %p76
    %p78 = scmp.ne.s32.totalorder %s70, %s73
    %p79 = scmp.eq.s32.totalorder %s8, 0
    %p80 = por %p78, %p79
    %p81 = scmp.ne.s32.totalorder %s70, %s73
    %p82 = scmp.eq.s32.totalorder %s13, 3
    %p83 = por %p81, %p82
    %p84 = scmp.ne.s32.totalorder %s73, %s74
    %p85 = scmp.eq.s32.totalorder %s13, 0
    %p86 = por %p84, %p85
    %p87 = scmp.ne.s32.totalorder %s73, %s74
    %p88 = scmp.eq.s32.totalorder %s14, 3
    %p89 = por %p87, %p88
    %p91 = scmp.ne.s32.totalorder %s74, %s90
    %p92 = scmp.eq.s32.totalorder %s14, 0
    %p93 = por %p91, %p92
    %p94 = scmp.le.s32.totalorder 1, %s8
    %p95 = scmp.lt.s32.totalorder %s8, 5
    %p96 = pnand %p94, %p95
    %p97 = pneg %p96
    // Predicated region
    $region9: #{fno3d_forward.7} parent=5 // pred_check
      _
    $region10: #{fno3d_forward.7} parent=5 // pred_check_branch
      %99 = sbr.rel (%p96) target = $region12
    $region11: #{fno3d_forward.7} parent=5 // pred_region
      %s100 = ssub.s32 %s8, 1
    $region12: #{fno3d_forward.7} parent=5 // pred_fallthru
      _
    %p101 = scmp.lt.s32.totalorder %s8, 4
    // Predicated region
    $region13: #{fno3d_forward.7} parent=5 // pred_check
      %p102 = pneg %p101
    $region14: #{fno3d_forward.7} parent=5 // pred_check_branch
      %104 = sbr.rel (%p102) target = $region16
    $region15: #{fno3d_forward.7} parent=5 // pred_region
      // Predicated region
      $region17: #{fno3d_forward.7} parent=15 // pred_check
        %p105 = pneg %p28
      $region18: #{fno3d_forward.7} parent=15 // pred_check_branch
        %107 = sbr.rel (%p105) target = $region20
      $region19: #{fno3d_forward.7} parent=15 // pred_region
        %s108 = smul.u32 64, %s8
        %p109 = scmp.lt.s32.totalorder %s108, 255
        %s110 = scalar_select %p109, %s108, 255
        %s111 = smul.addr %s110, 2
        %s112 = scalar_lea.vmem %s0, %s111
        %s113 = smul.u32 64, %s8
      $region20: #{fno3d_forward.7} parent=15 // pred_fallthru
        _
      // Predicated region
      $region21: #{fno3d_forward.7} parent=15 // pred_check
        %p114 = pneg %p54
      $region22: #{fno3d_forward.7} parent=15 // pred_check_branch
        %116 = sbr.rel (%p114) target = $region24
      $region23: #{fno3d_forward.7} parent=15 // pred_region
        %s117 = smul.u32 64, %s8
        %p118 = scmp.lt.s32.totalorder %s117, 255
        %s119 = scalar_select %p118, %s117, 255
        %s120 = smul.addr %s119, 4
        %s121 = smul.addr %s120, 4
        %s122 = scalar_lea.vmem %s1, %s121
        %s123 = smul.u32 64, %s8
      $region24: #{fno3d_forward.7} parent=15 // pred_fallthru
        _
    $region16: #{fno3d_forward.7} parent=5 // pred_fallthru
      _
    %p124 = scmp.le.s32.totalorder 1, %s8
    %p125 = scmp.lt.s32.totalorder %s8, 5
    %p126 = pnand %p124, %p125
    %p127 = pneg %p126
    // Predicated region
    $region25: #{fno3d_forward.7} parent=5 // pred_check
      _
    $region26: #{fno3d_forward.7} parent=5 // pred_check_branch
      %129 = sbr.rel (%p126) target = $region28
    $region27: #{fno3d_forward.7} parent=5 // pred_region
      %s130 = ssub.s32 %s8, 1
      %s131 = smul.u32 64, %s13
      %p132 = scmp.lt.s32.totalorder %s131, 255
      %s133 = scalar_select %p132, %s131, 255
      %s134 = smul.addr %s133, 2
      %s135 = scalar_lea.vmem %s0, %s134
      %p136 = pneg %p34
      %p137 = pneg %p31
      %s138 = smul.u32 64, %s13
      %p139 = scmp.lt.s32.totalorder %s138, 255
      %s140 = scalar_select %p139, %s138, 255
      %s141 = smul.addr %s140, 4
      %s142 = smul.addr %s141, 4
      %s143 = scalar_lea.vmem %s1, %s142
      %p144 = pneg %p60
      %p145 = pneg %p57
      %p146 = pneg %p86
      %p147 = pneg %p83
      %s148 = smul.u32 64, %s13
      %p149 = scmp.lt.s32.totalorder %s148, 255
      %s150 = scalar_select %p149, %s148, 255
      %s151 = smul.addr %s150, 2
      %s152 = scalar_lea.vmem %s2, %s151
      %s153 = smul.u32 64, %s13
      %p154 = scmp.lt.s32.totalorder %s153, 255
      %s155 = scalar_select %p154, %s153, 255
      %s156 = smul.addr %s155, 2
      %s157 = scalar_lea.vmem %s0, %s156
      %s158 = smul.u32 64, %s13
      %s159 = smul.u32 64, %s13
      %p160 = scmp.lt.s32.totalorder %s159, 255
      %s161 = scalar_select %p160, %s159, 255
      %s162 = smul.addr %s161, 4
      %s163 = smul.addr %s162, 4
      %s164 = scalar_lea.vmem %s1, %s163
      %s165 = smul.u32 64, %s13
      %s166 = smul.u32 64, %s13
      %p167 = scmp.lt.s32.totalorder %s166, 255
      %s168 = scalar_select %p167, %s166, 255
      %s169 = smul.addr %s168, 2
      %s170 = scalar_lea.vmem %s2, %s169
      %s171 = smul.u32 64, %s13
      %v173 = vld [vmem:[%s157] sm:$0x3]
      %v174 = vld [vmem:[%s157 + $0x2] sm:$0x3]
      %v175 = vld [vmem:[%s157 + $0x4] sm:$0x3]
      %v176 = vld [vmem:[%s157 + $0x6] sm:$0x3]
      %v177 = vld [vmem:[%s157 + $0x8] sm:$0x3]
      %v178 = vld [vmem:[%s157 + $0xa] sm:$0x3]
      %v179 = vld [vmem:[%s157 + $0xc] sm:$0x3]
      %v180 = vld [vmem:[%s157 + $0xe] sm:$0x3]
      %v181 = vld [vmem:[%s157 + $0x10] sm:$0x3]
      %v182 = vld [vmem:[%s157 + $0x12] sm:$0x3]
      %v183 = vld [vmem:[%s157 + $0x14] sm:$0x3]
      %v184 = vld [vmem:[%s157 + $0x16] sm:$0x3]
      %v185 = vld [vmem:[%s157 + $0x18] sm:$0x3]
      %v186 = vld [vmem:[%s157 + $0x1a] sm:$0x3]
      %v187 = vld [vmem:[%s157 + $0x1c] sm:$0x3]
      %v188 = vld [vmem:[%s157 + $0x1e] sm:$0x3]
      %v189 = vld [vmem:[%s157 + $0x20] sm:$0x3]
      %v190 = vld [vmem:[%s157 + $0x22] sm:$0x3]
      %v191 = vld [vmem:[%s157 + $0x24] sm:$0x3]
      %v192 = vld [vmem:[%s157 + $0x26] sm:$0x3]
      %v193 = vld [vmem:[%s157 + $0x28] sm:$0x3]
      %v194 = vld [vmem:[%s157 + $0x2a] sm:$0x3]
      %v195 = vld [vmem:[%s157 + $0x2c] sm:$0x3]
      %v196 = vld [vmem:[%s157 + $0x2e] sm:$0x3]
      %v197 = vld [vmem:[%s157 + $0x30] sm:$0x3]
      %v198 = vld [vmem:[%s157 + $0x32] sm:$0x3]
      %v199 = vld [vmem:[%s157 + $0x34] sm:$0x3]
      %v200 = vld [vmem:[%s157 + $0x36] sm:$0x3]
      %v201 = vld [vmem:[%s157 + $0x38] sm:$0x3]
      %v202 = vld [vmem:[%s157 + $0x3a] sm:$0x3]
      %v203 = vld [vmem:[%s157 + $0x3c] sm:$0x3]
      %v204 = vld [vmem:[%s157 + $0x3e] sm:$0x3]
      %v205 = vld [vmem:[%s157 + $0x40] sm:$0x3]
      %v206 = vld [vmem:[%s157 + $0x42] sm:$0x3]
      %v207 = vld [vmem:[%s157 + $0x44] sm:$0x3]
      %v208 = vld [vmem:[%s157 + $0x46] sm:$0x3]
      %v209 = vld [vmem:[%s157 + $0x48] sm:$0x3]
      %v210 = vld [vmem:[%s157 + $0x4a] sm:$0x3]
      %v211 = vld [vmem:[%s157 + $0x4c] sm:$0x3]
      %v212 = vld [vmem:[%s157 + $0x4e] sm:$0x3]
      %v213 = vld [vmem:[%s157 + $0x50] sm:$0x3]
      %v214 = vld [vmem:[%s157 + $0x52] sm:$0x3]
      %v215 = vld [vmem:[%s157 + $0x54] sm:$0x3]
      %v216 = vld [vmem:[%s157 + $0x56] sm:$0x3]
      %v217 = vld [vmem:[%s157 + $0x58] sm:$0x3]
      %v218 = vld [vmem:[%s157 + $0x5a] sm:$0x3]
      %v219 = vld [vmem:[%s157 + $0x5c] sm:$0x3]
      %v220 = vld [vmem:[%s157 + $0x5e] sm:$0x3]
      %v221 = vld [vmem:[%s157 + $0x60] sm:$0x3]
      %v222 = vld [vmem:[%s157 + $0x62] sm:$0x3]
      %v223 = vld [vmem:[%s157 + $0x64] sm:$0x3]
      %v224 = vld [vmem:[%s157 + $0x66] sm:$0x3]
      %v225 = vld [vmem:[%s157 + $0x68] sm:$0x3]
      %v226 = vld [vmem:[%s157 + $0x6a] sm:$0x3]
      %v227 = vld [vmem:[%s157 + $0x6c] sm:$0x3]
      %v228 = vld [vmem:[%s157 + $0x6e] sm:$0x3]
      %v229 = vld [vmem:[%s157 + $0x70] sm:$0x3]
      %v230 = vld [vmem:[%s157 + $0x72] sm:$0x3]
      %v231 = vld [vmem:[%s157 + $0x74] sm:$0x3]
      %v232 = vld [vmem:[%s157 + $0x76] sm:$0x3]
      %v233 = vld [vmem:[%s157 + $0x78] sm:$0x3]
      %v234 = vld [vmem:[%s157 + $0x7a] sm:$0x3]
      %v235 = vld [vmem:[%s157 + $0x7c] sm:$0x3]
      %v236 = vld [vmem:[%s157 + $0x7e] sm:$0x3]
      %v237 = vld [vmem:[%s164] sm:$0xf]
      %v238 = vld [vmem:[%s164 + $0x4] sm:$0xf]
      %v239 = vld [vmem:[%s164 + $0x8] sm:$0xf]
      %v240 = vld [vmem:[%s164 + $0xc] sm:$0xf]
      %v241 = vld [vmem:[%s164 + $0x10] sm:$0xf]
      %v242 = vld [vmem:[%s164 + $0x14] sm:$0xf]
      %v243 = vld [vmem:[%s164 + $0x18] sm:$0xf]
      %v244 = vld [vmem:[%s164 + $0x1c] sm:$0xf]
      %v245 = vld [vmem:[%s164 + $0x20] sm:$0xf]
      %v246 = vld [vmem:[%s164 + $0x24] sm:$0xf]
      %v247 = vld [vmem:[%s164 + $0x28] sm:$0xf]
      %v248 = vld [vmem:[%s164 + $0x2c] sm:$0xf]
      %v249 = vld [vmem:[%s164 + $0x30] sm:$0xf]
      %v250 = vld [vmem:[%s164 + $0x34] sm:$0xf]
      %v251 = vld [vmem:[%s164 + $0x38] sm:$0xf]
      %v252 = vld [vmem:[%s164 + $0x3c] sm:$0xf]
      %v253 = vld [vmem:[%s164 + $0x40] sm:$0xf]
      %v254 = vld [vmem:[%s164 + $0x44] sm:$0xf]
      %v255 = vld [vmem:[%s164 + $0x48] sm:$0xf]
      %v256 = vld [vmem:[%s164 + $0x4c] sm:$0xf]
      %v257 = vld [vmem:[%s164 + $0x50] sm:$0xf]
      %v258 = vld [vmem:[%s164 + $0x54] sm:$0xf]
      %v259 = vld [vmem:[%s164 + $0x58] sm:$0xf]
      %v260 = vld [vmem:[%s164 + $0x5c] sm:$0xf]
      %v261 = vld [vmem:[%s164 + $0x60] sm:$0xf]
      %v262 = vld [vmem:[%s164 + $0x64] sm:$0xf]
      %v263 = vld [vmem:[%s164 + $0x68] sm:$0xf]
      %v264 = vld [vmem:[%s164 + $0x6c] sm:$0xf]
      %v265 = vld [vmem:[%s164 + $0x70] sm:$0xf]
      %v266 = vld [vmem:[%s164 + $0x74] sm:$0xf]
      %v267 = vld [vmem:[%s164 + $0x78] sm:$0xf]
      %v268 = vld [vmem:[%s164 + $0x7c] sm:$0xf]
      %v269 = vld [vmem:[%s164 + $0x80] sm:$0xf]
      %v270 = vld [vmem:[%s164 + $0x84] sm:$0xf]
      %v271 = vld [vmem:[%s164 + $0x88] sm:$0xf]
      %v272 = vld [vmem:[%s164 + $0x8c] sm:$0xf]
      %v273 = vld [vmem:[%s164 + $0x90] sm:$0xf]
      %v274 = vld [vmem:[%s164 + $0x94] sm:$0xf]
      %v275 = vld [vmem:[%s164 + $0x98] sm:$0xf]
      %v276 = vld [vmem:[%s164 + $0x9c] sm:$0xf]
      %v277 = vld [vmem:[%s164 + $0xa0] sm:$0xf]
      %v278 = vld [vmem:[%s164 + $0xa4] sm:$0xf]
      %v279 = vld [vmem:[%s164 + $0xa8] sm:$0xf]
      %v280 = vld [vmem:[%s164 + $0xac] sm:$0xf]
      %v281 = vld [vmem:[%s164 + $0xb0] sm:$0xf]
      %v282 = vld [vmem:[%s164 + $0xb4] sm:$0xf]
      %v283 = vld [vmem:[%s164 + $0xb8] sm:$0xf]
      %v284 = vld [vmem:[%s164 + $0xbc] sm:$0xf]
      %v285 = vld [vmem:[%s164 + $0xc0] sm:$0xf]
      %v286 = vld [vmem:[%s164 + $0xc4] sm:$0xf]
      %v287 = vld [vmem:[%s164 + $0xc8] sm:$0xf]
      %v288 = vld [vmem:[%s164 + $0xcc] sm:$0xf]
      %v289 = vld [vmem:[%s164 + $0xd0] sm:$0xf]
      %v290 = vld [vmem:[%s164 + $0xd4] sm:$0xf]
      %v291 = vld [vmem:[%s164 + $0xd8] sm:$0xf]
      %v292 = vld [vmem:[%s164 + $0xdc] sm:$0xf]
      %v293 = vld [vmem:[%s164 + $0xe0] sm:$0xf]
      %v294 = vld [vmem:[%s164 + $0xe4] sm:$0xf]
      %v295 = vld [vmem:[%s164 + $0xe8] sm:$0xf]
      %v296 = vld [vmem:[%s164 + $0xec] sm:$0xf]
      %v297 = vld [vmem:[%s164 + $0xf0] sm:$0xf]
      %v298 = vld [vmem:[%s164 + $0xf4] sm:$0xf]
      %v299 = vld [vmem:[%s164 + $0xf8] sm:$0xf]
      %v300 = vld [vmem:[%s164 + $0xfc] sm:$0xf]
      %v301 = vld [vmem:[%s164 + $0x100] sm:$0xf]
      %v302 = vld [vmem:[%s164 + $0x104] sm:$0xf]
      %v303 = vld [vmem:[%s164 + $0x108] sm:$0xf]
      %v304 = vld [vmem:[%s164 + $0x10c] sm:$0xf]
      %v305 = vld [vmem:[%s164 + $0x110] sm:$0xf]
      %v306 = vld [vmem:[%s164 + $0x114] sm:$0xf]
      %v307 = vld [vmem:[%s164 + $0x118] sm:$0xf]
      %v308 = vld [vmem:[%s164 + $0x11c] sm:$0xf]
      %v309 = vld [vmem:[%s164 + $0x120] sm:$0xf]
      %v310 = vld [vmem:[%s164 + $0x124] sm:$0xf]
      %v311 = vld [vmem:[%s164 + $0x128] sm:$0xf]
      %v312 = vld [vmem:[%s164 + $0x12c] sm:$0xf]
      %v313 = vld [vmem:[%s164 + $0x130] sm:$0xf]
      %v314 = vld [vmem:[%s164 + $0x134] sm:$0xf]
      %v315 = vld [vmem:[%s164 + $0x138] sm:$0xf]
      %v316 = vld [vmem:[%s164 + $0x13c] sm:$0xf]
      %v317 = vld [vmem:[%s164 + $0x140] sm:$0xf]
      %v318 = vld [vmem:[%s164 + $0x144] sm:$0xf]
      %v319 = vld [vmem:[%s164 + $0x148] sm:$0xf]
      %v320 = vld [vmem:[%s164 + $0x14c] sm:$0xf]
      %v321 = vld [vmem:[%s164 + $0x150] sm:$0xf]
      %v322 = vld [vmem:[%s164 + $0x154] sm:$0xf]
      %v323 = vld [vmem:[%s164 + $0x158] sm:$0xf]
      %v324 = vld [vmem:[%s164 + $0x15c] sm:$0xf]
      %v325 = vld [vmem:[%s164 + $0x160] sm:$0xf]
      %v326 = vld [vmem:[%s164 + $0x164] sm:$0xf]
      %v327 = vld [vmem:[%s164 + $0x168] sm:$0xf]
      %v328 = vld [vmem:[%s164 + $0x16c] sm:$0xf]
      %v329 = vld [vmem:[%s164 + $0x170] sm:$0xf]
      %v330 = vld [vmem:[%s164 + $0x174] sm:$0xf]
      %v331 = vld [vmem:[%s164 + $0x178] sm:$0xf]
      %v332 = vld [vmem:[%s164 + $0x17c] sm:$0xf]
      %v333 = vld [vmem:[%s164 + $0x180] sm:$0xf]
      %v334 = vld [vmem:[%s164 + $0x184] sm:$0xf]
      %v335 = vld [vmem:[%s164 + $0x188] sm:$0xf]
      %v336 = vld [vmem:[%s164 + $0x18c] sm:$0xf]
      %v337 = vld [vmem:[%s164 + $0x190] sm:$0xf]
      %v338 = vld [vmem:[%s164 + $0x194] sm:$0xf]
      %v339 = vld [vmem:[%s164 + $0x198] sm:$0xf]
      %v340 = vld [vmem:[%s164 + $0x19c] sm:$0xf]
      %v341 = vld [vmem:[%s164 + $0x1a0] sm:$0xf]
      %v342 = vld [vmem:[%s164 + $0x1a4] sm:$0xf]
      %v343 = vld [vmem:[%s164 + $0x1a8] sm:$0xf]
      %v344 = vld [vmem:[%s164 + $0x1ac] sm:$0xf]
      %v345 = vld [vmem:[%s164 + $0x1b0] sm:$0xf]
      %v346 = vld [vmem:[%s164 + $0x1b4] sm:$0xf]
      %v347 = vld [vmem:[%s164 + $0x1b8] sm:$0xf]
      %v348 = vld [vmem:[%s164 + $0x1bc] sm:$0xf]
      %v349 = vld [vmem:[%s164 + $0x1c0] sm:$0xf]
      %v350 = vld [vmem:[%s164 + $0x1c4] sm:$0xf]
      %v351 = vld [vmem:[%s164 + $0x1c8] sm:$0xf]
      %v352 = vld [vmem:[%s164 + $0x1cc] sm:$0xf]
      %v353 = vld [vmem:[%s164 + $0x1d0] sm:$0xf]
      %v354 = vld [vmem:[%s164 + $0x1d4] sm:$0xf]
      %v355 = vld [vmem:[%s164 + $0x1d8] sm:$0xf]
      %v356 = vld [vmem:[%s164 + $0x1dc] sm:$0xf]
      %v357 = vld [vmem:[%s164 + $0x1e0] sm:$0xf]
      %v358 = vld [vmem:[%s164 + $0x1e4] sm:$0xf]
      %v359 = vld [vmem:[%s164 + $0x1e8] sm:$0xf]
      %v360 = vld [vmem:[%s164 + $0x1ec] sm:$0xf]
      %v361 = vld [vmem:[%s164 + $0x1f0] sm:$0xf]
      %v362 = vld [vmem:[%s164 + $0x1f4] sm:$0xf]
      %v363 = vld [vmem:[%s164 + $0x1f8] sm:$0xf]
      %v364 = vld [vmem:[%s164 + $0x1fc] sm:$0xf]
      %v365 = vld [vmem:[%s164 + $0x200] sm:$0xf]
      %v366 = vld [vmem:[%s164 + $0x204] sm:$0xf]
      %v367 = vld [vmem:[%s164 + $0x208] sm:$0xf]
      %v368 = vld [vmem:[%s164 + $0x20c] sm:$0xf]
      %v369 = vld [vmem:[%s164 + $0x210] sm:$0xf]
      %v370 = vld [vmem:[%s164 + $0x214] sm:$0xf]
      %v371 = vld [vmem:[%s164 + $0x218] sm:$0xf]
      %v372 = vld [vmem:[%s164 + $0x21c] sm:$0xf]
      %v373 = vld [vmem:[%s164 + $0x220] sm:$0xf]
      %v374 = vld [vmem:[%s164 + $0x224] sm:$0xf]
      %v375 = vld [vmem:[%s164 + $0x228] sm:$0xf]
      %v376 = vld [vmem:[%s164 + $0x22c] sm:$0xf]
      %v377 = vld [vmem:[%s164 + $0x230] sm:$0xf]
      %v378 = vld [vmem:[%s164 + $0x234] sm:$0xf]
      %v379 = vld [vmem:[%s164 + $0x238] sm:$0xf]
      %v380 = vld [vmem:[%s164 + $0x23c] sm:$0xf]
      %v381 = vld [vmem:[%s164 + $0x240] sm:$0xf]
      %v382 = vld [vmem:[%s164 + $0x244] sm:$0xf]
      %v383 = vld [vmem:[%s164 + $0x248] sm:$0xf]
      %v384 = vld [vmem:[%s164 + $0x24c] sm:$0xf]
      %v385 = vld [vmem:[%s164 + $0x250] sm:$0xf]
      %v386 = vld [vmem:[%s164 + $0x254] sm:$0xf]
      %v387 = vld [vmem:[%s164 + $0x258] sm:$0xf]
      %v388 = vld [vmem:[%s164 + $0x25c] sm:$0xf]
      %v389 = vld [vmem:[%s164 + $0x260] sm:$0xf]
      %v390 = vld [vmem:[%s164 + $0x264] sm:$0xf]
      %v391 = vld [vmem:[%s164 + $0x268] sm:$0xf]
      %v392 = vld [vmem:[%s164 + $0x26c] sm:$0xf]
      %v393 = vld [vmem:[%s164 + $0x270] sm:$0xf]
      %v394 = vld [vmem:[%s164 + $0x274] sm:$0xf]
      %v395 = vld [vmem:[%s164 + $0x278] sm:$0xf]
      %v396 = vld [vmem:[%s164 + $0x27c] sm:$0xf]
      %v397 = vld [vmem:[%s164 + $0x280] sm:$0xf]
      %v398 = vld [vmem:[%s164 + $0x284] sm:$0xf]
      %v399 = vld [vmem:[%s164 + $0x288] sm:$0xf]
      %v400 = vld [vmem:[%s164 + $0x28c] sm:$0xf]
      %v401 = vld [vmem:[%s164 + $0x290] sm:$0xf]
      %v402 = vld [vmem:[%s164 + $0x294] sm:$0xf]
      %v403 = vld [vmem:[%s164 + $0x298] sm:$0xf]
      %v404 = vld [vmem:[%s164 + $0x29c] sm:$0xf]
      %v405 = vld [vmem:[%s164 + $0x2a0] sm:$0xf]
      %v406 = vld [vmem:[%s164 + $0x2a4] sm:$0xf]
      %v407 = vld [vmem:[%s164 + $0x2a8] sm:$0xf]
      %v408 = vld [vmem:[%s164 + $0x2ac] sm:$0xf]
      %v409 = vld [vmem:[%s164 + $0x2b0] sm:$0xf]
      %v410 = vld [vmem:[%s164 + $0x2b4] sm:$0xf]
      %v411 = vld [vmem:[%s164 + $0x2b8] sm:$0xf]
      %v412 = vld [vmem:[%s164 + $0x2bc] sm:$0xf]
      %v413 = vld [vmem:[%s164 + $0x2c0] sm:$0xf]
      %v414 = vld [vmem:[%s164 + $0x2c4] sm:$0xf]
      %v415 = vld [vmem:[%s164 + $0x2c8] sm:$0xf]
      %v416 = vld [vmem:[%s164 + $0x2cc] sm:$0xf]
      %v417 = vld [vmem:[%s164 + $0x2d0] sm:$0xf]
      %v418 = vld [vmem:[%s164 + $0x2d4] sm:$0xf]
      %v419 = vld [vmem:[%s164 + $0x2d8] sm:$0xf]
      %v420 = vld [vmem:[%s164 + $0x2dc] sm:$0xf]
      %v421 = vld [vmem:[%s164 + $0x2e0] sm:$0xf]
      %v422 = vld [vmem:[%s164 + $0x2e4] sm:$0xf]
      %v423 = vld [vmem:[%s164 + $0x2e8] sm:$0xf]
      %v424 = vld [vmem:[%s164 + $0x2ec] sm:$0xf]
      %v425 = vld [vmem:[%s164 + $0x2f0] sm:$0xf]
      %v426 = vld [vmem:[%s164 + $0x2f4] sm:$0xf]
      %v427 = vld [vmem:[%s164 + $0x2f8] sm:$0xf]
      %v428 = vld [vmem:[%s164 + $0x2fc] sm:$0xf]
      %v429 = vld [vmem:[%s164 + $0x300] sm:$0xf]
      %v430 = vld [vmem:[%s164 + $0x304] sm:$0xf]
      %v431 = vld [vmem:[%s164 + $0x308] sm:$0xf]
      %v432 = vld [vmem:[%s164 + $0x30c] sm:$0xf]
      %v433 = vld [vmem:[%s164 + $0x310] sm:$0xf]
      %v434 = vld [vmem:[%s164 + $0x314] sm:$0xf]
      %v435 = vld [vmem:[%s164 + $0x318] sm:$0xf]
      %v436 = vld [vmem:[%s164 + $0x31c] sm:$0xf]
      %v437 = vld [vmem:[%s164 + $0x320] sm:$0xf]
      %v438 = vld [vmem:[%s164 + $0x324] sm:$0xf]
      %v439 = vld [vmem:[%s164 + $0x328] sm:$0xf]
      %v440 = vld [vmem:[%s164 + $0x32c] sm:$0xf]
      %v441 = vld [vmem:[%s164 + $0x330] sm:$0xf]
      %v442 = vld [vmem:[%s164 + $0x334] sm:$0xf]
      %v443 = vld [vmem:[%s164 + $0x338] sm:$0xf]
      %v444 = vld [vmem:[%s164 + $0x33c] sm:$0xf]
      %v445 = vld [vmem:[%s164 + $0x340] sm:$0xf]
      %v446 = vld [vmem:[%s164 + $0x344] sm:$0xf]
      %v447 = vld [vmem:[%s164 + $0x348] sm:$0xf]
      %v448 = vld [vmem:[%s164 + $0x34c] sm:$0xf]
      %v449 = vld [vmem:[%s164 + $0x350] sm:$0xf]
      %v450 = vld [vmem:[%s164 + $0x354] sm:$0xf]
      %v451 = vld [vmem:[%s164 + $0x358] sm:$0xf]
      %v452 = vld [vmem:[%s164 + $0x35c] sm:$0xf]
      %v453 = vld [vmem:[%s164 + $0x360] sm:$0xf]
      %v454 = vld [vmem:[%s164 + $0x364] sm:$0xf]
      %v455 = vld [vmem:[%s164 + $0x368] sm:$0xf]
      %v456 = vld [vmem:[%s164 + $0x36c] sm:$0xf]
      %v457 = vld [vmem:[%s164 + $0x370] sm:$0xf]
      %v458 = vld [vmem:[%s164 + $0x374] sm:$0xf]
      %v459 = vld [vmem:[%s164 + $0x378] sm:$0xf]
      %v460 = vld [vmem:[%s164 + $0x37c] sm:$0xf]
      %v461 = vld [vmem:[%s164 + $0x380] sm:$0xf]
      %v462 = vld [vmem:[%s164 + $0x384] sm:$0xf]
      %v463 = vld [vmem:[%s164 + $0x388] sm:$0xf]
      %v464 = vld [vmem:[%s164 + $0x38c] sm:$0xf]
      %v465 = vld [vmem:[%s164 + $0x390] sm:$0xf]
      %v466 = vld [vmem:[%s164 + $0x394] sm:$0xf]
      %v467 = vld [vmem:[%s164 + $0x398] sm:$0xf]
      %v468 = vld [vmem:[%s164 + $0x39c] sm:$0xf]
      %v469 = vld [vmem:[%s164 + $0x3a0] sm:$0xf]
      %v470 = vld [vmem:[%s164 + $0x3a4] sm:$0xf]
      %v471 = vld [vmem:[%s164 + $0x3a8] sm:$0xf]
      %v472 = vld [vmem:[%s164 + $0x3ac] sm:$0xf]
      %v473 = vld [vmem:[%s164 + $0x3b0] sm:$0xf]
      %v474 = vld [vmem:[%s164 + $0x3b4] sm:$0xf]
      %v475 = vld [vmem:[%s164 + $0x3b8] sm:$0xf]
      %v476 = vld [vmem:[%s164 + $0x3bc] sm:$0xf]
      %v477 = vld [vmem:[%s164 + $0x3c0] sm:$0xf]
      %v478 = vld [vmem:[%s164 + $0x3c4] sm:$0xf]
      %v479 = vld [vmem:[%s164 + $0x3c8] sm:$0xf]
      %v480 = vld [vmem:[%s164 + $0x3cc] sm:$0xf]
      %v481 = vld [vmem:[%s164 + $0x3d0] sm:$0xf]
      %v482 = vld [vmem:[%s164 + $0x3d4] sm:$0xf]
      %v483 = vld [vmem:[%s164 + $0x3d8] sm:$0xf]
      %v484 = vld [vmem:[%s164 + $0x3dc] sm:$0xf]
      %v485 = vld [vmem:[%s164 + $0x3e0] sm:$0xf]
      %v486 = vld [vmem:[%s164 + $0x3e4] sm:$0xf]
      %v487 = vld [vmem:[%s164 + $0x3e8] sm:$0xf]
      %v488 = vld [vmem:[%s164 + $0x3ec] sm:$0xf]
      %v489 = vld [vmem:[%s164 + $0x3f0] sm:$0xf]
      %v490 = vld [vmem:[%s164 + $0x3f4] sm:$0xf]
      %v491 = vld [vmem:[%s164 + $0x3f8] sm:$0xf]
      %v492 = vld [vmem:[%s164 + $0x3fc] sm:$0xf]
      %v497 = vunpack.c.l.b16 %v237
      %v498 = vunpack.c.l.b16 %v238
      %v499 = vunpack.c.l.b16 %v239
      %v500 = vunpack.c.l.b16 %v240
      %v501 = vpack.c.b16 %v498, %v497
      %v502 = vpack.c.b16 %v500, %v499
      %vm505 = vcmask 261120
      %v507 = vsel %vm505, %v173, 0
      %509 = vmatprep.subr.bf16.mxu0 0
      %510 = vmatpush1.bf16.msra.mxu0 0
      %511 = vmatprep.subr.bf16.mxu0 0
      %512 = vmatpush1.bf16.msra.mxu0 0
      %513 = vmatprep.subr.bf16.mxu0 0
      %514 = vmatpush1.bf16.msra.mxu0 0
      %515 = vmatprep.subr.bf16.mxu0 0
      %516 = vmatpush1.bf16.msra.mxu0 0
      %517 = vmatprep.subr.bf16.mxu0 0
      %518 = vmatpush1.bf16.msra.mxu0 0
      %519 = vmatprep.subr.bf16.mxu0 0
      %520 = vmatpush1.bf16.msra.mxu0 0
      %521 = vmatprep.subr.bf16.mxu0 0
      %522 = vmatpush1.bf16.msra.mxu0 %v502
      %523 = vmatprep.subr.bf16.mxu0 0
      %524 = vmatpush1.bf16.msra.mxu0 %v501
      %525 = vmatprep.subr.bf16.mxu0 0
      %526 = vmatpush2.bf16.msra.mxu0 0
      %527 = vmatprep.subr.bf16.mxu0 0
      %528 = vmatpush2.bf16.msra.mxu0 0
      %529 = vmatprep.subr.bf16.mxu0 0
      %530 = vmatpush2.bf16.msra.mxu0 0
      %531 = vmatprep.subr.bf16.mxu0 0
      %532 = vmatpush2.bf16.msra.mxu0 0
      %533 = vmatprep.subr.bf16.mxu0 0
      %534 = vmatpush2.bf16.msra.mxu0 0
      %535 = vmatprep.subr.bf16.mxu0 0
      %536 = vmatpush2.bf16.msra.mxu0 0
      %537 = vmatprep.subr.bf16.mxu0 0
      %538 = vmatpush2.bf16.msra.mxu0 0
      %539 = vmatprep.subr.bf16.mxu0 0
      %540 = vmatpush2.bf16.msra.mxu0 0
      %541 = vmatprep.mubr.bf16.mxu0 0
      %542 = vmatmul.mubr.bf16.gmra.mxu0 %v507
      %v543 = vpop.f32.mrf.mxu0
      %v544 = vadd.f32 0.0, %v543
      %v545 = vpop.f32.mrf.mxu0
      %v546 = vpop.f32.mrf.mxu0
      %v547 = vpop.f32.mrf.mxu0
      %548 = vdwg.mxu0
      %v553 = vunpack.c.l.b16 %v241
      %v554 = vunpack.c.l.b16 %v242
      %v555 = vunpack.c.l.b16 %v243
      %v556 = vunpack.c.l.b16 %v244
      %v557 = vpack.c.b16 %v554, %v553
      %v558 = vpack.c.b16 %v556, %v555
      %v562 = vsel %vm505, %v174, 0
      %564 = vmatprep.subr.bf16.mxu0 0
      %565 = vmatpush1.bf16.msra.mxu0 0
      %566 = vmatprep.subr.bf16.mxu0 0
      %567 = vmatpush1.bf16.msra.mxu0 0
      %568 = vmatprep.subr.bf16.mxu0 0
      %569 = vmatpush1.bf16.msra.mxu0 0
      %570 = vmatprep.subr.bf16.mxu0 0
      %571 = vmatpush1.bf16.msra.mxu0 0
      %572 = vmatprep.subr.bf16.mxu0 0
      %573 = vmatpush1.bf16.msra.mxu0 0
      %574 = vmatprep.subr.bf16.mxu0 0
      %575 = vmatpush1.bf16.msra.mxu0 0
      %576 = vmatprep.subr.bf16.mxu0 0
      %577 = vmatpush1.bf16.msra.mxu0 %v558
      %578 = vmatprep.subr.bf16.mxu0 0
      %579 = vmatpush1.bf16.msra.mxu0 %v557
      %580 = vmatprep.subr.bf16.mxu0 0
      %581 = vmatpush2.bf16.msra.mxu0 0
      %582 = vmatprep.subr.bf16.mxu0 0
      %583 = vmatpush2.bf16.msra.mxu0 0
      %584 = vmatprep.subr.bf16.mxu0 0
      %585 = vmatpush2.bf16.msra.mxu0 0
      %586 = vmatprep.subr.bf16.mxu0 0
      %587 = vmatpush2.bf16.msra.mxu0 0
      %588 = vmatprep.subr.bf16.mxu0 0
      %589 = vmatpush2.bf16.msra.mxu0 0
      %590 = vmatprep.subr.bf16.mxu0 0
      %591 = vmatpush2.bf16.msra.mxu0 0
      %592 = vmatprep.subr.bf16.mxu0 0
      %593 = vmatpush2.bf16.msra.mxu0 0
      %594 = vmatprep.subr.bf16.mxu0 0
      %595 = vmatpush2.bf16.msra.mxu0 0
      %596 = vmatprep.mubr.bf16.mxu0 0
      %597 = vmatmul.mubr.bf16.gmra.mxu0 %v562
      %v598 = vpop.f32.mrf.mxu0
      %v599 = vadd.f32 0.0, %v598
      %v600 = vpop.f32.mrf.mxu0
      %v601 = vpop.f32.mrf.mxu0
      %v602 = vpop.f32.mrf.mxu0
      %603 = vdwg.mxu0
      %v608 = vunpack.c.l.b16 %v245
      %v609 = vunpack.c.l.b16 %v246
      %v610 = vunpack.c.l.b16 %v247
      %v611 = vunpack.c.l.b16 %v248
      %v612 = vpack.c.b16 %v609, %v608
      %v613 = vpack.c.b16 %v611, %v610
      %v617 = vsel %vm505, %v175, 0
      %619 = vmatprep.subr.bf16.mxu0 0
      %620 = vmatpush1.bf16.msra.mxu0 0
      %621 = vmatprep.subr.bf16.mxu0 0
      %622 = vmatpush1.bf16.msra.mxu0 0
      %623 = vmatprep.subr.bf16.mxu0 0
      %624 = vmatpush1.bf16.msra.mxu0 0
      %625 = vmatprep.subr.bf16.mxu0 0
      %626 = vmatpush1.bf16.msra.mxu0 0
      %627 = vmatprep.subr.bf16.mxu0 0
      %628 = vmatpush1.bf16.msra.mxu0 0
      %629 = vmatprep.subr.bf16.mxu0 0
      %630 = vmatpush1.bf16.msra.mxu0 0
      %631 = vmatprep.subr.bf16.mxu0 0
      %632 = vmatpush1.bf16.msra.mxu0 %v613
      %633 = vmatprep.subr.bf16.mxu0 0
      %634 = vmatpush1.bf16.msra.mxu0 %v612
      %635 = vmatprep.subr.bf16.mxu0 0
      %636 = vmatpush2.bf16.msra.mxu0 0
      %637 = vmatprep.subr.bf16.mxu0 0
      %638 = vmatpush2.bf16.msra.mxu0 0
      %639 = vmatprep.subr.bf16.mxu0 0
      %640 = vmatpush2.bf16.msra.mxu0 0
      %641 = vmatprep.subr.bf16.mxu0 0
      %642 = vmatpush2.bf16.msra.mxu0 0
      %643 = vmatprep.subr.bf16.mxu0 0
      %644 = vmatpush2.bf16.msra.mxu0 0
      %645 = vmatprep.subr.bf16.mxu0 0
      %646 = vmatpush2.bf16.msra.mxu0 0
      %647 = vmatprep.subr.bf16.mxu0 0
      %648 = vmatpush2.bf16.msra.mxu0 0
      %649 = vmatprep.subr.bf16.mxu0 0
      %650 = vmatpush2.bf16.msra.mxu0 0
      %651 = vmatprep.mubr.bf16.mxu0 0
      %652 = vmatmul.mubr.bf16.gmra.mxu0 %v617
      %v653 = vpop.f32.mrf.mxu0
      %v654 = vadd.f32 0.0, %v653
      %v655 = vpop.f32.mrf.mxu0
      %v656 = vpop.f32.mrf.mxu0
      %v657 = vpop.f32.mrf.mxu0
      %658 = vdwg.mxu0
      %v663 = vunpack.c.l.b16 %v249
      %v664 = vunpack.c.l.b16 %v250
      %v665 = vunpack.c.l.b16 %v251
      %v666 = vunpack.c.l.b16 %v252
      %v667 = vpack.c.b16 %v664, %v663
      %v668 = vpack.c.b16 %v666, %v665
      %v672 = vsel %vm505, %v176, 0
      %674 = vmatprep.subr.bf16.mxu0 0
      %675 = vmatpush1.bf16.msra.mxu0 0
      %676 = vmatprep.subr.bf16.mxu0 0
      %677 = vmatpush1.bf16.msra.mxu0 0
      %678 = vmatprep.subr.bf16.mxu0 0
      %679 = vmatpush1.bf16.msra.mxu0 0
      %680 = vmatprep.subr.bf16.mxu0 0
      %681 = vmatpush1.bf16.msra.mxu0 0
      %682 = vmatprep.subr.bf16.mxu0 0
      %683 = vmatpush1.bf16.msra.mxu0 0
      %684 = vmatprep.subr.bf16.mxu0 0
      %685 = vmatpush1.bf16.msra.mxu0 0
      %686 = vmatprep.subr.bf16.mxu0 0
      %687 = vmatpush1.bf16.msra.mxu0 %v668
      %688 = vmatprep.subr.bf16.mxu0 0
      %689 = vmatpush1.bf16.msra.mxu0 %v667
      %690 = vmatprep.subr.bf16.mxu0 0
      %691 = vmatpush2.bf16.msra.mxu0 0
      %692 = vmatprep.subr.bf16.mxu0 0
      %693 = vmatpush2.bf16.msra.mxu0 0
      %694 = vmatprep.subr.bf16.mxu0 0
      %695 = vmatpush2.bf16.msra.mxu0 0
      %696 = vmatprep.subr.bf16.mxu0 0
      %697 = vmatpush2.bf16.msra.mxu0 0
      %698 = vmatprep.subr.bf16.mxu0 0
      %699 = vmatpush2.bf16.msra.mxu0 0
      %700 = vmatprep.subr.bf16.mxu0 0
      %701 = vmatpush2.bf16.msra.mxu0 0
      %702 = vmatprep.subr.bf16.mxu0 0
      %703 = vmatpush2.bf16.msra.mxu0 0
      %704 = vmatprep.subr.bf16.mxu0 0
      %705 = vmatpush2.bf16.msra.mxu0 0
      %706 = vmatprep.mubr.bf16.mxu0 0
      %707 = vmatmul.mubr.bf16.gmra.mxu0 %v672
      %v708 = vpop.f32.mrf.mxu0
      %v709 = vadd.f32 0.0, %v708
      %v710 = vpop.f32.mrf.mxu0
      %v711 = vpop.f32.mrf.mxu0
      %v712 = vpop.f32.mrf.mxu0
      %713 = vdwg.mxu0
      %v718 = vunpack.c.l.b16 %v253
      %v719 = vunpack.c.l.b16 %v254
      %v720 = vunpack.c.l.b16 %v255
      %v721 = vunpack.c.l.b16 %v256
      %v722 = vpack.c.b16 %v719, %v718
      %v723 = vpack.c.b16 %v721, %v720
      %v727 = vsel %vm505, %v177, 0
      %729 = vmatprep.subr.bf16.mxu0 0
      %730 = vmatpush1.bf16.msra.mxu0 0
      %731 = vmatprep.subr.bf16.mxu0 0
      %732 = vmatpush1.bf16.msra.mxu0 0
      %733 = vmatprep.subr.bf16.mxu0 0
      %734 = vmatpush1.bf16.msra.mxu0 0
      %735 = vmatprep.subr.bf16.mxu0 0
      %736 = vmatpush1.bf16.msra.mxu0 0
      %737 = vmatprep.subr.bf16.mxu0 0
      %738 = vmatpush1.bf16.msra.mxu0 0
      %739 = vmatprep.subr.bf16.mxu0 0
      %740 = vmatpush1.bf16.msra.mxu0 0
      %741 = vmatprep.subr.bf16.mxu0 0
      %742 = vmatpush1.bf16.msra.mxu0 %v723
      %743 = vmatprep.subr.bf16.mxu0 0
      %744 = vmatpush1.bf16.msra.mxu0 %v722
      %745 = vmatprep.subr.bf16.mxu0 0
      %746 = vmatpush2.bf16.msra.mxu0 0
      %747 = vmatprep.subr.bf16.mxu0 0
      %748 = vmatpush2.bf16.msra.mxu0 0
      %749 = vmatprep.subr.bf16.mxu0 0
      %750 = vmatpush2.bf16.msra.mxu0 0
      %751 = vmatprep.subr.bf16.mxu0 0
      %752 = vmatpush2.bf16.msra.mxu0 0
      %753 = vmatprep.subr.bf16.mxu0 0
      %754 = vmatpush2.bf16.msra.mxu0 0
      %755 = vmatprep.subr.bf16.mxu0 0
      %756 = vmatpush2.bf16.msra.mxu0 0
      %757 = vmatprep.subr.bf16.mxu0 0
      %758 = vmatpush2.bf16.msra.mxu0 0
      %759 = vmatprep.subr.bf16.mxu0 0
      %760 = vmatpush2.bf16.msra.mxu0 0
      %761 = vmatprep.mubr.bf16.mxu0 0
      %762 = vmatmul.mubr.bf16.gmra.mxu0 %v727
      %v763 = vpop.f32.mrf.mxu0
      %v764 = vadd.f32 0.0, %v763
      %v765 = vpop.f32.mrf.mxu0
      %v766 = vpop.f32.mrf.mxu0
      %v767 = vpop.f32.mrf.mxu0
      %768 = vdwg.mxu0
      %v773 = vunpack.c.l.b16 %v257
      %v774 = vunpack.c.l.b16 %v258
      %v775 = vunpack.c.l.b16 %v259
      %v776 = vunpack.c.l.b16 %v260
      %v777 = vpack.c.b16 %v774, %v773
      %v778 = vpack.c.b16 %v776, %v775
      %v782 = vsel %vm505, %v178, 0
      %784 = vmatprep.subr.bf16.mxu0 0
      %785 = vmatpush1.bf16.msra.mxu0 0
      %786 = vmatprep.subr.bf16.mxu0 0
      %787 = vmatpush1.bf16.msra.mxu0 0
      %788 = vmatprep.subr.bf16.mxu0 0
      %789 = vmatpush1.bf16.msra.mxu0 0
      %790 = vmatprep.subr.bf16.mxu0 0
      %791 = vmatpush1.bf16.msra.mxu0 0
      %792 = vmatprep.subr.bf16.mxu0 0
      %793 = vmatpush1.bf16.msra.mxu0 0
      %794 = vmatprep.subr.bf16.mxu0 0
      %795 = vmatpush1.bf16.msra.mxu0 0
      %796 = vmatprep.subr.bf16.mxu0 0
      %797 = vmatpush1.bf16.msra.mxu0 %v778
      %798 = vmatprep.subr.bf16.mxu0 0
      %799 = vmatpush1.bf16.msra.mxu0 %v777
      %800 = vmatprep.subr.bf16.mxu0 0
      %801 = vmatpush2.bf16.msra.mxu0 0
      %802 = vmatprep.subr.bf16.mxu0 0
      %803 = vmatpush2.bf16.msra.mxu0 0
      %804 = vmatprep.subr.bf16.mxu0 0
      %805 = vmatpush2.bf16.msra.mxu0 0
      %806 = vmatprep.subr.bf16.mxu0 0
      %807 = vmatpush2.bf16.msra.mxu0 0
      %808 = vmatprep.subr.bf16.mxu0 0
      %809 = vmatpush2.bf16.msra.mxu0 0
      %810 = vmatprep.subr.bf16.mxu0 0
      %811 = vmatpush2.bf16.msra.mxu0 0
      %812 = vmatprep.subr.bf16.mxu0 0
      %813 = vmatpush2.bf16.msra.mxu0 0
      %814 = vmatprep.subr.bf16.mxu0 0
      %815 = vmatpush2.bf16.msra.mxu0 0
      %816 = vmatprep.mubr.bf16.mxu0 0
      %817 = vmatmul.mubr.bf16.gmra.mxu0 %v782
      %v818 = vpop.f32.mrf.mxu0
      %v819 = vadd.f32 0.0, %v818
      %v820 = vpop.f32.mrf.mxu0
      %v821 = vpop.f32.mrf.mxu0
      %v822 = vpop.f32.mrf.mxu0
      %823 = vdwg.mxu0
      %v828 = vunpack.c.l.b16 %v261
      %v829 = vunpack.c.l.b16 %v262
      %v830 = vunpack.c.l.b16 %v263
      %v831 = vunpack.c.l.b16 %v264
      %v832 = vpack.c.b16 %v829, %v828
      %v833 = vpack.c.b16 %v831, %v830
      %v837 = vsel %vm505, %v179, 0
      %839 = vmatprep.subr.bf16.mxu0 0
      %840 = vmatpush1.bf16.msra.mxu0 0
      %841 = vmatprep.subr.bf16.mxu0 0
      %842 = vmatpush1.bf16.msra.mxu0 0
      %843 = vmatprep.subr.bf16.mxu0 0
      %844 = vmatpush1.bf16.msra.mxu0 0
      %845 = vmatprep.subr.bf16.mxu0 0
      %846 = vmatpush1.bf16.msra.mxu0 0
      %847 = vmatprep.subr.bf16.mxu0 0
      %848 = vmatpush1.bf16.msra.mxu0 0
      %849 = vmatprep.subr.bf16.mxu0 0
      %850 = vmatpush1.bf16.msra.mxu0 0
      %851 = vmatprep.subr.bf16.mxu0 0
      %852 = vmatpush1.bf16.msra.mxu0 %v833
      %853 = vmatprep.subr.bf16.mxu0 0
      %854 = vmatpush1.bf16.msra.mxu0 %v832
      %855 = vmatprep.subr.bf16.mxu0 0
      %856 = vmatpush2.bf16.msra.mxu0 0
      %857 = vmatprep.subr.bf16.mxu0 0
      %858 = vmatpush2.bf16.msra.mxu0 0
      %859 = vmatprep.subr.bf16.mxu0 0
      %860 = vmatpush2.bf16.msra.mxu0 0
      %861 = vmatprep.subr.bf16.mxu0 0
      %862 = vmatpush2.bf16.msra.mxu0 0
      %863 = vmatprep.subr.bf16.mxu0 0
      %864 = vmatpush2.bf16.msra.mxu0 0
      %865 = vmatprep.subr.bf16.mxu0 0
      %866 = vmatpush2.bf16.msra.mxu0 0
      %867 = vmatprep.subr.bf16.mxu0 0
      %868 = vmatpush2.bf16.msra.mxu0 0
      %869 = vmatprep.subr.bf16.mxu0 0
      %870 = vmatpush2.bf16.msra.mxu0 0
      %871 = vmatprep.mubr.bf16.mxu0 0
      %872 = vmatmul.mubr.bf16.gmra.mxu0 %v837
      %v873 = vpop.f32.mrf.mxu0
      %v874 = vadd.f32 0.0, %v873
      %v875 = vpop.f32.mrf.mxu0
      %v876 = vpop.f32.mrf.mxu0
      %v877 = vpop.f32.mrf.mxu0
      %878 = vdwg.mxu0
      %v883 = vunpack.c.l.b16 %v265
      %v884 = vunpack.c.l.b16 %v266
      %v885 = vunpack.c.l.b16 %v267
      %v886 = vunpack.c.l.b16 %v268
      %v887 = vpack.c.b16 %v884, %v883
      %v888 = vpack.c.b16 %v886, %v885
      %v892 = vsel %vm505, %v180, 0
      %894 = vmatprep.subr.bf16.mxu0 0
      %895 = vmatpush1.bf16.msra.mxu0 0
      %896 = vmatprep.subr.bf16.mxu0 0
      %897 = vmatpush1.bf16.msra.mxu0 0
      %898 = vmatprep.subr.bf16.mxu0 0
      %899 = vmatpush1.bf16.msra.mxu0 0
      %900 = vmatprep.subr.bf16.mxu0 0
      %901 = vmatpush1.bf16.msra.mxu0 0
      %902 = vmatprep.subr.bf16.mxu0 0
      %903 = vmatpush1.bf16.msra.mxu0 0
      %904 = vmatprep.subr.bf16.mxu0 0
      %905 = vmatpush1.bf16.msra.mxu0 0
      %906 = vmatprep.subr.bf16.mxu0 0
      %907 = vmatpush1.bf16.msra.mxu0 %v888
      %908 = vmatprep.subr.bf16.mxu0 0
      %909 = vmatpush1.bf16.msra.mxu0 %v887
      %910 = vmatprep.subr.bf16.mxu0 0
      %911 = vmatpush2.bf16.msra.mxu0 0
      %912 = vmatprep.subr.bf16.mxu0 0
      %913 = vmatpush2.bf16.msra.mxu0 0
      %914 = vmatprep.subr.bf16.mxu0 0
      %915 = vmatpush2.bf16.msra.mxu0 0
      %916 = vmatprep.subr.bf16.mxu0 0
      %917 = vmatpush2.bf16.msra.mxu0 0
      %918 = vmatprep.subr.bf16.mxu0 0
      %919 = vmatpush2.bf16.msra.mxu0 0
      %920 = vmatprep.subr.bf16.mxu0 0
      %921 = vmatpush2.bf16.msra.mxu0 0
      %922 = vmatprep.subr.bf16.mxu0 0
      %923 = vmatpush2.bf16.msra.mxu0 0
      %924 = vmatprep.subr.bf16.mxu0 0
      %925 = vmatpush2.bf16.msra.mxu0 0
      %926 = vmatprep.mubr.bf16.mxu0 0
      %927 = vmatmul.mubr.bf16.gmra.mxu0 %v892
      %v928 = vpop.f32.mrf.mxu0
      %v929 = vadd.f32 0.0, %v928
      %v930 = vpop.f32.mrf.mxu0
      %v931 = vpop.f32.mrf.mxu0
      %v932 = vpop.f32.mrf.mxu0
      %933 = vdwg.mxu0
      %v938 = vunpack.c.l.b16 %v269
      %v939 = vunpack.c.l.b16 %v270
      %v940 = vunpack.c.l.b16 %v271
      %v941 = vunpack.c.l.b16 %v272
      %v942 = vpack.c.b16 %v939, %v938
      %v943 = vpack.c.b16 %v941, %v940
      %v947 = vsel %vm505, %v181, 0
      %949 = vmatprep.subr.bf16.mxu0 0
      %950 = vmatpush1.bf16.msra.mxu0 0
      %951 = vmatprep.subr.bf16.mxu0 0
      %952 = vmatpush1.bf16.msra.mxu0 0
      %953 = vmatprep.subr.bf16.mxu0 0
      %954 = vmatpush1.bf16.msra.mxu0 0
      %955 = vmatprep.subr.bf16.mxu0 0
      %956 = vmatpush1.bf16.msra.mxu0 0
      %957 = vmatprep.subr.bf16.mxu0 0
      %958 = vmatpush1.bf16.msra.mxu0 0
      %959 = vmatprep.subr.bf16.mxu0 0
      %960 = vmatpush1.bf16.msra.mxu0 0
      %961 = vmatprep.subr.bf16.mxu0 0
      %962 = vmatpush1.bf16.msra.mxu0 %v943
      %963 = vmatprep.subr.bf16.mxu0 0
      %964 = vmatpush1.bf16.msra.mxu0 %v942
      %965 = vmatprep.subr.bf16.mxu0 0
      %966 = vmatpush2.bf16.msra.mxu0 0
      %967 = vmatprep.subr.bf16.mxu0 0
      %968 = vmatpush2.bf16.msra.mxu0 0
      %969 = vmatprep.subr.bf16.mxu0 0
      %970 = vmatpush2.bf16.msra.mxu0 0
      %971 = vmatprep.subr.bf16.mxu0 0
      %972 = vmatpush2.bf16.msra.mxu0 0
      %973 = vmatprep.subr.bf16.mxu0 0
      %974 = vmatpush2.bf16.msra.mxu0 0
      %975 = vmatprep.subr.bf16.mxu0 0
      %976 = vmatpush2.bf16.msra.mxu0 0
      %977 = vmatprep.subr.bf16.mxu0 0
      %978 = vmatpush2.bf16.msra.mxu0 0
      %979 = vmatprep.subr.bf16.mxu0 0
      %980 = vmatpush2.bf16.msra.mxu0 0
      %981 = vmatprep.mubr.bf16.mxu0 0
      %982 = vmatmul.mubr.bf16.gmra.mxu0 %v947
      %v983 = vpop.f32.mrf.mxu0
      %v984 = vadd.f32 0.0, %v983
      %v985 = vpop.f32.mrf.mxu0
      %v986 = vpop.f32.mrf.mxu0
      %v987 = vpop.f32.mrf.mxu0
      %988 = vdwg.mxu0
      %v993 = vunpack.c.l.b16 %v273
      %v994 = vunpack.c.l.b16 %v274
      %v995 = vunpack.c.l.b16 %v275
      %v996 = vunpack.c.l.b16 %v276
      %v997 = vpack.c.b16 %v994, %v993
      %v998 = vpack.c.b16 %v996, %v995
      %v1002 = vsel %vm505, %v182, 0
      %1004 = vmatprep.subr.bf16.mxu0 0
      %1005 = vmatpush1.bf16.msra.mxu0 0
      %1006 = vmatprep.subr.bf16.mxu0 0
      %1007 = vmatpush1.bf16.msra.mxu0 0
      %1008 = vmatprep.subr.bf16.mxu0 0
      %1009 = vmatpush1.bf16.msra.mxu0 0
      %1010 = vmatprep.subr.bf16.mxu0 0
      %1011 = vmatpush1.bf16.msra.mxu0 0
      %1012 = vmatprep.subr.bf16.mxu0 0
      %1013 = vmatpush1.bf16.msra.mxu0 0
      %1014 = vmatprep.subr.bf16.mxu0 0
      %1015 = vmatpush1.bf16.msra.mxu0 0
      %1016 = vmatprep.subr.bf16.mxu0 0
      %1017 = vmatpush1.bf16.msra.mxu0 %v998
      %1018 = vmatprep.subr.bf16.mxu0 0
      %1019 = vmatpush1.bf16.msra.mxu0 %v997
      %1020 = vmatprep.subr.bf16.mxu0 0
      %1021 = vmatpush2.bf16.msra.mxu0 0
      %1022 = vmatprep.subr.bf16.mxu0 0
      %1023 = vmatpush2.bf16.msra.mxu0 0
      %1024 = vmatprep.subr.bf16.mxu0 0
      %1025 = vmatpush2.bf16.msra.mxu0 0
      %1026 = vmatprep.subr.bf16.mxu0 0
      %1027 = vmatpush2.bf16.msra.mxu0 0
      %1028 = vmatprep.subr.bf16.mxu0 0
      %1029 = vmatpush2.bf16.msra.mxu0 0
      %1030 = vmatprep.subr.bf16.mxu0 0
      %1031 = vmatpush2.bf16.msra.mxu0 0
      %1032 = vmatprep.subr.bf16.mxu0 0
      %1033 = vmatpush2.bf16.msra.mxu0 0
      %1034 = vmatprep.subr.bf16.mxu0 0
      %1035 = vmatpush2.bf16.msra.mxu0 0
      %1036 = vmatprep.mubr.bf16.mxu0 0
      %1037 = vmatmul.mubr.bf16.gmra.mxu0 %v1002
      %v1038 = vpop.f32.mrf.mxu0
      %v1039 = vadd.f32 0.0, %v1038
      %v1040 = vpop.f32.mrf.mxu0
      %v1041 = vpop.f32.mrf.mxu0
      %v1042 = vpop.f32.mrf.mxu0
      %1043 = vdwg.mxu0
      %v1048 = vunpack.c.l.b16 %v277
      %v1049 = vunpack.c.l.b16 %v278
      %v1050 = vunpack.c.l.b16 %v279
      %v1051 = vunpack.c.l.b16 %v280
      %v1052 = vpack.c.b16 %v1049, %v1048
      %v1053 = vpack.c.b16 %v1051, %v1050
      %v1057 = vsel %vm505, %v183, 0
      %1059 = vmatprep.subr.bf16.mxu0 0
      %1060 = vmatpush1.bf16.msra.mxu0 0
      %1061 = vmatprep.subr.bf16.mxu0 0
      %1062 = vmatpush1.bf16.msra.mxu0 0
      %1063 = vmatprep.subr.bf16.mxu0 0
      %1064 = vmatpush1.bf16.msra.mxu0 0
      %1065 = vmatprep.subr.bf16.mxu0 0
      %1066 = vmatpush1.bf16.msra.mxu0 0
      %1067 = vmatprep.subr.bf16.mxu0 0
      %1068 = vmatpush1.bf16.msra.mxu0 0
      %1069 = vmatprep.subr.bf16.mxu0 0
      %1070 = vmatpush1.bf16.msra.mxu0 0
      %1071 = vmatprep.subr.bf16.mxu0 0
      %1072 = vmatpush1.bf16.msra.mxu0 %v1053
      %1073 = vmatprep.subr.bf16.mxu0 0
      %1074 = vmatpush1.bf16.msra.mxu0 %v1052
      %1075 = vmatprep.subr.bf16.mxu0 0
      %1076 = vmatpush2.bf16.msra.mxu0 0
      %1077 = vmatprep.subr.bf16.mxu0 0
      %1078 = vmatpush2.bf16.msra.mxu0 0
      %1079 = vmatprep.subr.bf16.mxu0 0
      %1080 = vmatpush2.bf16.msra.mxu0 0
      %1081 = vmatprep.subr.bf16.mxu0 0
      %1082 = vmatpush2.bf16.msra.mxu0 0
      %1083 = vmatprep.subr.bf16.mxu0 0
      %1084 = vmatpush2.bf16.msra.mxu0 0
      %1085 = vmatprep.subr.bf16.mxu0 0
      %1086 = vmatpush2.bf16.msra.mxu0 0
      %1087 = vmatprep.subr.bf16.mxu0 0
      %1088 = vmatpush2.bf16.msra.mxu0 0
      %1089 = vmatprep.subr.bf16.mxu0 0
      %1090 = vmatpush2.bf16.msra.mxu0 0
      %1091 = vmatprep.mubr.bf16.mxu0 0
      %1092 = vmatmul.mubr.bf16.gmra.mxu0 %v1057
      %v1093 = vpop.f32.mrf.mxu0
      %v1094 = vadd.f32 0.0, %v1093
      %v1095 = vpop.f32.mrf.mxu0
      %v1096 = vpop.f32.mrf.mxu0
      %v1097 = vpop.f32.mrf.mxu0
      %1098 = vdwg.mxu0
      %v1103 = vunpack.c.l.b16 %v281
      %v1104 = vunpack.c.l.b16 %v282
      %v1105 = vunpack.c.l.b16 %v283
      %v1106 = vunpack.c.l.b16 %v284
      %v1107 = vpack.c.b16 %v1104, %v1103
      %v1108 = vpack.c.b16 %v1106, %v1105
      %v1112 = vsel %vm505, %v184, 0
      %1114 = vmatprep.subr.bf16.mxu0 0
      %1115 = vmatpush1.bf16.msra.mxu0 0
      %1116 = vmatprep.subr.bf16.mxu0 0
      %1117 = vmatpush1.bf16.msra.mxu0 0
      %1118 = vmatprep.subr.bf16.mxu0 0
      %1119 = vmatpush1.bf16.msra.mxu0 0
      %1120 = vmatprep.subr.bf16.mxu0 0
      %1121 = vmatpush1.bf16.msra.mxu0 0
      %1122 = vmatprep.subr.bf16.mxu0 0
      %1123 = vmatpush1.bf16.msra.mxu0 0
      %1124 = vmatprep.subr.bf16.mxu0 0
      %1125 = vmatpush1.bf16.msra.mxu0 0
      %1126 = vmatprep.subr.bf16.mxu0 0
      %1127 = vmatpush1.bf16.msra.mxu0 %v1108
      %1128 = vmatprep.subr.bf16.mxu0 0
      %1129 = vmatpush1.bf16.msra.mxu0 %v1107
      %1130 = vmatprep.subr.bf16.mxu0 0
      %1131 = vmatpush2.bf16.msra.mxu0 0
      %1132 = vmatprep.subr.bf16.mxu0 0
      %1133 = vmatpush2.bf16.msra.mxu0 0
      %1134 = vmatprep.subr.bf16.mxu0 0
      %1135 = vmatpush2.bf16.msra.mxu0 0
      %1136 = vmatprep.subr.bf16.mxu0 0
      %1137 = vmatpush2.bf16.msra.mxu0 0
      %1138 = vmatprep.subr.bf16.mxu0 0
      %1139 = vmatpush2.bf16.msra.mxu0 0
      %1140 = vmatprep.subr.bf16.mxu0 0
      %1141 = vmatpush2.bf16.msra.mxu0 0
      %1142 = vmatprep.subr.bf16.mxu0 0
      %1143 = vmatpush2.bf16.msra.mxu0 0
      %1144 = vmatprep.subr.bf16.mxu0 0
      %1145 = vmatpush2.bf16.msra.mxu0 0
      %1146 = vmatprep.mubr.bf16.mxu0 0
      %1147 = vmatmul.mubr.bf16.gmra.mxu0 %v1112
      %v1148 = vpop.f32.mrf.mxu0
      %v1149 = vadd.f32 0.0, %v1148
      %v1150 = vpop.f32.mrf.mxu0
      %v1151 = vpop.f32.mrf.mxu0
      %v1152 = vpop.f32.mrf.mxu0
      %1153 = vdwg.mxu0
      %v1158 = vunpack.c.l.b16 %v285
      %v1159 = vunpack.c.l.b16 %v286
      %v1160 = vunpack.c.l.b16 %v287
      %v1161 = vunpack.c.l.b16 %v288
      %v1162 = vpack.c.b16 %v1159, %v1158
      %v1163 = vpack.c.b16 %v1161, %v1160
      %v1167 = vsel %vm505, %v185, 0
      %1169 = vmatprep.subr.bf16.mxu0 0
      %1170 = vmatpush1.bf16.msra.mxu0 0
      %1171 = vmatprep.subr.bf16.mxu0 0
      %1172 = vmatpush1.bf16.msra.mxu0 0
      %1173 = vmatprep.subr.bf16.mxu0 0
      %1174 = vmatpush1.bf16.msra.mxu0 0
      %1175 = vmatprep.subr.bf16.mxu0 0
      %1176 = vmatpush1.bf16.msra.mxu0 0
      %1177 = vmatprep.subr.bf16.mxu0 0
      %1178 = vmatpush1.bf16.msra.mxu0 0
      %1179 = vmatprep.subr.bf16.mxu0 0
      %1180 = vmatpush1.bf16.msra.mxu0 0
      %1181 = vmatprep.subr.bf16.mxu0 0
      %1182 = vmatpush1.bf16.msra.mxu0 %v1163
      %1183 = vmatprep.subr.bf16.mxu0 0
      %1184 = vmatpush1.bf16.msra.mxu0 %v1162
      %1185 = vmatprep.subr.bf16.mxu0 0
      %1186 = vmatpush2.bf16.msra.mxu0 0
      %1187 = vmatprep.subr.bf16.mxu0 0
      %1188 = vmatpush2.bf16.msra.mxu0 0
      %1189 = vmatprep.subr.bf16.mxu0 0
      %1190 = vmatpush2.bf16.msra.mxu0 0
      %1191 = vmatprep.subr.bf16.mxu0 0
      %1192 = vmatpush2.bf16.msra.mxu0 0
      %1193 = vmatprep.subr.bf16.mxu0 0
      %1194 = vmatpush2.bf16.msra.mxu0 0
      %1195 = vmatprep.subr.bf16.mxu0 0
      %1196 = vmatpush2.bf16.msra.mxu0 0
      %1197 = vmatprep.subr.bf16.mxu0 0
      %1198 = vmatpush2.bf16.msra.mxu0 0
      %1199 = vmatprep.subr.bf16.mxu0 0
      %1200 = vmatpush2.bf16.msra.mxu0 0
      %1201 = vmatprep.mubr.bf16.mxu0 0
      %1202 = vmatmul.mubr.bf16.gmra.mxu0 %v1167
      %v1203 = vpop.f32.mrf.mxu0
      %v1204 = vadd.f32 0.0, %v1203
      %v1205 = vpop.f32.mrf.mxu0
      %v1206 = vpop.f32.mrf.mxu0
      %v1207 = vpop.f32.mrf.mxu0
      %1208 = vdwg.mxu0
      %v1213 = vunpack.c.l.b16 %v289
      %v1214 = vunpack.c.l.b16 %v290
      %v1215 = vunpack.c.l.b16 %v291
      %v1216 = vunpack.c.l.b16 %v292
      %v1217 = vpack.c.b16 %v1214, %v1213
      %v1218 = vpack.c.b16 %v1216, %v1215
      %v1222 = vsel %vm505, %v186, 0
      %1224 = vmatprep.subr.bf16.mxu0 0
      %1225 = vmatpush1.bf16.msra.mxu0 0
      %1226 = vmatprep.subr.bf16.mxu0 0
      %1227 = vmatpush1.bf16.msra.mxu0 0
      %1228 = vmatprep.subr.bf16.mxu0 0
      %1229 = vmatpush1.bf16.msra.mxu0 0
      %1230 = vmatprep.subr.bf16.mxu0 0
      %1231 = vmatpush1.bf16.msra.mxu0 0
      %1232 = vmatprep.subr.bf16.mxu0 0
      %1233 = vmatpush1.bf16.msra.mxu0 0
      %1234 = vmatprep.subr.bf16.mxu0 0
      %1235 = vmatpush1.bf16.msra.mxu0 0
      %1236 = vmatprep.subr.bf16.mxu0 0
      %1237 = vmatpush1.bf16.msra.mxu0 %v1218
      %1238 = vmatprep.subr.bf16.mxu0 0
      %1239 = vmatpush1.bf16.msra.mxu0 %v1217
      %1240 = vmatprep.subr.bf16.mxu0 0
      %1241 = vmatpush2.bf16.msra.mxu0 0
      %1242 = vmatprep.subr.bf16.mxu0 0
      %1243 = vmatpush2.bf16.msra.mxu0 0
      %1244 = vmatprep.subr.bf16.mxu0 0
      %1245 = vmatpush2.bf16.msra.mxu0 0
      %1246 = vmatprep.subr.bf16.mxu0 0
      %1247 = vmatpush2.bf16.msra.mxu0 0
      %1248 = vmatprep.subr.bf16.mxu0 0
      %1249 = vmatpush2.bf16.msra.mxu0 0
      %1250 = vmatprep.subr.bf16.mxu0 0
      %1251 = vmatpush2.bf16.msra.mxu0 0
      %1252 = vmatprep.subr.bf16.mxu0 0
      %1253 = vmatpush2.bf16.msra.mxu0 0
      %1254 = vmatprep.subr.bf16.mxu0 0
      %1255 = vmatpush2.bf16.msra.mxu0 0
      %1256 = vmatprep.mubr.bf16.mxu0 0
      %1257 = vmatmul.mubr.bf16.gmra.mxu0 %v1222
      %v1258 = vpop.f32.mrf.mxu0
      %v1259 = vadd.f32 0.0, %v1258
      %v1260 = vpop.f32.mrf.mxu0
      %v1261 = vpop.f32.mrf.mxu0
      %v1262 = vpop.f32.mrf.mxu0
      %1263 = vdwg.mxu0
      %v1268 = vunpack.c.l.b16 %v293
      %v1269 = vunpack.c.l.b16 %v294
      %v1270 = vunpack.c.l.b16 %v295
      %v1271 = vunpack.c.l.b16 %v296
      %v1272 = vpack.c.b16 %v1269, %v1268
      %v1273 = vpack.c.b16 %v1271, %v1270
      %v1277 = vsel %vm505, %v187, 0
      %1279 = vmatprep.subr.bf16.mxu0 0
      %1280 = vmatpush1.bf16.msra.mxu0 0
      %1281 = vmatprep.subr.bf16.mxu0 0
      %1282 = vmatpush1.bf16.msra.mxu0 0
      %1283 = vmatprep.subr.bf16.mxu0 0
      %1284 = vmatpush1.bf16.msra.mxu0 0
      %1285 = vmatprep.subr.bf16.mxu0 0
      %1286 = vmatpush1.bf16.msra.mxu0 0
      %1287 = vmatprep.subr.bf16.mxu0 0
      %1288 = vmatpush1.bf16.msra.mxu0 0
      %1289 = vmatprep.subr.bf16.mxu0 0
      %1290 = vmatpush1.bf16.msra.mxu0 0
      %1291 = vmatprep.subr.bf16.mxu0 0
      %1292 = vmatpush1.bf16.msra.mxu0 %v1273
      %1293 = vmatprep.subr.bf16.mxu0 0
      %1294 = vmatpush1.bf16.msra.mxu0 %v1272
      %1295 = vmatprep.subr.bf16.mxu0 0
      %1296 = vmatpush2.bf16.msra.mxu0 0
      %1297 = vmatprep.subr.bf16.mxu0 0
      %1298 = vmatpush2.bf16.msra.mxu0 0
      %1299 = vmatprep.subr.bf16.mxu0 0
      %1300 = vmatpush2.bf16.msra.mxu0 0
      %1301 = vmatprep.subr.bf16.mxu0 0
      %1302 = vmatpush2.bf16.msra.mxu0 0
      %1303 = vmatprep.subr.bf16.mxu0 0
      %1304 = vmatpush2.bf16.msra.mxu0 0
      %1305 = vmatprep.subr.bf16.mxu0 0
      %1306 = vmatpush2.bf16.msra.mxu0 0
      %1307 = vmatprep.subr.bf16.mxu0 0
      %1308 = vmatpush2.bf16.msra.mxu0 0
      %1309 = vmatprep.subr.bf16.mxu0 0
      %1310 = vmatpush2.bf16.msra.mxu0 0
      %1311 = vmatprep.mubr.bf16.mxu0 0
      %1312 = vmatmul.mubr.bf16.gmra.mxu0 %v1277
      %v1313 = vpop.f32.mrf.mxu0
      %v1314 = vadd.f32 0.0, %v1313
      %v1315 = vpop.f32.mrf.mxu0
      %v1316 = vpop.f32.mrf.mxu0
      %v1317 = vpop.f32.mrf.mxu0
      %1318 = vdwg.mxu0
      %v1323 = vunpack.c.l.b16 %v297
      %v1324 = vunpack.c.l.b16 %v298
      %v1325 = vunpack.c.l.b16 %v299
      %v1326 = vunpack.c.l.b16 %v300
      %v1327 = vpack.c.b16 %v1324, %v1323
      %v1328 = vpack.c.b16 %v1326, %v1325
      %v1332 = vsel %vm505, %v188, 0
      %1334 = vmatprep.subr.bf16.mxu0 0
      %1335 = vmatpush1.bf16.msra.mxu0 0
      %1336 = vmatprep.subr.bf16.mxu0 0
      %1337 = vmatpush1.bf16.msra.mxu0 0
      %1338 = vmatprep.subr.bf16.mxu0 0
      %1339 = vmatpush1.bf16.msra.mxu0 0
      %1340 = vmatprep.subr.bf16.mxu0 0
      %1341 = vmatpush1.bf16.msra.mxu0 0
      %1342 = vmatprep.subr.bf16.mxu0 0
      %1343 = vmatpush1.bf16.msra.mxu0 0
      %1344 = vmatprep.subr.bf16.mxu0 0
      %1345 = vmatpush1.bf16.msra.mxu0 0
      %1346 = vmatprep.subr.bf16.mxu0 0
      %1347 = vmatpush1.bf16.msra.mxu0 %v1328
      %1348 = vmatprep.subr.bf16.mxu0 0
      %1349 = vmatpush1.bf16.msra.mxu0 %v1327
      %1350 = vmatprep.subr.bf16.mxu0 0
      %1351 = vmatpush2.bf16.msra.mxu0 0
      %1352 = vmatprep.subr.bf16.mxu0 0
      %1353 = vmatpush2.bf16.msra.mxu0 0
      %1354 = vmatprep.subr.bf16.mxu0 0
      %1355 = vmatpush2.bf16.msra.mxu0 0
      %1356 = vmatprep.subr.bf16.mxu0 0
      %1357 = vmatpush2.bf16.msra.mxu0 0
      %1358 = vmatprep.subr.bf16.mxu0 0
      %1359 = vmatpush2.bf16.msra.mxu0 0
      %1360 = vmatprep.subr.bf16.mxu0 0
      %1361 = vmatpush2.bf16.msra.mxu0 0
      %1362 = vmatprep.subr.bf16.mxu0 0
      %1363 = vmatpush2.bf16.msra.mxu0 0
      %1364 = vmatprep.subr.bf16.mxu0 0
      %1365 = vmatpush2.bf16.msra.mxu0 0
      %1366 = vmatprep.mubr.bf16.mxu0 0
      %1367 = vmatmul.mubr.bf16.gmra.mxu0 %v1332
      %v1368 = vpop.f32.mrf.mxu0
      %v1369 = vadd.f32 0.0, %v1368
      %v1370 = vpop.f32.mrf.mxu0
      %v1371 = vpop.f32.mrf.mxu0
      %v1372 = vpop.f32.mrf.mxu0
      %1373 = vdwg.mxu0
      %v1378 = vunpack.c.l.b16 %v301
      %v1379 = vunpack.c.l.b16 %v302
      %v1380 = vunpack.c.l.b16 %v303
      %v1381 = vunpack.c.l.b16 %v304
      %v1382 = vpack.c.b16 %v1379, %v1378
      %v1383 = vpack.c.b16 %v1381, %v1380
      %v1387 = vsel %vm505, %v189, 0
      %1389 = vmatprep.subr.bf16.mxu0 0
      %1390 = vmatpush1.bf16.msra.mxu0 0
      %1391 = vmatprep.subr.bf16.mxu0 0
      %1392 = vmatpush1.bf16.msra.mxu0 0
      %1393 = vmatprep.subr.bf16.mxu0 0
      %1394 = vmatpush1.bf16.msra.mxu0 0
      %1395 = vmatprep.subr.bf16.mxu0 0
      %1396 = vmatpush1.bf16.msra.mxu0 0
      %1397 = vmatprep.subr.bf16.mxu0 0
      %1398 = vmatpush1.bf16.msra.mxu0 0
      %1399 = vmatprep.subr.bf16.mxu0 0
      %1400 = vmatpush1.bf16.msra.mxu0 0
      %1401 = vmatprep.subr.bf16.mxu0 0
      %1402 = vmatpush1.bf16.msra.mxu0 %v1383
      %1403 = vmatprep.subr.bf16.mxu0 0
      %1404 = vmatpush1.bf16.msra.mxu0 %v1382
      %1405 = vmatprep.subr.bf16.mxu0 0
      %1406 = vmatpush2.bf16.msra.mxu0 0
      %1407 = vmatprep.subr.bf16.mxu0 0
      %1408 = vmatpush2.bf16.msra.mxu0 0
      %1409 = vmatprep.subr.bf16.mxu0 0
      %1410 = vmatpush2.bf16.msra.mxu0 0
      %1411 = vmatprep.subr.bf16.mxu0 0
      %1412 = vmatpush2.bf16.msra.mxu0 0
      %1413 = vmatprep.subr.bf16.mxu0 0
      %1414 = vmatpush2.bf16.msra.mxu0 0
      %1415 = vmatprep.subr.bf16.mxu0 0
      %1416 = vmatpush2.bf16.msra.mxu0 0
      %1417 = vmatprep.subr.bf16.mxu0 0
      %1418 = vmatpush2.bf16.msra.mxu0 0
      %1419 = vmatprep.subr.bf16.mxu0 0
      %1420 = vmatpush2.bf16.msra.mxu0 0
      %1421 = vmatprep.mubr.bf16.mxu0 0
      %1422 = vmatmul.mubr.bf16.gmra.mxu0 %v1387
      %v1423 = vpop.f32.mrf.mxu0
      %v1424 = vadd.f32 0.0, %v1423
      %v1425 = vpop.f32.mrf.mxu0
      %v1426 = vpop.f32.mrf.mxu0
      %v1427 = vpop.f32.mrf.mxu0
      %1428 = vdwg.mxu0
      %v1433 = vunpack.c.l.b16 %v305
      %v1434 = vunpack.c.l.b16 %v306
      %v1435 = vunpack.c.l.b16 %v307
      %v1436 = vunpack.c.l.b16 %v308
      %v1437 = vpack.c.b16 %v1434, %v1433
      %v1438 = vpack.c.b16 %v1436, %v1435
      %v1442 = vsel %vm505, %v190, 0
      %1444 = vmatprep.subr.bf16.mxu0 0
      %1445 = vmatpush1.bf16.msra.mxu0 0
      %1446 = vmatprep.subr.bf16.mxu0 0
      %1447 = vmatpush1.bf16.msra.mxu0 0
      %1448 = vmatprep.subr.bf16.mxu0 0
      %1449 = vmatpush1.bf16.msra.mxu0 0
      %1450 = vmatprep.subr.bf16.mxu0 0
      %1451 = vmatpush1.bf16.msra.mxu0 0
      %1452 = vmatprep.subr.bf16.mxu0 0
      %1453 = vmatpush1.bf16.msra.mxu0 0
      %1454 = vmatprep.subr.bf16.mxu0 0
      %1455 = vmatpush1.bf16.msra.mxu0 0
      %1456 = vmatprep.subr.bf16.mxu0 0
      %1457 = vmatpush1.bf16.msra.mxu0 %v1438
      %1458 = vmatprep.subr.bf16.mxu0 0
      %1459 = vmatpush1.bf16.msra.mxu0 %v1437
      %1460 = vmatprep.subr.bf16.mxu0 0
      %1461 = vmatpush2.bf16.msra.mxu0 0
      %1462 = vmatprep.subr.bf16.mxu0 0
      %1463 = vmatpush2.bf16.msra.mxu0 0
      %1464 = vmatprep.subr.bf16.mxu0 0
      %1465 = vmatpush2.bf16.msra.mxu0 0
      %1466 = vmatprep.subr.bf16.mxu0 0
      %1467 = vmatpush2.bf16.msra.mxu0 0
      %1468 = vmatprep.subr.bf16.mxu0 0
      %1469 = vmatpush2.bf16.msra.mxu0 0
      %1470 = vmatprep.subr.bf16.mxu0 0
      %1471 = vmatpush2.bf16.msra.mxu0 0
      %1472 = vmatprep.subr.bf16.mxu0 0
      %1473 = vmatpush2.bf16.msra.mxu0 0
      %1474 = vmatprep.subr.bf16.mxu0 0
      %1475 = vmatpush2.bf16.msra.mxu0 0
      %1476 = vmatprep.mubr.bf16.mxu0 0
      %1477 = vmatmul.mubr.bf16.gmra.mxu0 %v1442
      %v1478 = vpop.f32.mrf.mxu0
      %v1479 = vadd.f32 0.0, %v1478
      %v1480 = vpop.f32.mrf.mxu0
      %v1481 = vpop.f32.mrf.mxu0
      %v1482 = vpop.f32.mrf.mxu0
      %1483 = vdwg.mxu0
      %v1488 = vunpack.c.l.b16 %v309
      %v1489 = vunpack.c.l.b16 %v310
      %v1490 = vunpack.c.l.b16 %v311
      %v1491 = vunpack.c.l.b16 %v312
      %v1492 = vpack.c.b16 %v1489, %v1488
      %v1493 = vpack.c.b16 %v1491, %v1490
      %v1497 = vsel %vm505, %v191, 0
      %1499 = vmatprep.subr.bf16.mxu0 0
      %1500 = vmatpush1.bf16.msra.mxu0 0
      %1501 = vmatprep.subr.bf16.mxu0 0
      %1502 = vmatpush1.bf16.msra.mxu0 0
      %1503 = vmatprep.subr.bf16.mxu0 0
      %1504 = vmatpush1.bf16.msra.mxu0 0
      %1505 = vmatprep.subr.bf16.mxu0 0
      %1506 = vmatpush1.bf16.msra.mxu0 0
      %1507 = vmatprep.subr.bf16.mxu0 0
      %1508 = vmatpush1.bf16.msra.mxu0 0
      %1509 = vmatprep.subr.bf16.mxu0 0
      %1510 = vmatpush1.bf16.msra.mxu0 0
      %1511 = vmatprep.subr.bf16.mxu0 0
      %1512 = vmatpush1.bf16.msra.mxu0 %v1493
      %1513 = vmatprep.subr.bf16.mxu0 0
      %1514 = vmatpush1.bf16.msra.mxu0 %v1492
      %1515 = vmatprep.subr.bf16.mxu0 0
      %1516 = vmatpush2.bf16.msra.mxu0 0
      %1517 = vmatprep.subr.bf16.mxu0 0
      %1518 = vmatpush2.bf16.msra.mxu0 0
      %1519 = vmatprep.subr.bf16.mxu0 0
      %1520 = vmatpush2.bf16.msra.mxu0 0
      %1521 = vmatprep.subr.bf16.mxu0 0
      %1522 = vmatpush2.bf16.msra.mxu0 0
      %1523 = vmatprep.subr.bf16.mxu0 0
      %1524 = vmatpush2.bf16.msra.mxu0 0
      %1525 = vmatprep.subr.bf16.mxu0 0
      %1526 = vmatpush2.bf16.msra.mxu0 0
      %1527 = vmatprep.subr.bf16.mxu0 0
      %1528 = vmatpush2.bf16.msra.mxu0 0
      %1529 = vmatprep.subr.bf16.mxu0 0
      %1530 = vmatpush2.bf16.msra.mxu0 0
      %1531 = vmatprep.mubr.bf16.mxu0 0
      %1532 = vmatmul.mubr.bf16.gmra.mxu0 %v1497
      %v1533 = vpop.f32.mrf.mxu0
      %v1534 = vadd.f32 0.0, %v1533
      %v1535 = vpop.f32.mrf.mxu0
      %v1536 = vpop.f32.mrf.mxu0
      %v1537 = vpop.f32.mrf.mxu0
      %1538 = vdwg.mxu0
      %v1543 = vunpack.c.l.b16 %v313
      %v1544 = vunpack.c.l.b16 %v314
      %v1545 = vunpack.c.l.b16 %v315
      %v1546 = vunpack.c.l.b16 %v316
      %v1547 = vpack.c.b16 %v1544, %v1543
      %v1548 = vpack.c.b16 %v1546, %v1545
      %v1552 = vsel %vm505, %v192, 0
      %1554 = vmatprep.subr.bf16.mxu0 0
      %1555 = vmatpush1.bf16.msra.mxu0 0
      %1556 = vmatprep.subr.bf16.mxu0 0
      %1557 = vmatpush1.bf16.msra.mxu0 0
      %1558 = vmatprep.subr.bf16.mxu0 0
      %1559 = vmatpush1.bf16.msra.mxu0 0
      %1560 = vmatprep.subr.bf16.mxu0 0
      %1561 = vmatpush1.bf16.msra.mxu0 0
      %1562 = vmatprep.subr.bf16.mxu0 0
      %1563 = vmatpush1.bf16.msra.mxu0 0
      %1564 = vmatprep.subr.bf16.mxu0 0
      %1565 = vmatpush1.bf16.msra.mxu0 0
      %1566 = vmatprep.subr.bf16.mxu0 0
      %1567 = vmatpush1.bf16.msra.mxu0 %v1548
      %1568 = vmatprep.subr.bf16.mxu0 0
      %1569 = vmatpush1.bf16.msra.mxu0 %v1547
      %1570 = vmatprep.subr.bf16.mxu0 0
      %1571 = vmatpush2.bf16.msra.mxu0 0
      %1572 = vmatprep.subr.bf16.mxu0 0
      %1573 = vmatpush2.bf16.msra.mxu0 0
      %1574 = vmatprep.subr.bf16.mxu0 0
      %1575 = vmatpush2.bf16.msra.mxu0 0
      %1576 = vmatprep.subr.bf16.mxu0 0
      %1577 = vmatpush2.bf16.msra.mxu0 0
      %1578 = vmatprep.subr.bf16.mxu0 0
      %1579 = vmatpush2.bf16.msra.mxu0 0
      %1580 = vmatprep.subr.bf16.mxu0 0
      %1581 = vmatpush2.bf16.msra.mxu0 0
      %1582 = vmatprep.subr.bf16.mxu0 0
      %1583 = vmatpush2.bf16.msra.mxu0 0
      %1584 = vmatprep.subr.bf16.mxu0 0
      %1585 = vmatpush2.bf16.msra.mxu0 0
      %1586 = vmatprep.mubr.bf16.mxu0 0
      %1587 = vmatmul.mubr.bf16.gmra.mxu0 %v1552
      %v1588 = vpop.f32.mrf.mxu0
      %v1589 = vadd.f32 0.0, %v1588
      %v1590 = vpop.f32.mrf.mxu0
      %v1591 = vpop.f32.mrf.mxu0
      %v1592 = vpop.f32.mrf.mxu0
      %1593 = vdwg.mxu0
      %v1598 = vunpack.c.l.b16 %v317
      %v1599 = vunpack.c.l.b16 %v318
      %v1600 = vunpack.c.l.b16 %v319
      %v1601 = vunpack.c.l.b16 %v320
      %v1602 = vpack.c.b16 %v1599, %v1598
      %v1603 = vpack.c.b16 %v1601, %v1600
      %v1607 = vsel %vm505, %v193, 0
      %1609 = vmatprep.subr.bf16.mxu0 0
      %1610 = vmatpush1.bf16.msra.mxu0 0
      %1611 = vmatprep.subr.bf16.mxu0 0
      %1612 = vmatpush1.bf16.msra.mxu0 0
      %1613 = vmatprep.subr.bf16.mxu0 0
      %1614 = vmatpush1.bf16.msra.mxu0 0
      %1615 = vmatprep.subr.bf16.mxu0 0
      %1616 = vmatpush1.bf16.msra.mxu0 0
      %1617 = vmatprep.subr.bf16.mxu0 0
      %1618 = vmatpush1.bf16.msra.mxu0 0
      %1619 = vmatprep.subr.bf16.mxu0 0
      %1620 = vmatpush1.bf16.msra.mxu0 0
      %1621 = vmatprep.subr.bf16.mxu0 0
      %1622 = vmatpush1.bf16.msra.mxu0 %v1603
      %1623 = vmatprep.subr.bf16.mxu0 0
      %1624 = vmatpush1.bf16.msra.mxu0 %v1602
      %1625 = vmatprep.subr.bf16.mxu0 0
      %1626 = vmatpush2.bf16.msra.mxu0 0
      %1627 = vmatprep.subr.bf16.mxu0 0
      %1628 = vmatpush2.bf16.msra.mxu0 0
      %1629 = vmatprep.subr.bf16.mxu0 0
      %1630 = vmatpush2.bf16.msra.mxu0 0
      %1631 = vmatprep.subr.bf16.mxu0 0
      %1632 = vmatpush2.bf16.msra.mxu0 0
      %1633 = vmatprep.subr.bf16.mxu0 0
      %1634 = vmatpush2.bf16.msra.mxu0 0
      %1635 = vmatprep.subr.bf16.mxu0 0
      %1636 = vmatpush2.bf16.msra.mxu0 0
      %1637 = vmatprep.subr.bf16.mxu0 0
      %1638 = vmatpush2.bf16.msra.mxu0 0
      %1639 = vmatprep.subr.bf16.mxu0 0
      %1640 = vmatpush2.bf16.msra.mxu0 0
      %1641 = vmatprep.mubr.bf16.mxu0 0
      %1642 = vmatmul.mubr.bf16.gmra.mxu0 %v1607
      %v1643 = vpop.f32.mrf.mxu0
      %v1644 = vadd.f32 0.0, %v1643
      %v1645 = vpop.f32.mrf.mxu0
      %v1646 = vpop.f32.mrf.mxu0
      %v1647 = vpop.f32.mrf.mxu0
      %1648 = vdwg.mxu0
      %v1653 = vunpack.c.l.b16 %v321
      %v1654 = vunpack.c.l.b16 %v322
      %v1655 = vunpack.c.l.b16 %v323
      %v1656 = vunpack.c.l.b16 %v324
      %v1657 = vpack.c.b16 %v1654, %v1653
      %v1658 = vpack.c.b16 %v1656, %v1655
      %v1662 = vsel %vm505, %v194, 0
      %1664 = vmatprep.subr.bf16.mxu0 0
      %1665 = vmatpush1.bf16.msra.mxu0 0
      %1666 = vmatprep.subr.bf16.mxu0 0
      %1667 = vmatpush1.bf16.msra.mxu0 0
      %1668 = vmatprep.subr.bf16.mxu0 0
      %1669 = vmatpush1.bf16.msra.mxu0 0
      %1670 = vmatprep.subr.bf16.mxu0 0
      %1671 = vmatpush1.bf16.msra.mxu0 0
      %1672 = vmatprep.subr.bf16.mxu0 0
      %1673 = vmatpush1.bf16.msra.mxu0 0
      %1674 = vmatprep.subr.bf16.mxu0 0
      %1675 = vmatpush1.bf16.msra.mxu0 0
      %1676 = vmatprep.subr.bf16.mxu0 0
      %1677 = vmatpush1.bf16.msra.mxu0 %v1658
      %1678 = vmatprep.subr.bf16.mxu0 0
      %1679 = vmatpush1.bf16.msra.mxu0 %v1657
      %1680 = vmatprep.subr.bf16.mxu0 0
      %1681 = vmatpush2.bf16.msra.mxu0 0
      %1682 = vmatprep.subr.bf16.mxu0 0
      %1683 = vmatpush2.bf16.msra.mxu0 0
      %1684 = vmatprep.subr.bf16.mxu0 0
      %1685 = vmatpush2.bf16.msra.mxu0 0
      %1686 = vmatprep.subr.bf16.mxu0 0
      %1687 = vmatpush2.bf16.msra.mxu0 0
      %1688 = vmatprep.subr.bf16.mxu0 0
      %1689 = vmatpush2.bf16.msra.mxu0 0
      %1690 = vmatprep.subr.bf16.mxu0 0
      %1691 = vmatpush2.bf16.msra.mxu0 0
      %1692 = vmatprep.subr.bf16.mxu0 0
      %1693 = vmatpush2.bf16.msra.mxu0 0
      %1694 = vmatprep.subr.bf16.mxu0 0
      %1695 = vmatpush2.bf16.msra.mxu0 0
      %1696 = vmatprep.mubr.bf16.mxu0 0
      %1697 = vmatmul.mubr.bf16.gmra.mxu0 %v1662
      %v1698 = vpop.f32.mrf.mxu0
      %v1699 = vadd.f32 0.0, %v1698
      %v1700 = vpop.f32.mrf.mxu0
      %v1701 = vpop.f32.mrf.mxu0
      %v1702 = vpop.f32.mrf.mxu0
      %1703 = vdwg.mxu0
      %v1708 = vunpack.c.l.b16 %v325
      %v1709 = vunpack.c.l.b16 %v326
      %v1710 = vunpack.c.l.b16 %v327
      %v1711 = vunpack.c.l.b16 %v328
      %v1712 = vpack.c.b16 %v1709, %v1708
      %v1713 = vpack.c.b16 %v1711, %v1710
      %v1717 = vsel %vm505, %v195, 0
      %1719 = vmatprep.subr.bf16.mxu0 0
      %1720 = vmatpush1.bf16.msra.mxu0 0
      %1721 = vmatprep.subr.bf16.mxu0 0
      %1722 = vmatpush1.bf16.msra.mxu0 0
      %1723 = vmatprep.subr.bf16.mxu0 0
      %1724 = vmatpush1.bf16.msra.mxu0 0
      %1725 = vmatprep.subr.bf16.mxu0 0
      %1726 = vmatpush1.bf16.msra.mxu0 0
      %1727 = vmatprep.subr.bf16.mxu0 0
      %1728 = vmatpush1.bf16.msra.mxu0 0
      %1729 = vmatprep.subr.bf16.mxu0 0
      %1730 = vmatpush1.bf16.msra.mxu0 0
      %1731 = vmatprep.subr.bf16.mxu0 0
      %1732 = vmatpush1.bf16.msra.mxu0 %v1713
      %1733 = vmatprep.subr.bf16.mxu0 0
      %1734 = vmatpush1.bf16.msra.mxu0 %v1712
      %1735 = vmatprep.subr.bf16.mxu0 0
      %1736 = vmatpush2.bf16.msra.mxu0 0
      %1737 = vmatprep.subr.bf16.mxu0 0
      %1738 = vmatpush2.bf16.msra.mxu0 0
      %1739 = vmatprep.subr.bf16.mxu0 0
      %1740 = vmatpush2.bf16.msra.mxu0 0
      %1741 = vmatprep.subr.bf16.mxu0 0
      %1742 = vmatpush2.bf16.msra.mxu0 0
      %1743 = vmatprep.subr.bf16.mxu0 0
      %1744 = vmatpush2.bf16.msra.mxu0 0
      %1745 = vmatprep.subr.bf16.mxu0 0
      %1746 = vmatpush2.bf16.msra.mxu0 0
      %1747 = vmatprep.subr.bf16.mxu0 0
      %1748 = vmatpush2.bf16.msra.mxu0 0
      %1749 = vmatprep.subr.bf16.mxu0 0
      %1750 = vmatpush2.bf16.msra.mxu0 0
      %1751 = vmatprep.mubr.bf16.mxu0 0
      %1752 = vmatmul.mubr.bf16.gmra.mxu0 %v1717
      %v1753 = vpop.f32.mrf.mxu0
      %v1754 = vadd.f32 0.0, %v1753
      %v1755 = vpop.f32.mrf.mxu0
      %v1756 = vpop.f32.mrf.mxu0
      %v1757 = vpop.f32.mrf.mxu0
      %1758 = vdwg.mxu0
      %v1763 = vunpack.c.l.b16 %v329
      %v1764 = vunpack.c.l.b16 %v330
      %v1765 = vunpack.c.l.b16 %v331
      %v1766 = vunpack.c.l.b16 %v332
      %v1767 = vpack.c.b16 %v1764, %v1763
      %v1768 = vpack.c.b16 %v1766, %v1765
      %v1772 = vsel %vm505, %v196, 0
      %1774 = vmatprep.subr.bf16.mxu0 0
      %1775 = vmatpush1.bf16.msra.mxu0 0
      %1776 = vmatprep.subr.bf16.mxu0 0
      %1777 = vmatpush1.bf16.msra.mxu0 0
      %1778 = vmatprep.subr.bf16.mxu0 0
      %1779 = vmatpush1.bf16.msra.mxu0 0
      %1780 = vmatprep.subr.bf16.mxu0 0
      %1781 = vmatpush1.bf16.msra.mxu0 0
      %1782 = vmatprep.subr.bf16.mxu0 0
      %1783 = vmatpush1.bf16.msra.mxu0 0
      %1784 = vmatprep.subr.bf16.mxu0 0
      %1785 = vmatpush1.bf16.msra.mxu0 0
      %1786 = vmatprep.subr.bf16.mxu0 0
      %1787 = vmatpush1.bf16.msra.mxu0 %v1768
      %1788 = vmatprep.subr.bf16.mxu0 0
      %1789 = vmatpush1.bf16.msra.mxu0 %v1767
      %1790 = vmatprep.subr.bf16.mxu0 0
      %1791 = vmatpush2.bf16.msra.mxu0 0
      %1792 = vmatprep.subr.bf16.mxu0 0
      %1793 = vmatpush2.bf16.msra.mxu0 0
      %1794 = vmatprep.subr.bf16.mxu0 0
      %1795 = vmatpush2.bf16.msra.mxu0 0
      %1796 = vmatprep.subr.bf16.mxu0 0
      %1797 = vmatpush2.bf16.msra.mxu0 0
      %1798 = vmatprep.subr.bf16.mxu0 0
      %1799 = vmatpush2.bf16.msra.mxu0 0
      %1800 = vmatprep.subr.bf16.mxu0 0
      %1801 = vmatpush2.bf16.msra.mxu0 0
      %1802 = vmatprep.subr.bf16.mxu0 0
      %1803 = vmatpush2.bf16.msra.mxu0 0
      %1804 = vmatprep.subr.bf16.mxu0 0
      %1805 = vmatpush2.bf16.msra.mxu0 0
      %1806 = vmatprep.mubr.bf16.mxu0 0
      %1807 = vmatmul.mubr.bf16.gmra.mxu0 %v1772
      %v1808 = vpop.f32.mrf.mxu0
      %v1809 = vadd.f32 0.0, %v1808
      %v1810 = vpop.f32.mrf.mxu0
      %v1811 = vpop.f32.mrf.mxu0
      %v1812 = vpop.f32.mrf.mxu0
      %1813 = vdwg.mxu0
      %v1818 = vunpack.c.l.b16 %v333
      %v1819 = vunpack.c.l.b16 %v334
      %v1820 = vunpack.c.l.b16 %v335
      %v1821 = vunpack.c.l.b16 %v336
      %v1822 = vpack.c.b16 %v1819, %v1818
      %v1823 = vpack.c.b16 %v1821, %v1820
      %v1827 = vsel %vm505, %v197, 0
      %1829 = vmatprep.subr.bf16.mxu0 0
      %1830 = vmatpush1.bf16.msra.mxu0 0
      %1831 = vmatprep.subr.bf16.mxu0 0
      %1832 = vmatpush1.bf16.msra.mxu0 0
      %1833 = vmatprep.subr.bf16.mxu0 0
      %1834 = vmatpush1.bf16.msra.mxu0 0
      %1835 = vmatprep.subr.bf16.mxu0 0
      %1836 = vmatpush1.bf16.msra.mxu0 0
      %1837 = vmatprep.subr.bf16.mxu0 0
      %1838 = vmatpush1.bf16.msra.mxu0 0
      %1839 = vmatprep.subr.bf16.mxu0 0
      %1840 = vmatpush1.bf16.msra.mxu0 0
      %1841 = vmatprep.subr.bf16.mxu0 0
      %1842 = vmatpush1.bf16.msra.mxu0 %v1823
      %1843 = vmatprep.subr.bf16.mxu0 0
      %1844 = vmatpush1.bf16.msra.mxu0 %v1822
      %1845 = vmatprep.subr.bf16.mxu0 0
      %1846 = vmatpush2.bf16.msra.mxu0 0
      %1847 = vmatprep.subr.bf16.mxu0 0
      %1848 = vmatpush2.bf16.msra.mxu0 0
      %1849 = vmatprep.subr.bf16.mxu0 0
      %1850 = vmatpush2.bf16.msra.mxu0 0
      %1851 = vmatprep.subr.bf16.mxu0 0
      %1852 = vmatpush2.bf16.msra.mxu0 0
      %1853 = vmatprep.subr.bf16.mxu0 0
      %1854 = vmatpush2.bf16.msra.mxu0 0
      %1855 = vmatprep.subr.bf16.mxu0 0
      %1856 = vmatpush2.bf16.msra.mxu0 0
      %1857 = vmatprep.subr.bf16.mxu0 0
      %1858 = vmatpush2.bf16.msra.mxu0 0
      %1859 = vmatprep.subr.bf16.mxu0 0
      %1860 = vmatpush2.bf16.msra.mxu0 0
      %1861 = vmatprep.mubr.bf16.mxu0 0
      %1862 = vmatmul.mubr.bf16.gmra.mxu0 %v1827
      %v1863 = vpop.f32.mrf.mxu0
      %v1864 = vadd.f32 0.0, %v1863
      %v1865 = vpop.f32.mrf.mxu0
      %v1866 = vpop.f32.mrf.mxu0
      %v1867 = vpop.f32.mrf.mxu0
      %1868 = vdwg.mxu0
      %v1873 = vunpack.c.l.b16 %v337
      %v1874 = vunpack.c.l.b16 %v338
      %v1875 = vunpack.c.l.b16 %v339
      %v1876 = vunpack.c.l.b16 %v340
      %v1877 = vpack.c.b16 %v1874, %v1873
      %v1878 = vpack.c.b16 %v1876, %v1875
      %v1882 = vsel %vm505, %v198, 0
      %1884 = vmatprep.subr.bf16.mxu0 0
      %1885 = vmatpush1.bf16.msra.mxu0 0
      %1886 = vmatprep.subr.bf16.mxu0 0
      %1887 = vmatpush1.bf16.msra.mxu0 0
      %1888 = vmatprep.subr.bf16.mxu0 0
      %1889 = vmatpush1.bf16.msra.mxu0 0
      %1890 = vmatprep.subr.bf16.mxu0 0
      %1891 = vmatpush1.bf16.msra.mxu0 0
      %1892 = vmatprep.subr.bf16.mxu0 0
      %1893 = vmatpush1.bf16.msra.mxu0 0
      %1894 = vmatprep.subr.bf16.mxu0 0
      %1895 = vmatpush1.bf16.msra.mxu0 0
      %1896 = vmatprep.subr.bf16.mxu0 0
      %1897 = vmatpush1.bf16.msra.mxu0 %v1878
      %1898 = vmatprep.subr.bf16.mxu0 0
      %1899 = vmatpush1.bf16.msra.mxu0 %v1877
      %1900 = vmatprep.subr.bf16.mxu0 0
      %1901 = vmatpush2.bf16.msra.mxu0 0
      %1902 = vmatprep.subr.bf16.mxu0 0
      %1903 = vmatpush2.bf16.msra.mxu0 0
      %1904 = vmatprep.subr.bf16.mxu0 0
      %1905 = vmatpush2.bf16.msra.mxu0 0
      %1906 = vmatprep.subr.bf16.mxu0 0
      %1907 = vmatpush2.bf16.msra.mxu0 0
      %1908 = vmatprep.subr.bf16.mxu0 0
      %1909 = vmatpush2.bf16.msra.mxu0 0
      %1910 = vmatprep.subr.bf16.mxu0 0
      %1911 = vmatpush2.bf16.msra.mxu0 0
      %1912 = vmatprep.subr.bf16.mxu0 0
      %1913 = vmatpush2.bf16.msra.mxu0 0
      %1914 = vmatprep.subr.bf16.mxu0 0
      %1915 = vmatpush2.bf16.msra.mxu0 0
      %1916 = vmatprep.mubr.bf16.mxu0 0
      %1917 = vmatmul.mubr.bf16.gmra.mxu0 %v1882
      %v1918 = vpop.f32.mrf.mxu0
      %v1919 = vadd.f32 0.0, %v1918
      %v1920 = vpop.f32.mrf.mxu0
      %v1921 = vpop.f32.mrf.mxu0
      %v1922 = vpop.f32.mrf.mxu0
      %1923 = vdwg.mxu0
      %v1928 = vunpack.c.l.b16 %v341
      %v1929 = vunpack.c.l.b16 %v342
      %v1930 = vunpack.c.l.b16 %v343
      %v1931 = vunpack.c.l.b16 %v344
      %v1932 = vpack.c.b16 %v1929, %v1928
      %v1933 = vpack.c.b16 %v1931, %v1930
      %v1937 = vsel %vm505, %v199, 0
      %1939 = vmatprep.subr.bf16.mxu0 0
      %1940 = vmatpush1.bf16.msra.mxu0 0
      %1941 = vmatprep.subr.bf16.mxu0 0
      %1942 = vmatpush1.bf16.msra.mxu0 0
      %1943 = vmatprep.subr.bf16.mxu0 0
      %1944 = vmatpush1.bf16.msra.mxu0 0
      %1945 = vmatprep.subr.bf16.mxu0 0
      %1946 = vmatpush1.bf16.msra.mxu0 0
      %1947 = vmatprep.subr.bf16.mxu0 0
      %1948 = vmatpush1.bf16.msra.mxu0 0
      %1949 = vmatprep.subr.bf16.mxu0 0
      %1950 = vmatpush1.bf16.msra.mxu0 0
      %1951 = vmatprep.subr.bf16.mxu0 0
      %1952 = vmatpush1.bf16.msra.mxu0 %v1933
      %1953 = vmatprep.subr.bf16.mxu0 0
      %1954 = vmatpush1.bf16.msra.mxu0 %v1932
      %1955 = vmatprep.subr.bf16.mxu0 0
      %1956 = vmatpush2.bf16.msra.mxu0 0
      %1957 = vmatprep.subr.bf16.mxu0 0
      %1958 = vmatpush2.bf16.msra.mxu0 0
      %1959 = vmatprep.subr.bf16.mxu0 0
      %1960 = vmatpush2.bf16.msra.mxu0 0
      %1961 = vmatprep.subr.bf16.mxu0 0
      %1962 = vmatpush2.bf16.msra.mxu0 0
      %1963 = vmatprep.subr.bf16.mxu0 0
      %1964 = vmatpush2.bf16.msra.mxu0 0
      %1965 = vmatprep.subr.bf16.mxu0 0
      %1966 = vmatpush2.bf16.msra.mxu0 0
      %1967 = vmatprep.subr.bf16.mxu0 0
      %1968 = vmatpush2.bf16.msra.mxu0 0
      %1969 = vmatprep.subr.bf16.mxu0 0
      %1970 = vmatpush2.bf16.msra.mxu0 0
      %1971 = vmatprep.mubr.bf16.mxu0 0
      %1972 = vmatmul.mubr.bf16.gmra.mxu0 %v1937
      %v1973 = vpop.f32.mrf.mxu0
      %v1974 = vadd.f32 0.0, %v1973
      %v1975 = vpop.f32.mrf.mxu0
      %v1976 = vpop.f32.mrf.mxu0
      %v1977 = vpop.f32.mrf.mxu0
      %1978 = vdwg.mxu0
      %v1983 = vunpack.c.l.b16 %v345
      %v1984 = vunpack.c.l.b16 %v346
      %v1985 = vunpack.c.l.b16 %v347
      %v1986 = vunpack.c.l.b16 %v348
      %v1987 = vpack.c.b16 %v1984, %v1983
      %v1988 = vpack.c.b16 %v1986, %v1985
      %v1992 = vsel %vm505, %v200, 0
      %1994 = vmatprep.subr.bf16.mxu0 0
      %1995 = vmatpush1.bf16.msra.mxu0 0
      %1996 = vmatprep.subr.bf16.mxu0 0
      %1997 = vmatpush1.bf16.msra.mxu0 0
      %1998 = vmatprep.subr.bf16.mxu0 0
      %1999 = vmatpush1.bf16.msra.mxu0 0
      %2000 = vmatprep.subr.bf16.mxu0 0
      %2001 = vmatpush1.bf16.msra.mxu0 0
      %2002 = vmatprep.subr.bf16.mxu0 0
      %2003 = vmatpush1.bf16.msra.mxu0 0
      %2004 = vmatprep.subr.bf16.mxu0 0
      %2005 = vmatpush1.bf16.msra.mxu0 0
      %2006 = vmatprep.subr.bf16.mxu0 0
      %2007 = vmatpush1.bf16.msra.mxu0 %v1988
      %2008 = vmatprep.subr.bf16.mxu0 0
      %2009 = vmatpush1.bf16.msra.mxu0 %v1987
      %2010 = vmatprep.subr.bf16.mxu0 0
      %2011 = vmatpush2.bf16.msra.mxu0 0
      %2012 = vmatprep.subr.bf16.mxu0 0
      %2013 = vmatpush2.bf16.msra.mxu0 0
      %2014 = vmatprep.subr.bf16.mxu0 0
      %2015 = vmatpush2.bf16.msra.mxu0 0
      %2016 = vmatprep.subr.bf16.mxu0 0
      %2017 = vmatpush2.bf16.msra.mxu0 0
      %2018 = vmatprep.subr.bf16.mxu0 0
      %2019 = vmatpush2.bf16.msra.mxu0 0
      %2020 = vmatprep.subr.bf16.mxu0 0
      %2021 = vmatpush2.bf16.msra.mxu0 0
      %2022 = vmatprep.subr.bf16.mxu0 0
      %2023 = vmatpush2.bf16.msra.mxu0 0
      %2024 = vmatprep.subr.bf16.mxu0 0
      %2025 = vmatpush2.bf16.msra.mxu0 0
      %2026 = vmatprep.mubr.bf16.mxu0 0
      %2027 = vmatmul.mubr.bf16.gmra.mxu0 %v1992
      %v2028 = vpop.f32.mrf.mxu0
      %v2029 = vadd.f32 0.0, %v2028
      %v2030 = vpop.f32.mrf.mxu0
      %v2031 = vpop.f32.mrf.mxu0
      %v2032 = vpop.f32.mrf.mxu0
      %2033 = vdwg.mxu0
      %v2038 = vunpack.c.l.b16 %v349
      %v2039 = vunpack.c.l.b16 %v350
      %v2040 = vunpack.c.l.b16 %v351
      %v2041 = vunpack.c.l.b16 %v352
      %v2042 = vpack.c.b16 %v2039, %v2038
      %v2043 = vpack.c.b16 %v2041, %v2040
      %v2047 = vsel %vm505, %v201, 0
      %2049 = vmatprep.subr.bf16.mxu0 0
      %2050 = vmatpush1.bf16.msra.mxu0 0
      %2051 = vmatprep.subr.bf16.mxu0 0
      %2052 = vmatpush1.bf16.msra.mxu0 0
      %2053 = vmatprep.subr.bf16.mxu0 0
      %2054 = vmatpush1.bf16.msra.mxu0 0
      %2055 = vmatprep.subr.bf16.mxu0 0
      %2056 = vmatpush1.bf16.msra.mxu0 0
      %2057 = vmatprep.subr.bf16.mxu0 0
      %2058 = vmatpush1.bf16.msra.mxu0 0
      %2059 = vmatprep.subr.bf16.mxu0 0
      %2060 = vmatpush1.bf16.msra.mxu0 0
      %2061 = vmatprep.subr.bf16.mxu0 0
      %2062 = vmatpush1.bf16.msra.mxu0 %v2043
      %2063 = vmatprep.subr.bf16.mxu0 0
      %2064 = vmatpush1.bf16.msra.mxu0 %v2042
      %2065 = vmatprep.subr.bf16.mxu0 0
      %2066 = vmatpush2.bf16.msra.mxu0 0
      %2067 = vmatprep.subr.bf16.mxu0 0
      %2068 = vmatpush2.bf16.msra.mxu0 0
      %2069 = vmatprep.subr.bf16.mxu0 0
      %2070 = vmatpush2.bf16.msra.mxu0 0
      %2071 = vmatprep.subr.bf16.mxu0 0
      %2072 = vmatpush2.bf16.msra.mxu0 0
      %2073 = vmatprep.subr.bf16.mxu0 0
      %2074 = vmatpush2.bf16.msra.mxu0 0
      %2075 = vmatprep.subr.bf16.mxu0 0
      %2076 = vmatpush2.bf16.msra.mxu0 0
      %2077 = vmatprep.subr.bf16.mxu0 0
      %2078 = vmatpush2.bf16.msra.mxu0 0
      %2079 = vmatprep.subr.bf16.mxu0 0
      %2080 = vmatpush2.bf16.msra.mxu0 0
      %2081 = vmatprep.mubr.bf16.mxu0 0
      %2082 = vmatmul.mubr.bf16.gmra.mxu0 %v2047
      %v2083 = vpop.f32.mrf.mxu0
      %v2084 = vadd.f32 0.0, %v2083
      %v2085 = vpop.f32.mrf.mxu0
      %v2086 = vpop.f32.mrf.mxu0
      %v2087 = vpop.f32.mrf.mxu0
      %2088 = vdwg.mxu0
      %v2093 = vunpack.c.l.b16 %v353
      %v2094 = vunpack.c.l.b16 %v354
      %v2095 = vunpack.c.l.b16 %v355
      %v2096 = vunpack.c.l.b16 %v356
      %v2097 = vpack.c.b16 %v2094, %v2093
      %v2098 = vpack.c.b16 %v2096, %v2095
      %v2102 = vsel %vm505, %v202, 0
      %2104 = vmatprep.subr.bf16.mxu0 0
      %2105 = vmatpush1.bf16.msra.mxu0 0
      %2106 = vmatprep.subr.bf16.mxu0 0
      %2107 = vmatpush1.bf16.msra.mxu0 0
      %2108 = vmatprep.subr.bf16.mxu0 0
      %2109 = vmatpush1.bf16.msra.mxu0 0
      %2110 = vmatprep.subr.bf16.mxu0 0
      %2111 = vmatpush1.bf16.msra.mxu0 0
      %2112 = vmatprep.subr.bf16.mxu0 0
      %2113 = vmatpush1.bf16.msra.mxu0 0
      %2114 = vmatprep.subr.bf16.mxu0 0
      %2115 = vmatpush1.bf16.msra.mxu0 0
      %2116 = vmatprep.subr.bf16.mxu0 0
      %2117 = vmatpush1.bf16.msra.mxu0 %v2098
      %2118 = vmatprep.subr.bf16.mxu0 0
      %2119 = vmatpush1.bf16.msra.mxu0 %v2097
      %2120 = vmatprep.subr.bf16.mxu0 0
      %2121 = vmatpush2.bf16.msra.mxu0 0
      %2122 = vmatprep.subr.bf16.mxu0 0
      %2123 = vmatpush2.bf16.msra.mxu0 0
      %2124 = vmatprep.subr.bf16.mxu0 0
      %2125 = vmatpush2.bf16.msra.mxu0 0
      %2126 = vmatprep.subr.bf16.mxu0 0
      %2127 = vmatpush2.bf16.msra.mxu0 0
      %2128 = vmatprep.subr.bf16.mxu0 0
      %2129 = vmatpush2.bf16.msra.mxu0 0
      %2130 = vmatprep.subr.bf16.mxu0 0
      %2131 = vmatpush2.bf16.msra.mxu0 0
      %2132 = vmatprep.subr.bf16.mxu0 0
      %2133 = vmatpush2.bf16.msra.mxu0 0
      %2134 = vmatprep.subr.bf16.mxu0 0
      %2135 = vmatpush2.bf16.msra.mxu0 0
      %2136 = vmatprep.mubr.bf16.mxu0 0
      %2137 = vmatmul.mubr.bf16.gmra.mxu0 %v2102
      %v2138 = vpop.f32.mrf.mxu0
      %v2139 = vadd.f32 0.0, %v2138
      %v2140 = vpop.f32.mrf.mxu0
      %v2141 = vpop.f32.mrf.mxu0
      %v2142 = vpop.f32.mrf.mxu0
      %2143 = vdwg.mxu0
      %v2148 = vunpack.c.l.b16 %v357
      %v2149 = vunpack.c.l.b16 %v358
      %v2150 = vunpack.c.l.b16 %v359
      %v2151 = vunpack.c.l.b16 %v360
      %v2152 = vpack.c.b16 %v2149, %v2148
      %v2153 = vpack.c.b16 %v2151, %v2150
      %v2157 = vsel %vm505, %v203, 0
      %2159 = vmatprep.subr.bf16.mxu0 0
      %2160 = vmatpush1.bf16.msra.mxu0 0
      %2161 = vmatprep.subr.bf16.mxu0 0
      %2162 = vmatpush1.bf16.msra.mxu0 0
      %2163 = vmatprep.subr.bf16.mxu0 0
      %2164 = vmatpush1.bf16.msra.mxu0 0
      %2165 = vmatprep.subr.bf16.mxu0 0
      %2166 = vmatpush1.bf16.msra.mxu0 0
      %2167 = vmatprep.subr.bf16.mxu0 0
      %2168 = vmatpush1.bf16.msra.mxu0 0
      %2169 = vmatprep.subr.bf16.mxu0 0
      %2170 = vmatpush1.bf16.msra.mxu0 0
      %2171 = vmatprep.subr.bf16.mxu0 0
      %2172 = vmatpush1.bf16.msra.mxu0 %v2153
      %2173 = vmatprep.subr.bf16.mxu0 0
      %2174 = vmatpush1.bf16.msra.mxu0 %v2152
      %2175 = vmatprep.subr.bf16.mxu0 0
      %2176 = vmatpush2.bf16.msra.mxu0 0
      %2177 = vmatprep.subr.bf16.mxu0 0
      %2178 = vmatpush2.bf16.msra.mxu0 0
      %2179 = vmatprep.subr.bf16.mxu0 0
      %2180 = vmatpush2.bf16.msra.mxu0 0
      %2181 = vmatprep.subr.bf16.mxu0 0
      %2182 = vmatpush2.bf16.msra.mxu0 0
      %2183 = vmatprep.subr.bf16.mxu0 0
      %2184 = vmatpush2.bf16.msra.mxu0 0
      %2185 = vmatprep.subr.bf16.mxu0 0
      %2186 = vmatpush2.bf16.msra.mxu0 0
      %2187 = vmatprep.subr.bf16.mxu0 0
      %2188 = vmatpush2.bf16.msra.mxu0 0
      %2189 = vmatprep.subr.bf16.mxu0 0
      %2190 = vmatpush2.bf16.msra.mxu0 0
      %2191 = vmatprep.mubr.bf16.mxu0 0
      %2192 = vmatmul.mubr.bf16.gmra.mxu0 %v2157
      %v2193 = vpop.f32.mrf.mxu0
      %v2194 = vadd.f32 0.0, %v2193
      %v2195 = vpop.f32.mrf.mxu0
      %v2196 = vpop.f32.mrf.mxu0
      %v2197 = vpop.f32.mrf.mxu0
      %2198 = vdwg.mxu0
      %v2203 = vunpack.c.l.b16 %v361
      %v2204 = vunpack.c.l.b16 %v362
      %v2205 = vunpack.c.l.b16 %v363
      %v2206 = vunpack.c.l.b16 %v364
      %v2207 = vpack.c.b16 %v2204, %v2203
      %v2208 = vpack.c.b16 %v2206, %v2205
      %v2212 = vsel %vm505, %v204, 0
      %2214 = vmatprep.subr.bf16.mxu0 0
      %2215 = vmatpush1.bf16.msra.mxu0 0
      %2216 = vmatprep.subr.bf16.mxu0 0
      %2217 = vmatpush1.bf16.msra.mxu0 0
      %2218 = vmatprep.subr.bf16.mxu0 0
      %2219 = vmatpush1.bf16.msra.mxu0 0
      %2220 = vmatprep.subr.bf16.mxu0 0
      %2221 = vmatpush1.bf16.msra.mxu0 0
      %2222 = vmatprep.subr.bf16.mxu0 0
      %2223 = vmatpush1.bf16.msra.mxu0 0
      %2224 = vmatprep.subr.bf16.mxu0 0
      %2225 = vmatpush1.bf16.msra.mxu0 0
      %2226 = vmatprep.subr.bf16.mxu0 0
      %2227 = vmatpush1.bf16.msra.mxu0 %v2208
      %2228 = vmatprep.subr.bf16.mxu0 0
      %2229 = vmatpush1.bf16.msra.mxu0 %v2207
      %2230 = vmatprep.subr.bf16.mxu0 0
      %2231 = vmatpush2.bf16.msra.mxu0 0
      %2232 = vmatprep.subr.bf16.mxu0 0
      %2233 = vmatpush2.bf16.msra.mxu0 0
      %2234 = vmatprep.subr.bf16.mxu0 0
      %2235 = vmatpush2.bf16.msra.mxu0 0
      %2236 = vmatprep.subr.bf16.mxu0 0
      %2237 = vmatpush2.bf16.msra.mxu0 0
      %2238 = vmatprep.subr.bf16.mxu0 0
      %2239 = vmatpush2.bf16.msra.mxu0 0
      %2240 = vmatprep.subr.bf16.mxu0 0
      %2241 = vmatpush2.bf16.msra.mxu0 0
      %2242 = vmatprep.subr.bf16.mxu0 0
      %2243 = vmatpush2.bf16.msra.mxu0 0
      %2244 = vmatprep.subr.bf16.mxu0 0
      %2245 = vmatpush2.bf16.msra.mxu0 0
      %2246 = vmatprep.mubr.bf16.mxu0 0
      %2247 = vmatmul.mubr.bf16.gmra.mxu0 %v2212
      %v2248 = vpop.f32.mrf.mxu0
      %v2249 = vadd.f32 0.0, %v2248
      %v2250 = vpop.f32.mrf.mxu0
      %v2251 = vpop.f32.mrf.mxu0
      %v2252 = vpop.f32.mrf.mxu0
      %2253 = vdwg.mxu0
      %v2258 = vunpack.c.l.b16 %v365
      %v2259 = vunpack.c.l.b16 %v366
      %v2260 = vunpack.c.l.b16 %v367
      %v2261 = vunpack.c.l.b16 %v368
      %v2262 = vpack.c.b16 %v2259, %v2258
      %v2263 = vpack.c.b16 %v2261, %v2260
      %v2267 = vsel %vm505, %v205, 0
      %2269 = vmatprep.subr.bf16.mxu0 0
      %2270 = vmatpush1.bf16.msra.mxu0 0
      %2271 = vmatprep.subr.bf16.mxu0 0
      %2272 = vmatpush1.bf16.msra.mxu0 0
      %2273 = vmatprep.subr.bf16.mxu0 0
      %2274 = vmatpush1.bf16.msra.mxu0 0
      %2275 = vmatprep.subr.bf16.mxu0 0
      %2276 = vmatpush1.bf16.msra.mxu0 0
      %2277 = vmatprep.subr.bf16.mxu0 0
      %2278 = vmatpush1.bf16.msra.mxu0 0
      %2279 = vmatprep.subr.bf16.mxu0 0
      %2280 = vmatpush1.bf16.msra.mxu0 0
      %2281 = vmatprep.subr.bf16.mxu0 0
      %2282 = vmatpush1.bf16.msra.mxu0 %v2263
      %2283 = vmatprep.subr.bf16.mxu0 0
      %2284 = vmatpush1.bf16.msra.mxu0 %v2262
      %2285 = vmatprep.subr.bf16.mxu0 0
      %2286 = vmatpush2.bf16.msra.mxu0 0
      %2287 = vmatprep.subr.bf16.mxu0 0
      %2288 = vmatpush2.bf16.msra.mxu0 0
      %2289 = vmatprep.subr.bf16.mxu0 0
      %2290 = vmatpush2.bf16.msra.mxu0 0
      %2291 = vmatprep.subr.bf16.mxu0 0
      %2292 = vmatpush2.bf16.msra.mxu0 0
      %2293 = vmatprep.subr.bf16.mxu0 0
      %2294 = vmatpush2.bf16.msra.mxu0 0
      %2295 = vmatprep.subr.bf16.mxu0 0
      %2296 = vmatpush2.bf16.msra.mxu0 0
      %2297 = vmatprep.subr.bf16.mxu0 0
      %2298 = vmatpush2.bf16.msra.mxu0 0
      %2299 = vmatprep.subr.bf16.mxu0 0
      %2300 = vmatpush2.bf16.msra.mxu0 0
      %2301 = vmatprep.mubr.bf16.mxu0 0
      %2302 = vmatmul.mubr.bf16.gmra.mxu0 %v2267
      %v2303 = vpop.f32.mrf.mxu0
      %v2304 = vadd.f32 0.0, %v2303
      %v2305 = vpop.f32.mrf.mxu0
      %v2306 = vpop.f32.mrf.mxu0
      %v2307 = vpop.f32.mrf.mxu0
      %2308 = vdwg.mxu0
      %v2313 = vunpack.c.l.b16 %v369
      %v2314 = vunpack.c.l.b16 %v370
      %v2315 = vunpack.c.l.b16 %v371
      %v2316 = vunpack.c.l.b16 %v372
      %v2317 = vpack.c.b16 %v2314, %v2313
      %v2318 = vpack.c.b16 %v2316, %v2315
      %v2322 = vsel %vm505, %v206, 0
      %2324 = vmatprep.subr.bf16.mxu0 0
      %2325 = vmatpush1.bf16.msra.mxu0 0
      %2326 = vmatprep.subr.bf16.mxu0 0
      %2327 = vmatpush1.bf16.msra.mxu0 0
      %2328 = vmatprep.subr.bf16.mxu0 0
      %2329 = vmatpush1.bf16.msra.mxu0 0
      %2330 = vmatprep.subr.bf16.mxu0 0
      %2331 = vmatpush1.bf16.msra.mxu0 0
      %2332 = vmatprep.subr.bf16.mxu0 0
      %2333 = vmatpush1.bf16.msra.mxu0 0
      %2334 = vmatprep.subr.bf16.mxu0 0
      %2335 = vmatpush1.bf16.msra.mxu0 0
      %2336 = vmatprep.subr.bf16.mxu0 0
      %2337 = vmatpush1.bf16.msra.mxu0 %v2318
      %2338 = vmatprep.subr.bf16.mxu0 0
      %2339 = vmatpush1.bf16.msra.mxu0 %v2317
      %2340 = vmatprep.subr.bf16.mxu0 0
      %2341 = vmatpush2.bf16.msra.mxu0 0
      %2342 = vmatprep.subr.bf16.mxu0 0
      %2343 = vmatpush2.bf16.msra.mxu0 0
      %2344 = vmatprep.subr.bf16.mxu0 0
      %2345 = vmatpush2.bf16.msra.mxu0 0
      %2346 = vmatprep.subr.bf16.mxu0 0
      %2347 = vmatpush2.bf16.msra.mxu0 0
      %2348 = vmatprep.subr.bf16.mxu0 0
      %2349 = vmatpush2.bf16.msra.mxu0 0
      %2350 = vmatprep.subr.bf16.mxu0 0
      %2351 = vmatpush2.bf16.msra.mxu0 0
      %2352 = vmatprep.subr.bf16.mxu0 0
      %2353 = vmatpush2.bf16.msra.mxu0 0
      %2354 = vmatprep.subr.bf16.mxu0 0
      %2355 = vmatpush2.bf16.msra.mxu0 0
      %2356 = vmatprep.mubr.bf16.mxu0 0
      %2357 = vmatmul.mubr.bf16.gmra.mxu0 %v2322
      %v2358 = vpop.f32.mrf.mxu0
      %v2359 = vadd.f32 0.0, %v2358
      %v2360 = vpop.f32.mrf.mxu0
      %v2361 = vpop.f32.mrf.mxu0
      %v2362 = vpop.f32.mrf.mxu0
      %2363 = vdwg.mxu0
      %v2368 = vunpack.c.l.b16 %v373
      %v2369 = vunpack.c.l.b16 %v374
      %v2370 = vunpack.c.l.b16 %v375
      %v2371 = vunpack.c.l.b16 %v376
      %v2372 = vpack.c.b16 %v2369, %v2368
      %v2373 = vpack.c.b16 %v2371, %v2370
      %v2377 = vsel %vm505, %v207, 0
      %2379 = vmatprep.subr.bf16.mxu0 0
      %2380 = vmatpush1.bf16.msra.mxu0 0
      %2381 = vmatprep.subr.bf16.mxu0 0
      %2382 = vmatpush1.bf16.msra.mxu0 0
      %2383 = vmatprep.subr.bf16.mxu0 0
      %2384 = vmatpush1.bf16.msra.mxu0 0
      %2385 = vmatprep.subr.bf16.mxu0 0
      %2386 = vmatpush1.bf16.msra.mxu0 0
      %2387 = vmatprep.subr.bf16.mxu0 0
      %2388 = vmatpush1.bf16.msra.mxu0 0
      %2389 = vmatprep.subr.bf16.mxu0 0
      %2390 = vmatpush1.bf16.msra.mxu0 0
      %2391 = vmatprep.subr.bf16.mxu0 0
      %2392 = vmatpush1.bf16.msra.mxu0 %v2373
      %2393 = vmatprep.subr.bf16.mxu0 0
      %2394 = vmatpush1.bf16.msra.mxu0 %v2372
      %2395 = vmatprep.subr.bf16.mxu0 0
      %2396 = vmatpush2.bf16.msra.mxu0 0
      %2397 = vmatprep.subr.bf16.mxu0 0
      %2398 = vmatpush2.bf16.msra.mxu0 0
      %2399 = vmatprep.subr.bf16.mxu0 0
      %2400 = vmatpush2.bf16.msra.mxu0 0
      %2401 = vmatprep.subr.bf16.mxu0 0
      %2402 = vmatpush2.bf16.msra.mxu0 0
      %2403 = vmatprep.subr.bf16.mxu0 0
      %2404 = vmatpush2.bf16.msra.mxu0 0
      %2405 = vmatprep.subr.bf16.mxu0 0
      %2406 = vmatpush2.bf16.msra.mxu0 0
      %2407 = vmatprep.subr.bf16.mxu0 0
      %2408 = vmatpush2.bf16.msra.mxu0 0
      %2409 = vmatprep.subr.bf16.mxu0 0
      %2410 = vmatpush2.bf16.msra.mxu0 0
      %2411 = vmatprep.mubr.bf16.mxu0 0
      %2412 = vmatmul.mubr.bf16.gmra.mxu0 %v2377
      %v2413 = vpop.f32.mrf.mxu0
      %v2414 = vadd.f32 0.0, %v2413
      %v2415 = vpop.f32.mrf.mxu0
      %v2416 = vpop.f32.mrf.mxu0
      %v2417 = vpop.f32.mrf.mxu0
      %2418 = vdwg.mxu0
      %v2423 = vunpack.c.l.b16 %v377
      %v2424 = vunpack.c.l.b16 %v378
      %v2425 = vunpack.c.l.b16 %v379
      %v2426 = vunpack.c.l.b16 %v380
      %v2427 = vpack.c.b16 %v2424, %v2423
      %v2428 = vpack.c.b16 %v2426, %v2425
      %v2432 = vsel %vm505, %v208, 0
      %2434 = vmatprep.subr.bf16.mxu0 0
      %2435 = vmatpush1.bf16.msra.mxu0 0
      %2436 = vmatprep.subr.bf16.mxu0 0
      %2437 = vmatpush1.bf16.msra.mxu0 0
      %2438 = vmatprep.subr.bf16.mxu0 0
      %2439 = vmatpush1.bf16.msra.mxu0 0
      %2440 = vmatprep.subr.bf16.mxu0 0
      %2441 = vmatpush1.bf16.msra.mxu0 0
      %2442 = vmatprep.subr.bf16.mxu0 0
      %2443 = vmatpush1.bf16.msra.mxu0 0
      %2444 = vmatprep.subr.bf16.mxu0 0
      %2445 = vmatpush1.bf16.msra.mxu0 0
      %2446 = vmatprep.subr.bf16.mxu0 0
      %2447 = vmatpush1.bf16.msra.mxu0 %v2428
      %2448 = vmatprep.subr.bf16.mxu0 0
      %2449 = vmatpush1.bf16.msra.mxu0 %v2427
      %2450 = vmatprep.subr.bf16.mxu0 0
      %2451 = vmatpush2.bf16.msra.mxu0 0
      %2452 = vmatprep.subr.bf16.mxu0 0
      %2453 = vmatpush2.bf16.msra.mxu0 0
      %2454 = vmatprep.subr.bf16.mxu0 0
      %2455 = vmatpush2.bf16.msra.mxu0 0
      %2456 = vmatprep.subr.bf16.mxu0 0
      %2457 = vmatpush2.bf16.msra.mxu0 0
      %2458 = vmatprep.subr.bf16.mxu0 0
      %2459 = vmatpush2.bf16.msra.mxu0 0
      %2460 = vmatprep.subr.bf16.mxu0 0
      %2461 = vmatpush2.bf16.msra.mxu0 0
      %2462 = vmatprep.subr.bf16.mxu0 0
      %2463 = vmatpush2.bf16.msra.mxu0 0
      %2464 = vmatprep.subr.bf16.mxu0 0
      %2465 = vmatpush2.bf16.msra.mxu0 0
      %2466 = vmatprep.mubr.bf16.mxu0 0
      %2467 = vmatmul.mubr.bf16.gmra.mxu0 %v2432
      %v2468 = vpop.f32.mrf.mxu0
      %v2469 = vadd.f32 0.0, %v2468
      %v2470 = vpop.f32.mrf.mxu0
      %v2471 = vpop.f32.mrf.mxu0
      %v2472 = vpop.f32.mrf.mxu0
      %2473 = vdwg.mxu0
      %v2478 = vunpack.c.l.b16 %v381
      %v2479 = vunpack.c.l.b16 %v382
      %v2480 = vunpack.c.l.b16 %v383
      %v2481 = vunpack.c.l.b16 %v384
      %v2482 = vpack.c.b16 %v2479, %v2478
      %v2483 = vpack.c.b16 %v2481, %v2480
      %v2487 = vsel %vm505, %v209, 0
      %2489 = vmatprep.subr.bf16.mxu0 0
      %2490 = vmatpush1.bf16.msra.mxu0 0
      %2491 = vmatprep.subr.bf16.mxu0 0
      %2492 = vmatpush1.bf16.msra.mxu0 0
      %2493 = vmatprep.subr.bf16.mxu0 0
      %2494 = vmatpush1.bf16.msra.mxu0 0
      %2495 = vmatprep.subr.bf16.mxu0 0
      %2496 = vmatpush1.bf16.msra.mxu0 0
      %2497 = vmatprep.subr.bf16.mxu0 0
      %2498 = vmatpush1.bf16.msra.mxu0 0
      %2499 = vmatprep.subr.bf16.mxu0 0
      %2500 = vmatpush1.bf16.msra.mxu0 0
      %2501 = vmatprep.subr.bf16.mxu0 0
      %2502 = vmatpush1.bf16.msra.mxu0 %v2483
      %2503 = vmatprep.subr.bf16.mxu0 0
      %2504 = vmatpush1.bf16.msra.mxu0 %v2482
      %2505 = vmatprep.subr.bf16.mxu0 0
      %2506 = vmatpush2.bf16.msra.mxu0 0
      %2507 = vmatprep.subr.bf16.mxu0 0
      %2508 = vmatpush2.bf16.msra.mxu0 0
      %2509 = vmatprep.subr.bf16.mxu0 0
      %2510 = vmatpush2.bf16.msra.mxu0 0
      %2511 = vmatprep.subr.bf16.mxu0 0
      %2512 = vmatpush2.bf16.msra.mxu0 0
      %2513 = vmatprep.subr.bf16.mxu0 0
      %2514 = vmatpush2.bf16.msra.mxu0 0
      %2515 = vmatprep.subr.bf16.mxu0 0
      %2516 = vmatpush2.bf16.msra.mxu0 0
      %2517 = vmatprep.subr.bf16.mxu0 0
      %2518 = vmatpush2.bf16.msra.mxu0 0
      %2519 = vmatprep.subr.bf16.mxu0 0
      %2520 = vmatpush2.bf16.msra.mxu0 0
      %2521 = vmatprep.mubr.bf16.mxu0 0
      %2522 = vmatmul.mubr.bf16.gmra.mxu0 %v2487
      %v2523 = vpop.f32.mrf.mxu0
      %v2524 = vadd.f32 0.0, %v2523
      %v2525 = vpop.f32.mrf.mxu0
      %v2526 = vpop.f32.mrf.mxu0
      %v2527 = vpop.f32.mrf.mxu0
      %2528 = vdwg.mxu0
      %v2533 = vunpack.c.l.b16 %v385
      %v2534 = vunpack.c.l.b16 %v386
      %v2535 = vunpack.c.l.b16 %v387
      %v2536 = vunpack.c.l.b16 %v388
      %v2537 = vpack.c.b16 %v2534, %v2533
      %v2538 = vpack.c.b16 %v2536, %v2535
      %v2542 = vsel %vm505, %v210, 0
      %2544 = vmatprep.subr.bf16.mxu0 0
      %2545 = vmatpush1.bf16.msra.mxu0 0
      %2546 = vmatprep.subr.bf16.mxu0 0
      %2547 = vmatpush1.bf16.msra.mxu0 0
      %2548 = vmatprep.subr.bf16.mxu0 0
      %2549 = vmatpush1.bf16.msra.mxu0 0
      %2550 = vmatprep.subr.bf16.mxu0 0
      %2551 = vmatpush1.bf16.msra.mxu0 0
      %2552 = vmatprep.subr.bf16.mxu0 0
      %2553 = vmatpush1.bf16.msra.mxu0 0
      %2554 = vmatprep.subr.bf16.mxu0 0
      %2555 = vmatpush1.bf16.msra.mxu0 0
      %2556 = vmatprep.subr.bf16.mxu0 0
      %2557 = vmatpush1.bf16.msra.mxu0 %v2538
      %2558 = vmatprep.subr.bf16.mxu0 0
      %2559 = vmatpush1.bf16.msra.mxu0 %v2537
      %2560 = vmatprep.subr.bf16.mxu0 0
      %2561 = vmatpush2.bf16.msra.mxu0 0
      %2562 = vmatprep.subr.bf16.mxu0 0
      %2563 = vmatpush2.bf16.msra.mxu0 0
      %2564 = vmatprep.subr.bf16.mxu0 0
      %2565 = vmatpush2.bf16.msra.mxu0 0
      %2566 = vmatprep.subr.bf16.mxu0 0
      %2567 = vmatpush2.bf16.msra.mxu0 0
      %2568 = vmatprep.subr.bf16.mxu0 0
      %2569 = vmatpush2.bf16.msra.mxu0 0
      %2570 = vmatprep.subr.bf16.mxu0 0
      %2571 = vmatpush2.bf16.msra.mxu0 0
      %2572 = vmatprep.subr.bf16.mxu0 0
      %2573 = vmatpush2.bf16.msra.mxu0 0
      %2574 = vmatprep.subr.bf16.mxu0 0
      %2575 = vmatpush2.bf16.msra.mxu0 0
      %2576 = vmatprep.mubr.bf16.mxu0 0
      %2577 = vmatmul.mubr.bf16.gmra.mxu0 %v2542
      %v2578 = vpop.f32.mrf.mxu0
      %v2579 = vadd.f32 0.0, %v2578
      %v2580 = vpop.f32.mrf.mxu0
      %v2581 = vpop.f32.mrf.mxu0
      %v2582 = vpop.f32.mrf.mxu0
      %2583 = vdwg.mxu0
      %v2588 = vunpack.c.l.b16 %v389
      %v2589 = vunpack.c.l.b16 %v390
      %v2590 = vunpack.c.l.b16 %v391
      %v2591 = vunpack.c.l.b16 %v392
      %v2592 = vpack.c.b16 %v2589, %v2588
      %v2593 = vpack.c.b16 %v2591, %v2590
      %v2597 = vsel %vm505, %v211, 0
      %2599 = vmatprep.subr.bf16.mxu0 0
      %2600 = vmatpush1.bf16.msra.mxu0 0
      %2601 = vmatprep.subr.bf16.mxu0 0
      %2602 = vmatpush1.bf16.msra.mxu0 0
      %2603 = vmatprep.subr.bf16.mxu0 0
      %2604 = vmatpush1.bf16.msra.mxu0 0
      %2605 = vmatprep.subr.bf16.mxu0 0
      %2606 = vmatpush1.bf16.msra.mxu0 0
      %2607 = vmatprep.subr.bf16.mxu0 0
      %2608 = vmatpush1.bf16.msra.mxu0 0
      %2609 = vmatprep.subr.bf16.mxu0 0
      %2610 = vmatpush1.bf16.msra.mxu0 0
      %2611 = vmatprep.subr.bf16.mxu0 0
      %2612 = vmatpush1.bf16.msra.mxu0 %v2593
      %2613 = vmatprep.subr.bf16.mxu0 0
      %2614 = vmatpush1.bf16.msra.mxu0 %v2592
      %2615 = vmatprep.subr.bf16.mxu0 0
      %2616 = vmatpush2.bf16.msra.mxu0 0
      %2617 = vmatprep.subr.bf16.mxu0 0
      %2618 = vmatpush2.bf16.msra.mxu0 0
      %2619 = vmatprep.subr.bf16.mxu0 0
      %2620 = vmatpush2.bf16.msra.mxu0 0
      %2621 = vmatprep.subr.bf16.mxu0 0
      %2622 = vmatpush2.bf16.msra.mxu0 0
      %2623 = vmatprep.subr.bf16.mxu0 0
      %2624 = vmatpush2.bf16.msra.mxu0 0
      %2625 = vmatprep.subr.bf16.mxu0 0
      %2626 = vmatpush2.bf16.msra.mxu0 0
      %2627 = vmatprep.subr.bf16.mxu0 0
      %2628 = vmatpush2.bf16.msra.mxu0 0
      %2629 = vmatprep.subr.bf16.mxu0 0
      %2630 = vmatpush2.bf16.msra.mxu0 0
      %2631 = vmatprep.mubr.bf16.mxu0 0
      %2632 = vmatmul.mubr.bf16.gmra.mxu0 %v2597
      %v2633 = vpop.f32.mrf.mxu0
      %v2634 = vadd.f32 0.0, %v2633
      %v2635 = vpop.f32.mrf.mxu0
      %v2636 = vpop.f32.mrf.mxu0
      %v2637 = vpop.f32.mrf.mxu0
      %2638 = vdwg.mxu0
      %v2643 = vunpack.c.l.b16 %v393
      %v2644 = vunpack.c.l.b16 %v394
      %v2645 = vunpack.c.l.b16 %v395
      %v2646 = vunpack.c.l.b16 %v396
      %v2647 = vpack.c.b16 %v2644, %v2643
      %v2648 = vpack.c.b16 %v2646, %v2645
      %v2652 = vsel %vm505, %v212, 0
      %2654 = vmatprep.subr.bf16.mxu0 0
      %2655 = vmatpush1.bf16.msra.mxu0 0
      %2656 = vmatprep.subr.bf16.mxu0 0
      %2657 = vmatpush1.bf16.msra.mxu0 0
      %2658 = vmatprep.subr.bf16.mxu0 0
      %2659 = vmatpush1.bf16.msra.mxu0 0
      %2660 = vmatprep.subr.bf16.mxu0 0
      %2661 = vmatpush1.bf16.msra.mxu0 0
      %2662 = vmatprep.subr.bf16.mxu0 0
      %2663 = vmatpush1.bf16.msra.mxu0 0
      %2664 = vmatprep.subr.bf16.mxu0 0
      %2665 = vmatpush1.bf16.msra.mxu0 0
      %2666 = vmatprep.subr.bf16.mxu0 0
      %2667 = vmatpush1.bf16.msra.mxu0 %v2648
      %2668 = vmatprep.subr.bf16.mxu0 0
      %2669 = vmatpush1.bf16.msra.mxu0 %v2647
      %2670 = vmatprep.subr.bf16.mxu0 0
      %2671 = vmatpush2.bf16.msra.mxu0 0
      %2672 = vmatprep.subr.bf16.mxu0 0
      %2673 = vmatpush2.bf16.msra.mxu0 0
      %2674 = vmatprep.subr.bf16.mxu0 0
      %2675 = vmatpush2.bf16.msra.mxu0 0
      %2676 = vmatprep.subr.bf16.mxu0 0
      %2677 = vmatpush2.bf16.msra.mxu0 0
      %2678 = vmatprep.subr.bf16.mxu0 0
      %2679 = vmatpush2.bf16.msra.mxu0 0
      %2680 = vmatprep.subr.bf16.mxu0 0
      %2681 = vmatpush2.bf16.msra.mxu0 0
      %2682 = vmatprep.subr.bf16.mxu0 0
      %2683 = vmatpush2.bf16.msra.mxu0 0
      %2684 = vmatprep.subr.bf16.mxu0 0
      %2685 = vmatpush2.bf16.msra.mxu0 0
      %2686 = vmatprep.mubr.bf16.mxu0 0
      %2687 = vmatmul.mubr.bf16.gmra.mxu0 %v2652
      %v2688 = vpop.f32.mrf.mxu0
      %v2689 = vadd.f32 0.0, %v2688
      %v2690 = vpop.f32.mrf.mxu0
      %v2691 = vpop.f32.mrf.mxu0
      %v2692 = vpop.f32.mrf.mxu0
      %2693 = vdwg.mxu0
      %v2698 = vunpack.c.l.b16 %v397
      %v2699 = vunpack.c.l.b16 %v398
      %v2700 = vunpack.c.l.b16 %v399
      %v2701 = vunpack.c.l.b16 %v400
      %v2702 = vpack.c.b16 %v2699, %v2698
      %v2703 = vpack.c.b16 %v2701, %v2700
      %v2707 = vsel %vm505, %v213, 0
      %2709 = vmatprep.subr.bf16.mxu0 0
      %2710 = vmatpush1.bf16.msra.mxu0 0
      %2711 = vmatprep.subr.bf16.mxu0 0
      %2712 = vmatpush1.bf16.msra.mxu0 0
      %2713 = vmatprep.subr.bf16.mxu0 0
      %2714 = vmatpush1.bf16.msra.mxu0 0
      %2715 = vmatprep.subr.bf16.mxu0 0
      %2716 = vmatpush1.bf16.msra.mxu0 0
      %2717 = vmatprep.subr.bf16.mxu0 0
      %2718 = vmatpush1.bf16.msra.mxu0 0
      %2719 = vmatprep.subr.bf16.mxu0 0
      %2720 = vmatpush1.bf16.msra.mxu0 0
      %2721 = vmatprep.subr.bf16.mxu0 0
      %2722 = vmatpush1.bf16.msra.mxu0 %v2703
      %2723 = vmatprep.subr.bf16.mxu0 0
      %2724 = vmatpush1.bf16.msra.mxu0 %v2702
      %2725 = vmatprep.subr.bf16.mxu0 0
      %2726 = vmatpush2.bf16.msra.mxu0 0
      %2727 = vmatprep.subr.bf16.mxu0 0
      %2728 = vmatpush2.bf16.msra.mxu0 0
      %2729 = vmatprep.subr.bf16.mxu0 0
      %2730 = vmatpush2.bf16.msra.mxu0 0
      %2731 = vmatprep.subr.bf16.mxu0 0
      %2732 = vmatpush2.bf16.msra.mxu0 0
      %2733 = vmatprep.subr.bf16.mxu0 0
      %2734 = vmatpush2.bf16.msra.mxu0 0
      %2735 = vmatprep.subr.bf16.mxu0 0
      %2736 = vmatpush2.bf16.msra.mxu0 0
      %2737 = vmatprep.subr.bf16.mxu0 0
      %2738 = vmatpush2.bf16.msra.mxu0 0
      %2739 = vmatprep.subr.bf16.mxu0 0
      %2740 = vmatpush2.bf16.msra.mxu0 0
      %2741 = vmatprep.mubr.bf16.mxu0 0
      %2742 = vmatmul.mubr.bf16.gmra.mxu0 %v2707
      %v2743 = vpop.f32.mrf.mxu0
      %v2744 = vadd.f32 0.0, %v2743
      %v2745 = vpop.f32.mrf.mxu0
      %v2746 = vpop.f32.mrf.mxu0
      %v2747 = vpop.f32.mrf.mxu0
      %2748 = vdwg.mxu0
      %v2753 = vunpack.c.l.b16 %v401
      %v2754 = vunpack.c.l.b16 %v402
      %v2755 = vunpack.c.l.b16 %v403
      %v2756 = vunpack.c.l.b16 %v404
      %v2757 = vpack.c.b16 %v2754, %v2753
      %v2758 = vpack.c.b16 %v2756, %v2755
      %v2762 = vsel %vm505, %v214, 0
      %2764 = vmatprep.subr.bf16.mxu0 0
      %2765 = vmatpush1.bf16.msra.mxu0 0
      %2766 = vmatprep.subr.bf16.mxu0 0
      %2767 = vmatpush1.bf16.msra.mxu0 0
      %2768 = vmatprep.subr.bf16.mxu0 0
      %2769 = vmatpush1.bf16.msra.mxu0 0
      %2770 = vmatprep.subr.bf16.mxu0 0
      %2771 = vmatpush1.bf16.msra.mxu0 0
      %2772 = vmatprep.subr.bf16.mxu0 0
      %2773 = vmatpush1.bf16.msra.mxu0 0
      %2774 = vmatprep.subr.bf16.mxu0 0
      %2775 = vmatpush1.bf16.msra.mxu0 0
      %2776 = vmatprep.subr.bf16.mxu0 0
      %2777 = vmatpush1.bf16.msra.mxu0 %v2758
      %2778 = vmatprep.subr.bf16.mxu0 0
      %2779 = vmatpush1.bf16.msra.mxu0 %v2757
      %2780 = vmatprep.subr.bf16.mxu0 0
      %2781 = vmatpush2.bf16.msra.mxu0 0
      %2782 = vmatprep.subr.bf16.mxu0 0
      %2783 = vmatpush2.bf16.msra.mxu0 0
      %2784 = vmatprep.subr.bf16.mxu0 0
      %2785 = vmatpush2.bf16.msra.mxu0 0
      %2786 = vmatprep.subr.bf16.mxu0 0
      %2787 = vmatpush2.bf16.msra.mxu0 0
      %2788 = vmatprep.subr.bf16.mxu0 0
      %2789 = vmatpush2.bf16.msra.mxu0 0
      %2790 = vmatprep.subr.bf16.mxu0 0
      %2791 = vmatpush2.bf16.msra.mxu0 0
      %2792 = vmatprep.subr.bf16.mxu0 0
      %2793 = vmatpush2.bf16.msra.mxu0 0
      %2794 = vmatprep.subr.bf16.mxu0 0
      %2795 = vmatpush2.bf16.msra.mxu0 0
      %2796 = vmatprep.mubr.bf16.mxu0 0
      %2797 = vmatmul.mubr.bf16.gmra.mxu0 %v2762
      %v2798 = vpop.f32.mrf.mxu0
      %v2799 = vadd.f32 0.0, %v2798
      %v2800 = vpop.f32.mrf.mxu0
      %v2801 = vpop.f32.mrf.mxu0
      %v2802 = vpop.f32.mrf.mxu0
      %2803 = vdwg.mxu0
      %v2808 = vunpack.c.l.b16 %v405
      %v2809 = vunpack.c.l.b16 %v406
      %v2810 = vunpack.c.l.b16 %v407
      %v2811 = vunpack.c.l.b16 %v408
      %v2812 = vpack.c.b16 %v2809, %v2808
      %v2813 = vpack.c.b16 %v2811, %v2810
      %v2817 = vsel %vm505, %v215, 0
      %2819 = vmatprep.subr.bf16.mxu0 0
      %2820 = vmatpush1.bf16.msra.mxu0 0
      %2821 = vmatprep.subr.bf16.mxu0 0
      %2822 = vmatpush1.bf16.msra.mxu0 0
      %2823 = vmatprep.subr.bf16.mxu0 0
      %2824 = vmatpush1.bf16.msra.mxu0 0
      %2825 = vmatprep.subr.bf16.mxu0 0
      %2826 = vmatpush1.bf16.msra.mxu0 0
      %2827 = vmatprep.subr.bf16.mxu0 0
      %2828 = vmatpush1.bf16.msra.mxu0 0
      %2829 = vmatprep.subr.bf16.mxu0 0
      %2830 = vmatpush1.bf16.msra.mxu0 0
      %2831 = vmatprep.subr.bf16.mxu0 0
      %2832 = vmatpush1.bf16.msra.mxu0 %v2813
      %2833 = vmatprep.subr.bf16.mxu0 0
      %2834 = vmatpush1.bf16.msra.mxu0 %v2812
      %2835 = vmatprep.subr.bf16.mxu0 0
      %2836 = vmatpush2.bf16.msra.mxu0 0
      %2837 = vmatprep.subr.bf16.mxu0 0
      %2838 = vmatpush2.bf16.msra.mxu0 0
      %2839 = vmatprep.subr.bf16.mxu0 0
      %2840 = vmatpush2.bf16.msra.mxu0 0
      %2841 = vmatprep.subr.bf16.mxu0 0
      %2842 = vmatpush2.bf16.msra.mxu0 0
      %2843 = vmatprep.subr.bf16.mxu0 0
      %2844 = vmatpush2.bf16.msra.mxu0 0
      %2845 = vmatprep.subr.bf16.mxu0 0
      %2846 = vmatpush2.bf16.msra.mxu0 0
      %2847 = vmatprep.subr.bf16.mxu0 0
      %2848 = vmatpush2.bf16.msra.mxu0 0
      %2849 = vmatprep.subr.bf16.mxu0 0
      %2850 = vmatpush2.bf16.msra.mxu0 0
      %2851 = vmatprep.mubr.bf16.mxu0 0
      %2852 = vmatmul.mubr.bf16.gmra.mxu0 %v2817
      %v2853 = vpop.f32.mrf.mxu0
      %v2854 = vadd.f32 0.0, %v2853
      %v2855 = vpop.f32.mrf.mxu0
      %v2856 = vpop.f32.mrf.mxu0
      %v2857 = vpop.f32.mrf.mxu0
      %2858 = vdwg.mxu0
      %v2863 = vunpack.c.l.b16 %v409
      %v2864 = vunpack.c.l.b16 %v410
      %v2865 = vunpack.c.l.b16 %v411
      %v2866 = vunpack.c.l.b16 %v412
      %v2867 = vpack.c.b16 %v2864, %v2863
      %v2868 = vpack.c.b16 %v2866, %v2865
      %v2872 = vsel %vm505, %v216, 0
      %2874 = vmatprep.subr.bf16.mxu0 0
      %2875 = vmatpush1.bf16.msra.mxu0 0
      %2876 = vmatprep.subr.bf16.mxu0 0
      %2877 = vmatpush1.bf16.msra.mxu0 0
      %2878 = vmatprep.subr.bf16.mxu0 0
      %2879 = vmatpush1.bf16.msra.mxu0 0
      %2880 = vmatprep.subr.bf16.mxu0 0
      %2881 = vmatpush1.bf16.msra.mxu0 0
      %2882 = vmatprep.subr.bf16.mxu0 0
      %2883 = vmatpush1.bf16.msra.mxu0 0
      %2884 = vmatprep.subr.bf16.mxu0 0
      %2885 = vmatpush1.bf16.msra.mxu0 0
      %2886 = vmatprep.subr.bf16.mxu0 0
      %2887 = vmatpush1.bf16.msra.mxu0 %v2868
      %2888 = vmatprep.subr.bf16.mxu0 0
      %2889 = vmatpush1.bf16.msra.mxu0 %v2867
      %2890 = vmatprep.subr.bf16.mxu0 0
      %2891 = vmatpush2.bf16.msra.mxu0 0
      %2892 = vmatprep.subr.bf16.mxu0 0
      %2893 = vmatpush2.bf16.msra.mxu0 0
      %2894 = vmatprep.subr.bf16.mxu0 0
      %2895 = vmatpush2.bf16.msra.mxu0 0
      %2896 = vmatprep.subr.bf16.mxu0 0
      %2897 = vmatpush2.bf16.msra.mxu0 0
      %2898 = vmatprep.subr.bf16.mxu0 0
      %2899 = vmatpush2.bf16.msra.mxu0 0
      %2900 = vmatprep.subr.bf16.mxu0 0
      %2901 = vmatpush2.bf16.msra.mxu0 0
      %2902 = vmatprep.subr.bf16.mxu0 0
      %2903 = vmatpush2.bf16.msra.mxu0 0
      %2904 = vmatprep.subr.bf16.mxu0 0
      %2905 = vmatpush2.bf16.msra.mxu0 0
      %2906 = vmatprep.mubr.bf16.mxu0 0
      %2907 = vmatmul.mubr.bf16.gmra.mxu0 %v2872
      %v2908 = vpop.f32.mrf.mxu0
      %v2909 = vadd.f32 0.0, %v2908
      %v2910 = vpop.f32.mrf.mxu0
      %v2911 = vpop.f32.mrf.mxu0
      %v2912 = vpop.f32.mrf.mxu0
      %2913 = vdwg.mxu0
      %v2918 = vunpack.c.l.b16 %v413
      %v2919 = vunpack.c.l.b16 %v414
      %v2920 = vunpack.c.l.b16 %v415
      %v2921 = vunpack.c.l.b16 %v416
      %v2922 = vpack.c.b16 %v2919, %v2918
      %v2923 = vpack.c.b16 %v2921, %v2920
      %v2927 = vsel %vm505, %v217, 0
      %2929 = vmatprep.subr.bf16.mxu0 0
      %2930 = vmatpush1.bf16.msra.mxu0 0
      %2931 = vmatprep.subr.bf16.mxu0 0
      %2932 = vmatpush1.bf16.msra.mxu0 0
      %2933 = vmatprep.subr.bf16.mxu0 0
      %2934 = vmatpush1.bf16.msra.mxu0 0
      %2935 = vmatprep.subr.bf16.mxu0 0
      %2936 = vmatpush1.bf16.msra.mxu0 0
      %2937 = vmatprep.subr.bf16.mxu0 0
      %2938 = vmatpush1.bf16.msra.mxu0 0
      %2939 = vmatprep.subr.bf16.mxu0 0
      %2940 = vmatpush1.bf16.msra.mxu0 0
      %2941 = vmatprep.subr.bf16.mxu0 0
      %2942 = vmatpush1.bf16.msra.mxu0 %v2923
      %2943 = vmatprep.subr.bf16.mxu0 0
      %2944 = vmatpush1.bf16.msra.mxu0 %v2922
      %2945 = vmatprep.subr.bf16.mxu0 0
      %2946 = vmatpush2.bf16.msra.mxu0 0
      %2947 = vmatprep.subr.bf16.mxu0 0
      %2948 = vmatpush2.bf16.msra.mxu0 0
      %2949 = vmatprep.subr.bf16.mxu0 0
      %2950 = vmatpush2.bf16.msra.mxu0 0
      %2951 = vmatprep.subr.bf16.mxu0 0
      %2952 = vmatpush2.bf16.msra.mxu0 0
      %2953 = vmatprep.subr.bf16.mxu0 0
      %2954 = vmatpush2.bf16.msra.mxu0 0
      %2955 = vmatprep.subr.bf16.mxu0 0
      %2956 = vmatpush2.bf16.msra.mxu0 0
      %2957 = vmatprep.subr.bf16.mxu0 0
      %2958 = vmatpush2.bf16.msra.mxu0 0
      %2959 = vmatprep.subr.bf16.mxu0 0
      %2960 = vmatpush2.bf16.msra.mxu0 0
      %2961 = vmatprep.mubr.bf16.mxu0 0
      %2962 = vmatmul.mubr.bf16.gmra.mxu0 %v2927
      %v2963 = vpop.f32.mrf.mxu0
      %v2964 = vadd.f32 0.0, %v2963
      %v2965 = vpop.f32.mrf.mxu0
      %v2966 = vpop.f32.mrf.mxu0
      %v2967 = vpop.f32.mrf.mxu0
      %2968 = vdwg.mxu0
      %v2973 = vunpack.c.l.b16 %v417
      %v2974 = vunpack.c.l.b16 %v418
      %v2975 = vunpack.c.l.b16 %v419
      %v2976 = vunpack.c.l.b16 %v420
      %v2977 = vpack.c.b16 %v2974, %v2973
      %v2978 = vpack.c.b16 %v2976, %v2975
      %v2982 = vsel %vm505, %v218, 0
      %2984 = vmatprep.subr.bf16.mxu0 0
      %2985 = vmatpush1.bf16.msra.mxu0 0
      %2986 = vmatprep.subr.bf16.mxu0 0
      %2987 = vmatpush1.bf16.msra.mxu0 0
      %2988 = vmatprep.subr.bf16.mxu0 0
      %2989 = vmatpush1.bf16.msra.mxu0 0
      %2990 = vmatprep.subr.bf16.mxu0 0
      %2991 = vmatpush1.bf16.msra.mxu0 0
      %2992 = vmatprep.subr.bf16.mxu0 0
      %2993 = vmatpush1.bf16.msra.mxu0 0
      %2994 = vmatprep.subr.bf16.mxu0 0
      %2995 = vmatpush1.bf16.msra.mxu0 0
      %2996 = vmatprep.subr.bf16.mxu0 0
      %2997 = vmatpush1.bf16.msra.mxu0 %v2978
      %2998 = vmatprep.subr.bf16.mxu0 0
      %2999 = vmatpush1.bf16.msra.mxu0 %v2977
      %3000 = vmatprep.subr.bf16.mxu0 0
      %3001 = vmatpush2.bf16.msra.mxu0 0
      %3002 = vmatprep.subr.bf16.mxu0 0
      %3003 = vmatpush2.bf16.msra.mxu0 0
      %3004 = vmatprep.subr.bf16.mxu0 0
      %3005 = vmatpush2.bf16.msra.mxu0 0
      %3006 = vmatprep.subr.bf16.mxu0 0
      %3007 = vmatpush2.bf16.msra.mxu0 0
      %3008 = vmatprep.subr.bf16.mxu0 0
      %3009 = vmatpush2.bf16.msra.mxu0 0
      %3010 = vmatprep.subr.bf16.mxu0 0
      %3011 = vmatpush2.bf16.msra.mxu0 0
      %3012 = vmatprep.subr.bf16.mxu0 0
      %3013 = vmatpush2.bf16.msra.mxu0 0
      %3014 = vmatprep.subr.bf16.mxu0 0
      %3015 = vmatpush2.bf16.msra.mxu0 0
      %3016 = vmatprep.mubr.bf16.mxu0 0
      %3017 = vmatmul.mubr.bf16.gmra.mxu0 %v2982
      %v3018 = vpop.f32.mrf.mxu0
      %v3019 = vadd.f32 0.0, %v3018
      %v3020 = vpop.f32.mrf.mxu0
      %v3021 = vpop.f32.mrf.mxu0
      %v3022 = vpop.f32.mrf.mxu0
      %3023 = vdwg.mxu0
      %v3028 = vunpack.c.l.b16 %v421
      %v3029 = vunpack.c.l.b16 %v422
      %v3030 = vunpack.c.l.b16 %v423
      %v3031 = vunpack.c.l.b16 %v424
      %v3032 = vpack.c.b16 %v3029, %v3028
      %v3033 = vpack.c.b16 %v3031, %v3030
      %v3037 = vsel %vm505, %v219, 0
      %3039 = vmatprep.subr.bf16.mxu0 0
      %3040 = vmatpush1.bf16.msra.mxu0 0
      %3041 = vmatprep.subr.bf16.mxu0 0
      %3042 = vmatpush1.bf16.msra.mxu0 0
      %3043 = vmatprep.subr.bf16.mxu0 0
      %3044 = vmatpush1.bf16.msra.mxu0 0
      %3045 = vmatprep.subr.bf16.mxu0 0
      %3046 = vmatpush1.bf16.msra.mxu0 0
      %3047 = vmatprep.subr.bf16.mxu0 0
      %3048 = vmatpush1.bf16.msra.mxu0 0
      %3049 = vmatprep.subr.bf16.mxu0 0
      %3050 = vmatpush1.bf16.msra.mxu0 0
      %3051 = vmatprep.subr.bf16.mxu0 0
      %3052 = vmatpush1.bf16.msra.mxu0 %v3033
      %3053 = vmatprep.subr.bf16.mxu0 0
      %3054 = vmatpush1.bf16.msra.mxu0 %v3032
      %3055 = vmatprep.subr.bf16.mxu0 0
      %3056 = vmatpush2.bf16.msra.mxu0 0
      %3057 = vmatprep.subr.bf16.mxu0 0
      %3058 = vmatpush2.bf16.msra.mxu0 0
      %3059 = vmatprep.subr.bf16.mxu0 0
      %3060 = vmatpush2.bf16.msra.mxu0 0
      %3061 = vmatprep.subr.bf16.mxu0 0
      %3062 = vmatpush2.bf16.msra.mxu0 0
      %3063 = vmatprep.subr.bf16.mxu0 0
      %3064 = vmatpush2.bf16.msra.mxu0 0
      %3065 = vmatprep.subr.bf16.mxu0 0
      %3066 = vmatpush2.bf16.msra.mxu0 0
      %3067 = vmatprep.subr.bf16.mxu0 0
      %3068 = vmatpush2.bf16.msra.mxu0 0
      %3069 = vmatprep.subr.bf16.mxu0 0
      %3070 = vmatpush2.bf16.msra.mxu0 0
      %3071 = vmatprep.mubr.bf16.mxu0 0
      %3072 = vmatmul.mubr.bf16.gmra.mxu0 %v3037
      %v3073 = vpop.f32.mrf.mxu0
      %v3074 = vadd.f32 0.0, %v3073
      %v3075 = vpop.f32.mrf.mxu0
      %v3076 = vpop.f32.mrf.mxu0
      %v3077 = vpop.f32.mrf.mxu0
      %3078 = vdwg.mxu0
      %v3083 = vunpack.c.l.b16 %v425
      %v3084 = vunpack.c.l.b16 %v426
      %v3085 = vunpack.c.l.b16 %v427
      %v3086 = vunpack.c.l.b16 %v428
      %v3087 = vpack.c.b16 %v3084, %v3083
      %v3088 = vpack.c.b16 %v3086, %v3085
      %v3092 = vsel %vm505, %v220, 0
      %3094 = vmatprep.subr.bf16.mxu0 0
      %3095 = vmatpush1.bf16.msra.mxu0 0
      %3096 = vmatprep.subr.bf16.mxu0 0
      %3097 = vmatpush1.bf16.msra.mxu0 0
      %3098 = vmatprep.subr.bf16.mxu0 0
      %3099 = vmatpush1.bf16.msra.mxu0 0
      %3100 = vmatprep.subr.bf16.mxu0 0
      %3101 = vmatpush1.bf16.msra.mxu0 0
      %3102 = vmatprep.subr.bf16.mxu0 0
      %3103 = vmatpush1.bf16.msra.mxu0 0
      %3104 = vmatprep.subr.bf16.mxu0 0
      %3105 = vmatpush1.bf16.msra.mxu0 0
      %3106 = vmatprep.subr.bf16.mxu0 0
      %3107 = vmatpush1.bf16.msra.mxu0 %v3088
      %3108 = vmatprep.subr.bf16.mxu0 0
      %3109 = vmatpush1.bf16.msra.mxu0 %v3087
      %3110 = vmatprep.subr.bf16.mxu0 0
      %3111 = vmatpush2.bf16.msra.mxu0 0
      %3112 = vmatprep.subr.bf16.mxu0 0
      %3113 = vmatpush2.bf16.msra.mxu0 0
      %3114 = vmatprep.subr.bf16.mxu0 0
      %3115 = vmatpush2.bf16.msra.mxu0 0
      %3116 = vmatprep.subr.bf16.mxu0 0
      %3117 = vmatpush2.bf16.msra.mxu0 0
      %3118 = vmatprep.subr.bf16.mxu0 0
      %3119 = vmatpush2.bf16.msra.mxu0 0
      %3120 = vmatprep.subr.bf16.mxu0 0
      %3121 = vmatpush2.bf16.msra.mxu0 0
      %3122 = vmatprep.subr.bf16.mxu0 0
      %3123 = vmatpush2.bf16.msra.mxu0 0
      %3124 = vmatprep.subr.bf16.mxu0 0
      %3125 = vmatpush2.bf16.msra.mxu0 0
      %3126 = vmatprep.mubr.bf16.mxu0 0
      %3127 = vmatmul.mubr.bf16.gmra.mxu0 %v3092
      %v3128 = vpop.f32.mrf.mxu0
      %v3129 = vadd.f32 0.0, %v3128
      %v3130 = vpop.f32.mrf.mxu0
      %v3131 = vpop.f32.mrf.mxu0
      %v3132 = vpop.f32.mrf.mxu0
      %3133 = vdwg.mxu0
      %v3138 = vunpack.c.l.b16 %v429
      %v3139 = vunpack.c.l.b16 %v430
      %v3140 = vunpack.c.l.b16 %v431
      %v3141 = vunpack.c.l.b16 %v432
      %v3142 = vpack.c.b16 %v3139, %v3138
      %v3143 = vpack.c.b16 %v3141, %v3140
      %v3147 = vsel %vm505, %v221, 0
      %3149 = vmatprep.subr.bf16.mxu0 0
      %3150 = vmatpush1.bf16.msra.mxu0 0
      %3151 = vmatprep.subr.bf16.mxu0 0
      %3152 = vmatpush1.bf16.msra.mxu0 0
      %3153 = vmatprep.subr.bf16.mxu0 0
      %3154 = vmatpush1.bf16.msra.mxu0 0
      %3155 = vmatprep.subr.bf16.mxu0 0
      %3156 = vmatpush1.bf16.msra.mxu0 0
      %3157 = vmatprep.subr.bf16.mxu0 0
      %3158 = vmatpush1.bf16.msra.mxu0 0
      %3159 = vmatprep.subr.bf16.mxu0 0
      %3160 = vmatpush1.bf16.msra.mxu0 0
      %3161 = vmatprep.subr.bf16.mxu0 0
      %3162 = vmatpush1.bf16.msra.mxu0 %v3143
      %3163 = vmatprep.subr.bf16.mxu0 0
      %3164 = vmatpush1.bf16.msra.mxu0 %v3142
      %3165 = vmatprep.subr.bf16.mxu0 0
      %3166 = vmatpush2.bf16.msra.mxu0 0
      %3167 = vmatprep.subr.bf16.mxu0 0
      %3168 = vmatpush2.bf16.msra.mxu0 0
      %3169 = vmatprep.subr.bf16.mxu0 0
      %3170 = vmatpush2.bf16.msra.mxu0 0
      %3171 = vmatprep.subr.bf16.mxu0 0
      %3172 = vmatpush2.bf16.msra.mxu0 0
      %3173 = vmatprep.subr.bf16.mxu0 0
      %3174 = vmatpush2.bf16.msra.mxu0 0
      %3175 = vmatprep.subr.bf16.mxu0 0
      %3176 = vmatpush2.bf16.msra.mxu0 0
      %3177 = vmatprep.subr.bf16.mxu0 0
      %3178 = vmatpush2.bf16.msra.mxu0 0
      %3179 = vmatprep.subr.bf16.mxu0 0
      %3180 = vmatpush2.bf16.msra.mxu0 0
      %3181 = vmatprep.mubr.bf16.mxu0 0
      %3182 = vmatmul.mubr.bf16.gmra.mxu0 %v3147
      %v3183 = vpop.f32.mrf.mxu0
      %v3184 = vadd.f32 0.0, %v3183
      %v3185 = vpop.f32.mrf.mxu0
      %v3186 = vpop.f32.mrf.mxu0
      %v3187 = vpop.f32.mrf.mxu0
      %3188 = vdwg.mxu0
      %v3193 = vunpack.c.l.b16 %v433
      %v3194 = vunpack.c.l.b16 %v434
      %v3195 = vunpack.c.l.b16 %v435
      %v3196 = vunpack.c.l.b16 %v436
      %v3197 = vpack.c.b16 %v3194, %v3193
      %v3198 = vpack.c.b16 %v3196, %v3195
      %v3202 = vsel %vm505, %v222, 0
      %3204 = vmatprep.subr.bf16.mxu0 0
      %3205 = vmatpush1.bf16.msra.mxu0 0
      %3206 = vmatprep.subr.bf16.mxu0 0
      %3207 = vmatpush1.bf16.msra.mxu0 0
      %3208 = vmatprep.subr.bf16.mxu0 0
      %3209 = vmatpush1.bf16.msra.mxu0 0
      %3210 = vmatprep.subr.bf16.mxu0 0
      %3211 = vmatpush1.bf16.msra.mxu0 0
      %3212 = vmatprep.subr.bf16.mxu0 0
      %3213 = vmatpush1.bf16.msra.mxu0 0
      %3214 = vmatprep.subr.bf16.mxu0 0
      %3215 = vmatpush1.bf16.msra.mxu0 0
      %3216 = vmatprep.subr.bf16.mxu0 0
      %3217 = vmatpush1.bf16.msra.mxu0 %v3198
      %3218 = vmatprep.subr.bf16.mxu0 0
      %3219 = vmatpush1.bf16.msra.mxu0 %v3197
      %3220 = vmatprep.subr.bf16.mxu0 0
      %3221 = vmatpush2.bf16.msra.mxu0 0
      %3222 = vmatprep.subr.bf16.mxu0 0
      %3223 = vmatpush2.bf16.msra.mxu0 0
      %3224 = vmatprep.subr.bf16.mxu0 0
      %3225 = vmatpush2.bf16.msra.mxu0 0
      %3226 = vmatprep.subr.bf16.mxu0 0
      %3227 = vmatpush2.bf16.msra.mxu0 0
      %3228 = vmatprep.subr.bf16.mxu0 0
      %3229 = vmatpush2.bf16.msra.mxu0 0
      %3230 = vmatprep.subr.bf16.mxu0 0
      %3231 = vmatpush2.bf16.msra.mxu0 0
      %3232 = vmatprep.subr.bf16.mxu0 0
      %3233 = vmatpush2.bf16.msra.mxu0 0
      %3234 = vmatprep.subr.bf16.mxu0 0
      %3235 = vmatpush2.bf16.msra.mxu0 0
      %3236 = vmatprep.mubr.bf16.mxu0 0
      %3237 = vmatmul.mubr.bf16.gmra.mxu0 %v3202
      %v3238 = vpop.f32.mrf.mxu0
      %v3239 = vadd.f32 0.0, %v3238
      %v3240 = vpop.f32.mrf.mxu0
      %v3241 = vpop.f32.mrf.mxu0
      %v3242 = vpop.f32.mrf.mxu0
      %3243 = vdwg.mxu0
      %v3248 = vunpack.c.l.b16 %v437
      %v3249 = vunpack.c.l.b16 %v438
      %v3250 = vunpack.c.l.b16 %v439
      %v3251 = vunpack.c.l.b16 %v440
      %v3252 = vpack.c.b16 %v3249, %v3248
      %v3253 = vpack.c.b16 %v3251, %v3250
      %v3257 = vsel %vm505, %v223, 0
      %3259 = vmatprep.subr.bf16.mxu0 0
      %3260 = vmatpush1.bf16.msra.mxu0 0
      %3261 = vmatprep.subr.bf16.mxu0 0
      %3262 = vmatpush1.bf16.msra.mxu0 0
      %3263 = vmatprep.subr.bf16.mxu0 0
      %3264 = vmatpush1.bf16.msra.mxu0 0
      %3265 = vmatprep.subr.bf16.mxu0 0
      %3266 = vmatpush1.bf16.msra.mxu0 0
      %3267 = vmatprep.subr.bf16.mxu0 0
      %3268 = vmatpush1.bf16.msra.mxu0 0
      %3269 = vmatprep.subr.bf16.mxu0 0
      %3270 = vmatpush1.bf16.msra.mxu0 0
      %3271 = vmatprep.subr.bf16.mxu0 0
      %3272 = vmatpush1.bf16.msra.mxu0 %v3253
      %3273 = vmatprep.subr.bf16.mxu0 0
      %3274 = vmatpush1.bf16.msra.mxu0 %v3252
      %3275 = vmatprep.subr.bf16.mxu0 0
      %3276 = vmatpush2.bf16.msra.mxu0 0
      %3277 = vmatprep.subr.bf16.mxu0 0
      %3278 = vmatpush2.bf16.msra.mxu0 0
      %3279 = vmatprep.subr.bf16.mxu0 0
      %3280 = vmatpush2.bf16.msra.mxu0 0
      %3281 = vmatprep.subr.bf16.mxu0 0
      %3282 = vmatpush2.bf16.msra.mxu0 0
      %3283 = vmatprep.subr.bf16.mxu0 0
      %3284 = vmatpush2.bf16.msra.mxu0 0
      %3285 = vmatprep.subr.bf16.mxu0 0
      %3286 = vmatpush2.bf16.msra.mxu0 0
      %3287 = vmatprep.subr.bf16.mxu0 0
      %3288 = vmatpush2.bf16.msra.mxu0 0
      %3289 = vmatprep.subr.bf16.mxu0 0
      %3290 = vmatpush2.bf16.msra.mxu0 0
      %3291 = vmatprep.mubr.bf16.mxu0 0
      %3292 = vmatmul.mubr.bf16.gmra.mxu0 %v3257
      %v3293 = vpop.f32.mrf.mxu0
      %v3294 = vadd.f32 0.0, %v3293
      %v3295 = vpop.f32.mrf.mxu0
      %v3296 = vpop.f32.mrf.mxu0
      %v3297 = vpop.f32.mrf.mxu0
      %3298 = vdwg.mxu0
      %v3303 = vunpack.c.l.b16 %v441
      %v3304 = vunpack.c.l.b16 %v442
      %v3305 = vunpack.c.l.b16 %v443
      %v3306 = vunpack.c.l.b16 %v444
      %v3307 = vpack.c.b16 %v3304, %v3303
      %v3308 = vpack.c.b16 %v3306, %v3305
      %v3312 = vsel %vm505, %v224, 0
      %3314 = vmatprep.subr.bf16.mxu0 0
      %3315 = vmatpush1.bf16.msra.mxu0 0
      %3316 = vmatprep.subr.bf16.mxu0 0
      %3317 = vmatpush1.bf16.msra.mxu0 0
      %3318 = vmatprep.subr.bf16.mxu0 0
      %3319 = vmatpush1.bf16.msra.mxu0 0
      %3320 = vmatprep.subr.bf16.mxu0 0
      %3321 = vmatpush1.bf16.msra.mxu0 0
      %3322 = vmatprep.subr.bf16.mxu0 0
      %3323 = vmatpush1.bf16.msra.mxu0 0
      %3324 = vmatprep.subr.bf16.mxu0 0
      %3325 = vmatpush1.bf16.msra.mxu0 0
      %3326 = vmatprep.subr.bf16.mxu0 0
      %3327 = vmatpush1.bf16.msra.mxu0 %v3308
      %3328 = vmatprep.subr.bf16.mxu0 0
      %3329 = vmatpush1.bf16.msra.mxu0 %v3307
      %3330 = vmatprep.subr.bf16.mxu0 0
      %3331 = vmatpush2.bf16.msra.mxu0 0
      %3332 = vmatprep.subr.bf16.mxu0 0
      %3333 = vmatpush2.bf16.msra.mxu0 0
      %3334 = vmatprep.subr.bf16.mxu0 0
      %3335 = vmatpush2.bf16.msra.mxu0 0
      %3336 = vmatprep.subr.bf16.mxu0 0
      %3337 = vmatpush2.bf16.msra.mxu0 0
      %3338 = vmatprep.subr.bf16.mxu0 0
      %3339 = vmatpush2.bf16.msra.mxu0 0
      %3340 = vmatprep.subr.bf16.mxu0 0
      %3341 = vmatpush2.bf16.msra.mxu0 0
      %3342 = vmatprep.subr.bf16.mxu0 0
      %3343 = vmatpush2.bf16.msra.mxu0 0
      %3344 = vmatprep.subr.bf16.mxu0 0
      %3345 = vmatpush2.bf16.msra.mxu0 0
      %3346 = vmatprep.mubr.bf16.mxu0 0
      %3347 = vmatmul.mubr.bf16.gmra.mxu0 %v3312
      %v3348 = vpop.f32.mrf.mxu0
      %v3349 = vadd.f32 0.0, %v3348
      %v3350 = vpop.f32.mrf.mxu0
      %v3351 = vpop.f32.mrf.mxu0
      %v3352 = vpop.f32.mrf.mxu0
      %3353 = vdwg.mxu0
      %v3358 = vunpack.c.l.b16 %v445
      %v3359 = vunpack.c.l.b16 %v446
      %v3360 = vunpack.c.l.b16 %v447
      %v3361 = vunpack.c.l.b16 %v448
      %v3362 = vpack.c.b16 %v3359, %v3358
      %v3363 = vpack.c.b16 %v3361, %v3360
      %v3367 = vsel %vm505, %v225, 0
      %3369 = vmatprep.subr.bf16.mxu0 0
      %3370 = vmatpush1.bf16.msra.mxu0 0
      %3371 = vmatprep.subr.bf16.mxu0 0
      %3372 = vmatpush1.bf16.msra.mxu0 0
      %3373 = vmatprep.subr.bf16.mxu0 0
      %3374 = vmatpush1.bf16.msra.mxu0 0
      %3375 = vmatprep.subr.bf16.mxu0 0
      %3376 = vmatpush1.bf16.msra.mxu0 0
      %3377 = vmatprep.subr.bf16.mxu0 0
      %3378 = vmatpush1.bf16.msra.mxu0 0
      %3379 = vmatprep.subr.bf16.mxu0 0
      %3380 = vmatpush1.bf16.msra.mxu0 0
      %3381 = vmatprep.subr.bf16.mxu0 0
      %3382 = vmatpush1.bf16.msra.mxu0 %v3363
      %3383 = vmatprep.subr.bf16.mxu0 0
      %3384 = vmatpush1.bf16.msra.mxu0 %v3362
      %3385 = vmatprep.subr.bf16.mxu0 0
      %3386 = vmatpush2.bf16.msra.mxu0 0
      %3387 = vmatprep.subr.bf16.mxu0 0
      %3388 = vmatpush2.bf16.msra.mxu0 0
      %3389 = vmatprep.subr.bf16.mxu0 0
      %3390 = vmatpush2.bf16.msra.mxu0 0
      %3391 = vmatprep.subr.bf16.mxu0 0
      %3392 = vmatpush2.bf16.msra.mxu0 0
      %3393 = vmatprep.subr.bf16.mxu0 0
      %3394 = vmatpush2.bf16.msra.mxu0 0
      %3395 = vmatprep.subr.bf16.mxu0 0
      %3396 = vmatpush2.bf16.msra.mxu0 0
      %3397 = vmatprep.subr.bf16.mxu0 0
      %3398 = vmatpush2.bf16.msra.mxu0 0
      %3399 = vmatprep.subr.bf16.mxu0 0
      %3400 = vmatpush2.bf16.msra.mxu0 0
      %3401 = vmatprep.mubr.bf16.mxu0 0
      %3402 = vmatmul.mubr.bf16.gmra.mxu0 %v3367
      %v3403 = vpop.f32.mrf.mxu0
      %v3404 = vadd.f32 0.0, %v3403
      %v3405 = vpop.f32.mrf.mxu0
      %v3406 = vpop.f32.mrf.mxu0
      %v3407 = vpop.f32.mrf.mxu0
      %3408 = vdwg.mxu0
      %v3413 = vunpack.c.l.b16 %v449
      %v3414 = vunpack.c.l.b16 %v450
      %v3415 = vunpack.c.l.b16 %v451
      %v3416 = vunpack.c.l.b16 %v452
      %v3417 = vpack.c.b16 %v3414, %v3413
      %v3418 = vpack.c.b16 %v3416, %v3415
      %v3422 = vsel %vm505, %v226, 0
      %3424 = vmatprep.subr.bf16.mxu0 0
      %3425 = vmatpush1.bf16.msra.mxu0 0
      %3426 = vmatprep.subr.bf16.mxu0 0
      %3427 = vmatpush1.bf16.msra.mxu0 0
      %3428 = vmatprep.subr.bf16.mxu0 0
      %3429 = vmatpush1.bf16.msra.mxu0 0
      %3430 = vmatprep.subr.bf16.mxu0 0
      %3431 = vmatpush1.bf16.msra.mxu0 0
      %3432 = vmatprep.subr.bf16.mxu0 0
      %3433 = vmatpush1.bf16.msra.mxu0 0
      %3434 = vmatprep.subr.bf16.mxu0 0
      %3435 = vmatpush1.bf16.msra.mxu0 0
      %3436 = vmatprep.subr.bf16.mxu0 0
      %3437 = vmatpush1.bf16.msra.mxu0 %v3418
      %3438 = vmatprep.subr.bf16.mxu0 0
      %3439 = vmatpush1.bf16.msra.mxu0 %v3417
      %3440 = vmatprep.subr.bf16.mxu0 0
      %3441 = vmatpush2.bf16.msra.mxu0 0
      %3442 = vmatprep.subr.bf16.mxu0 0
      %3443 = vmatpush2.bf16.msra.mxu0 0
      %3444 = vmatprep.subr.bf16.mxu0 0
      %3445 = vmatpush2.bf16.msra.mxu0 0
      %3446 = vmatprep.subr.bf16.mxu0 0
      %3447 = vmatpush2.bf16.msra.mxu0 0
      %3448 = vmatprep.subr.bf16.mxu0 0
      %3449 = vmatpush2.bf16.msra.mxu0 0
      %3450 = vmatprep.subr.bf16.mxu0 0
      %3451 = vmatpush2.bf16.msra.mxu0 0
      %3452 = vmatprep.subr.bf16.mxu0 0
      %3453 = vmatpush2.bf16.msra.mxu0 0
      %3454 = vmatprep.subr.bf16.mxu0 0
      %3455 = vmatpush2.bf16.msra.mxu0 0
      %3456 = vmatprep.mubr.bf16.mxu0 0
      %3457 = vmatmul.mubr.bf16.gmra.mxu0 %v3422
      %v3458 = vpop.f32.mrf.mxu0
      %v3459 = vadd.f32 0.0, %v3458
      %v3460 = vpop.f32.mrf.mxu0
      %v3461 = vpop.f32.mrf.mxu0
      %v3462 = vpop.f32.mrf.mxu0
      %3463 = vdwg.mxu0
      %v3468 = vunpack.c.l.b16 %v453
      %v3469 = vunpack.c.l.b16 %v454
      %v3470 = vunpack.c.l.b16 %v455
      %v3471 = vunpack.c.l.b16 %v456
      %v3472 = vpack.c.b16 %v3469, %v3468
      %v3473 = vpack.c.b16 %v3471, %v3470
      %v3477 = vsel %vm505, %v227, 0
      %3479 = vmatprep.subr.bf16.mxu0 0
      %3480 = vmatpush1.bf16.msra.mxu0 0
      %3481 = vmatprep.subr.bf16.mxu0 0
      %3482 = vmatpush1.bf16.msra.mxu0 0
      %3483 = vmatprep.subr.bf16.mxu0 0
      %3484 = vmatpush1.bf16.msra.mxu0 0
      %3485 = vmatprep.subr.bf16.mxu0 0
      %3486 = vmatpush1.bf16.msra.mxu0 0
      %3487 = vmatprep.subr.bf16.mxu0 0
      %3488 = vmatpush1.bf16.msra.mxu0 0
      %3489 = vmatprep.subr.bf16.mxu0 0
      %3490 = vmatpush1.bf16.msra.mxu0 0
      %3491 = vmatprep.subr.bf16.mxu0 0
      %3492 = vmatpush1.bf16.msra.mxu0 %v3473
      %3493 = vmatprep.subr.bf16.mxu0 0
      %3494 = vmatpush1.bf16.msra.mxu0 %v3472
      %3495 = vmatprep.subr.bf16.mxu0 0
      %3496 = vmatpush2.bf16.msra.mxu0 0
      %3497 = vmatprep.subr.bf16.mxu0 0
      %3498 = vmatpush2.bf16.msra.mxu0 0
      %3499 = vmatprep.subr.bf16.mxu0 0
      %3500 = vmatpush2.bf16.msra.mxu0 0
      %3501 = vmatprep.subr.bf16.mxu0 0
      %3502 = vmatpush2.bf16.msra.mxu0 0
      %3503 = vmatprep.subr.bf16.mxu0 0
      %3504 = vmatpush2.bf16.msra.mxu0 0
      %3505 = vmatprep.subr.bf16.mxu0 0
      %3506 = vmatpush2.bf16.msra.mxu0 0
      %3507 = vmatprep.subr.bf16.mxu0 0
      %3508 = vmatpush2.bf16.msra.mxu0 0
      %3509 = vmatprep.subr.bf16.mxu0 0
      %3510 = vmatpush2.bf16.msra.mxu0 0
      %3511 = vmatprep.mubr.bf16.mxu0 0
      %3512 = vmatmul.mubr.bf16.gmra.mxu0 %v3477
      %v3513 = vpop.f32.mrf.mxu0
      %v3514 = vadd.f32 0.0, %v3513
      %v3515 = vpop.f32.mrf.mxu0
      %v3516 = vpop.f32.mrf.mxu0
      %v3517 = vpop.f32.mrf.mxu0
      %3518 = vdwg.mxu0
      %v3523 = vunpack.c.l.b16 %v457
      %v3524 = vunpack.c.l.b16 %v458
      %v3525 = vunpack.c.l.b16 %v459
      %v3526 = vunpack.c.l.b16 %v460
      %v3527 = vpack.c.b16 %v3524, %v3523
      %v3528 = vpack.c.b16 %v3526, %v3525
      %v3532 = vsel %vm505, %v228, 0
      %3534 = vmatprep.subr.bf16.mxu0 0
      %3535 = vmatpush1.bf16.msra.mxu0 0
      %3536 = vmatprep.subr.bf16.mxu0 0
      %3537 = vmatpush1.bf16.msra.mxu0 0
      %3538 = vmatprep.subr.bf16.mxu0 0
      %3539 = vmatpush1.bf16.msra.mxu0 0
      %3540 = vmatprep.subr.bf16.mxu0 0
      %3541 = vmatpush1.bf16.msra.mxu0 0
      %3542 = vmatprep.subr.bf16.mxu0 0
      %3543 = vmatpush1.bf16.msra.mxu0 0
      %3544 = vmatprep.subr.bf16.mxu0 0
      %3545 = vmatpush1.bf16.msra.mxu0 0
      %3546 = vmatprep.subr.bf16.mxu0 0
      %3547 = vmatpush1.bf16.msra.mxu0 %v3528
      %3548 = vmatprep.subr.bf16.mxu0 0
      %3549 = vmatpush1.bf16.msra.mxu0 %v3527
      %3550 = vmatprep.subr.bf16.mxu0 0
      %3551 = vmatpush2.bf16.msra.mxu0 0
      %3552 = vmatprep.subr.bf16.mxu0 0
      %3553 = vmatpush2.bf16.msra.mxu0 0
      %3554 = vmatprep.subr.bf16.mxu0 0
      %3555 = vmatpush2.bf16.msra.mxu0 0
      %3556 = vmatprep.subr.bf16.mxu0 0
      %3557 = vmatpush2.bf16.msra.mxu0 0
      %3558 = vmatprep.subr.bf16.mxu0 0
      %3559 = vmatpush2.bf16.msra.mxu0 0
      %3560 = vmatprep.subr.bf16.mxu0 0
      %3561 = vmatpush2.bf16.msra.mxu0 0
      %3562 = vmatprep.subr.bf16.mxu0 0
      %3563 = vmatpush2.bf16.msra.mxu0 0
      %3564 = vmatprep.subr.bf16.mxu0 0
      %3565 = vmatpush2.bf16.msra.mxu0 0
      %3566 = vmatprep.mubr.bf16.mxu0 0
      %3567 = vmatmul.mubr.bf16.gmra.mxu0 %v3532
      %v3568 = vpop.f32.mrf.mxu0
      %v3569 = vadd.f32 0.0, %v3568
      %v3570 = vpop.f32.mrf.mxu0
      %v3571 = vpop.f32.mrf.mxu0
      %v3572 = vpop.f32.mrf.mxu0
      %3573 = vdwg.mxu0
      %v3578 = vunpack.c.l.b16 %v461
      %v3579 = vunpack.c.l.b16 %v462
      %v3580 = vunpack.c.l.b16 %v463
      %v3581 = vunpack.c.l.b16 %v464
      %v3582 = vpack.c.b16 %v3579, %v3578
      %v3583 = vpack.c.b16 %v3581, %v3580
      %v3587 = vsel %vm505, %v229, 0
      %3589 = vmatprep.subr.bf16.mxu0 0
      %3590 = vmatpush1.bf16.msra.mxu0 0
      %3591 = vmatprep.subr.bf16.mxu0 0
      %3592 = vmatpush1.bf16.msra.mxu0 0
      %3593 = vmatprep.subr.bf16.mxu0 0
      %3594 = vmatpush1.bf16.msra.mxu0 0
      %3595 = vmatprep.subr.bf16.mxu0 0
      %3596 = vmatpush1.bf16.msra.mxu0 0
      %3597 = vmatprep.subr.bf16.mxu0 0
      %3598 = vmatpush1.bf16.msra.mxu0 0
      %3599 = vmatprep.subr.bf16.mxu0 0
      %3600 = vmatpush1.bf16.msra.mxu0 0
      %3601 = vmatprep.subr.bf16.mxu0 0
      %3602 = vmatpush1.bf16.msra.mxu0 %v3583
      %3603 = vmatprep.subr.bf16.mxu0 0
      %3604 = vmatpush1.bf16.msra.mxu0 %v3582
      %3605 = vmatprep.subr.bf16.mxu0 0
      %3606 = vmatpush2.bf16.msra.mxu0 0
      %3607 = vmatprep.subr.bf16.mxu0 0
      %3608 = vmatpush2.bf16.msra.mxu0 0
      %3609 = vmatprep.subr.bf16.mxu0 0
      %3610 = vmatpush2.bf16.msra.mxu0 0
      %3611 = vmatprep.subr.bf16.mxu0 0
      %3612 = vmatpush2.bf16.msra.mxu0 0
      %3613 = vmatprep.subr.bf16.mxu0 0
      %3614 = vmatpush2.bf16.msra.mxu0 0
      %3615 = vmatprep.subr.bf16.mxu0 0
      %3616 = vmatpush2.bf16.msra.mxu0 0
      %3617 = vmatprep.subr.bf16.mxu0 0
      %3618 = vmatpush2.bf16.msra.mxu0 0
      %3619 = vmatprep.subr.bf16.mxu0 0
      %3620 = vmatpush2.bf16.msra.mxu0 0
      %3621 = vmatprep.mubr.bf16.mxu0 0
      %3622 = vmatmul.mubr.bf16.gmra.mxu0 %v3587
      %v3623 = vpop.f32.mrf.mxu0
      %v3624 = vadd.f32 0.0, %v3623
      %v3625 = vpop.f32.mrf.mxu0
      %v3626 = vpop.f32.mrf.mxu0
      %v3627 = vpop.f32.mrf.mxu0
      %3628 = vdwg.mxu0
      %v3633 = vunpack.c.l.b16 %v465
      %v3634 = vunpack.c.l.b16 %v466
      %v3635 = vunpack.c.l.b16 %v467
      %v3636 = vunpack.c.l.b16 %v468
      %v3637 = vpack.c.b16 %v3634, %v3633
      %v3638 = vpack.c.b16 %v3636, %v3635
      %v3642 = vsel %vm505, %v230, 0
      %3644 = vmatprep.subr.bf16.mxu0 0
      %3645 = vmatpush1.bf16.msra.mxu0 0
      %3646 = vmatprep.subr.bf16.mxu0 0
      %3647 = vmatpush1.bf16.msra.mxu0 0
      %3648 = vmatprep.subr.bf16.mxu0 0
      %3649 = vmatpush1.bf16.msra.mxu0 0
      %3650 = vmatprep.subr.bf16.mxu0 0
      %3651 = vmatpush1.bf16.msra.mxu0 0
      %3652 = vmatprep.subr.bf16.mxu0 0
      %3653 = vmatpush1.bf16.msra.mxu0 0
      %3654 = vmatprep.subr.bf16.mxu0 0
      %3655 = vmatpush1.bf16.msra.mxu0 0
      %3656 = vmatprep.subr.bf16.mxu0 0
      %3657 = vmatpush1.bf16.msra.mxu0 %v3638
      %3658 = vmatprep.subr.bf16.mxu0 0
      %3659 = vmatpush1.bf16.msra.mxu0 %v3637
      %3660 = vmatprep.subr.bf16.mxu0 0
      %3661 = vmatpush2.bf16.msra.mxu0 0
      %3662 = vmatprep.subr.bf16.mxu0 0
      %3663 = vmatpush2.bf16.msra.mxu0 0
      %3664 = vmatprep.subr.bf16.mxu0 0
      %3665 = vmatpush2.bf16.msra.mxu0 0
      %3666 = vmatprep.subr.bf16.mxu0 0
      %3667 = vmatpush2.bf16.msra.mxu0 0
      %3668 = vmatprep.subr.bf16.mxu0 0
      %3669 = vmatpush2.bf16.msra.mxu0 0
      %3670 = vmatprep.subr.bf16.mxu0 0
      %3671 = vmatpush2.bf16.msra.mxu0 0
      %3672 = vmatprep.subr.bf16.mxu0 0
      %3673 = vmatpush2.bf16.msra.mxu0 0
      %3674 = vmatprep.subr.bf16.mxu0 0
      %3675 = vmatpush2.bf16.msra.mxu0 0
      %3676 = vmatprep.mubr.bf16.mxu0 0
      %3677 = vmatmul.mubr.bf16.gmra.mxu0 %v3642
      %v3678 = vpop.f32.mrf.mxu0
      %v3679 = vadd.f32 0.0, %v3678
      %v3680 = vpop.f32.mrf.mxu0
      %v3681 = vpop.f32.mrf.mxu0
      %v3682 = vpop.f32.mrf.mxu0
      %3683 = vdwg.mxu0
      %v3688 = vunpack.c.l.b16 %v469
      %v3689 = vunpack.c.l.b16 %v470
      %v3690 = vunpack.c.l.b16 %v471
      %v3691 = vunpack.c.l.b16 %v472
      %v3692 = vpack.c.b16 %v3689, %v3688
      %v3693 = vpack.c.b16 %v3691, %v3690
      %v3697 = vsel %vm505, %v231, 0
      %3699 = vmatprep.subr.bf16.mxu0 0
      %3700 = vmatpush1.bf16.msra.mxu0 0
      %3701 = vmatprep.subr.bf16.mxu0 0
      %3702 = vmatpush1.bf16.msra.mxu0 0
      %3703 = vmatprep.subr.bf16.mxu0 0
      %3704 = vmatpush1.bf16.msra.mxu0 0
      %3705 = vmatprep.subr.bf16.mxu0 0
      %3706 = vmatpush1.bf16.msra.mxu0 0
      %3707 = vmatprep.subr.bf16.mxu0 0
      %3708 = vmatpush1.bf16.msra.mxu0 0
      %3709 = vmatprep.subr.bf16.mxu0 0
      %3710 = vmatpush1.bf16.msra.mxu0 0
      %3711 = vmatprep.subr.bf16.mxu0 0
      %3712 = vmatpush1.bf16.msra.mxu0 %v3693
      %3713 = vmatprep.subr.bf16.mxu0 0
      %3714 = vmatpush1.bf16.msra.mxu0 %v3692
      %3715 = vmatprep.subr.bf16.mxu0 0
      %3716 = vmatpush2.bf16.msra.mxu0 0
      %3717 = vmatprep.subr.bf16.mxu0 0
      %3718 = vmatpush2.bf16.msra.mxu0 0
      %3719 = vmatprep.subr.bf16.mxu0 0
      %3720 = vmatpush2.bf16.msra.mxu0 0
      %3721 = vmatprep.subr.bf16.mxu0 0
      %3722 = vmatpush2.bf16.msra.mxu0 0
      %3723 = vmatprep.subr.bf16.mxu0 0
      %3724 = vmatpush2.bf16.msra.mxu0 0
      %3725 = vmatprep.subr.bf16.mxu0 0
      %3726 = vmatpush2.bf16.msra.mxu0 0
      %3727 = vmatprep.subr.bf16.mxu0 0
      %3728 = vmatpush2.bf16.msra.mxu0 0
      %3729 = vmatprep.subr.bf16.mxu0 0
      %3730 = vmatpush2.bf16.msra.mxu0 0
      %3731 = vmatprep.mubr.bf16.mxu0 0
      %3732 = vmatmul.mubr.bf16.gmra.mxu0 %v3697
      %v3733 = vpop.f32.mrf.mxu0
      %v3734 = vadd.f32 0.0, %v3733
      %v3735 = vpop.f32.mrf.mxu0
      %v3736 = vpop.f32.mrf.mxu0
      %v3737 = vpop.f32.mrf.mxu0
      %3738 = vdwg.mxu0
      %v3743 = vunpack.c.l.b16 %v473
      %v3744 = vunpack.c.l.b16 %v474
      %v3745 = vunpack.c.l.b16 %v475
      %v3746 = vunpack.c.l.b16 %v476
      %v3747 = vpack.c.b16 %v3744, %v3743
      %v3748 = vpack.c.b16 %v3746, %v3745
      %v3752 = vsel %vm505, %v232, 0
      %3754 = vmatprep.subr.bf16.mxu0 0
      %3755 = vmatpush1.bf16.msra.mxu0 0
      %3756 = vmatprep.subr.bf16.mxu0 0
      %3757 = vmatpush1.bf16.msra.mxu0 0
      %3758 = vmatprep.subr.bf16.mxu0 0
      %3759 = vmatpush1.bf16.msra.mxu0 0
      %3760 = vmatprep.subr.bf16.mxu0 0
      %3761 = vmatpush1.bf16.msra.mxu0 0
      %3762 = vmatprep.subr.bf16.mxu0 0
      %3763 = vmatpush1.bf16.msra.mxu0 0
      %3764 = vmatprep.subr.bf16.mxu0 0
      %3765 = vmatpush1.bf16.msra.mxu0 0
      %3766 = vmatprep.subr.bf16.mxu0 0
      %3767 = vmatpush1.bf16.msra.mxu0 %v3748
      %3768 = vmatprep.subr.bf16.mxu0 0
      %3769 = vmatpush1.bf16.msra.mxu0 %v3747
      %3770 = vmatprep.subr.bf16.mxu0 0
      %3771 = vmatpush2.bf16.msra.mxu0 0
      %3772 = vmatprep.subr.bf16.mxu0 0
      %3773 = vmatpush2.bf16.msra.mxu0 0
      %3774 = vmatprep.subr.bf16.mxu0 0
      %3775 = vmatpush2.bf16.msra.mxu0 0
      %3776 = vmatprep.subr.bf16.mxu0 0
      %3777 = vmatpush2.bf16.msra.mxu0 0
      %3778 = vmatprep.subr.bf16.mxu0 0
      %3779 = vmatpush2.bf16.msra.mxu0 0
      %3780 = vmatprep.subr.bf16.mxu0 0
      %3781 = vmatpush2.bf16.msra.mxu0 0
      %3782 = vmatprep.subr.bf16.mxu0 0
      %3783 = vmatpush2.bf16.msra.mxu0 0
      %3784 = vmatprep.subr.bf16.mxu0 0
      %3785 = vmatpush2.bf16.msra.mxu0 0
      %3786 = vmatprep.mubr.bf16.mxu0 0
      %3787 = vmatmul.mubr.bf16.gmra.mxu0 %v3752
      %v3788 = vpop.f32.mrf.mxu0
      %v3789 = vadd.f32 0.0, %v3788
      %v3790 = vpop.f32.mrf.mxu0
      %v3791 = vpop.f32.mrf.mxu0
      %v3792 = vpop.f32.mrf.mxu0
      %3793 = vdwg.mxu0
      %v3798 = vunpack.c.l.b16 %v477
      %v3799 = vunpack.c.l.b16 %v478
      %v3800 = vunpack.c.l.b16 %v479
      %v3801 = vunpack.c.l.b16 %v480
      %v3802 = vpack.c.b16 %v3799, %v3798
      %v3803 = vpack.c.b16 %v3801, %v3800
      %v3807 = vsel %vm505, %v233, 0
      %3809 = vmatprep.subr.bf16.mxu0 0
      %3810 = vmatpush1.bf16.msra.mxu0 0
      %3811 = vmatprep.subr.bf16.mxu0 0
      %3812 = vmatpush1.bf16.msra.mxu0 0
      %3813 = vmatprep.subr.bf16.mxu0 0
      %3814 = vmatpush1.bf16.msra.mxu0 0
      %3815 = vmatprep.subr.bf16.mxu0 0
      %3816 = vmatpush1.bf16.msra.mxu0 0
      %3817 = vmatprep.subr.bf16.mxu0 0
      %3818 = vmatpush1.bf16.msra.mxu0 0
      %3819 = vmatprep.subr.bf16.mxu0 0
      %3820 = vmatpush1.bf16.msra.mxu0 0
      %3821 = vmatprep.subr.bf16.mxu0 0
      %3822 = vmatpush1.bf16.msra.mxu0 %v3803
      %3823 = vmatprep.subr.bf16.mxu0 0
      %3824 = vmatpush1.bf16.msra.mxu0 %v3802
      %3825 = vmatprep.subr.bf16.mxu0 0
      %3826 = vmatpush2.bf16.msra.mxu0 0
      %3827 = vmatprep.subr.bf16.mxu0 0
      %3828 = vmatpush2.bf16.msra.mxu0 0
      %3829 = vmatprep.subr.bf16.mxu0 0
      %3830 = vmatpush2.bf16.msra.mxu0 0
      %3831 = vmatprep.subr.bf16.mxu0 0
      %3832 = vmatpush2.bf16.msra.mxu0 0
      %3833 = vmatprep.subr.bf16.mxu0 0
      %3834 = vmatpush2.bf16.msra.mxu0 0
      %3835 = vmatprep.subr.bf16.mxu0 0
      %3836 = vmatpush2.bf16.msra.mxu0 0
      %3837 = vmatprep.subr.bf16.mxu0 0
      %3838 = vmatpush2.bf16.msra.mxu0 0
      %3839 = vmatprep.subr.bf16.mxu0 0
      %3840 = vmatpush2.bf16.msra.mxu0 0
      %3841 = vmatprep.mubr.bf16.mxu0 0
      %3842 = vmatmul.mubr.bf16.gmra.mxu0 %v3807
      %v3843 = vpop.f32.mrf.mxu0
      %v3844 = vadd.f32 0.0, %v3843
      %v3845 = vpop.f32.mrf.mxu0
      %v3846 = vpop.f32.mrf.mxu0
      %v3847 = vpop.f32.mrf.mxu0
      %3848 = vdwg.mxu0
      %v3853 = vunpack.c.l.b16 %v481
      %v3854 = vunpack.c.l.b16 %v482
      %v3855 = vunpack.c.l.b16 %v483
      %v3856 = vunpack.c.l.b16 %v484
      %v3857 = vpack.c.b16 %v3854, %v3853
      %v3858 = vpack.c.b16 %v3856, %v3855
      %v3862 = vsel %vm505, %v234, 0
      %3864 = vmatprep.subr.bf16.mxu0 0
      %3865 = vmatpush1.bf16.msra.mxu0 0
      %3866 = vmatprep.subr.bf16.mxu0 0
      %3867 = vmatpush1.bf16.msra.mxu0 0
      %3868 = vmatprep.subr.bf16.mxu0 0
      %3869 = vmatpush1.bf16.msra.mxu0 0
      %3870 = vmatprep.subr.bf16.mxu0 0
      %3871 = vmatpush1.bf16.msra.mxu0 0
      %3872 = vmatprep.subr.bf16.mxu0 0
      %3873 = vmatpush1.bf16.msra.mxu0 0
      %3874 = vmatprep.subr.bf16.mxu0 0
      %3875 = vmatpush1.bf16.msra.mxu0 0
      %3876 = vmatprep.subr.bf16.mxu0 0
      %3877 = vmatpush1.bf16.msra.mxu0 %v3858
      %3878 = vmatprep.subr.bf16.mxu0 0
      %3879 = vmatpush1.bf16.msra.mxu0 %v3857
      %3880 = vmatprep.subr.bf16.mxu0 0
      %3881 = vmatpush2.bf16.msra.mxu0 0
      %3882 = vmatprep.subr.bf16.mxu0 0
      %3883 = vmatpush2.bf16.msra.mxu0 0
      %3884 = vmatprep.subr.bf16.mxu0 0
      %3885 = vmatpush2.bf16.msra.mxu0 0
      %3886 = vmatprep.subr.bf16.mxu0 0
      %3887 = vmatpush2.bf16.msra.mxu0 0
      %3888 = vmatprep.subr.bf16.mxu0 0
      %3889 = vmatpush2.bf16.msra.mxu0 0
      %3890 = vmatprep.subr.bf16.mxu0 0
      %3891 = vmatpush2.bf16.msra.mxu0 0
      %3892 = vmatprep.subr.bf16.mxu0 0
      %3893 = vmatpush2.bf16.msra.mxu0 0
      %3894 = vmatprep.subr.bf16.mxu0 0
      %3895 = vmatpush2.bf16.msra.mxu0 0
      %3896 = vmatprep.mubr.bf16.mxu0 0
      %3897 = vmatmul.mubr.bf16.gmra.mxu0 %v3862
      %v3898 = vpop.f32.mrf.mxu0
      %v3899 = vadd.f32 0.0, %v3898
      %v3900 = vpop.f32.mrf.mxu0
      %v3901 = vpop.f32.mrf.mxu0
      %v3902 = vpop.f32.mrf.mxu0
      %3903 = vdwg.mxu0
      %v3908 = vunpack.c.l.b16 %v485
      %v3909 = vunpack.c.l.b16 %v486
      %v3910 = vunpack.c.l.b16 %v487
      %v3911 = vunpack.c.l.b16 %v488
      %v3912 = vpack.c.b16 %v3909, %v3908
      %v3913 = vpack.c.b16 %v3911, %v3910
      %v3917 = vsel %vm505, %v235, 0
      %3919 = vmatprep.subr.bf16.mxu0 0
      %3920 = vmatpush1.bf16.msra.mxu0 0
      %3921 = vmatprep.subr.bf16.mxu0 0
      %3922 = vmatpush1.bf16.msra.mxu0 0
      %3923 = vmatprep.subr.bf16.mxu0 0
      %3924 = vmatpush1.bf16.msra.mxu0 0
      %3925 = vmatprep.subr.bf16.mxu0 0
      %3926 = vmatpush1.bf16.msra.mxu0 0
      %3927 = vmatprep.subr.bf16.mxu0 0
      %3928 = vmatpush1.bf16.msra.mxu0 0
      %3929 = vmatprep.subr.bf16.mxu0 0
      %3930 = vmatpush1.bf16.msra.mxu0 0
      %3931 = vmatprep.subr.bf16.mxu0 0
      %3932 = vmatpush1.bf16.msra.mxu0 %v3913
      %3933 = vmatprep.subr.bf16.mxu0 0
      %3934 = vmatpush1.bf16.msra.mxu0 %v3912
      %3935 = vmatprep.subr.bf16.mxu0 0
      %3936 = vmatpush2.bf16.msra.mxu0 0
      %3937 = vmatprep.subr.bf16.mxu0 0
      %3938 = vmatpush2.bf16.msra.mxu0 0
      %3939 = vmatprep.subr.bf16.mxu0 0
      %3940 = vmatpush2.bf16.msra.mxu0 0
      %3941 = vmatprep.subr.bf16.mxu0 0
      %3942 = vmatpush2.bf16.msra.mxu0 0
      %3943 = vmatprep.subr.bf16.mxu0 0
      %3944 = vmatpush2.bf16.msra.mxu0 0
      %3945 = vmatprep.subr.bf16.mxu0 0
      %3946 = vmatpush2.bf16.msra.mxu0 0
      %3947 = vmatprep.subr.bf16.mxu0 0
      %3948 = vmatpush2.bf16.msra.mxu0 0
      %3949 = vmatprep.subr.bf16.mxu0 0
      %3950 = vmatpush2.bf16.msra.mxu0 0
      %3951 = vmatprep.mubr.bf16.mxu0 0
      %3952 = vmatmul.mubr.bf16.gmra.mxu0 %v3917
      %v3953 = vpop.f32.mrf.mxu0
      %v3954 = vadd.f32 0.0, %v3953
      %v3955 = vpop.f32.mrf.mxu0
      %v3956 = vpop.f32.mrf.mxu0
      %v3957 = vpop.f32.mrf.mxu0
      %3958 = vdwg.mxu0
      %v3963 = vunpack.c.l.b16 %v489
      %v3964 = vunpack.c.l.b16 %v490
      %v3965 = vunpack.c.l.b16 %v491
      %v3966 = vunpack.c.l.b16 %v492
      %v3967 = vpack.c.b16 %v3964, %v3963
      %v3968 = vpack.c.b16 %v3966, %v3965
      %v3972 = vsel %vm505, %v236, 0
      %3974 = vmatprep.subr.bf16.mxu0 0
      %3975 = vmatpush1.bf16.msra.mxu0 0
      %3976 = vmatprep.subr.bf16.mxu0 0
      %3977 = vmatpush1.bf16.msra.mxu0 0
      %3978 = vmatprep.subr.bf16.mxu0 0
      %3979 = vmatpush1.bf16.msra.mxu0 0
      %3980 = vmatprep.subr.bf16.mxu0 0
      %3981 = vmatpush1.bf16.msra.mxu0 0
      %3982 = vmatprep.subr.bf16.mxu0 0
      %3983 = vmatpush1.bf16.msra.mxu0 0
      %3984 = vmatprep.subr.bf16.mxu0 0
      %3985 = vmatpush1.bf16.msra.mxu0 0
      %3986 = vmatprep.subr.bf16.mxu0 0
      %3987 = vmatpush1.bf16.msra.mxu0 %v3968
      %3988 = vmatprep.subr.bf16.mxu0 0
      %3989 = vmatpush1.bf16.msra.mxu0 %v3967
      %3990 = vmatprep.subr.bf16.mxu0 0
      %3991 = vmatpush2.bf16.msra.mxu0 0
      %3992 = vmatprep.subr.bf16.mxu0 0
      %3993 = vmatpush2.bf16.msra.mxu0 0
      %3994 = vmatprep.subr.bf16.mxu0 0
      %3995 = vmatpush2.bf16.msra.mxu0 0
      %3996 = vmatprep.subr.bf16.mxu0 0
      %3997 = vmatpush2.bf16.msra.mxu0 0
      %3998 = vmatprep.subr.bf16.mxu0 0
      %3999 = vmatpush2.bf16.msra.mxu0 0
      %4000 = vmatprep.subr.bf16.mxu0 0
      %4001 = vmatpush2.bf16.msra.mxu0 0
      %4002 = vmatprep.subr.bf16.mxu0 0
      %4003 = vmatpush2.bf16.msra.mxu0 0
      %4004 = vmatprep.subr.bf16.mxu0 0
      %4005 = vmatpush2.bf16.msra.mxu0 0
      %4006 = vmatprep.mubr.bf16.mxu0 0
      %4007 = vmatmul.mubr.bf16.gmra.mxu0 %v3972
      %v4008 = vpop.f32.mrf.mxu0
      %v4009 = vadd.f32 0.0, %v4008
      %v4010 = vpop.f32.mrf.mxu0
      %v4011 = vpop.f32.mrf.mxu0
      %v4012 = vpop.f32.mrf.mxu0
      %4013 = vdwg.mxu0
      %v4078 = vrot.slane %v544, 2
      %v4079 = vrot.slane %v599, 2
      %v4080 = vrot.slane %v654, 2
      %v4081 = vrot.slane %v709, 2
      %v4082 = vrot.slane %v764, 2
      %v4083 = vrot.slane %v819, 2
      %v4084 = vrot.slane %v874, 2
      %v4085 = vrot.slane %v929, 2
      %v4086 = vrot.slane %v984, 2
      %v4087 = vrot.slane %v1039, 2
      %v4088 = vrot.slane %v1094, 2
      %v4089 = vrot.slane %v1149, 2
      %v4090 = vrot.slane %v1204, 2
      %v4091 = vrot.slane %v1259, 2
      %v4092 = vrot.slane %v1314, 2
      %v4093 = vrot.slane %v1369, 2
      %v4094 = vrot.slane %v1424, 2
      %v4095 = vrot.slane %v1479, 2
      %v4096 = vrot.slane %v1534, 2
      %v4097 = vrot.slane %v1589, 2
      %v4098 = vrot.slane %v1644, 2
      %v4099 = vrot.slane %v1699, 2
      %v4100 = vrot.slane %v1754, 2
      %v4101 = vrot.slane %v1809, 2
      %v4102 = vrot.slane %v1864, 2
      %v4103 = vrot.slane %v1919, 2
      %v4104 = vrot.slane %v1974, 2
      %v4105 = vrot.slane %v2029, 2
      %v4106 = vrot.slane %v2084, 2
      %v4107 = vrot.slane %v2139, 2
      %v4108 = vrot.slane %v2194, 2
      %v4109 = vrot.slane %v2249, 2
      %v4110 = vrot.slane %v2304, 2
      %v4111 = vrot.slane %v2359, 2
      %v4112 = vrot.slane %v2414, 2
      %v4113 = vrot.slane %v2469, 2
      %v4114 = vrot.slane %v2524, 2
      %v4115 = vrot.slane %v2579, 2
      %v4116 = vrot.slane %v2634, 2
      %v4117 = vrot.slane %v2689, 2
      %v4118 = vrot.slane %v2744, 2
      %v4119 = vrot.slane %v2799, 2
      %v4120 = vrot.slane %v2854, 2
      %v4121 = vrot.slane %v2909, 2
      %v4122 = vrot.slane %v2964, 2
      %v4123 = vrot.slane %v3019, 2
      %v4124 = vrot.slane %v3074, 2
      %v4125 = vrot.slane %v3129, 2
      %v4126 = vrot.slane %v3184, 2
      %v4127 = vrot.slane %v3239, 2
      %v4128 = vrot.slane %v3294, 2
      %v4129 = vrot.slane %v3349, 2
      %v4130 = vrot.slane %v3404, 2
      %v4131 = vrot.slane %v3459, 2
      %v4132 = vrot.slane %v3514, 2
      %v4133 = vrot.slane %v3569, 2
      %v4134 = vrot.slane %v3624, 2
      %v4135 = vrot.slane %v3679, 2
      %v4136 = vrot.slane %v3734, 2
      %v4137 = vrot.slane %v3789, 2
      %v4138 = vrot.slane %v3844, 2
      %v4139 = vrot.slane %v3899, 2
      %v4140 = vrot.slane %v3954, 2
      %v4141 = vrot.slane %v4009, 2
      %4142 = vrot.lane.b32.xlu0 %v4078, 96
      %v4143 = vpop.permute.xlu0 %4142
      %4144 = vrot.lane.b32.xlu0 %v4079, 96
      %v4145 = vpop.permute.xlu0 %4144
      %4146 = vrot.lane.b32.xlu0 %v4080, 96
      %v4147 = vpop.permute.xlu0 %4146
      %4148 = vrot.lane.b32.xlu0 %v4081, 96
      %v4149 = vpop.permute.xlu0 %4148
      %4150 = vrot.lane.b32.xlu0 %v4082, 96
      %v4151 = vpop.permute.xlu0 %4150
      %4152 = vrot.lane.b32.xlu0 %v4083, 96
      %v4153 = vpop.permute.xlu0 %4152
      %4154 = vrot.lane.b32.xlu0 %v4084, 96
      %v4155 = vpop.permute.xlu0 %4154
      %4156 = vrot.lane.b32.xlu0 %v4085, 96
      %v4157 = vpop.permute.xlu0 %4156
      %4158 = vrot.lane.b32.xlu0 %v4086, 96
      %v4159 = vpop.permute.xlu0 %4158
      %4160 = vrot.lane.b32.xlu0 %v4087, 96
      %v4161 = vpop.permute.xlu0 %4160
      %4162 = vrot.lane.b32.xlu0 %v4088, 96
      %v4163 = vpop.permute.xlu0 %4162
      %4164 = vrot.lane.b32.xlu0 %v4089, 96
      %v4165 = vpop.permute.xlu0 %4164
      %4166 = vrot.lane.b32.xlu0 %v4090, 96
      %v4167 = vpop.permute.xlu0 %4166
      %4168 = vrot.lane.b32.xlu0 %v4091, 96
      %v4169 = vpop.permute.xlu0 %4168
      %4170 = vrot.lane.b32.xlu0 %v4092, 96
      %v4171 = vpop.permute.xlu0 %4170
      %4172 = vrot.lane.b32.xlu0 %v4093, 96
      %v4173 = vpop.permute.xlu0 %4172
      %4174 = vrot.lane.b32.xlu0 %v4094, 96
      %v4175 = vpop.permute.xlu0 %4174
      %4176 = vrot.lane.b32.xlu0 %v4095, 96
      %v4177 = vpop.permute.xlu0 %4176
      %4178 = vrot.lane.b32.xlu0 %v4096, 96
      %v4179 = vpop.permute.xlu0 %4178
      %4180 = vrot.lane.b32.xlu0 %v4097, 96
      %v4181 = vpop.permute.xlu0 %4180
      %4182 = vrot.lane.b32.xlu0 %v4098, 96
      %v4183 = vpop.permute.xlu0 %4182
      %4184 = vrot.lane.b32.xlu0 %v4099, 96
      %v4185 = vpop.permute.xlu0 %4184
      %4186 = vrot.lane.b32.xlu0 %v4100, 96
      %v4187 = vpop.permute.xlu0 %4186
      %4188 = vrot.lane.b32.xlu0 %v4101, 96
      %v4189 = vpop.permute.xlu0 %4188
      %4190 = vrot.lane.b32.xlu0 %v4102, 96
      %v4191 = vpop.permute.xlu0 %4190
      %4192 = vrot.lane.b32.xlu0 %v4103, 96
      %v4193 = vpop.permute.xlu0 %4192
      %4194 = vrot.lane.b32.xlu0 %v4104, 96
      %v4195 = vpop.permute.xlu0 %4194
      %4196 = vrot.lane.b32.xlu0 %v4105, 96
      %v4197 = vpop.permute.xlu0 %4196
      %4198 = vrot.lane.b32.xlu0 %v4106, 96
      %v4199 = vpop.permute.xlu0 %4198
      %4200 = vrot.lane.b32.xlu0 %v4107, 96
      %v4201 = vpop.permute.xlu0 %4200
      %4202 = vrot.lane.b32.xlu0 %v4108, 96
      %v4203 = vpop.permute.xlu0 %4202
      %4204 = vrot.lane.b32.xlu0 %v4109, 96
      %v4205 = vpop.permute.xlu0 %4204
      %4206 = vrot.lane.b32.xlu0 %v4110, 96
      %v4207 = vpop.permute.xlu0 %4206
      %4208 = vrot.lane.b32.xlu0 %v4111, 96
      %v4209 = vpop.permute.xlu0 %4208
      %4210 = vrot.lane.b32.xlu0 %v4112, 96
      %v4211 = vpop.permute.xlu0 %4210
      %4212 = vrot.lane.b32.xlu0 %v4113, 96
      %v4213 = vpop.permute.xlu0 %4212
      %4214 = vrot.lane.b32.xlu0 %v4114, 96
      %v4215 = vpop.permute.xlu0 %4214
      %4216 = vrot.lane.b32.xlu0 %v4115, 96
      %v4217 = vpop.permute.xlu0 %4216
      %4218 = vrot.lane.b32.xlu0 %v4116, 96
      %v4219 = vpop.permute.xlu0 %4218
      %4220 = vrot.lane.b32.xlu0 %v4117, 96
      %v4221 = vpop.permute.xlu0 %4220
      %4222 = vrot.lane.b32.xlu0 %v4118, 96
      %v4223 = vpop.permute.xlu0 %4222
      %4224 = vrot.lane.b32.xlu0 %v4119, 96
      %v4225 = vpop.permute.xlu0 %4224
      %4226 = vrot.lane.b32.xlu0 %v4120, 96
      %v4227 = vpop.permute.xlu0 %4226
      %4228 = vrot.lane.b32.xlu0 %v4121, 96
      %v4229 = vpop.permute.xlu0 %4228
      %4230 = vrot.lane.b32.xlu0 %v4122, 96
      %v4231 = vpop.permute.xlu0 %4230
      %4232 = vrot.lane.b32.xlu0 %v4123, 96
      %v4233 = vpop.permute.xlu0 %4232
      %4234 = vrot.lane.b32.xlu0 %v4124, 96
      %v4235 = vpop.permute.xlu0 %4234
      %4236 = vrot.lane.b32.xlu0 %v4125, 96
      %v4237 = vpop.permute.xlu0 %4236
      %4238 = vrot.lane.b32.xlu0 %v4126, 96
      %v4239 = vpop.permute.xlu0 %4238
      %4240 = vrot.lane.b32.xlu0 %v4127, 96
      %v4241 = vpop.permute.xlu0 %4240
      %4242 = vrot.lane.b32.xlu0 %v4128, 96
      %v4243 = vpop.permute.xlu0 %4242
      %4244 = vrot.lane.b32.xlu0 %v4129, 96
      %v4245 = vpop.permute.xlu0 %4244
      %4246 = vrot.lane.b32.xlu0 %v4130, 96
      %v4247 = vpop.permute.xlu0 %4246
      %4248 = vrot.lane.b32.xlu0 %v4131, 96
      %v4249 = vpop.permute.xlu0 %4248
      %4250 = vrot.lane.b32.xlu0 %v4132, 96
      %v4251 = vpop.permute.xlu0 %4250
      %4252 = vrot.lane.b32.xlu0 %v4133, 96
      %v4253 = vpop.permute.xlu0 %4252
      %4254 = vrot.lane.b32.xlu0 %v4134, 96
      %v4255 = vpop.permute.xlu0 %4254
      %4256 = vrot.lane.b32.xlu0 %v4135, 96
      %v4257 = vpop.permute.xlu0 %4256
      %4258 = vrot.lane.b32.xlu0 %v4136, 96
      %v4259 = vpop.permute.xlu0 %4258
      %4260 = vrot.lane.b32.xlu0 %v4137, 96
      %v4261 = vpop.permute.xlu0 %4260
      %4262 = vrot.lane.b32.xlu0 %v4138, 96
      %v4263 = vpop.permute.xlu0 %4262
      %4264 = vrot.lane.b32.xlu0 %v4139, 96
      %v4265 = vpop.permute.xlu0 %4264
      %4266 = vrot.lane.b32.xlu0 %v4140, 96
      %v4267 = vpop.permute.xlu0 %4266
      %4268 = vrot.lane.b32.xlu0 %v4141, 96
      %v4269 = vpop.permute.xlu0 %4268
      %v4334 = vsub.f32 %v544, %v4143
      %v4335 = vsub.f32 %v599, %v4145
      %v4336 = vsub.f32 %v654, %v4147
      %v4337 = vsub.f32 %v709, %v4149
      %v4338 = vsub.f32 %v764, %v4151
      %v4339 = vsub.f32 %v819, %v4153
      %v4340 = vsub.f32 %v874, %v4155
      %v4341 = vsub.f32 %v929, %v4157
      %v4342 = vsub.f32 %v984, %v4159
      %v4343 = vsub.f32 %v1039, %v4161
      %v4344 = vsub.f32 %v1094, %v4163
      %v4345 = vsub.f32 %v1149, %v4165
      %v4346 = vsub.f32 %v1204, %v4167
      %v4347 = vsub.f32 %v1259, %v4169
      %v4348 = vsub.f32 %v1314, %v4171
      %v4349 = vsub.f32 %v1369, %v4173
      %v4350 = vsub.f32 %v1424, %v4175
      %v4351 = vsub.f32 %v1479, %v4177
      %v4352 = vsub.f32 %v1534, %v4179
      %v4353 = vsub.f32 %v1589, %v4181
      %v4354 = vsub.f32 %v1644, %v4183
      %v4355 = vsub.f32 %v1699, %v4185
      %v4356 = vsub.f32 %v1754, %v4187
      %v4357 = vsub.f32 %v1809, %v4189
      %v4358 = vsub.f32 %v1864, %v4191
      %v4359 = vsub.f32 %v1919, %v4193
      %v4360 = vsub.f32 %v1974, %v4195
      %v4361 = vsub.f32 %v2029, %v4197
      %v4362 = vsub.f32 %v2084, %v4199
      %v4363 = vsub.f32 %v2139, %v4201
      %v4364 = vsub.f32 %v2194, %v4203
      %v4365 = vsub.f32 %v2249, %v4205
      %v4366 = vsub.f32 %v2304, %v4207
      %v4367 = vsub.f32 %v2359, %v4209
      %v4368 = vsub.f32 %v2414, %v4211
      %v4369 = vsub.f32 %v2469, %v4213
      %v4370 = vsub.f32 %v2524, %v4215
      %v4371 = vsub.f32 %v2579, %v4217
      %v4372 = vsub.f32 %v2634, %v4219
      %v4373 = vsub.f32 %v2689, %v4221
      %v4374 = vsub.f32 %v2744, %v4223
      %v4375 = vsub.f32 %v2799, %v4225
      %v4376 = vsub.f32 %v2854, %v4227
      %v4377 = vsub.f32 %v2909, %v4229
      %v4378 = vsub.f32 %v2964, %v4231
      %v4379 = vsub.f32 %v3019, %v4233
      %v4380 = vsub.f32 %v3074, %v4235
      %v4381 = vsub.f32 %v3129, %v4237
      %v4382 = vsub.f32 %v3184, %v4239
      %v4383 = vsub.f32 %v3239, %v4241
      %v4384 = vsub.f32 %v3294, %v4243
      %v4385 = vsub.f32 %v3349, %v4245
      %v4386 = vsub.f32 %v3404, %v4247
      %v4387 = vsub.f32 %v3459, %v4249
      %v4388 = vsub.f32 %v3514, %v4251
      %v4389 = vsub.f32 %v3569, %v4253
      %v4390 = vsub.f32 %v3624, %v4255
      %v4391 = vsub.f32 %v3679, %v4257
      %v4392 = vsub.f32 %v3734, %v4259
      %v4393 = vsub.f32 %v3789, %v4261
      %v4394 = vsub.f32 %v3844, %v4263
      %v4395 = vsub.f32 %v3899, %v4265
      %v4396 = vsub.f32 %v3954, %v4267
      %v4397 = vsub.f32 %v4009, %v4269
      %4398 = vrot.lane.b32.xlu0 %v4078, 32
      %v4399 = vpop.permute.xlu0 %4398
      %4400 = vrot.lane.b32.xlu0 %v4079, 32
      %v4401 = vpop.permute.xlu0 %4400
      %4402 = vrot.lane.b32.xlu0 %v4080, 32
      %v4403 = vpop.permute.xlu0 %4402
      %4404 = vrot.lane.b32.xlu0 %v4081, 32
      %v4405 = vpop.permute.xlu0 %4404
      %4406 = vrot.lane.b32.xlu0 %v4082, 32
      %v4407 = vpop.permute.xlu0 %4406
      %4408 = vrot.lane.b32.xlu0 %v4083, 32
      %v4409 = vpop.permute.xlu0 %4408
      %4410 = vrot.lane.b32.xlu0 %v4084, 32
      %v4411 = vpop.permute.xlu0 %4410
      %4412 = vrot.lane.b32.xlu0 %v4085, 32
      %v4413 = vpop.permute.xlu0 %4412
      %4414 = vrot.lane.b32.xlu0 %v4086, 32
      %v4415 = vpop.permute.xlu0 %4414
      %4416 = vrot.lane.b32.xlu0 %v4087, 32
      %v4417 = vpop.permute.xlu0 %4416
      %4418 = vrot.lane.b32.xlu0 %v4088, 32
      %v4419 = vpop.permute.xlu0 %4418
      %4420 = vrot.lane.b32.xlu0 %v4089, 32
      %v4421 = vpop.permute.xlu0 %4420
      %4422 = vrot.lane.b32.xlu0 %v4090, 32
      %v4423 = vpop.permute.xlu0 %4422
      %4424 = vrot.lane.b32.xlu0 %v4091, 32
      %v4425 = vpop.permute.xlu0 %4424
      %4426 = vrot.lane.b32.xlu0 %v4092, 32
      %v4427 = vpop.permute.xlu0 %4426
      %4428 = vrot.lane.b32.xlu0 %v4093, 32
      %v4429 = vpop.permute.xlu0 %4428
      %4430 = vrot.lane.b32.xlu0 %v4094, 32
      %v4431 = vpop.permute.xlu0 %4430
      %4432 = vrot.lane.b32.xlu0 %v4095, 32
      %v4433 = vpop.permute.xlu0 %4432
      %4434 = vrot.lane.b32.xlu0 %v4096, 32
      %v4435 = vpop.permute.xlu0 %4434
      %4436 = vrot.lane.b32.xlu0 %v4097, 32
      %v4437 = vpop.permute.xlu0 %4436
      %4438 = vrot.lane.b32.xlu0 %v4098, 32
      %v4439 = vpop.permute.xlu0 %4438
      %4440 = vrot.lane.b32.xlu0 %v4099, 32
      %v4441 = vpop.permute.xlu0 %4440
      %4442 = vrot.lane.b32.xlu0 %v4100, 32
      %v4443 = vpop.permute.xlu0 %4442
      %4444 = vrot.lane.b32.xlu0 %v4101, 32
      %v4445 = vpop.permute.xlu0 %4444
      %4446 = vrot.lane.b32.xlu0 %v4102, 32
      %v4447 = vpop.permute.xlu0 %4446
      %4448 = vrot.lane.b32.xlu0 %v4103, 32
      %v4449 = vpop.permute.xlu0 %4448
      %4450 = vrot.lane.b32.xlu0 %v4104, 32
      %v4451 = vpop.permute.xlu0 %4450
      %4452 = vrot.lane.b32.xlu0 %v4105, 32
      %v4453 = vpop.permute.xlu0 %4452
      %4454 = vrot.lane.b32.xlu0 %v4106, 32
      %v4455 = vpop.permute.xlu0 %4454
      %4456 = vrot.lane.b32.xlu0 %v4107, 32
      %v4457 = vpop.permute.xlu0 %4456
      %4458 = vrot.lane.b32.xlu0 %v4108, 32
      %v4459 = vpop.permute.xlu0 %4458
      %4460 = vrot.lane.b32.xlu0 %v4109, 32
      %v4461 = vpop.permute.xlu0 %4460
      %4462 = vrot.lane.b32.xlu0 %v4110, 32
      %v4463 = vpop.permute.xlu0 %4462
      %4464 = vrot.lane.b32.xlu0 %v4111, 32
      %v4465 = vpop.permute.xlu0 %4464
      %4466 = vrot.lane.b32.xlu0 %v4112, 32
      %v4467 = vpop.permute.xlu0 %4466
      %4468 = vrot.lane.b32.xlu0 %v4113, 32
      %v4469 = vpop.permute.xlu0 %4468
      %4470 = vrot.lane.b32.xlu0 %v4114, 32
      %v4471 = vpop.permute.xlu0 %4470
      %4472 = vrot.lane.b32.xlu0 %v4115, 32
      %v4473 = vpop.permute.xlu0 %4472
      %4474 = vrot.lane.b32.xlu0 %v4116, 32
      %v4475 = vpop.permute.xlu0 %4474
      %4476 = vrot.lane.b32.xlu0 %v4117, 32
      %v4477 = vpop.permute.xlu0 %4476
      %4478 = vrot.lane.b32.xlu0 %v4118, 32
      %v4479 = vpop.permute.xlu0 %4478
      %4480 = vrot.lane.b32.xlu0 %v4119, 32
      %v4481 = vpop.permute.xlu0 %4480
      %4482 = vrot.lane.b32.xlu0 %v4120, 32
      %v4483 = vpop.permute.xlu0 %4482
      %4484 = vrot.lane.b32.xlu0 %v4121, 32
      %v4485 = vpop.permute.xlu0 %4484
      %4486 = vrot.lane.b32.xlu0 %v4122, 32
      %v4487 = vpop.permute.xlu0 %4486
      %4488 = vrot.lane.b32.xlu0 %v4123, 32
      %v4489 = vpop.permute.xlu0 %4488
      %4490 = vrot.lane.b32.xlu0 %v4124, 32
      %v4491 = vpop.permute.xlu0 %4490
      %4492 = vrot.lane.b32.xlu0 %v4125, 32
      %v4493 = vpop.permute.xlu0 %4492
      %4494 = vrot.lane.b32.xlu0 %v4126, 32
      %v4495 = vpop.permute.xlu0 %4494
      %4496 = vrot.lane.b32.xlu0 %v4127, 32
      %v4497 = vpop.permute.xlu0 %4496
      %4498 = vrot.lane.b32.xlu0 %v4128, 32
      %v4499 = vpop.permute.xlu0 %4498
      %4500 = vrot.lane.b32.xlu0 %v4129, 32
      %v4501 = vpop.permute.xlu0 %4500
      %4502 = vrot.lane.b32.xlu0 %v4130, 32
      %v4503 = vpop.permute.xlu0 %4502
      %4504 = vrot.lane.b32.xlu0 %v4131, 32
      %v4505 = vpop.permute.xlu0 %4504
      %4506 = vrot.lane.b32.xlu0 %v4132, 32
      %v4507 = vpop.permute.xlu0 %4506
      %4508 = vrot.lane.b32.xlu0 %v4133, 32
      %v4509 = vpop.permute.xlu0 %4508
      %4510 = vrot.lane.b32.xlu0 %v4134, 32
      %v4511 = vpop.permute.xlu0 %4510
      %4512 = vrot.lane.b32.xlu0 %v4135, 32
      %v4513 = vpop.permute.xlu0 %4512
      %4514 = vrot.lane.b32.xlu0 %v4136, 32
      %v4515 = vpop.permute.xlu0 %4514
      %4516 = vrot.lane.b32.xlu0 %v4137, 32
      %v4517 = vpop.permute.xlu0 %4516
      %4518 = vrot.lane.b32.xlu0 %v4138, 32
      %v4519 = vpop.permute.xlu0 %4518
      %4520 = vrot.lane.b32.xlu0 %v4139, 32
      %v4521 = vpop.permute.xlu0 %4520
      %4522 = vrot.lane.b32.xlu0 %v4140, 32
      %v4523 = vpop.permute.xlu0 %4522
      %4524 = vrot.lane.b32.xlu0 %v4141, 32
      %v4525 = vpop.permute.xlu0 %4524
      %v4590 = vadd.f32 %v544, %v4399
      %v4591 = vadd.f32 %v599, %v4401
      %v4592 = vadd.f32 %v654, %v4403
      %v4593 = vadd.f32 %v709, %v4405
      %v4594 = vadd.f32 %v764, %v4407
      %v4595 = vadd.f32 %v819, %v4409
      %v4596 = vadd.f32 %v874, %v4411
      %v4597 = vadd.f32 %v929, %v4413
      %v4598 = vadd.f32 %v984, %v4415
      %v4599 = vadd.f32 %v1039, %v4417
      %v4600 = vadd.f32 %v1094, %v4419
      %v4601 = vadd.f32 %v1149, %v4421
      %v4602 = vadd.f32 %v1204, %v4423
      %v4603 = vadd.f32 %v1259, %v4425
      %v4604 = vadd.f32 %v1314, %v4427
      %v4605 = vadd.f32 %v1369, %v4429
      %v4606 = vadd.f32 %v1424, %v4431
      %v4607 = vadd.f32 %v1479, %v4433
      %v4608 = vadd.f32 %v1534, %v4435
      %v4609 = vadd.f32 %v1589, %v4437
      %v4610 = vadd.f32 %v1644, %v4439
      %v4611 = vadd.f32 %v1699, %v4441
      %v4612 = vadd.f32 %v1754, %v4443
      %v4613 = vadd.f32 %v1809, %v4445
      %v4614 = vadd.f32 %v1864, %v4447
      %v4615 = vadd.f32 %v1919, %v4449
      %v4616 = vadd.f32 %v1974, %v4451
      %v4617 = vadd.f32 %v2029, %v4453
      %v4618 = vadd.f32 %v2084, %v4455
      %v4619 = vadd.f32 %v2139, %v4457
      %v4620 = vadd.f32 %v2194, %v4459
      %v4621 = vadd.f32 %v2249, %v4461
      %v4622 = vadd.f32 %v2304, %v4463
      %v4623 = vadd.f32 %v2359, %v4465
      %v4624 = vadd.f32 %v2414, %v4467
      %v4625 = vadd.f32 %v2469, %v4469
      %v4626 = vadd.f32 %v2524, %v4471
      %v4627 = vadd.f32 %v2579, %v4473
      %v4628 = vadd.f32 %v2634, %v4475
      %v4629 = vadd.f32 %v2689, %v4477
      %v4630 = vadd.f32 %v2744, %v4479
      %v4631 = vadd.f32 %v2799, %v4481
      %v4632 = vadd.f32 %v2854, %v4483
      %v4633 = vadd.f32 %v2909, %v4485
      %v4634 = vadd.f32 %v2964, %v4487
      %v4635 = vadd.f32 %v3019, %v4489
      %v4636 = vadd.f32 %v3074, %v4491
      %v4637 = vadd.f32 %v3129, %v4493
      %v4638 = vadd.f32 %v3184, %v4495
      %v4639 = vadd.f32 %v3239, %v4497
      %v4640 = vadd.f32 %v3294, %v4499
      %v4641 = vadd.f32 %v3349, %v4501
      %v4642 = vadd.f32 %v3404, %v4503
      %v4643 = vadd.f32 %v3459, %v4505
      %v4644 = vadd.f32 %v3514, %v4507
      %v4645 = vadd.f32 %v3569, %v4509
      %v4646 = vadd.f32 %v3624, %v4511
      %v4647 = vadd.f32 %v3679, %v4513
      %v4648 = vadd.f32 %v3734, %v4515
      %v4649 = vadd.f32 %v3789, %v4517
      %v4650 = vadd.f32 %v3844, %v4519
      %v4651 = vadd.f32 %v3899, %v4521
      %v4652 = vadd.f32 %v3954, %v4523
      %v4653 = vadd.f32 %v4009, %v4525
      %v4654 = vsel %vm505, %v4334, %v4590
      %v4655 = vsel %vm505, %v4335, %v4591
      %v4656 = vsel %vm505, %v4336, %v4592
      %v4657 = vsel %vm505, %v4337, %v4593
      %v4658 = vsel %vm505, %v4338, %v4594
      %v4659 = vsel %vm505, %v4339, %v4595
      %v4660 = vsel %vm505, %v4340, %v4596
      %v4661 = vsel %vm505, %v4341, %v4597
      %v4662 = vsel %vm505, %v4342, %v4598
      %v4663 = vsel %vm505, %v4343, %v4599
      %v4664 = vsel %vm505, %v4344, %v4600
      %v4665 = vsel %vm505, %v4345, %v4601
      %v4666 = vsel %vm505, %v4346, %v4602
      %v4667 = vsel %vm505, %v4347, %v4603
      %v4668 = vsel %vm505, %v4348, %v4604
      %v4669 = vsel %vm505, %v4349, %v4605
      %v4670 = vsel %vm505, %v4350, %v4606
      %v4671 = vsel %vm505, %v4351, %v4607
      %v4672 = vsel %vm505, %v4352, %v4608
      %v4673 = vsel %vm505, %v4353, %v4609
      %v4674 = vsel %vm505, %v4354, %v4610
      %v4675 = vsel %vm505, %v4355, %v4611
      %v4676 = vsel %vm505, %v4356, %v4612
      %v4677 = vsel %vm505, %v4357, %v4613
      %v4678 = vsel %vm505, %v4358, %v4614
      %v4679 = vsel %vm505, %v4359, %v4615
      %v4680 = vsel %vm505, %v4360, %v4616
      %v4681 = vsel %vm505, %v4361, %v4617
      %v4682 = vsel %vm505, %v4362, %v4618
      %v4683 = vsel %vm505, %v4363, %v4619
      %v4684 = vsel %vm505, %v4364, %v4620
      %v4685 = vsel %vm505, %v4365, %v4621
      %v4686 = vsel %vm505, %v4366, %v4622
      %v4687 = vsel %vm505, %v4367, %v4623
      %v4688 = vsel %vm505, %v4368, %v4624
      %v4689 = vsel %vm505, %v4369, %v4625
      %v4690 = vsel %vm505, %v4370, %v4626
      %v4691 = vsel %vm505, %v4371, %v4627
      %v4692 = vsel %vm505, %v4372, %v4628
      %v4693 = vsel %vm505, %v4373, %v4629
      %v4694 = vsel %vm505, %v4374, %v4630
      %v4695 = vsel %vm505, %v4375, %v4631
      %v4696 = vsel %vm505, %v4376, %v4632
      %v4697 = vsel %vm505, %v4377, %v4633
      %v4698 = vsel %vm505, %v4378, %v4634
      %v4699 = vsel %vm505, %v4379, %v4635
      %v4700 = vsel %vm505, %v4380, %v4636
      %v4701 = vsel %vm505, %v4381, %v4637
      %v4702 = vsel %vm505, %v4382, %v4638
      %v4703 = vsel %vm505, %v4383, %v4639
      %v4704 = vsel %vm505, %v4384, %v4640
      %v4705 = vsel %vm505, %v4385, %v4641
      %v4706 = vsel %vm505, %v4386, %v4642
      %v4707 = vsel %vm505, %v4387, %v4643
      %v4708 = vsel %vm505, %v4388, %v4644
      %v4709 = vsel %vm505, %v4389, %v4645
      %v4710 = vsel %vm505, %v4390, %v4646
      %v4711 = vsel %vm505, %v4391, %v4647
      %v4712 = vsel %vm505, %v4392, %v4648
      %v4713 = vsel %vm505, %v4393, %v4649
      %v4714 = vsel %vm505, %v4394, %v4650
      %v4715 = vsel %vm505, %v4395, %v4651
      %v4716 = vsel %vm505, %v4396, %v4652
      %v4717 = vsel %vm505, %v4397, %v4653
      %vm4718 = vcmask 517120
      %4719 = vst.msk [vmem:[%s170] sm:$0x3] %vm4718, %v4654
      %4720 = vst.msk [vmem:[%s170 + $0x2] sm:$0x3] %vm4718, %v4655
      %4721 = vst.msk [vmem:[%s170 + $0x4] sm:$0x3] %vm4718, %v4656
      %4722 = vst.msk [vmem:[%s170 + $0x6] sm:$0x3] %vm4718, %v4657
      %4723 = vst.msk [vmem:[%s170 + $0x8] sm:$0x3] %vm4718, %v4658
      %4724 = vst.msk [vmem:[%s170 + $0xa] sm:$0x3] %vm4718, %v4659
      %4725 = vst.msk [vmem:[%s170 + $0xc] sm:$0x3] %vm4718, %v4660
      %4726 = vst.msk [vmem:[%s170 + $0xe] sm:$0x3] %vm4718, %v4661
      %4727 = vst.msk [vmem:[%s170 + $0x10] sm:$0x3] %vm4718, %v4662
      %4728 = vst.msk [vmem:[%s170 + $0x12] sm:$0x3] %vm4718, %v4663
      %4729 = vst.msk [vmem:[%s170 + $0x14] sm:$0x3] %vm4718, %v4664
      %4730 = vst.msk [vmem:[%s170 + $0x16] sm:$0x3] %vm4718, %v4665
      %4731 = vst.msk [vmem:[%s170 + $0x18] sm:$0x3] %vm4718, %v4666
      %4732 = vst.msk [vmem:[%s170 + $0x1a] sm:$0x3] %vm4718, %v4667
      %4733 = vst.msk [vmem:[%s170 + $0x1c] sm:$0x3] %vm4718, %v4668
      %4734 = vst.msk [vmem:[%s170 + $0x1e] sm:$0x3] %vm4718, %v4669
      %4735 = vst.msk [vmem:[%s170 + $0x20] sm:$0x3] %vm4718, %v4670
      %4736 = vst.msk [vmem:[%s170 + $0x22] sm:$0x3] %vm4718, %v4671
      %4737 = vst.msk [vmem:[%s170 + $0x24] sm:$0x3] %vm4718, %v4672
      %4738 = vst.msk [vmem:[%s170 + $0x26] sm:$0x3] %vm4718, %v4673
      %4739 = vst.msk [vmem:[%s170 + $0x28] sm:$0x3] %vm4718, %v4674
      %4740 = vst.msk [vmem:[%s170 + $0x2a] sm:$0x3] %vm4718, %v4675
      %4741 = vst.msk [vmem:[%s170 + $0x2c] sm:$0x3] %vm4718, %v4676
      %4742 = vst.msk [vmem:[%s170 + $0x2e] sm:$0x3] %vm4718, %v4677
      %4743 = vst.msk [vmem:[%s170 + $0x30] sm:$0x3] %vm4718, %v4678
      %4744 = vst.msk [vmem:[%s170 + $0x32] sm:$0x3] %vm4718, %v4679
      %4745 = vst.msk [vmem:[%s170 + $0x34] sm:$0x3] %vm4718, %v4680
      %4746 = vst.msk [vmem:[%s170 + $0x36] sm:$0x3] %vm4718, %v4681
      %4747 = vst.msk [vmem:[%s170 + $0x38] sm:$0x3] %vm4718, %v4682
      %4748 = vst.msk [vmem:[%s170 + $0x3a] sm:$0x3] %vm4718, %v4683
      %4749 = vst.msk [vmem:[%s170 + $0x3c] sm:$0x3] %vm4718, %v4684
      %4750 = vst.msk [vmem:[%s170 + $0x3e] sm:$0x3] %vm4718, %v4685
      %4751 = vst.msk [vmem:[%s170 + $0x40] sm:$0x3] %vm4718, %v4686
      %4752 = vst.msk [vmem:[%s170 + $0x42] sm:$0x3] %vm4718, %v4687
      %4753 = vst.msk [vmem:[%s170 + $0x44] sm:$0x3] %vm4718, %v4688
      %4754 = vst.msk [vmem:[%s170 + $0x46] sm:$0x3] %vm4718, %v4689
      %4755 = vst.msk [vmem:[%s170 + $0x48] sm:$0x3] %vm4718, %v4690
      %4756 = vst.msk [vmem:[%s170 + $0x4a] sm:$0x3] %vm4718, %v4691
      %4757 = vst.msk [vmem:[%s170 + $0x4c] sm:$0x3] %vm4718, %v4692
      %4758 = vst.msk [vmem:[%s170 + $0x4e] sm:$0x3] %vm4718, %v4693
      %4759 = vst.msk [vmem:[%s170 + $0x50] sm:$0x3] %vm4718, %v4694
      %4760 = vst.msk [vmem:[%s170 + $0x52] sm:$0x3] %vm4718, %v4695
      %4761 = vst.msk [vmem:[%s170 + $0x54] sm:$0x3] %vm4718, %v4696
      %4762 = vst.msk [vmem:[%s170 + $0x56] sm:$0x3] %vm4718, %v4697
      %4763 = vst.msk [vmem:[%s170 + $0x58] sm:$0x3] %vm4718, %v4698
      %4764 = vst.msk [vmem:[%s170 + $0x5a] sm:$0x3] %vm4718, %v4699
      %4765 = vst.msk [vmem:[%s170 + $0x5c] sm:$0x3] %vm4718, %v4700
      %4766 = vst.msk [vmem:[%s170 + $0x5e] sm:$0x3] %vm4718, %v4701
      %4767 = vst.msk [vmem:[%s170 + $0x60] sm:$0x3] %vm4718, %v4702
      %4768 = vst.msk [vmem:[%s170 + $0x62] sm:$0x3] %vm4718, %v4703
      %4769 = vst.msk [vmem:[%s170 + $0x64] sm:$0x3] %vm4718, %v4704
      %4770 = vst.msk [vmem:[%s170 + $0x66] sm:$0x3] %vm4718, %v4705
      %4771 = vst.msk [vmem:[%s170 + $0x68] sm:$0x3] %vm4718, %v4706
      %4772 = vst.msk [vmem:[%s170 + $0x6a] sm:$0x3] %vm4718, %v4707
      %4773 = vst.msk [vmem:[%s170 + $0x6c] sm:$0x3] %vm4718, %v4708
      %4774 = vst.msk [vmem:[%s170 + $0x6e] sm:$0x3] %vm4718, %v4709
      %4775 = vst.msk [vmem:[%s170 + $0x70] sm:$0x3] %vm4718, %v4710
      %4776 = vst.msk [vmem:[%s170 + $0x72] sm:$0x3] %vm4718, %v4711
      %4777 = vst.msk [vmem:[%s170 + $0x74] sm:$0x3] %vm4718, %v4712
      %4778 = vst.msk [vmem:[%s170 + $0x76] sm:$0x3] %vm4718, %v4713
      %4779 = vst.msk [vmem:[%s170 + $0x78] sm:$0x3] %vm4718, %v4714
      %4780 = vst.msk [vmem:[%s170 + $0x7a] sm:$0x3] %vm4718, %v4715
      %4781 = vst.msk [vmem:[%s170 + $0x7c] sm:$0x3] %vm4718, %v4716
      %4782 = vst.msk [vmem:[%s170 + $0x7e] sm:$0x3] %vm4718, %v4717
      %s4783 = smul.u32 64, %s13
      %p4784 = scmp.lt.s32.totalorder %s4783, 255
      %s4785 = scalar_select %p4784, %s4783, 255
      %s4786 = smul.addr %s4785, 2
      %s4787 = scalar_lea.vmem %s2, %s4786
      // Predicated region
      $region29: #{fno3d_forward.7} parent=27 // pred_check
        %p4788 = pneg %p83
      $region30: #{fno3d_forward.7} parent=27 // pred_check_branch
        %4790 = sbr.rel (%p4788) target = $region32
      $region31: #{fno3d_forward.7} parent=27 // pred_region
        %s4791 = smul.u32 64, %s13
      $region32: #{fno3d_forward.7} parent=27 // pred_fallthru
        _
    $region28: #{fno3d_forward.7} parent=5 // pred_fallthru
      _
    %p4792 = scmp.le.s32.totalorder 2, %s8
    // Predicated region
    $region33: #{fno3d_forward.7} parent=5 // pred_check
      %p4793 = pneg %p4792
    $region34: #{fno3d_forward.7} parent=5 // pred_check_branch
      %4795 = sbr.rel (%p4793) target = $region36
    $region35: #{fno3d_forward.7} parent=5 // pred_region
      %s4796 = ssub.s32 %s8, 2
      // Predicated region
      $region37: #{fno3d_forward.7} parent=35 // pred_check
        %p4797 = pneg %p89
      $region38: #{fno3d_forward.7} parent=35 // pred_check_branch
        %4799 = sbr.rel (%p4797) target = $region40
      $region39: #{fno3d_forward.7} parent=35 // pred_region
        %s4800 = smul.u32 64, %s14
        %p4801 = scmp.lt.s32.totalorder %s4800, 255
        %s4802 = scalar_select %p4801, %s4800, 255
        %s4803 = smul.addr %s4802, 2
        %s4804 = scalar_lea.vmem %s2, %s4803
      $region40: #{fno3d_forward.7} parent=35 // pred_fallthru
        _
    $region36: #{fno3d_forward.7} parent=5 // pred_fallthru
      _
  $region6: #{fno3d_forward.7} parent=0 // loop_footer
    %s12 = sadd.s32 1, %s8
  $region7: #{fno3d_forward.7} parent=0 // loop_footer_branch
    %7 = sbr.rel target = $region3
  $region8: #{fno3d_forward.7} parent=0 // loop_exit
    _

// kernel: reverse.4
$region0: #{reverse.4}
  #allocation0 [shape = 's32[1]{0}', space=sflag, size = 0x4, scoped, tag = 'scoped memory for reverse.4']
  %s0 = inlined_call_operand.vmem [shape: f32[2,32,10,10,4], index: 0, kind: input, shape index: {}]
  %s1 = inlined_call_operand.vmem [shape: f32[2,32,10,10,4], index: 1, kind: output, shape index: {}]
  %s2 = scalar_lea.vmem %s0, 480
  %v3 = vld [vmem:[%s2] sm:$0xff]
  %4 = vst [vmem:[%s1] sm:$0xff] %v3
  %s5 = scalar_lea.vmem %s0, 1120
  %v6 = vld [vmem:[%s5] sm:$0xff]
  %s7 = scalar_lea.vmem %s1, 640
  %8 = vst [vmem:[%s7] sm:$0xff] %v6
  %s9 = scalar_lea.vmem %s0, 320
  %v10 = vld [vmem:[%s9] sm:$0xff]
  %s11 = scalar_lea.vmem %s1, 160
  %12 = vst [vmem:[%s11] sm:$0xff] %v10
  %s13 = scalar_lea.vmem %s0, 960
  %v14 = vld [vmem:[%s13] sm:$0xff]
  %s15 = scalar_lea.vmem %s1, 800
  %16 = vst [vmem:[%s15] sm:$0xff] %v14
  %s17 = scalar_lea.vmem %s0, 160
  %v18 = vld [vmem:[%s17] sm:$0xff]
  %s19 = scalar_lea.vmem %s1, 320
  %20 = vst [vmem:[%s19] sm:$0xff] %v18
  %s21 = scalar_lea.vmem %s0, 800
  %v22 = vld [vmem:[%s21] sm:$0xff]
  %s23 = scalar_lea.vmem %s1, 960
  %24 = vst [vmem:[%s23] sm:$0xff] %v22
  %v25 = vld [vmem:[%s0] sm:$0xff]
  %s26 = scalar_lea.vmem %s1, 480
  %27 = vst [vmem:[%s26] sm:$0xff] %v25
  %s28 = scalar_lea.vmem %s0, 640
  %v29 = vld [vmem:[%s28] sm:$0xff]
  %s30 = scalar_lea.vmem %s1, 1120
  %31 = vst [vmem:[%s30] sm:$0xff] %v29
  %s32 = scalar_lea.vmem %s0, 496
  %v33 = vld [vmem:[%s32] sm:$0xff]
  %s34 = scalar_lea.vmem %s1, 16
  %35 = vst [vmem:[%s34] sm:$0xff] %v33
  %s36 = scalar_lea.vmem %s0, 1136
  %v37 = vld [vmem:[%s36] sm:$0xff]
  %s38 = scalar_lea.vmem %s1, 656
  %39 = vst [vmem:[%s38] sm:$0xff] %v37
  %s40 = scalar_lea.vmem %s0, 336
  %v41 = vld [vmem:[%s40] sm:$0xff]
  %s42 = scalar_lea.vmem %s1, 176
  %43 = vst [vmem:[%s42] sm:$0xff] %v41
  %s44 = scalar_lea.vmem %s0, 976
  %v45 = vld [vmem:[%s44] sm:$0xff]
  %s46 = scalar_lea.vmem %s1, 816
  %47 = vst [vmem:[%s46] sm:$0xff] %v45
  %s48 = scalar_lea.vmem %s0, 176
  %v49 = vld [vmem:[%s48] sm:$0xff]
  %s50 = scalar_lea.vmem %s1, 336
  %51 = vst [vmem:[%s50] sm:$0xff] %v49
  %s52 = scalar_lea.vmem %s0, 816
  %v53 = vld [vmem:[%s52] sm:$0xff]
  %s54 = scalar_lea.vmem %s1, 976
  %55 = vst [vmem:[%s54] sm:$0xff] %v53
  %s56 = scalar_lea.vmem %s0, 16
  %v57 = vld [vmem:[%s56] sm:$0xff]
  %s58 = scalar_lea.vmem %s1, 496
  %59 = vst [vmem:[%s58] sm:$0xff] %v57
  %s60 = scalar_lea.vmem %s0, 656
  %v61 = vld [vmem:[%s60] sm:$0xff]
  %s62 = scalar_lea.vmem %s1, 1136
  %63 = vst [vmem:[%s62] sm:$0xff] %v61
  %s64 = scalar_lea.vmem %s0, 512
  %v65 = vld [vmem:[%s64] sm:$0xff]
  %s66 = scalar_lea.vmem %s1, 32
  %67 = vst [vmem:[%s66] sm:$0xff] %v65
  %s68 = scalar_lea.vmem %s0, 1152
  %v69 = vld [vmem:[%s68] sm:$0xff]
  %s70 = scalar_lea.vmem %s1, 672
  %71 = vst [vmem:[%s70] sm:$0xff] %v69
  %s72 = scalar_lea.vmem %s0, 352
  %v73 = vld [vmem:[%s72] sm:$0xff]
  %s74 = scalar_lea.vmem %s1, 192
  %75 = vst [vmem:[%s74] sm:$0xff] %v73
  %s76 = scalar_lea.vmem %s0, 992
  %v77 = vld [vmem:[%s76] sm:$0xff]
  %s78 = scalar_lea.vmem %s1, 832
  %79 = vst [vmem:[%s78] sm:$0xff] %v77
  %s80 = scalar_lea.vmem %s0, 192
  %v81 = vld [vmem:[%s80] sm:$0xff]
  %s82 = scalar_lea.vmem %s1, 352
  %83 = vst [vmem:[%s82] sm:$0xff] %v81
  %s84 = scalar_lea.vmem %s0, 832
  %v85 = vld [vmem:[%s84] sm:$0xff]
  %s86 = scalar_lea.vmem %s1, 992
  %87 = vst [vmem:[%s86] sm:$0xff] %v85
  %s88 = scalar_lea.vmem %s0, 32
  %v89 = vld [vmem:[%s88] sm:$0xff]
  %s90 = scalar_lea.vmem %s1, 512
  %91 = vst [vmem:[%s90] sm:$0xff] %v89
  %s92 = scalar_lea.vmem %s0, 672
  %v93 = vld [vmem:[%s92] sm:$0xff]
  %s94 = scalar_lea.vmem %s1, 1152
  %95 = vst [vmem:[%s94] sm:$0xff] %v93
  %s96 = scalar_lea.vmem %s0, 528
  %v97 = vld [vmem:[%s96] sm:$0xff]
  %s98 = scalar_lea.vmem %s1, 48
  %99 = vst [vmem:[%s98] sm:$0xff] %v97
  %s100 = scalar_lea.vmem %s0, 1168
  %v101 = vld [vmem:[%s100] sm:$0xff]
  %s102 = scalar_lea.vmem %s1, 688
  %103 = vst [vmem:[%s102] sm:$0xff] %v101
  %s104 = scalar_lea.vmem %s0, 368
  %v105 = vld [vmem:[%s104] sm:$0xff]
  %s106 = scalar_lea.vmem %s1, 208
  %107 = vst [vmem:[%s106] sm:$0xff] %v105
  %s108 = scalar_lea.vmem %s0, 1008
  %v109 = vld [vmem:[%s108] sm:$0xff]
  %s110 = scalar_lea.vmem %s1, 848
  %111 = vst [vmem:[%s110] sm:$0xff] %v109
  %s112 = scalar_lea.vmem %s0, 208
  %v113 = vld [vmem:[%s112] sm:$0xff]
  %s114 = scalar_lea.vmem %s1, 368
  %115 = vst [vmem:[%s114] sm:$0xff] %v113
  %s116 = scalar_lea.vmem %s0, 848
  %v117 = vld [vmem:[%s116] sm:$0xff]
  %s118 = scalar_lea.vmem %s1, 1008
  %119 = vst [vmem:[%s118] sm:$0xff] %v117
  %s120 = scalar_lea.vmem %s0, 48
  %v121 = vld [vmem:[%s120] sm:$0xff]
  %s122 = scalar_lea.vmem %s1, 528
  %123 = vst [vmem:[%s122] sm:$0xff] %v121
  %s124 = scalar_lea.vmem %s0, 688
  %v125 = vld [vmem:[%s124] sm:$0xff]
  %s126 = scalar_lea.vmem %s1, 1168
  %127 = vst [vmem:[%s126] sm:$0xff] %v125
  %s128 = scalar_lea.vmem %s0, 544
  %v129 = vld [vmem:[%s128] sm:$0xff]
  %s130 = scalar_lea.vmem %s1, 64
  %131 = vst [vmem:[%s130] sm:$0xff] %v129
  %s132 = scalar_lea.vmem %s0, 1184
  %v133 = vld [vmem:[%s132] sm:$0xff]
  %s134 = scalar_lea.vmem %s1, 704
  %135 = vst [vmem:[%s134] sm:$0xff] %v133
  %s136 = scalar_lea.vmem %s0, 384
  %v137 = vld [vmem:[%s136] sm:$0xff]
  %s138 = scalar_lea.vmem %s1, 224
  %139 = vst [vmem:[%s138] sm:$0xff] %v137
  %s140 = scalar_lea.vmem %s0, 1024
  %v141 = vld [vmem:[%s140] sm:$0xff]
  %s142 = scalar_lea.vmem %s1, 864
  %143 = vst [vmem:[%s142] sm:$0xff] %v141
  %s144 = scalar_lea.vmem %s0, 224
  %v145 = vld [vmem:[%s144] sm:$0xff]
  %s146 = scalar_lea.vmem %s1, 384
  %147 = vst [vmem:[%s146] sm:$0xff] %v145
  %s148 = scalar_lea.vmem %s0, 864
  %v149 = vld [vmem:[%s148] sm:$0xff]
  %s150 = scalar_lea.vmem %s1, 1024
  %151 = vst [vmem:[%s150] sm:$0xff] %v149
  %s152 = scalar_lea.vmem %s0, 64
  %v153 = vld [vmem:[%s152] sm:$0xff]
  %s154 = scalar_lea.vmem %s1, 544
  %155 = vst [vmem:[%s154] sm:$0xff] %v153
  %s156 = scalar_lea.vmem %s0, 704
  %v157 = vld [vmem:[%s156] sm:$0xff]
  %s158 = scalar_lea.vmem %s1, 1184
  %159 = vst [vmem:[%s158] sm:$0xff] %v157
  %s160 = scalar_lea.vmem %s0, 560
  %v161 = vld [vmem:[%s160] sm:$0xff]
  %s162 = scalar_lea.vmem %s1, 80
  %163 = vst [vmem:[%s162] sm:$0xff] %v161
  %s164 = scalar_lea.vmem %s0, 1200
  %v165 = vld [vmem:[%s164] sm:$0xff]
  %s166 = scalar_lea.vmem %s1, 720
  %167 = vst [vmem:[%s166] sm:$0xff] %v165
  %s168 = scalar_lea.vmem %s0, 400
  %v169 = vld [vmem:[%s168] sm:$0xff]
  %s170 = scalar_lea.vmem %s1, 240
  %171 = vst [vmem:[%s170] sm:$0xff] %v169
  %s172 = scalar_lea.vmem %s0, 1040
  %v173 = vld [vmem:[%s172] sm:$0xff]
  %s174 = scalar_lea.vmem %s1, 880
  %175 = vst [vmem:[%s174] sm:$0xff] %v173
  %s176 = scalar_lea.vmem %s0, 240
  %v177 = vld [vmem:[%s176] sm:$0xff]
  %s178 = scalar_lea.vmem %s1, 400
  %179 = vst [vmem:[%s178] sm:$0xff] %v177
  %s180 = scalar_lea.vmem %s0, 880
  %v181 = vld [vmem:[%s180] sm:$0xff]
  %s182 = scalar_lea.vmem %s1, 1040
  %183 = vst [vmem:[%s182] sm:$0xff] %v181
  %s184 = scalar_lea.vmem %s0, 80
  %v185 = vld [vmem:[%s184] sm:$0xff]
  %s186 = scalar_lea.vmem %s1, 560
  %187 = vst [vmem:[%s186] sm:$0xff] %v185
  %s188 = scalar_lea.vmem %s0, 720
  %v189 = vld [vmem:[%s188] sm:$0xff]
  %s190 = scalar_lea.vmem %s1, 1200
  %191 = vst [vmem:[%s190] sm:$0xff] %v189
  %s192 = scalar_lea.vmem %s0, 576
  %v193 = vld [vmem:[%s192] sm:$0xff]
  %s194 = scalar_lea.vmem %s1, 96
  %195 = vst [vmem:[%s194] sm:$0xff] %v193
  %s196 = scalar_lea.vmem %s0, 1216
  %v197 = vld [vmem:[%s196] sm:$0xff]
  %s198 = scalar_lea.vmem %s1, 736
  %199 = vst [vmem:[%s198] sm:$0xff] %v197
  %s200 = scalar_lea.vmem %s0, 416
  %v201 = vld [vmem:[%s200] sm:$0xff]
  %s202 = scalar_lea.vmem %s1, 256
  %203 = vst [vmem:[%s202] sm:$0xff] %v201
  %s204 = scalar_lea.vmem %s0, 1056
  %v205 = vld [vmem:[%s204] sm:$0xff]
  %s206 = scalar_lea.vmem %s1, 896
  %207 = vst [vmem:[%s206] sm:$0xff] %v205
  %s208 = scalar_lea.vmem %s0, 256
  %v209 = vld [vmem:[%s208] sm:$0xff]
  %s210 = scalar_lea.vmem %s1, 416
  %211 = vst [vmem:[%s210] sm:$0xff] %v209
  %s212 = scalar_lea.vmem %s0, 896
  %v213 = vld [vmem:[%s212] sm:$0xff]
  %s214 = scalar_lea.vmem %s1, 1056
  %215 = vst [vmem:[%s214] sm:$0xff] %v213
  %s216 = scalar_lea.vmem %s0, 96
  %v217 = vld [vmem:[%s216] sm:$0xff]
  %s218 = scalar_lea.vmem %s1, 576
  %219 = vst [vmem:[%s218] sm:$0xff] %v217
  %s220 = scalar_lea.vmem %s0, 736
  %v221 = vld [vmem:[%s220] sm:$0xff]
  %s222 = scalar_lea.vmem %s1, 1216
  %223 = vst [vmem:[%s222] sm:$0xff] %v221
  %s224 = scalar_lea.vmem %s0, 592
  %v225 = vld [vmem:[%s224] sm:$0xff]
  %s226 = scalar_lea.vmem %s1, 112
  %227 = vst [vmem:[%s226] sm:$0xff] %v225
  %s228 = scalar_lea.vmem %s0, 1232
  %v229 = vld [vmem:[%s228] sm:$0xff]
  %s230 = scalar_lea.vmem %s1, 752
  %231 = vst [vmem:[%s230] sm:$0xff] %v229
  %s232 = scalar_lea.vmem %s0, 432
  %v233 = vld [vmem:[%s232] sm:$0xff]
  %s234 = scalar_lea.vmem %s1, 272
  %235 = vst [vmem:[%s234] sm:$0xff] %v233
  %s236 = scalar_lea.vmem %s0, 1072
  %v237 = vld [vmem:[%s236] sm:$0xff]
  %s238 = scalar_lea.vmem %s1, 912
  %239 = vst [vmem:[%s238] sm:$0xff] %v237
  %s240 = scalar_lea.vmem %s0, 272
  %v241 = vld [vmem:[%s240] sm:$0xff]
  %s242 = scalar_lea.vmem %s1, 432
  %243 = vst [vmem:[%s242] sm:$0xff] %v241
  %s244 = scalar_lea.vmem %s0, 912
  %v245 = vld [vmem:[%s244] sm:$0xff]
  %s246 = scalar_lea.vmem %s1, 1072
  %247 = vst [vmem:[%s246] sm:$0xff] %v245
  %s248 = scalar_lea.vmem %s0, 112
  %v249 = vld [vmem:[%s248] sm:$0xff]
  %s250 = scalar_lea.vmem %s1, 592
  %251 = vst [vmem:[%s250] sm:$0xff] %v249
  %s252 = scalar_lea.vmem %s0, 752
  %v253 = vld [vmem:[%s252] sm:$0xff]
  %s254 = scalar_lea.vmem %s1, 1232
  %255 = vst [vmem:[%s254] sm:$0xff] %v253
  %s256 = scalar_lea.vmem %s0, 608
  %v257 = vld [vmem:[%s256] sm:$0xff]
  %s258 = scalar_lea.vmem %s1, 128
  %259 = vst [vmem:[%s258] sm:$0xff] %v257
  %s260 = scalar_lea.vmem %s0, 1248
  %v261 = vld [vmem:[%s260] sm:$0xff]
  %s262 = scalar_lea.vmem %s1, 768
  %263 = vst [vmem:[%s262] sm:$0xff] %v261
  %s264 = scalar_lea.vmem %s0, 448
  %v265 = vld [vmem:[%s264] sm:$0xff]
  %s266 = scalar_lea.vmem %s1, 288
  %267 = vst [vmem:[%s266] sm:$0xff] %v265
  %s268 = scalar_lea.vmem %s0, 1088
  %v269 = vld [vmem:[%s268] sm:$0xff]
  %s270 = scalar_lea.vmem %s1, 928
  %271 = vst [vmem:[%s270] sm:$0xff] %v269
  %s272 = scalar_lea.vmem %s0, 288
  %v273 = vld [vmem:[%s272] sm:$0xff]
  %s274 = scalar_lea.vmem %s1, 448
  %275 = vst [vmem:[%s274] sm:$0xff] %v273
  %s276 = scalar_lea.vmem %s0, 928
  %v277 = vld [vmem:[%s276] sm:$0xff]
  %s278 = scalar_lea.vmem %s1, 1088
  %279 = vst [vmem:[%s278] sm:$0xff] %v277
  %s280 = scalar_lea.vmem %s0, 128
  %v281 = vld [vmem:[%s280] sm:$0xff]
  %s282 = scalar_lea.vmem %s1, 608
  %283 = vst [vmem:[%s282] sm:$0xff] %v281
  %s284 = scalar_lea.vmem %s0, 768
  %v285 = vld [vmem:[%s284] sm:$0xff]
  %s286 = scalar_lea.vmem %s1, 1248
  %287 = vst [vmem:[%s286] sm:$0xff] %v285
  %s288 = scalar_lea.vmem %s0, 624
  %v289 = vld [vmem:[%s288] sm:$0xff]
  %s290 = scalar_lea.vmem %s1, 144
  %291 = vst [vmem:[%s290] sm:$0xff] %v289
  %s292 = scalar_lea.vmem %s0, 1264
  %v293 = vld [vmem:[%s292] sm:$0xff]
  %s294 = scalar_lea.vmem %s1, 784
  %295 = vst [vmem:[%s294] sm:$0xff] %v293
  %s296 = scalar_lea.vmem %s0, 464
  %v297 = vld [vmem:[%s296] sm:$0xff]
  %s298 = scalar_lea.vmem %s1, 304
  %299 = vst [vmem:[%s298] sm:$0xff] %v297
  %s300 = scalar_lea.vmem %s0, 1104
  %v301 = vld [vmem:[%s300] sm:$0xff]
  %s302 = scalar_lea.vmem %s1, 944
  %303 = vst [vmem:[%s302] sm:$0xff] %v301
  %s304 = scalar_lea.vmem %s0, 304
  %v305 = vld [vmem:[%s304] sm:$0xff]
  %s306 = scalar_lea.vmem %s1, 464
  %307 = vst [vmem:[%s306] sm:$0xff] %v305
  %s308 = scalar_lea.vmem %s0, 944
  %v309 = vld [vmem:[%s308] sm:$0xff]
  %s310 = scalar_lea.vmem %s1, 1104
  %311 = vst [vmem:[%s310] sm:$0xff] %v309
  %s312 = scalar_lea.vmem %s0, 144
  %v313 = vld [vmem:[%s312] sm:$0xff]
  %s314 = scalar_lea.vmem %s1, 624
  %315 = vst [vmem:[%s314] sm:$0xff] %v313
  %s316 = scalar_lea.vmem %s0, 784
  %v317 = vld [vmem:[%s316] sm:$0xff]
  %s318 = scalar_lea.vmem %s1, 1264
  %319 = vst [vmem:[%s318] sm:$0xff] %v317
  %s320 = scalar_lea.vmem %s0, 488
  %v321 = vld [vmem:[%s320] sm:$0xff]
  %s322 = scalar_lea.vmem %s1, 8
  %323 = vst [vmem:[%s322] sm:$0xff] %v321
  %s324 = scalar_lea.vmem %s0, 1128
  %v325 = vld [vmem:[%s324] sm:$0xff]
  %s326 = scalar_lea.vmem %s1, 648
  %327 = vst [vmem:[%s326] sm:$0xff] %v325
  %s328 = scalar_lea.vmem %s0, 328
  %v329 = vld [vmem:[%s328] sm:$0xff]
  %s330 = scalar_lea.vmem %s1, 168
  %331 = vst [vmem:[%s330] sm:$0xff] %v329
  %s332 = scalar_lea.vmem %s0, 968
  %v333 = vld [vmem:[%s332] sm:$0xff]
  %s334 = scalar_lea.vmem %s1, 808
  %335 = vst [vmem:[%s334] sm:$0xff] %v333
  %s336 = scalar_lea.vmem %s0, 168
  %v337 = vld [vmem:[%s336] sm:$0xff]
  %s338 = scalar_lea.vmem %s1, 328
  %339 = vst [vmem:[%s338] sm:$0xff] %v337
  %s340 = scalar_lea.vmem %s0, 808
  %v341 = vld [vmem:[%s340] sm:$0xff]
  %s342 = scalar_lea.vmem %s1, 968
  %343 = vst [vmem:[%s342] sm:$0xff] %v341
  %s344 = scalar_lea.vmem %s0, 8
  %v345 = vld [vmem:[%s344] sm:$0xff]
  %s346 = scalar_lea.vmem %s1, 488
  %347 = vst [vmem:[%s346] sm:$0xff] %v345
  %s348 = scalar_lea.vmem %s0, 648
  %v349 = vld [vmem:[%s348] sm:$0xff]
  %s350 = scalar_lea.vmem %s1, 1128
  %351 = vst [vmem:[%s350] sm:$0xff] %v349
  %s352 = scalar_lea.vmem %s0, 504
  %v353 = vld [vmem:[%s352] sm:$0xff]
  %s354 = scalar_lea.vmem %s1, 24
  %355 = vst [vmem:[%s354] sm:$0xff] %v353
  %s356 = scalar_lea.vmem %s0, 1144
  %v357 = vld [vmem:[%s356] sm:$0xff]
  %s358 = scalar_lea.vmem %s1, 664
  %359 = vst [vmem:[%s358] sm:$0xff] %v357
  %s360 = scalar_lea.vmem %s0, 344
  %v361 = vld [vmem:[%s360] sm:$0xff]
  %s362 = scalar_lea.vmem %s1, 184
  %363 = vst [vmem:[%s362] sm:$0xff] %v361
  %s364 = scalar_lea.vmem %s0, 984
  %v365 = vld [vmem:[%s364] sm:$0xff]
  %s366 = scalar_lea.vmem %s1, 824
  %367 = vst [vmem:[%s366] sm:$0xff] %v365
  %s368 = scalar_lea.vmem %s0, 184
  %v369 = vld [vmem:[%s368] sm:$0xff]
  %s370 = scalar_lea.vmem %s1, 344
  %371 = vst [vmem:[%s370] sm:$0xff] %v369
  %s372 = scalar_lea.vmem %s0, 824
  %v373 = vld [vmem:[%s372] sm:$0xff]
  %s374 = scalar_lea.vmem %s1, 984
  %375 = vst [vmem:[%s374] sm:$0xff] %v373
  %s376 = scalar_lea.vmem %s0, 24
  %v377 = vld [vmem:[%s376] sm:$0xff]
  %s378 = scalar_lea.vmem %s1, 504
  %379 = vst [vmem:[%s378] sm:$0xff] %v377
  %s380 = scalar_lea.vmem %s0, 664
  %v381 = vld [vmem:[%s380] sm:$0xff]
  %s382 = scalar_lea.vmem %s1, 1144
  %383 = vst [vmem:[%s382] sm:$0xff] %v381
  %s384 = scalar_lea.vmem %s0, 520
  %v385 = vld [vmem:[%s384] sm:$0xff]
  %s386 = scalar_lea.vmem %s1, 40
  %387 = vst [vmem:[%s386] sm:$0xff] %v385
  %s388 = scalar_lea.vmem %s0, 1160
  %v389 = vld [vmem:[%s388] sm:$0xff]
  %s390 = scalar_lea.vmem %s1, 680
  %391 = vst [vmem:[%s390] sm:$0xff] %v389
  %s392 = scalar_lea.vmem %s0, 360
  %v393 = vld [vmem:[%s392] sm:$0xff]
  %s394 = scalar_lea.vmem %s1, 200
  %395 = vst [vmem:[%s394] sm:$0xff] %v393
  %s396 = scalar_lea.vmem %s0, 1000
  %v397 = vld [vmem:[%s396] sm:$0xff]
  %s398 = scalar_lea.vmem %s1, 840
  %399 = vst [vmem:[%s398] sm:$0xff] %v397
  %s400 = scalar_lea.vmem %s0, 200
  %v401 = vld [vmem:[%s400] sm:$0xff]
  %s402 = scalar_lea.vmem %s1, 360
  %403 = vst [vmem:[%s402] sm:$0xff] %v401
  %s404 = scalar_lea.vmem %s0, 840
  %v405 = vld [vmem:[%s404] sm:$0xff]
  %s406 = scalar_lea.vmem %s1, 1000
  %407 = vst [vmem:[%s406] sm:$0xff] %v405
  %s408 = scalar_lea.vmem %s0, 40
  %v409 = vld [vmem:[%s408] sm:$0xff]
  %s410 = scalar_lea.vmem %s1, 520
  %411 = vst [vmem:[%s410] sm:$0xff] %v409
  %s412 = scalar_lea.vmem %s0, 680
  %v413 = vld [vmem:[%s412] sm:$0xff]
  %s414 = scalar_lea.vmem %s1, 1160
  %415 = vst [vmem:[%s414] sm:$0xff] %v413
  %s416 = scalar_lea.vmem %s0, 536
  %v417 = vld [vmem:[%s416] sm:$0xff]
  %s418 = scalar_lea.vmem %s1, 56
  %419 = vst [vmem:[%s418] sm:$0xff] %v417
  %s420 = scalar_lea.vmem %s0, 1176
  %v421 = vld [vmem:[%s420] sm:$0xff]
  %s422 = scalar_lea.vmem %s1, 696
  %423 = vst [vmem:[%s422] sm:$0xff] %v421
  %s424 = scalar_lea.vmem %s0, 376
  %v425 = vld [vmem:[%s424] sm:$0xff]
  %s426 = scalar_lea.vmem %s1, 216
  %427 = vst [vmem:[%s426] sm:$0xff] %v425
  %s428 = scalar_lea.vmem %s0, 1016
  %v429 = vld [vmem:[%s428] sm:$0xff]
  %s430 = scalar_lea.vmem %s1, 856
  %431 = vst [vmem:[%s430] sm:$0xff] %v429
  %s432 = scalar_lea.vmem %s0, 216
  %v433 = vld [vmem:[%s432] sm:$0xff]
  %s434 = scalar_lea.vmem %s1, 376
  %435 = vst [vmem:[%s434] sm:$0xff] %v433
  %s436 = scalar_lea.vmem %s0, 856
  %v437 = vld [vmem:[%s436] sm:$0xff]
  %s438 = scalar_lea.vmem %s1, 1016
  %439 = vst [vmem:[%s438] sm:$0xff] %v437
  %s440 = scalar_lea.vmem %s0, 56
  %v441 = vld [vmem:[%s440] sm:$0xff]
  %s442 = scalar_lea.vmem %s1, 536
  %443 = vst [vmem:[%s442] sm:$0xff] %v441
  %s444 = scalar_lea.vmem %s0, 696
  %v445 = vld [vmem:[%s444] sm:$0xff]
  %s446 = scalar_lea.vmem %s1, 1176
  %447 = vst [vmem:[%s446] sm:$0xff] %v445
  %s448 = scalar_lea.vmem %s0, 552
  %v449 = vld [vmem:[%s448] sm:$0xff]
  %s450 = scalar_lea.vmem %s1, 72
  %451 = vst [vmem:[%s450] sm:$0xff] %v449
  %s452 = scalar_lea.vmem %s0, 1192
  %v453 = vld [vmem:[%s452] sm:$0xff]
  %s454 = scalar_lea.vmem %s1, 712
  %455 = vst [vmem:[%s454] sm:$0xff] %v453
  %s456 = scalar_lea.vmem %s0, 392
  %v457 = vld [vmem:[%s456] sm:$0xff]
  %s458 = scalar_lea.vmem %s1, 232
  %459 = vst [vmem:[%s458] sm:$0xff] %v457
  %s460 = scalar_lea.vmem %s0, 1032
  %v461 = vld [vmem:[%s460] sm:$0xff]
  %s462 = scalar_lea.vmem %s1, 872
  %463 = vst [vmem:[%s462] sm:$0xff] %v461
  %s464 = scalar_lea.vmem %s0, 232
  %v465 = vld [vmem:[%s464] sm:$0xff]
  %s466 = scalar_lea.vmem %s1, 392
  %467 = vst [vmem:[%s466] sm:$0xff] %v465
  %s468 = scalar_lea.vmem %s0, 872
  %v469 = vld [vmem:[%s468] sm:$0xff]
  %s470 = scalar_lea.vmem %s1, 1032
  %471 = vst [vmem:[%s470] sm:$0xff] %v469
  %s472 = scalar_lea.vmem %s0, 72
  %v473 = vld [vmem:[%s472] sm:$0xff]
  %s474 = scalar_lea.vmem %s1, 552
  %475 = vst [vmem:[%s474] sm:$0xff] %v473
  %s476 = scalar_lea.vmem %s0, 712
  %v477 = vld [vmem:[%s476] sm:$0xff]
  %s478 = scalar_lea.vmem %s1, 1192
  %479 = vst [vmem:[%s478] sm:$0xff] %v477
  %s480 = scalar_lea.vmem %s0, 568
  %v481 = vld [vmem:[%s480] sm:$0xff]
  %s482 = scalar_lea.vmem %s1, 88
  %483 = vst [vmem:[%s482] sm:$0xff] %v481
  %s484 = scalar_lea.vmem %s0, 1208
  %v485 = vld [vmem:[%s484] sm:$0xff]
  %s486 = scalar_lea.vmem %s1, 728
  %487 = vst [vmem:[%s486] sm:$0xff] %v485
  %s488 = scalar_lea.vmem %s0, 408
  %v489 = vld [vmem:[%s488] sm:$0xff]
  %s490 = scalar_lea.vmem %s1, 248
  %491 = vst [vmem:[%s490] sm:$0xff] %v489
  %s492 = scalar_lea.vmem %s0, 1048
  %v493 = vld [vmem:[%s492] sm:$0xff]
  %s494 = scalar_lea.vmem %s1, 888
  %495 = vst [vmem:[%s494] sm:$0xff] %v493
  %s496 = scalar_lea.vmem %s0, 248
  %v497 = vld [vmem:[%s496] sm:$0xff]
  %s498 = scalar_lea.vmem %s1, 408
  %499 = vst [vmem:[%s498] sm:$0xff] %v497
  %s500 = scalar_lea.vmem %s0, 888
  %v501 = vld [vmem:[%s500] sm:$0xff]
  %s502 = scalar_lea.vmem %s1, 1048
  %503 = vst [vmem:[%s502] sm:$0xff] %v501
  %s504 = scalar_lea.vmem %s0, 88
  %v505 = vld [vmem:[%s504] sm:$0xff]
  %s506 = scalar_lea.vmem %s1, 568
  %507 = vst [vmem:[%s506] sm:$0xff] %v505
  %s508 = scalar_lea.vmem %s0, 728
  %v509 = vld [vmem:[%s508] sm:$0xff]
  %s510 = scalar_lea.vmem %s1, 1208
  %511 = vst [vmem:[%s510] sm:$0xff] %v509
  %s512 = scalar_lea.vmem %s0, 584
  %v513 = vld [vmem:[%s512] sm:$0xff]
  %s514 = scalar_lea.vmem %s1, 104
  %515 = vst [vmem:[%s514] sm:$0xff] %v513
  %s516 = scalar_lea.vmem %s0, 1224
  %v517 = vld [vmem:[%s516] sm:$0xff]
  %s518 = scalar_lea.vmem %s1, 744
  %519 = vst [vmem:[%s518] sm:$0xff] %v517
  %s520 = scalar_lea.vmem %s0, 424
  %v521 = vld [vmem:[%s520] sm:$0xff]
  %s522 = scalar_lea.vmem %s1, 264
  %523 = vst [vmem:[%s522] sm:$0xff] %v521
  %s524 = scalar_lea.vmem %s0, 1064
  %v525 = vld [vmem:[%s524] sm:$0xff]
  %s526 = scalar_lea.vmem %s1, 904
  %527 = vst [vmem:[%s526] sm:$0xff] %v525
  %s528 = scalar_lea.vmem %s0, 264
  %v529 = vld [vmem:[%s528] sm:$0xff]
  %s530 = scalar_lea.vmem %s1, 424
  %531 = vst [vmem:[%s530] sm:$0xff] %v529
  %s532 = scalar_lea.vmem %s0, 904
  %v533 = vld [vmem:[%s532] sm:$0xff]
  %s534 = scalar_lea.vmem %s1, 1064
  %535 = vst [vmem:[%s534] sm:$0xff] %v533
  %s536 = scalar_lea.vmem %s0, 104
  %v537 = vld [vmem:[%s536] sm:$0xff]
  %s538 = scalar_lea.vmem %s1, 584
  %539 = vst [vmem:[%s538] sm:$0xff] %v537
  %s540 = scalar_lea.vmem %s0, 744
  %v541 = vld [vmem:[%s540] sm:$0xff]
  %s542 = scalar_lea.vmem %s1, 1224
  %543 = vst [vmem:[%s542] sm:$0xff] %v541
  %s544 = scalar_lea.vmem %s0, 600
  %v545 = vld [vmem:[%s544] sm:$0xff]
  %s546 = scalar_lea.vmem %s1, 120
  %547 = vst [vmem:[%s546] sm:$0xff] %v545
  %s548 = scalar_lea.vmem %s0, 1240
  %v549 = vld [vmem:[%s548] sm:$0xff]
  %s550 = scalar_lea.vmem %s1, 760
  %551 = vst [vmem:[%s550] sm:$0xff] %v549
  %s552 = scalar_lea.vmem %s0, 440
  %v553 = vld [vmem:[%s552] sm:$0xff]
  %s554 = scalar_lea.vmem %s1, 280
  %555 = vst [vmem:[%s554] sm:$0xff] %v553
  %s556 = scalar_lea.vmem %s0, 1080
  %v557 = vld [vmem:[%s556] sm:$0xff]
  %s558 = scalar_lea.vmem %s1, 920
  %559 = vst [vmem:[%s558] sm:$0xff] %v557
  %s560 = scalar_lea.vmem %s0, 280
  %v561 = vld [vmem:[%s560] sm:$0xff]
  %s562 = scalar_lea.vmem %s1, 440
  %563 = vst [vmem:[%s562] sm:$0xff] %v561
  %s564 = scalar_lea.vmem %s0, 920
  %v565 = vld [vmem:[%s564] sm:$0xff]
  %s566 = scalar_lea.vmem %s1, 1080
  %567 = vst [vmem:[%s566] sm:$0xff] %v565
  %s568 = scalar_lea.vmem %s0, 120
  %v569 = vld [vmem:[%s568] sm:$0xff]
  %s570 = scalar_lea.vmem %s1, 600
  %571 = vst [vmem:[%s570] sm:$0xff] %v569
  %s572 = scalar_lea.vmem %s0, 760
  %v573 = vld [vmem:[%s572] sm:$0xff]
  %s574 = scalar_lea.vmem %s1, 1240
  %575 = vst [vmem:[%s574] sm:$0xff] %v573
  %s576 = scalar_lea.vmem %s0, 616
  %v577 = vld [vmem:[%s576] sm:$0xff]
  %s578 = scalar_lea.vmem %s1, 136
  %579 = vst [vmem:[%s578] sm:$0xff] %v577
  %s580 = scalar_lea.vmem %s0, 1256
  %v581 = vld [vmem:[%s580] sm:$0xff]
  %s582 = scalar_lea.vmem %s1, 776
  %583 = vst [vmem:[%s582] sm:$0xff] %v581
  %s584 = scalar_lea.vmem %s0, 456
  %v585 = vld [vmem:[%s584] sm:$0xff]
  %s586 = scalar_lea.vmem %s1, 296
  %587 = vst [vmem:[%s586] sm:$0xff] %v585
  %s588 = scalar_lea.vmem %s0, 1096
  %v589 = vld [vmem:[%s588] sm:$0xff]
  %s590 = scalar_lea.vmem %s1, 936
  %591 = vst [vmem:[%s590] sm:$0xff] %v589
  %s592 = scalar_lea.vmem %s0, 296
  %v593 = vld [vmem:[%s592] sm:$0xff]
  %s594 = scalar_lea.vmem %s1, 456
  %595 = vst [vmem:[%s594] sm:$0xff] %v593
  %s596 = scalar_lea.vmem %s0, 936
  %v597 = vld [vmem:[%s596] sm:$0xff]
  %s598 = scalar_lea.vmem %s1, 1096
  %599 = vst [vmem:[%s598] sm:$0xff] %v597
  %s600 = scalar_lea.vmem %s0, 136
  %v601 = vld [vmem:[%s600] sm:$0xff]
  %s602 = scalar_lea.vmem %s1, 616
  %603 = vst [vmem:[%s602] sm:$0xff] %v601
  %s604 = scalar_lea.vmem %s0, 776
  %v605 = vld [vmem:[%s604] sm:$0xff]
  %s606 = scalar_lea.vmem %s1, 1256
  %607 = vst [vmem:[%s606] sm:$0xff] %v605
  %s608 = scalar_lea.vmem %s0, 632
  %v609 = vld [vmem:[%s608] sm:$0xff]
  %s610 = scalar_lea.vmem %s1, 152
  %611 = vst [vmem:[%s610] sm:$0xff] %v609
  %s612 = scalar_lea.vmem %s0, 1272
  %v613 = vld [vmem:[%s612] sm:$0xff]
  %s614 = scalar_lea.vmem %s1, 792
  %615 = vst [vmem:[%s614] sm:$0xff] %v613
  %s616 = scalar_lea.vmem %s0, 472
  %v617 = vld [vmem:[%s616] sm:$0xff]
  %s618 = scalar_lea.vmem %s1, 312
  %619 = vst [vmem:[%s618] sm:$0xff] %v617
  %s620 = scalar_lea.vmem %s0, 1112
  %v621 = vld [vmem:[%s620] sm:$0xff]
  %s622 = scalar_lea.vmem %s1, 952
  %623 = vst [vmem:[%s622] sm:$0xff] %v621
  %s624 = scalar_lea.vmem %s0, 312
  %v625 = vld [vmem:[%s624] sm:$0xff]
  %s626 = scalar_lea.vmem %s1, 472
  %627 = vst [vmem:[%s626] sm:$0xff] %v625
  %s628 = scalar_lea.vmem %s0, 952
  %v629 = vld [vmem:[%s628] sm:$0xff]
  %s630 = scalar_lea.vmem %s1, 1112
  %631 = vst [vmem:[%s630] sm:$0xff] %v629
  %s632 = scalar_lea.vmem %s0, 152
  %v633 = vld [vmem:[%s632] sm:$0xff]
  %s634 = scalar_lea.vmem %s1, 632
  %635 = vst [vmem:[%s634] sm:$0xff] %v633
  %s636 = scalar_lea.vmem %s0, 792
  %v637 = vld [vmem:[%s636] sm:$0xff]
  %s638 = scalar_lea.vmem %s1, 1272
  %639 = vst [vmem:[%s638] sm:$0xff] %v637

// kernel: fno3d_forward.8
$region0: #{fno3d_forward.8}
  #allocation0 [shape = 'u32[]', space=smem, size = 0x4, offset = 0x4, fixed_abs, tag = 'smem constant byte address 0x4 - core index']
  #allocation1 [shape = 'u32[144,128]{1,0:T(1,128)}', space=vmem, size = 0x12000, scoped, tag = 'internal scratch']
  %s0 = inlined_call_operand.vmem [shape: bf16[2000,32], index: 0, kind: input, shape index: {}]
  %s1 = inlined_call_operand.vmem [shape: f32[32,32], index: 1, kind: input, shape index: {}]
  %s2 = inlined_call_operand.vmem [shape: f32[1,32], index: 2, kind: input, shape index: {}]
  %s3 = inlined_call_operand.vmem [shape: bf16[2000,32], index: 3, kind: input, shape index: {}]
  %s4 = inlined_call_operand.vmem [shape: bf16[2000,32], index: 4, kind: output, shape index: {}]
  %s5 = sld [smem:[#allocation0]]
  $region93: #{fno3d_forward.8} parent=0
    _
  %s7 = ssub.s32 1, %s5
  %s8 = scalar_select 0, %s7, %s5
  $region1: #{fno3d_forward.8} parent=0
    #allocation2 [shape = 'u8[262144]{0}', space=vmem, size = 0x40000, scoped, tag = 'output window, operand 0']
    loop: start=0, step=1, limit=6
    $region2: #{fno3d_forward.8} parent=1 // loop_pre_header
      _
    $region3: #{fno3d_forward.8} parent=1 // loop_header
      %s10 = sphi 0, %s14
      %p11 = scmp.ge.s32.totalorder %s10, 6
      %s20 = sphi 0, %s22
      %s23 = sphi 0, %s20
      %s24 = sphi 0, %s23
      %s40 = sphi 0, %s24
      %s44 = sphi 0, %s44
      %s46 = sphi 0, %s44
      %s47 = sphi 0, %s46
      %s61 = sphi 0, %s47
      %s65 = sphi 0, %s65
      %s67 = sphi 0, %s65
      %s68 = sphi 0, %s67
      %s82 = sphi 0, %s68
      %s88 = sphi 0, %s90
      %s91 = sphi 0, %s88
      %s92 = sphi 0, %s91
      %s108 = sphi 0, %s92
      %s114 = sphi 0, %s116
      %s117 = sphi 0, %s114
      %s118 = sphi 0, %s117
      %s134 = sphi 0, %s118
    $region4: #{fno3d_forward.8} parent=1 // loop_header_branch
      %13 = sbr.rel (%p11) target = $region8
    $region5: #{fno3d_forward.8} parent=1 // loop_body
      %s15 = ssub.s32 %s10, 1
      %s16 = ssub.s32 %s10, 2
      %s17 = sadd.s32 %s10, 1
      %s18 = ssub.s32 %s10, %s17
      %p19 = scmp.eq.s32.totalorder %s18, 0
      %s21 = sadd.s32 %s20, 1
      %s22 = scalar_select %p19, %s20, %s21
      %p25 = pneg %p19
      %p26 = scmp.eq.s32.totalorder %s10, 3
      %p27 = por %p25, %p26
      %p28 = scmp.ne.s32.totalorder %s20, %s23
      %p29 = scmp.eq.s32.totalorder %s10, 0
      %p30 = por %p28, %p29
      %p31 = scmp.ne.s32.totalorder %s20, %s23
      %p32 = scmp.eq.s32.totalorder %s15, 3
      %p33 = por %p31, %p32
      %p34 = scmp.ne.s32.totalorder %s23, %s24
      %p35 = scmp.eq.s32.totalorder %s15, 0
      %p36 = por %p34, %p35
      %p37 = scmp.ne.s32.totalorder %s23, %s24
      %p38 = scmp.eq.s32.totalorder %s16, 3
      %p39 = por %p37, %p38
      %p41 = scmp.ne.s32.totalorder %s24, %s40
      %p42 = scmp.eq.s32.totalorder %s16, 0
      %p43 = por %p41, %p42
      %s45 = sadd.s32 %s44, 1
      %p48 = scmp.eq.s32.totalorder %s10, 3
      %p49 = scmp.ne.s32.totalorder %s44, %s46
      %p50 = scmp.eq.s32.totalorder %s10, 0
      %p51 = por %p49, %p50
      %p52 = scmp.ne.s32.totalorder %s44, %s46
      %p53 = scmp.eq.s32.totalorder %s15, 3
      %p54 = por %p52, %p53
      %p55 = scmp.ne.s32.totalorder %s46, %s47
      %p56 = scmp.eq.s32.totalorder %s15, 0
      %p57 = por %p55, %p56
      %p58 = scmp.ne.s32.totalorder %s46, %s47
      %p59 = scmp.eq.s32.totalorder %s16, 3
      %p60 = por %p58, %p59
      %p62 = scmp.ne.s32.totalorder %s47, %s61
      %p63 = scmp.eq.s32.totalorder %s16, 0
      %p64 = por %p62, %p63
      %s66 = sadd.s32 %s65, 1
      %p69 = scmp.eq.s32.totalorder %s10, 3
      %p70 = scmp.ne.s32.totalorder %s65, %s67
      %p71 = scmp.eq.s32.totalorder %s10, 0
      %p72 = por %p70, %p71
      %p73 = scmp.ne.s32.totalorder %s65, %s67
      %p74 = scmp.eq.s32.totalorder %s15, 3
      %p75 = por %p73, %p74
      %p76 = scmp.ne.s32.totalorder %s67, %s68
      %p77 = scmp.eq.s32.totalorder %s15, 0
      %p78 = por %p76, %p77
      %p79 = scmp.ne.s32.totalorder %s67, %s68
      %p80 = scmp.eq.s32.totalorder %s16, 3
      %p81 = por %p79, %p80
      %p83 = scmp.ne.s32.totalorder %s68, %s82
      %p84 = scmp.eq.s32.totalorder %s16, 0
      %p85 = por %p83, %p84
      %s86 = ssub.s32 %s10, %s17
      %p87 = scmp.eq.s32.totalorder %s86, 0
      %s89 = sadd.s32 %s88, 1
      %s90 = scalar_select %p87, %s88, %s89
      %p93 = pneg %p87
      %p94 = scmp.eq.s32.totalorder %s10, 3
      %p95 = por %p93, %p94
      %p96 = scmp.ne.s32.totalorder %s88, %s91
      %p97 = scmp.eq.s32.totalorder %s10, 0
      %p98 = por %p96, %p97
      %p99 = scmp.ne.s32.totalorder %s88, %s91
      %p100 = scmp.eq.s32.totalorder %s15, 3
      %p101 = por %p99, %p100
      %p102 = scmp.ne.s32.totalorder %s91, %s92
      %p103 = scmp.eq.s32.totalorder %s15, 0
      %p104 = por %p102, %p103
      %p105 = scmp.ne.s32.totalorder %s91, %s92
      %p106 = scmp.eq.s32.totalorder %s16, 3
      %p107 = por %p105, %p106
      %p109 = scmp.ne.s32.totalorder %s92, %s108
      %p110 = scmp.eq.s32.totalorder %s16, 0
      %p111 = por %p109, %p110
      %s112 = ssub.s32 %s10, %s17
      %p113 = scmp.eq.s32.totalorder %s112, 0
      %s115 = sadd.s32 %s114, 1
      %s116 = scalar_select %p113, %s114, %s115
      %p119 = pneg %p113
      %p120 = scmp.eq.s32.totalorder %s10, 3
      %p121 = por %p119, %p120
      %p122 = scmp.ne.s32.totalorder %s114, %s117
      %p123 = scmp.eq.s32.totalorder %s10, 0
      %p124 = por %p122, %p123
      %p125 = scmp.ne.s32.totalorder %s114, %s117
      %p126 = scmp.eq.s32.totalorder %s15, 3
      %p127 = por %p125, %p126
      %p128 = scmp.ne.s32.totalorder %s117, %s118
      %p129 = scmp.eq.s32.totalorder %s15, 0
      %p130 = por %p128, %p129
      %p131 = scmp.ne.s32.totalorder %s117, %s118
      %p132 = scmp.eq.s32.totalorder %s16, 3
      %p133 = por %p131, %p132
      %p135 = scmp.ne.s32.totalorder %s118, %s134
      %p136 = scmp.eq.s32.totalorder %s16, 0
      %p137 = por %p135, %p136
      %p138 = scmp.le.s32.totalorder 1, %s10
      %p139 = scmp.lt.s32.totalorder %s10, 5
      %p140 = pnand %p138, %p139
      %p141 = pneg %p140
      // Predicated region
      $region9: #{fno3d_forward.8} parent=5 // pred_check
        _
      $region10: #{fno3d_forward.8} parent=5 // pred_check_branch
        %143 = sbr.rel (%p140) target = $region12
      $region11: #{fno3d_forward.8} parent=5 // pred_region
        %s144 = ssub.s32 %s10, 1
        // Predicated region
        $region13: #{fno3d_forward.8} parent=11 // pred_check
          %p145 = pneg %p57
        $region14: #{fno3d_forward.8} parent=11 // pred_check_branch
          %147 = sbr.rel (%p145) target = $region16
        $region15: #{fno3d_forward.8} parent=11 // pred_region
          _
        $region16: #{fno3d_forward.8} parent=11 // pred_fallthru
          _
        // Predicated region
        $region17: #{fno3d_forward.8} parent=11 // pred_check
          %p148 = pneg %p78
        $region18: #{fno3d_forward.8} parent=11 // pred_check_branch
          %150 = sbr.rel (%p148) target = $region20
        $region19: #{fno3d_forward.8} parent=11 // pred_region
          _
        $region20: #{fno3d_forward.8} parent=11 // pred_fallthru
          _
      $region12: #{fno3d_forward.8} parent=5 // pred_fallthru
        _
      %p151 = scmp.lt.s32.totalorder %s10, 4
      // Predicated region
      $region21: #{fno3d_forward.8} parent=5 // pred_check
        %p152 = pneg %p151
      $region22: #{fno3d_forward.8} parent=5 // pred_check_branch
        %154 = sbr.rel (%p152) target = $region24
      $region23: #{fno3d_forward.8} parent=5 // pred_region
        // Predicated region
        $region25: #{fno3d_forward.8} parent=23 // pred_check
          %p155 = pneg %p30
        $region26: #{fno3d_forward.8} parent=23 // pred_check_branch
          %157 = sbr.rel (%p155) target = $region28
        $region27: #{fno3d_forward.8} parent=23 // pred_region
          %s158 = smul.u32 64, %s10
          %s159 = ssub.s32 250, %s158
          %p160 = scmp.lt.s32.totalorder %s159, 64
          %s161 = scalar_select %p160, %s159, 64
          %s162 = smul.u32 64, %s161
          %p163 = scmp.lt.s32.totalorder %s158, 249
          %s164 = scalar_select %p163, %s158, 249
          %s165 = smul.addr %s164, 4
          %s166 = scalar_lea.vmem %s0, %s165
          %s167 = smul.u32 64, %s10
          %s168 = ssub.s32 250, %s167
          %p169 = scmp.lt.s32.totalorder %s168, 64
          %s170 = scalar_select %p169, %s168, 64
          %s171 = smul.u32 64, %s170
        $region28: #{fno3d_forward.8} parent=23 // pred_fallthru
          _
        // Predicated region
        $region29: #{fno3d_forward.8} parent=23 // pred_check
          %p172 = pneg %p98
        $region30: #{fno3d_forward.8} parent=23 // pred_check_branch
          %174 = sbr.rel (%p172) target = $region32
        $region31: #{fno3d_forward.8} parent=23 // pred_region
          %s175 = smul.u32 64, %s10
          %s176 = ssub.s32 250, %s175
          %p177 = scmp.lt.s32.totalorder %s176, 64
          %s178 = scalar_select %p177, %s176, 64
          %s179 = smul.u32 64, %s178
          %p180 = scmp.lt.s32.totalorder %s175, 249
          %s181 = scalar_select %p180, %s175, 249
          %s182 = smul.addr %s181, 4
          %s183 = scalar_lea.vmem %s3, %s182
          %s184 = smul.u32 64, %s10
          %s185 = ssub.s32 250, %s184
          %p186 = scmp.lt.s32.totalorder %s185, 64
          %s187 = scalar_select %p186, %s185, 64
          %s188 = smul.u32 64, %s187
        $region32: #{fno3d_forward.8} parent=23 // pred_fallthru
          _
      $region24: #{fno3d_forward.8} parent=5 // pred_fallthru
        _
      %p189 = scmp.le.s32.totalorder 1, %s10
      %p190 = scmp.lt.s32.totalorder %s10, 5
      %p191 = pnand %p189, %p190
      %p192 = pneg %p191
      // Predicated region
      $region33: #{fno3d_forward.8} parent=5 // pred_check
        _
      $region34: #{fno3d_forward.8} parent=5 // pred_check_branch
        %194 = sbr.rel (%p191) target = $region36
      $region35: #{fno3d_forward.8} parent=5 // pred_region
        %s195 = ssub.s32 %s10, 1
        %s196 = smul.u32 64, %s15
        %s197 = ssub.s32 250, %s196
        %p198 = scmp.lt.s32.totalorder %s197, 64
        %s199 = scalar_select %p198, %s197, 64
        %s200 = smul.u32 64, %s199
        %p201 = scmp.lt.s32.totalorder %s196, 249
        %s202 = scalar_select %p201, %s196, 249
        %s203 = smul.addr %s202, 4
        %s204 = scalar_lea.vmem %s0, %s203
        %p205 = pneg %p36
        %p206 = pneg %p33
        %p207 = pneg %p57
        %p208 = pneg %p54
        %p209 = pneg %p78
        %p210 = pneg %p75
        %s211 = smul.u32 64, %s15
        %s212 = ssub.s32 250, %s211
        %p213 = scmp.lt.s32.totalorder %s212, 64
        %s214 = scalar_select %p213, %s212, 64
        %s215 = smul.u32 64, %s214
        %p216 = scmp.lt.s32.totalorder %s211, 249
        %s217 = scalar_select %p216, %s211, 249
        %s218 = smul.addr %s217, 4
        %s219 = scalar_lea.vmem %s3, %s218
        %p220 = pneg %p104
        %p221 = pneg %p101
        %p222 = pneg %p130
        %p223 = pneg %p127
        %s224 = sand.u32 %s117, 1
        %s225 = sand.u32 %s117, 1
        %s226 = smul.addr %s225, 256
        %s227 = scalar_lea.vmem [#allocation2], %s226
        %s228 = smul.u32 64, %s15
        %s229 = ssub.s32 250, %s228
        %p230 = scmp.lt.s32.totalorder %s229, 64
        %s231 = scalar_select %p230, %s229, 64
        %s232 = smul.u32 64, %s231
        %p233 = scmp.lt.s32.totalorder %s228, 249
        %s234 = scalar_select %p233, %s228, 249
        %s235 = smul.addr %s234, 4
        %s236 = scalar_lea.vmem %s0, %s235
        %s237 = smul.u32 64, %s15
        %s238 = ssub.s32 250, %s237
        %p239 = scmp.lt.s32.totalorder %s238, 64
        %s240 = scalar_select %p239, %s238, 64
        %s241 = smul.u32 64, %s240
        %s242 = smul.u32 64, %s15
        %s243 = ssub.s32 250, %s242
        %p244 = scmp.lt.s32.totalorder %s243, 64
        %s245 = scalar_select %p244, %s243, 64
        %s246 = smul.u32 64, %s245
        %p247 = scmp.lt.s32.totalorder %s242, 249
        %s248 = scalar_select %p247, %s242, 249
        %s249 = smul.addr %s248, 4
        %s250 = scalar_lea.vmem %s3, %s249
        %s251 = smul.u32 64, %s15
        %s252 = ssub.s32 250, %s251
        %p253 = scmp.lt.s32.totalorder %s252, 64
        %s254 = scalar_select %p253, %s252, 64
        %s255 = smul.u32 64, %s254
        %s256 = smul.u32 64, %s15
        %s257 = ssub.s32 250, %s256
        %p258 = scmp.lt.s32.totalorder %s257, 64
        %s259 = scalar_select %p258, %s257, 64
        %s260 = smul.u32 64, %s259
        %v261 = vld [vmem:[%s236] sm:$0xf]
        %v262 = vld [vmem:[%s236 + $0x4] sm:$0xf]
        %v263 = vld [vmem:[%s236 + $0x8] sm:$0xf]
        %v264 = vld [vmem:[%s236 + $0xc] sm:$0xf]
        %v265 = vld [vmem:[%s236 + $0x10] sm:$0xf]
        %v266 = vld [vmem:[%s236 + $0x14] sm:$0xf]
        %v267 = vld [vmem:[%s236 + $0x18] sm:$0xf]
        %v268 = vld [vmem:[%s236 + $0x1c] sm:$0xf]
        %v269 = vld [vmem:[%s236 + $0x20] sm:$0xf]
        %v270 = vld [vmem:[%s236 + $0x24] sm:$0xf]
        %v271 = vld [vmem:[%s236 + $0x28] sm:$0xf]
        %v272 = vld [vmem:[%s236 + $0x2c] sm:$0xf]
        %v273 = vld [vmem:[%s236 + $0x30] sm:$0xf]
        %v274 = vld [vmem:[%s236 + $0x34] sm:$0xf]
        %v275 = vld [vmem:[%s236 + $0x38] sm:$0xf]
        %v276 = vld [vmem:[%s236 + $0x3c] sm:$0xf]
        %v277 = vld [vmem:[%s236 + $0x40] sm:$0xf]
        %v278 = vld [vmem:[%s236 + $0x44] sm:$0xf]
        %v279 = vld [vmem:[%s236 + $0x48] sm:$0xf]
        %v280 = vld [vmem:[%s236 + $0x4c] sm:$0xf]
        %v281 = vld [vmem:[%s236 + $0x50] sm:$0xf]
        %v282 = vld [vmem:[%s236 + $0x54] sm:$0xf]
        %v283 = vld [vmem:[%s236 + $0x58] sm:$0xf]
        %v284 = vld [vmem:[%s236 + $0x5c] sm:$0xf]
        %v285 = vld [vmem:[%s236 + $0x60] sm:$0xf]
        %v286 = vld [vmem:[%s236 + $0x64] sm:$0xf]
        %v287 = vld [vmem:[%s236 + $0x68] sm:$0xf]
        %v288 = vld [vmem:[%s236 + $0x6c] sm:$0xf]
        %v289 = vld [vmem:[%s236 + $0x70] sm:$0xf]
        %v290 = vld [vmem:[%s236 + $0x74] sm:$0xf]
        %v291 = vld [vmem:[%s236 + $0x78] sm:$0xf]
        %v292 = vld [vmem:[%s236 + $0x7c] sm:$0xf]
        %v293 = vld [vmem:[%s236 + $0x80] sm:$0xf]
        %v294 = vld [vmem:[%s236 + $0x84] sm:$0xf]
        %v295 = vld [vmem:[%s236 + $0x88] sm:$0xf]
        %v296 = vld [vmem:[%s236 + $0x8c] sm:$0xf]
        %v297 = vld [vmem:[%s236 + $0x90] sm:$0xf]
        %v298 = vld [vmem:[%s236 + $0x94] sm:$0xf]
        %v299 = vld [vmem:[%s236 + $0x98] sm:$0xf]
        %v300 = vld [vmem:[%s236 + $0x9c] sm:$0xf]
        %v301 = vld [vmem:[%s236 + $0xa0] sm:$0xf]
        %v302 = vld [vmem:[%s236 + $0xa4] sm:$0xf]
        %v303 = vld [vmem:[%s236 + $0xa8] sm:$0xf]
        %v304 = vld [vmem:[%s236 + $0xac] sm:$0xf]
        %v305 = vld [vmem:[%s236 + $0xb0] sm:$0xf]
        %v306 = vld [vmem:[%s236 + $0xb4] sm:$0xf]
        %v307 = vld [vmem:[%s236 + $0xb8] sm:$0xf]
        %v308 = vld [vmem:[%s236 + $0xbc] sm:$0xf]
        %v309 = vld [vmem:[%s236 + $0xc0] sm:$0xf]
        %v310 = vld [vmem:[%s236 + $0xc4] sm:$0xf]
        %v311 = vld [vmem:[%s236 + $0xc8] sm:$0xf]
        %v312 = vld [vmem:[%s236 + $0xcc] sm:$0xf]
        %v313 = vld [vmem:[%s236 + $0xd0] sm:$0xf]
        %v314 = vld [vmem:[%s236 + $0xd4] sm:$0xf]
        %v315 = vld [vmem:[%s236 + $0xd8] sm:$0xf]
        %v316 = vld [vmem:[%s236 + $0xdc] sm:$0xf]
        %v317 = vld [vmem:[%s236 + $0xe0] sm:$0xf]
        %v318 = vld [vmem:[%s236 + $0xe4] sm:$0xf]
        %v319 = vld [vmem:[%s236 + $0xe8] sm:$0xf]
        %v320 = vld [vmem:[%s236 + $0xec] sm:$0xf]
        %v321 = vld [vmem:[%s236 + $0xf0] sm:$0xf]
        %v322 = vld [vmem:[%s236 + $0xf4] sm:$0xf]
        %v323 = vld [vmem:[%s236 + $0xf8] sm:$0xf]
        %v324 = vld [vmem:[%s236 + $0xfc] sm:$0xf]
        %v325 = vunpack.c.l.bf16 %v261
        %v326 = vunpack.c.l.bf16 %v262
        %v327 = vunpack.c.l.bf16 %v263
        %v328 = vunpack.c.l.bf16 %v264
        %v329 = vunpack.c.l.bf16 %v265
        %v330 = vunpack.c.l.bf16 %v266
        %v331 = vunpack.c.l.bf16 %v267
        %v332 = vunpack.c.l.bf16 %v268
        %v333 = vunpack.c.l.bf16 %v269
        %v334 = vunpack.c.l.bf16 %v270
        %v335 = vunpack.c.l.bf16 %v271
        %v336 = vunpack.c.l.bf16 %v272
        %v337 = vunpack.c.l.bf16 %v273
        %v338 = vunpack.c.l.bf16 %v274
        %v339 = vunpack.c.l.bf16 %v275
        %v340 = vunpack.c.l.bf16 %v276
        %v341 = vunpack.c.l.bf16 %v277
        %v342 = vunpack.c.l.bf16 %v278
        %v343 = vunpack.c.l.bf16 %v279
        %v344 = vunpack.c.l.bf16 %v280
        %v345 = vunpack.c.l.bf16 %v281
        %v346 = vunpack.c.l.bf16 %v282
        %v347 = vunpack.c.l.bf16 %v283
        %v348 = vunpack.c.l.bf16 %v284
        %v349 = vunpack.c.l.bf16 %v285
        %v350 = vunpack.c.l.bf16 %v286
        %v351 = vunpack.c.l.bf16 %v287
        %v352 = vunpack.c.l.bf16 %v288
        %v353 = vunpack.c.l.bf16 %v289
        %v354 = vunpack.c.l.bf16 %v290
        %v355 = vunpack.c.l.bf16 %v291
        %v356 = vunpack.c.l.bf16 %v292
        %v357 = vunpack.c.l.bf16 %v293
        %v358 = vunpack.c.l.bf16 %v294
        %v359 = vunpack.c.l.bf16 %v295
        %v360 = vunpack.c.l.bf16 %v296
        %v361 = vunpack.c.l.bf16 %v297
        %v362 = vunpack.c.l.bf16 %v298
        %v363 = vunpack.c.l.bf16 %v299
        %v364 = vunpack.c.l.bf16 %v300
        %v365 = vunpack.c.l.bf16 %v301
        %v366 = vunpack.c.l.bf16 %v302
        %v367 = vunpack.c.l.bf16 %v303
        %v368 = vunpack.c.l.bf16 %v304
        %v369 = vunpack.c.l.bf16 %v305
        %v370 = vunpack.c.l.bf16 %v306
        %v371 = vunpack.c.l.bf16 %v307
        %v372 = vunpack.c.l.bf16 %v308
        %v373 = vunpack.c.l.bf16 %v309
        %v374 = vunpack.c.l.bf16 %v310
        %v375 = vunpack.c.l.bf16 %v311
        %v376 = vunpack.c.l.bf16 %v312
        %v377 = vunpack.c.l.bf16 %v313
        %v378 = vunpack.c.l.bf16 %v314
        %v379 = vunpack.c.l.bf16 %v315
        %v380 = vunpack.c.l.bf16 %v316
        %v381 = vunpack.c.l.bf16 %v317
        %v382 = vunpack.c.l.bf16 %v318
        %v383 = vunpack.c.l.bf16 %v319
        %v384 = vunpack.c.l.bf16 %v320
        %v385 = vunpack.c.l.bf16 %v321
        %v386 = vunpack.c.l.bf16 %v322
        %v387 = vunpack.c.l.bf16 %v323
        %v388 = vunpack.c.l.bf16 %v324
        %v389 = vld [vmem:[%s1] sm:$0xff]
        %v390 = vld [vmem:[%s1 + $0x8] sm:$0xff]
        %v391 = vld [vmem:[%s1 + $0x10] sm:$0xff]
        %v392 = vld [vmem:[%s1 + $0x18] sm:$0xff]
        %v393 = vld [vmem:[%s2] sm:$0x1]
        %v395 = vlaneseq
        %v396 = vshrl.u32 %v395, 7
        %v397 = vsub.s32 0, %v396
        %v398 = vrot.slane %v393, %v397
        %vm400 = vcmask 261120
        %v402 = vsel %vm400, %v325, 0
        %v405 = vsel %vm400, %v326, 0
        %v408 = vsel %vm400, %v327, 0
        %v411 = vsel %vm400, %v328, 0
        %v414 = vsel %vm400, %v329, 0
        %v417 = vsel %vm400, %v330, 0
        %v420 = vsel %vm400, %v331, 0
        %v423 = vsel %vm400, %v332, 0
        %v426 = vsel %vm400, %v333, 0
        %v429 = vsel %vm400, %v334, 0
        %v432 = vsel %vm400, %v335, 0
        %v435 = vsel %vm400, %v336, 0
        %v438 = vsel %vm400, %v337, 0
        %v441 = vsel %vm400, %v338, 0
        %v444 = vsel %vm400, %v339, 0
        %v447 = vsel %vm400, %v340, 0
        %v450 = vsel %vm400, %v341, 0
        %v453 = vsel %vm400, %v342, 0
        %v456 = vsel %vm400, %v343, 0
        %v459 = vsel %vm400, %v344, 0
        %v462 = vsel %vm400, %v345, 0
        %v465 = vsel %vm400, %v346, 0
        %v468 = vsel %vm400, %v347, 0
        %v471 = vsel %vm400, %v348, 0
        %v474 = vsel %vm400, %v349, 0
        %v477 = vsel %vm400, %v350, 0
        %v480 = vsel %vm400, %v351, 0
        %v483 = vsel %vm400, %v352, 0
        %v486 = vsel %vm400, %v353, 0
        %v489 = vsel %vm400, %v354, 0
        %v492 = vsel %vm400, %v355, 0
        %v495 = vsel %vm400, %v356, 0
        %v498 = vsel %vm400, %v357, 0
        %v501 = vsel %vm400, %v358, 0
        %v504 = vsel %vm400, %v359, 0
        %v507 = vsel %vm400, %v360, 0
        %v510 = vsel %vm400, %v361, 0
        %v513 = vsel %vm400, %v362, 0
        %v516 = vsel %vm400, %v363, 0
        %v519 = vsel %vm400, %v364, 0
        %v522 = vsel %vm400, %v365, 0
        %v525 = vsel %vm400, %v366, 0
        %v528 = vsel %vm400, %v367, 0
        %v531 = vsel %vm400, %v368, 0
        %v534 = vsel %vm400, %v369, 0
        %v537 = vsel %vm400, %v370, 0
        %v540 = vsel %vm400, %v371, 0
        %v543 = vsel %vm400, %v372, 0
        %v546 = vsel %vm400, %v373, 0
        %v549 = vsel %vm400, %v374, 0
        %v552 = vsel %vm400, %v375, 0
        %v555 = vsel %vm400, %v376, 0
        %v558 = vsel %vm400, %v377, 0
        %v561 = vsel %vm400, %v378, 0
        %v564 = vsel %vm400, %v379, 0
        %v567 = vsel %vm400, %v380, 0
        %v570 = vsel %vm400, %v381, 0
        %v573 = vsel %vm400, %v382, 0
        %v576 = vsel %vm400, %v383, 0
        %v579 = vsel %vm400, %v384, 0
        %v582 = vsel %vm400, %v385, 0
        %v585 = vsel %vm400, %v386, 0
        %v588 = vsel %vm400, %v387, 0
        %v591 = vsel %vm400, %v388, 0
        %593 = vmatprep.subr.mxu0 0.0
        %594 = vmatpush1.msra.mxu0 0.0
        %595 = vmatprep.subr.mxu0 0.0
        %596 = vmatpush1.msra.mxu0 0.0
        %597 = vmatprep.subr.mxu0 0.0
        %598 = vmatpush1.msra.mxu0 0.0
        %599 = vmatprep.subr.mxu0 0.0
        %600 = vmatpush1.msra.mxu0 0.0
        %601 = vmatprep.subr.mxu0 0.0
        %602 = vmatpush1.msra.mxu0 0.0
        %603 = vmatprep.subr.mxu0 0.0
        %604 = vmatpush1.msra.mxu0 0.0
        %605 = vmatprep.subr.mxu0 0.0
        %606 = vmatpush1.msra.mxu0 0.0
        %607 = vmatprep.subr.mxu0 0.0
        %608 = vmatpush1.msra.mxu0 0.0
        %609 = vmatprep.subr.mxu0 0.0
        %610 = vmatpush1.msra.mxu0 0.0
        %611 = vmatprep.subr.mxu0 0.0
        %612 = vmatpush1.msra.mxu0 0.0
        %613 = vmatprep.subr.mxu0 0.0
        %614 = vmatpush1.msra.mxu0 0.0
        %615 = vmatprep.subr.mxu0 0.0
        %616 = vmatpush1.msra.mxu0 0.0
        %617 = vmatprep.subr.mxu0 0.0
        %618 = vmatpush1.msra.mxu0 %v392
        %619 = vmatprep.subr.mxu0 0.0
        %620 = vmatpush1.msra.mxu0 %v391
        %621 = vmatprep.subr.mxu0 0.0
        %622 = vmatpush1.msra.mxu0 %v390
        %623 = vmatprep.subr.mxu0 0.0
        %624 = vmatpush1.msra.mxu0 %v389
        %625 = vmatprep.subr.mxu0 0.0
        %626 = vmatpush2.msra.mxu0 0.0
        %627 = vmatprep.subr.mxu0 0.0
        %628 = vmatpush2.msra.mxu0 0.0
        %629 = vmatprep.subr.mxu0 0.0
        %630 = vmatpush2.msra.mxu0 0.0
        %631 = vmatprep.subr.mxu0 0.0
        %632 = vmatpush2.msra.mxu0 0.0
        %633 = vmatprep.subr.mxu0 0.0
        %634 = vmatpush2.msra.mxu0 0.0
        %635 = vmatprep.subr.mxu0 0.0
        %636 = vmatpush2.msra.mxu0 0.0
        %637 = vmatprep.subr.mxu0 0.0
        %638 = vmatpush2.msra.mxu0 0.0
        %639 = vmatprep.subr.mxu0 0.0
        %640 = vmatpush2.msra.mxu0 0.0
        %641 = vmatprep.subr.mxu0 0.0
        %642 = vmatpush2.msra.mxu0 0.0
        %643 = vmatprep.subr.mxu0 0.0
        %644 = vmatpush2.msra.mxu0 0.0
        %645 = vmatprep.subr.mxu0 0.0
        %646 = vmatpush2.msra.mxu0 0.0
        %647 = vmatprep.subr.mxu0 0.0
        %648 = vmatpush2.msra.mxu0 0.0
        %649 = vmatprep.subr.mxu0 0.0
        %650 = vmatpush2.msra.mxu0 0.0
        %651 = vmatprep.subr.mxu0 0.0
        %652 = vmatpush2.msra.mxu0 0.0
        %653 = vmatprep.subr.mxu0 0.0
        %654 = vmatpush2.msra.mxu0 0.0
        %655 = vmatprep.subr.mxu0 0.0
        %656 = vmatpush2.msra.mxu0 0.0
        %657 = vmatprep.mubr.f32.mxu0 0.0
        %658 = vmatmul.mubr.f32.gmra.mxu0 %v402
        %v659 = vpop.f32.mrf.mxu0
        %v660 = vadd.f32 %v398, %v659
        %v661 = vpop.f32.mrf.mxu0
        %662 = vmatprep.mubr.f32.mxu0 0.0
        %663 = vmatmul.mubr.f32.gmra.mxu0 %v405
        %v664 = vpop.f32.mrf.mxu0
        %v665 = vadd.f32 %v398, %v664
        %v666 = vpop.f32.mrf.mxu0
        %667 = vmatprep.mubr.f32.mxu0 0.0
        %668 = vmatmul.mubr.f32.gmra.mxu0 %v408
        %v669 = vpop.f32.mrf.mxu0
        %v670 = vadd.f32 %v398, %v669
        %v671 = vpop.f32.mrf.mxu0
        %672 = vmatprep.mubr.f32.mxu0 0.0
        %673 = vmatmul.mubr.f32.gmra.mxu0 %v411
        %v674 = vpop.f32.mrf.mxu0
        %v675 = vadd.f32 %v398, %v674
        %v676 = vpop.f32.mrf.mxu0
        %677 = vmatprep.mubr.f32.mxu0 0.0
        %678 = vmatmul.mubr.f32.gmra.mxu0 %v414
        %v679 = vpop.f32.mrf.mxu0
        %v680 = vadd.f32 %v398, %v679
        %v681 = vpop.f32.mrf.mxu0
        %682 = vmatprep.mubr.f32.mxu0 0.0
        %683 = vmatmul.mubr.f32.gmra.mxu0 %v417
        %v684 = vpop.f32.mrf.mxu0
        %v685 = vadd.f32 %v398, %v684
        %v686 = vpop.f32.mrf.mxu0
        %687 = vmatprep.mubr.f32.mxu0 0.0
        %688 = vmatmul.mubr.f32.gmra.mxu0 %v420
        %v689 = vpop.f32.mrf.mxu0
        %v690 = vadd.f32 %v398, %v689
        %v691 = vpop.f32.mrf.mxu0
        %692 = vmatprep.mubr.f32.mxu0 0.0
        %693 = vmatmul.mubr.f32.gmra.mxu0 %v423
        %v694 = vpop.f32.mrf.mxu0
        %v695 = vadd.f32 %v398, %v694
        %v696 = vpop.f32.mrf.mxu0
        %697 = vmatprep.mubr.f32.mxu0 0.0
        %698 = vmatmul.mubr.f32.gmra.mxu0 %v426
        %v699 = vpop.f32.mrf.mxu0
        %v700 = vadd.f32 %v398, %v699
        %v701 = vpop.f32.mrf.mxu0
        %702 = vmatprep.mubr.f32.mxu0 0.0
        %703 = vmatmul.mubr.f32.gmra.mxu0 %v429
        %v704 = vpop.f32.mrf.mxu0
        %v705 = vadd.f32 %v398, %v704
        %v706 = vpop.f32.mrf.mxu0
        %707 = vmatprep.mubr.f32.mxu0 0.0
        %708 = vmatmul.mubr.f32.gmra.mxu0 %v432
        %v709 = vpop.f32.mrf.mxu0
        %v710 = vadd.f32 %v398, %v709
        %v711 = vpop.f32.mrf.mxu0
        %712 = vmatprep.mubr.f32.mxu0 0.0
        %713 = vmatmul.mubr.f32.gmra.mxu0 %v435
        %v714 = vpop.f32.mrf.mxu0
        %v715 = vadd.f32 %v398, %v714
        %v716 = vpop.f32.mrf.mxu0
        %717 = vmatprep.mubr.f32.mxu0 0.0
        %718 = vmatmul.mubr.f32.gmra.mxu0 %v438
        %v719 = vpop.f32.mrf.mxu0
        %v720 = vadd.f32 %v398, %v719
        %v721 = vpop.f32.mrf.mxu0
        %722 = vmatprep.mubr.f32.mxu0 0.0
        %723 = vmatmul.mubr.f32.gmra.mxu0 %v441
        %v724 = vpop.f32.mrf.mxu0
        %v725 = vadd.f32 %v398, %v724
        %v726 = vpop.f32.mrf.mxu0
        %727 = vmatprep.mubr.f32.mxu0 0.0
        %728 = vmatmul.mubr.f32.gmra.mxu0 %v444
        %v729 = vpop.f32.mrf.mxu0
        %v730 = vadd.f32 %v398, %v729
        %v731 = vpop.f32.mrf.mxu0
        %732 = vmatprep.mubr.f32.mxu0 0.0
        %733 = vmatmul.mubr.f32.gmra.mxu0 %v447
        %v734 = vpop.f32.mrf.mxu0
        %v735 = vadd.f32 %v398, %v734
        %v736 = vpop.f32.mrf.mxu0
        %737 = vmatprep.mubr.f32.mxu0 0.0
        %738 = vmatmul.mubr.f32.gmra.mxu0 %v450
        %v739 = vpop.f32.mrf.mxu0
        %v740 = vadd.f32 %v398, %v739
        %v741 = vpop.f32.mrf.mxu0
        %742 = vmatprep.mubr.f32.mxu0 0.0
        %743 = vmatmul.mubr.f32.gmra.mxu0 %v453
        %v744 = vpop.f32.mrf.mxu0
        %v745 = vadd.f32 %v398, %v744
        %v746 = vpop.f32.mrf.mxu0
        %747 = vmatprep.mubr.f32.mxu0 0.0
        %748 = vmatmul.mubr.f32.gmra.mxu0 %v456
        %v749 = vpop.f32.mrf.mxu0
        %v750 = vadd.f32 %v398, %v749
        %v751 = vpop.f32.mrf.mxu0
        %752 = vmatprep.mubr.f32.mxu0 0.0
        %753 = vmatmul.mubr.f32.gmra.mxu0 %v459
        %v754 = vpop.f32.mrf.mxu0
        %v755 = vadd.f32 %v398, %v754
        %v756 = vpop.f32.mrf.mxu0
        %757 = vmatprep.mubr.f32.mxu0 0.0
        %758 = vmatmul.mubr.f32.gmra.mxu0 %v462
        %v759 = vpop.f32.mrf.mxu0
        %v760 = vadd.f32 %v398, %v759
        %v761 = vpop.f32.mrf.mxu0
        %762 = vmatprep.mubr.f32.mxu0 0.0
        %763 = vmatmul.mubr.f32.gmra.mxu0 %v465
        %v764 = vpop.f32.mrf.mxu0
        %v765 = vadd.f32 %v398, %v764
        %v766 = vpop.f32.mrf.mxu0
        %767 = vmatprep.mubr.f32.mxu0 0.0
        %768 = vmatmul.mubr.f32.gmra.mxu0 %v468
        %v769 = vpop.f32.mrf.mxu0
        %v770 = vadd.f32 %v398, %v769
        %v771 = vpop.f32.mrf.mxu0
        %772 = vmatprep.mubr.f32.mxu0 0.0
        %773 = vmatmul.mubr.f32.gmra.mxu0 %v471
        %v774 = vpop.f32.mrf.mxu0
        %v775 = vadd.f32 %v398, %v774
        %v776 = vpop.f32.mrf.mxu0
        %777 = vmatprep.mubr.f32.mxu0 0.0
        %778 = vmatmul.mubr.f32.gmra.mxu0 %v474
        %v779 = vpop.f32.mrf.mxu0
        %v780 = vadd.f32 %v398, %v779
        %v781 = vpop.f32.mrf.mxu0
        %782 = vmatprep.mubr.f32.mxu0 0.0
        %783 = vmatmul.mubr.f32.gmra.mxu0 %v477
        %v784 = vpop.f32.mrf.mxu0
        %v785 = vadd.f32 %v398, %v784
        %v786 = vpop.f32.mrf.mxu0
        %787 = vmatprep.mubr.f32.mxu0 0.0
        %788 = vmatmul.mubr.f32.gmra.mxu0 %v480
        %v789 = vpop.f32.mrf.mxu0
        %v790 = vadd.f32 %v398, %v789
        %v791 = vpop.f32.mrf.mxu0
        %792 = vmatprep.mubr.f32.mxu0 0.0
        %793 = vmatmul.mubr.f32.gmra.mxu0 %v483
        %v794 = vpop.f32.mrf.mxu0
        %v795 = vadd.f32 %v398, %v794
        %v796 = vpop.f32.mrf.mxu0
        %797 = vmatprep.mubr.f32.mxu0 0.0
        %798 = vmatmul.mubr.f32.gmra.mxu0 %v486
        %v799 = vpop.f32.mrf.mxu0
        %v800 = vadd.f32 %v398, %v799
        %v801 = vpop.f32.mrf.mxu0
        %802 = vmatprep.mubr.f32.mxu0 0.0
        %803 = vmatmul.mubr.f32.gmra.mxu0 %v489
        %v804 = vpop.f32.mrf.mxu0
        %v805 = vadd.f32 %v398, %v804
        %v806 = vpop.f32.mrf.mxu0
        %807 = vmatprep.mubr.f32.mxu0 0.0
        %808 = vmatmul.mubr.f32.gmra.mxu0 %v492
        %v809 = vpop.f32.mrf.mxu0
        %v810 = vadd.f32 %v398, %v809
        %v811 = vpop.f32.mrf.mxu0
        %812 = vmatprep.mubr.f32.mxu0 0.0
        %813 = vmatmul.mubr.f32.gmra.mxu0 %v495
        %v814 = vpop.f32.mrf.mxu0
        %v815 = vadd.f32 %v398, %v814
        %v816 = vpop.f32.mrf.mxu0
        %817 = vmatprep.mubr.f32.mxu0 0.0
        %818 = vmatmul.mubr.f32.gmra.mxu0 %v498
        %v819 = vpop.f32.mrf.mxu0
        %v820 = vadd.f32 %v398, %v819
        %v821 = vpop.f32.mrf.mxu0
        %822 = vmatprep.mubr.f32.mxu0 0.0
        %823 = vmatmul.mubr.f32.gmra.mxu0 %v501
        %v824 = vpop.f32.mrf.mxu0
        %v825 = vadd.f32 %v398, %v824
        %v826 = vpop.f32.mrf.mxu0
        %827 = vmatprep.mubr.f32.mxu0 0.0
        %828 = vmatmul.mubr.f32.gmra.mxu0 %v504
        %v829 = vpop.f32.mrf.mxu0
        %v830 = vadd.f32 %v398, %v829
        %v831 = vpop.f32.mrf.mxu0
        %832 = vmatprep.mubr.f32.mxu0 0.0
        %833 = vmatmul.mubr.f32.gmra.mxu0 %v507
        %v834 = vpop.f32.mrf.mxu0
        %v835 = vadd.f32 %v398, %v834
        %v836 = vpop.f32.mrf.mxu0
        %837 = vmatprep.mubr.f32.mxu0 0.0
        %838 = vmatmul.mubr.f32.gmra.mxu0 %v510
        %v839 = vpop.f32.mrf.mxu0
        %v840 = vadd.f32 %v398, %v839
        %v841 = vpop.f32.mrf.mxu0
        %842 = vmatprep.mubr.f32.mxu0 0.0
        %843 = vmatmul.mubr.f32.gmra.mxu0 %v513
        %v844 = vpop.f32.mrf.mxu0
        %v845 = vadd.f32 %v398, %v844
        %v846 = vpop.f32.mrf.mxu0
        %847 = vmatprep.mubr.f32.mxu0 0.0
        %848 = vmatmul.mubr.f32.gmra.mxu0 %v516
        %v849 = vpop.f32.mrf.mxu0
        %v850 = vadd.f32 %v398, %v849
        %v851 = vpop.f32.mrf.mxu0
        %852 = vmatprep.mubr.f32.mxu0 0.0
        %853 = vmatmul.mubr.f32.gmra.mxu0 %v519
        %v854 = vpop.f32.mrf.mxu0
        %v855 = vadd.f32 %v398, %v854
        %v856 = vpop.f32.mrf.mxu0
        %857 = vmatprep.mubr.f32.mxu0 0.0
        %858 = vmatmul.mubr.f32.gmra.mxu0 %v522
        %v859 = vpop.f32.mrf.mxu0
        %v860 = vadd.f32 %v398, %v859
        %v861 = vpop.f32.mrf.mxu0
        %862 = vmatprep.mubr.f32.mxu0 0.0
        %863 = vmatmul.mubr.f32.gmra.mxu0 %v525
        %v864 = vpop.f32.mrf.mxu0
        %v865 = vadd.f32 %v398, %v864
        %v866 = vpop.f32.mrf.mxu0
        %867 = vmatprep.mubr.f32.mxu0 0.0
        %868 = vmatmul.mubr.f32.gmra.mxu0 %v528
        %v869 = vpop.f32.mrf.mxu0
        %v870 = vadd.f32 %v398, %v869
        %v871 = vpop.f32.mrf.mxu0
        %872 = vmatprep.mubr.f32.mxu0 0.0
        %873 = vmatmul.mubr.f32.gmra.mxu0 %v531
        %v874 = vpop.f32.mrf.mxu0
        %v875 = vadd.f32 %v398, %v874
        %v876 = vpop.f32.mrf.mxu0
        %877 = vmatprep.mubr.f32.mxu0 0.0
        %878 = vmatmul.mubr.f32.gmra.mxu0 %v534
        %v879 = vpop.f32.mrf.mxu0
        %v880 = vadd.f32 %v398, %v879
        %v881 = vpop.f32.mrf.mxu0
        %882 = vmatprep.mubr.f32.mxu0 0.0
        %883 = vmatmul.mubr.f32.gmra.mxu0 %v537
        %v884 = vpop.f32.mrf.mxu0
        %v885 = vadd.f32 %v398, %v884
        %v886 = vpop.f32.mrf.mxu0
        %887 = vmatprep.mubr.f32.mxu0 0.0
        %888 = vmatmul.mubr.f32.gmra.mxu0 %v540
        %v889 = vpop.f32.mrf.mxu0
        %v890 = vadd.f32 %v398, %v889
        %v891 = vpop.f32.mrf.mxu0
        %892 = vmatprep.mubr.f32.mxu0 0.0
        %893 = vmatmul.mubr.f32.gmra.mxu0 %v543
        %v894 = vpop.f32.mrf.mxu0
        %v895 = vadd.f32 %v398, %v894
        %v896 = vpop.f32.mrf.mxu0
        %897 = vmatprep.mubr.f32.mxu0 0.0
        %898 = vmatmul.mubr.f32.gmra.mxu0 %v546
        %v899 = vpop.f32.mrf.mxu0
        %v900 = vadd.f32 %v398, %v899
        %v901 = vpop.f32.mrf.mxu0
        %902 = vmatprep.mubr.f32.mxu0 0.0
        %903 = vmatmul.mubr.f32.gmra.mxu0 %v549
        %v904 = vpop.f32.mrf.mxu0
        %v905 = vadd.f32 %v398, %v904
        %v906 = vpop.f32.mrf.mxu0
        %907 = vmatprep.mubr.f32.mxu0 0.0
        %908 = vmatmul.mubr.f32.gmra.mxu0 %v552
        %v909 = vpop.f32.mrf.mxu0
        %v910 = vadd.f32 %v398, %v909
        %v911 = vpop.f32.mrf.mxu0
        %912 = vmatprep.mubr.f32.mxu0 0.0
        %913 = vmatmul.mubr.f32.gmra.mxu0 %v555
        %v914 = vpop.f32.mrf.mxu0
        %v915 = vadd.f32 %v398, %v914
        %v916 = vpop.f32.mrf.mxu0
        %917 = vmatprep.mubr.f32.mxu0 0.0
        %918 = vmatmul.mubr.f32.gmra.mxu0 %v558
        %v919 = vpop.f32.mrf.mxu0
        %v920 = vadd.f32 %v398, %v919
        %v921 = vpop.f32.mrf.mxu0
        %922 = vmatprep.mubr.f32.mxu0 0.0
        %923 = vmatmul.mubr.f32.gmra.mxu0 %v561
        %v924 = vpop.f32.mrf.mxu0
        %v925 = vadd.f32 %v398, %v924
        %v926 = vpop.f32.mrf.mxu0
        %927 = vmatprep.mubr.f32.mxu0 0.0
        %928 = vmatmul.mubr.f32.gmra.mxu0 %v564
        %v929 = vpop.f32.mrf.mxu0
        %v930 = vadd.f32 %v398, %v929
        %v931 = vpop.f32.mrf.mxu0
        %932 = vmatprep.mubr.f32.mxu0 0.0
        %933 = vmatmul.mubr.f32.gmra.mxu0 %v567
        %v934 = vpop.f32.mrf.mxu0
        %v935 = vadd.f32 %v398, %v934
        %v936 = vpop.f32.mrf.mxu0
        %937 = vmatprep.mubr.f32.mxu0 0.0
        %938 = vmatmul.mubr.f32.gmra.mxu0 %v570
        %v939 = vpop.f32.mrf.mxu0
        %v940 = vadd.f32 %v398, %v939
        %v941 = vpop.f32.mrf.mxu0
        %942 = vmatprep.mubr.f32.mxu0 0.0
        %943 = vmatmul.mubr.f32.gmra.mxu0 %v573
        %v944 = vpop.f32.mrf.mxu0
        %v945 = vadd.f32 %v398, %v944
        %v946 = vpop.f32.mrf.mxu0
        %947 = vmatprep.mubr.f32.mxu0 0.0
        %948 = vmatmul.mubr.f32.gmra.mxu0 %v576
        %v949 = vpop.f32.mrf.mxu0
        %v950 = vadd.f32 %v398, %v949
        %v951 = vpop.f32.mrf.mxu0
        %952 = vmatprep.mubr.f32.mxu0 0.0
        %953 = vmatmul.mubr.f32.gmra.mxu0 %v579
        %v954 = vpop.f32.mrf.mxu0
        %v955 = vadd.f32 %v398, %v954
        %v956 = vpop.f32.mrf.mxu0
        %957 = vmatprep.mubr.f32.mxu0 0.0
        %958 = vmatmul.mubr.f32.gmra.mxu0 %v582
        %v959 = vpop.f32.mrf.mxu0
        %v960 = vadd.f32 %v398, %v959
        %v961 = vpop.f32.mrf.mxu0
        %962 = vmatprep.mubr.f32.mxu0 0.0
        %963 = vmatmul.mubr.f32.gmra.mxu0 %v585
        %v964 = vpop.f32.mrf.mxu0
        %v965 = vadd.f32 %v398, %v964
        %v966 = vpop.f32.mrf.mxu0
        %967 = vmatprep.mubr.f32.mxu0 0.0
        %968 = vmatmul.mubr.f32.gmra.mxu0 %v588
        %v969 = vpop.f32.mrf.mxu0
        %v970 = vadd.f32 %v398, %v969
        %v971 = vpop.f32.mrf.mxu0
        %972 = vmatprep.mubr.f32.mxu0 0.0
        %973 = vmatmul.mubr.f32.gmra.mxu0 %v591
        %v974 = vpop.f32.mrf.mxu0
        %v975 = vadd.f32 %v398, %v974
        %v976 = vpop.f32.mrf.mxu0
        %977 = vdwg.mxu0
        %v978 = vld [vmem:[%s250] sm:$0xf]
        %v979 = vld [vmem:[%s250 + $0x4] sm:$0xf]
        %v980 = vld [vmem:[%s250 + $0x8] sm:$0xf]
        %v981 = vld [vmem:[%s250 + $0xc] sm:$0xf]
        %v982 = vld [vmem:[%s250 + $0x10] sm:$0xf]
        %v983 = vld [vmem:[%s250 + $0x14] sm:$0xf]
        %v984 = vld [vmem:[%s250 + $0x18] sm:$0xf]
        %v985 = vld [vmem:[%s250 + $0x1c] sm:$0xf]
        %v986 = vld [vmem:[%s250 + $0x20] sm:$0xf]
        %v987 = vld [vmem:[%s250 + $0x24] sm:$0xf]
        %v988 = vld [vmem:[%s250 + $0x28] sm:$0xf]
        %v989 = vld [vmem:[%s250 + $0x2c] sm:$0xf]
        %v990 = vld [vmem:[%s250 + $0x30] sm:$0xf]
        %v991 = vld [vmem:[%s250 + $0x34] sm:$0xf]
        %v992 = vld [vmem:[%s250 + $0x38] sm:$0xf]
        %v993 = vld [vmem:[%s250 + $0x3c] sm:$0xf]
        %v994 = vld [vmem:[%s250 + $0x40] sm:$0xf]
        %v995 = vld [vmem:[%s250 + $0x44] sm:$0xf]
        %v996 = vld [vmem:[%s250 + $0x48] sm:$0xf]
        %v997 = vld [vmem:[%s250 + $0x4c] sm:$0xf]
        %v998 = vld [vmem:[%s250 + $0x50] sm:$0xf]
        %v999 = vld [vmem:[%s250 + $0x54] sm:$0xf]
        %v1000 = vld [vmem:[%s250 + $0x58] sm:$0xf]
        %v1001 = vld [vmem:[%s250 + $0x5c] sm:$0xf]
        %v1002 = vld [vmem:[%s250 + $0x60] sm:$0xf]
        %v1003 = vld [vmem:[%s250 + $0x64] sm:$0xf]
        %v1004 = vld [vmem:[%s250 + $0x68] sm:$0xf]
        %v1005 = vld [vmem:[%s250 + $0x6c] sm:$0xf]
        %v1006 = vld [vmem:[%s250 + $0x70] sm:$0xf]
        %v1007 = vld [vmem:[%s250 + $0x74] sm:$0xf]
        %v1008 = vld [vmem:[%s250 + $0x78] sm:$0xf]
        %v1009 = vld [vmem:[%s250 + $0x7c] sm:$0xf]
        %v1010 = vld [vmem:[%s250 + $0x80] sm:$0xf]
        %v1011 = vld [vmem:[%s250 + $0x84] sm:$0xf]
        %v1012 = vld [vmem:[%s250 + $0x88] sm:$0xf]
        %v1013 = vld [vmem:[%s250 + $0x8c] sm:$0xf]
        %v1014 = vld [vmem:[%s250 + $0x90] sm:$0xf]
        %v1015 = vld [vmem:[%s250 + $0x94] sm:$0xf]
        %v1016 = vld [vmem:[%s250 + $0x98] sm:$0xf]
        %v1017 = vld [vmem:[%s250 + $0x9c] sm:$0xf]
        %v1018 = vld [vmem:[%s250 + $0xa0] sm:$0xf]
        %v1019 = vld [vmem:[%s250 + $0xa4] sm:$0xf]
        %v1020 = vld [vmem:[%s250 + $0xa8] sm:$0xf]
        %v1021 = vld [vmem:[%s250 + $0xac] sm:$0xf]
        %v1022 = vld [vmem:[%s250 + $0xb0] sm:$0xf]
        %v1023 = vld [vmem:[%s250 + $0xb4] sm:$0xf]
        %v1024 = vld [vmem:[%s250 + $0xb8] sm:$0xf]
        %v1025 = vld [vmem:[%s250 + $0xbc] sm:$0xf]
        %v1026 = vld [vmem:[%s250 + $0xc0] sm:$0xf]
        %v1027 = vld [vmem:[%s250 + $0xc4] sm:$0xf]
        %v1028 = vld [vmem:[%s250 + $0xc8] sm:$0xf]
        %v1029 = vld [vmem:[%s250 + $0xcc] sm:$0xf]
        %v1030 = vld [vmem:[%s250 + $0xd0] sm:$0xf]
        %v1031 = vld [vmem:[%s250 + $0xd4] sm:$0xf]
        %v1032 = vld [vmem:[%s250 + $0xd8] sm:$0xf]
        %v1033 = vld [vmem:[%s250 + $0xdc] sm:$0xf]
        %v1034 = vld [vmem:[%s250 + $0xe0] sm:$0xf]
        %v1035 = vld [vmem:[%s250 + $0xe4] sm:$0xf]
        %v1036 = vld [vmem:[%s250 + $0xe8] sm:$0xf]
        %v1037 = vld [vmem:[%s250 + $0xec] sm:$0xf]
        %v1038 = vld [vmem:[%s250 + $0xf0] sm:$0xf]
        %v1039 = vld [vmem:[%s250 + $0xf4] sm:$0xf]
        %v1040 = vld [vmem:[%s250 + $0xf8] sm:$0xf]
        %v1041 = vld [vmem:[%s250 + $0xfc] sm:$0xf]
        %v1042 = vunpack.c.l.bf16 %v978
        %v1043 = vunpack.c.l.bf16 %v979
        %v1044 = vunpack.c.l.bf16 %v980
        %v1045 = vunpack.c.l.bf16 %v981
        %v1046 = vunpack.c.l.bf16 %v982
        %v1047 = vunpack.c.l.bf16 %v983
        %v1048 = vunpack.c.l.bf16 %v984
        %v1049 = vunpack.c.l.bf16 %v985
        %v1050 = vunpack.c.l.bf16 %v986
        %v1051 = vunpack.c.l.bf16 %v987
        %v1052 = vunpack.c.l.bf16 %v988
        %v1053 = vunpack.c.l.bf16 %v989
        %v1054 = vunpack.c.l.bf16 %v990
        %v1055 = vunpack.c.l.bf16 %v991
        %v1056 = vunpack.c.l.bf16 %v992
        %v1057 = vunpack.c.l.bf16 %v993
        %v1058 = vunpack.c.l.bf16 %v994
        %v1059 = vunpack.c.l.bf16 %v995
        %v1060 = vunpack.c.l.bf16 %v996
        %v1061 = vunpack.c.l.bf16 %v997
        %v1062 = vunpack.c.l.bf16 %v998
        %v1063 = vunpack.c.l.bf16 %v999
        %v1064 = vunpack.c.l.bf16 %v1000
        %v1065 = vunpack.c.l.bf16 %v1001
        %v1066 = vunpack.c.l.bf16 %v1002
        %v1067 = vunpack.c.l.bf16 %v1003
        %v1068 = vunpack.c.l.bf16 %v1004
        %v1069 = vunpack.c.l.bf16 %v1005
        %v1070 = vunpack.c.l.bf16 %v1006
        %v1071 = vunpack.c.l.bf16 %v1007
        %v1072 = vunpack.c.l.bf16 %v1008
        %v1073 = vunpack.c.l.bf16 %v1009
        %v1074 = vunpack.c.l.bf16 %v1010
        %v1075 = vunpack.c.l.bf16 %v1011
        %v1076 = vunpack.c.l.bf16 %v1012
        %v1077 = vunpack.c.l.bf16 %v1013
        %v1078 = vunpack.c.l.bf16 %v1014
        %v1079 = vunpack.c.l.bf16 %v1015
        %v1080 = vunpack.c.l.bf16 %v1016
        %v1081 = vunpack.c.l.bf16 %v1017
        %v1082 = vunpack.c.l.bf16 %v1018
        %v1083 = vunpack.c.l.bf16 %v1019
        %v1084 = vunpack.c.l.bf16 %v1020
        %v1085 = vunpack.c.l.bf16 %v1021
        %v1086 = vunpack.c.l.bf16 %v1022
        %v1087 = vunpack.c.l.bf16 %v1023
        %v1088 = vunpack.c.l.bf16 %v1024
        %v1089 = vunpack.c.l.bf16 %v1025
        %v1090 = vunpack.c.l.bf16 %v1026
        %v1091 = vunpack.c.l.bf16 %v1027
        %v1092 = vunpack.c.l.bf16 %v1028
        %v1093 = vunpack.c.l.bf16 %v1029
        %v1094 = vunpack.c.l.bf16 %v1030
        %v1095 = vunpack.c.l.bf16 %v1031
        %v1096 = vunpack.c.l.bf16 %v1032
        %v1097 = vunpack.c.l.bf16 %v1033
        %v1098 = vunpack.c.l.bf16 %v1034
        %v1099 = vunpack.c.l.bf16 %v1035
        %v1100 = vunpack.c.l.bf16 %v1036
        %v1101 = vunpack.c.l.bf16 %v1037
        %v1102 = vunpack.c.l.bf16 %v1038
        %v1103 = vunpack.c.l.bf16 %v1039
        %v1104 = vunpack.c.l.bf16 %v1040
        %v1105 = vunpack.c.l.bf16 %v1041
        %v1106 = vadd.f32 %v660, %v1042
        %v1107 = vadd.f32 %v665, %v1043
        %v1108 = vadd.f32 %v670, %v1044
        %v1109 = vadd.f32 %v675, %v1045
        %v1110 = vadd.f32 %v680, %v1046
        %v1111 = vadd.f32 %v685, %v1047
        %v1112 = vadd.f32 %v690, %v1048
        %v1113 = vadd.f32 %v695, %v1049
        %v1114 = vadd.f32 %v700, %v1050
        %v1115 = vadd.f32 %v705, %v1051
        %v1116 = vadd.f32 %v710, %v1052
        %v1117 = vadd.f32 %v715, %v1053
        %v1118 = vadd.f32 %v720, %v1054
        %v1119 = vadd.f32 %v725, %v1055
        %v1120 = vadd.f32 %v730, %v1056
        %v1121 = vadd.f32 %v735, %v1057
        %v1122 = vadd.f32 %v740, %v1058
        %v1123 = vadd.f32 %v745, %v1059
        %v1124 = vadd.f32 %v750, %v1060
        %v1125 = vadd.f32 %v755, %v1061
        %v1126 = vadd.f32 %v760, %v1062
        %v1127 = vadd.f32 %v765, %v1063
        %v1128 = vadd.f32 %v770, %v1064
        %v1129 = vadd.f32 %v775, %v1065
        %v1130 = vadd.f32 %v780, %v1066
        %v1131 = vadd.f32 %v785, %v1067
        %v1132 = vadd.f32 %v790, %v1068
        %v1133 = vadd.f32 %v795, %v1069
        %v1134 = vadd.f32 %v800, %v1070
        %v1135 = vadd.f32 %v805, %v1071
        %v1136 = vadd.f32 %v810, %v1072
        %v1137 = vadd.f32 %v815, %v1073
        %v1138 = vadd.f32 %v820, %v1074
        %v1139 = vadd.f32 %v825, %v1075
        %v1140 = vadd.f32 %v830, %v1076
        %v1141 = vadd.f32 %v835, %v1077
        %v1142 = vadd.f32 %v840, %v1078
        %v1143 = vadd.f32 %v845, %v1079
        %v1144 = vadd.f32 %v850, %v1080
        %v1145 = vadd.f32 %v855, %v1081
        %v1146 = vadd.f32 %v860, %v1082
        %v1147 = vadd.f32 %v865, %v1083
        %v1148 = vadd.f32 %v870, %v1084
        %v1149 = vadd.f32 %v875, %v1085
        %v1150 = vadd.f32 %v880, %v1086
        %v1151 = vadd.f32 %v885, %v1087
        %v1152 = vadd.f32 %v890, %v1088
        %v1153 = vadd.f32 %v895, %v1089
        %v1154 = vadd.f32 %v900, %v1090
        %v1155 = vadd.f32 %v905, %v1091
        %v1156 = vadd.f32 %v910, %v1092
        %v1157 = vadd.f32 %v915, %v1093
        %v1158 = vadd.f32 %v920, %v1094
        %v1159 = vadd.f32 %v925, %v1095
        %v1160 = vadd.f32 %v930, %v1096
        %v1161 = vadd.f32 %v935, %v1097
        %v1162 = vadd.f32 %v940, %v1098
        %v1163 = vadd.f32 %v945, %v1099
        %v1164 = vadd.f32 %v950, %v1100
        %v1165 = vadd.f32 %v955, %v1101
        %v1166 = vadd.f32 %v960, %v1102
        %v1167 = vadd.f32 %v965, %v1103
        %v1168 = vadd.f32 %v970, %v1104
        %v1169 = vadd.f32 %v975, %v1105
        %v1170 = vmul.f32 %v1106, 0.5
        %v1171 = vmul.f32 %v1107, 0.5
        %v1172 = vmul.f32 %v1108, 0.5
        %v1173 = vmul.f32 %v1109, 0.5
        %v1174 = vmul.f32 %v1110, 0.5
        %v1175 = vmul.f32 %v1111, 0.5
        %v1176 = vmul.f32 %v1112, 0.5
        %v1177 = vmul.f32 %v1113, 0.5
        %v1178 = vmul.f32 %v1114, 0.5
        %v1179 = vmul.f32 %v1115, 0.5
        %v1180 = vmul.f32 %v1116, 0.5
        %v1181 = vmul.f32 %v1117, 0.5
        %v1182 = vmul.f32 %v1118, 0.5
        %v1183 = vmul.f32 %v1119, 0.5
        %v1184 = vmul.f32 %v1120, 0.5
        %v1185 = vmul.f32 %v1121, 0.5
        %v1186 = vmul.f32 %v1122, 0.5
        %v1187 = vmul.f32 %v1123, 0.5
        %v1188 = vmul.f32 %v1124, 0.5
        %v1189 = vmul.f32 %v1125, 0.5
        %v1190 = vmul.f32 %v1126, 0.5
        %v1191 = vmul.f32 %v1127, 0.5
        %v1192 = vmul.f32 %v1128, 0.5
        %v1193 = vmul.f32 %v1129, 0.5
        %v1194 = vmul.f32 %v1130, 0.5
        %v1195 = vmul.f32 %v1131, 0.5
        %v1196 = vmul.f32 %v1132, 0.5
        %v1197 = vmul.f32 %v1133, 0.5
        %v1198 = vmul.f32 %v1134, 0.5
        %v1199 = vmul.f32 %v1135, 0.5
        %v1200 = vmul.f32 %v1136, 0.5
        %v1201 = vmul.f32 %v1137, 0.5
        %v1202 = vmul.f32 %v1138, 0.5
        %v1203 = vmul.f32 %v1139, 0.5
        %v1204 = vmul.f32 %v1140, 0.5
        %v1205 = vmul.f32 %v1141, 0.5
        %v1206 = vmul.f32 %v1142, 0.5
        %v1207 = vmul.f32 %v1143, 0.5
        %v1208 = vmul.f32 %v1144, 0.5
        %v1209 = vmul.f32 %v1145, 0.5
        %v1210 = vmul.f32 %v1146, 0.5
        %v1211 = vmul.f32 %v1147, 0.5
        %v1212 = vmul.f32 %v1148, 0.5
        %v1213 = vmul.f32 %v1149, 0.5
        %v1214 = vmul.f32 %v1150, 0.5
        %v1215 = vmul.f32 %v1151, 0.5
        %v1216 = vmul.f32 %v1152, 0.5
        %v1217 = vmul.f32 %v1153, 0.5
        %v1218 = vmul.f32 %v1154, 0.5
        %v1219 = vmul.f32 %v1155, 0.5
        %v1220 = vmul.f32 %v1156, 0.5
        %v1221 = vmul.f32 %v1157, 0.5
        %v1222 = vmul.f32 %v1158, 0.5
        %v1223 = vmul.f32 %v1159, 0.5
        %v1224 = vmul.f32 %v1160, 0.5
        %v1225 = vmul.f32 %v1161, 0.5
        %v1226 = vmul.f32 %v1162, 0.5
        %v1227 = vmul.f32 %v1163, 0.5
        %v1228 = vmul.f32 %v1164, 0.5
        %v1229 = vmul.f32 %v1165, 0.5
        %v1230 = vmul.f32 %v1166, 0.5
        %v1231 = vmul.f32 %v1167, 0.5
        %v1232 = vmul.f32 %v1168, 0.5
        %v1233 = vmul.f32 %v1169, 0.5
        %v1234 = vmul.f32 %v1106, 0.70710677
        %v1235 = vmul.f32 %v1107, 0.70710677
        %v1236 = vmul.f32 %v1108, 0.70710677
        %v1237 = vmul.f32 %v1109, 0.70710677
        %v1238 = vmul.f32 %v1110, 0.70710677
        %v1239 = vmul.f32 %v1111, 0.70710677
        %v1240 = vmul.f32 %v1112, 0.70710677
        %v1241 = vmul.f32 %v1113, 0.70710677
        %v1242 = vmul.f32 %v1114, 0.70710677
        %v1243 = vmul.f32 %v1115, 0.70710677
        %v1244 = vmul.f32 %v1116, 0.70710677
        %v1245 = vmul.f32 %v1117, 0.70710677
        %v1246 = vmul.f32 %v1118, 0.70710677
        %v1247 = vmul.f32 %v1119, 0.70710677
        %v1248 = vmul.f32 %v1120, 0.70710677
        %v1249 = vmul.f32 %v1121, 0.70710677
        %v1250 = vmul.f32 %v1122, 0.70710677
        %v1251 = vmul.f32 %v1123, 0.70710677
        %v1252 = vmul.f32 %v1124, 0.70710677
        %v1253 = vmul.f32 %v1125, 0.70710677
        %v1254 = vmul.f32 %v1126, 0.70710677
        %v1255 = vmul.f32 %v1127, 0.70710677
        %v1256 = vmul.f32 %v1128, 0.70710677
        %v1257 = vmul.f32 %v1129, 0.70710677
        %v1258 = vmul.f32 %v1130, 0.70710677
        %v1259 = vmul.f32 %v1131, 0.70710677
        %v1260 = vmul.f32 %v1132, 0.70710677
        %v1261 = vmul.f32 %v1133, 0.70710677
        %v1262 = vmul.f32 %v1134, 0.70710677
        %v1263 = vmul.f32 %v1135, 0.70710677
        %v1264 = vmul.f32 %v1136, 0.70710677
        %v1265 = vmul.f32 %v1137, 0.70710677
        %v1266 = vmul.f32 %v1138, 0.70710677
        %v1267 = vmul.f32 %v1139, 0.70710677
        %v1268 = vmul.f32 %v1140, 0.70710677
        %v1269 = vmul.f32 %v1141, 0.70710677
        %v1270 = vmul.f32 %v1142, 0.70710677
        %v1271 = vmul.f32 %v1143, 0.70710677
        %v1272 = vmul.f32 %v1144, 0.70710677
        %v1273 = vmul.f32 %v1145, 0.70710677
        %v1274 = vmul.f32 %v1146, 0.70710677
        %v1275 = vmul.f32 %v1147, 0.70710677
        %v1276 = vmul.f32 %v1148, 0.70710677
        %v1277 = vmul.f32 %v1149, 0.70710677
        %v1278 = vmul.f32 %v1150, 0.70710677
        %v1279 = vmul.f32 %v1151, 0.70710677
        %v1280 = vmul.f32 %v1152, 0.70710677
        %v1281 = vmul.f32 %v1153, 0.70710677
        %v1282 = vmul.f32 %v1154, 0.70710677
        %v1283 = vmul.f32 %v1155, 0.70710677
        %v1284 = vmul.f32 %v1156, 0.70710677
        %v1285 = vmul.f32 %v1157, 0.70710677
        %v1286 = vmul.f32 %v1158, 0.70710677
        %v1287 = vmul.f32 %v1159, 0.70710677
        %v1288 = vmul.f32 %v1160, 0.70710677
        %v1289 = vmul.f32 %v1161, 0.70710677
        %v1290 = vmul.f32 %v1162, 0.70710677
        %v1291 = vmul.f32 %v1163, 0.70710677
        %v1292 = vmul.f32 %v1164, 0.70710677
        %v1293 = vmul.f32 %v1165, 0.70710677
        %v1294 = vmul.f32 %v1166, 0.70710677
        %v1295 = vmul.f32 %v1167, 0.70710677
        %v1296 = vmul.f32 %v1168, 0.70710677
        %v1297 = vmul.f32 %v1169, 0.70710677
        %v1298 = vand.u32 2147483647, %v1234
        %v1299 = vand.u32 2147483647, %v1235
        %v1300 = vand.u32 2147483647, %v1236
        %v1301 = vand.u32 2147483647, %v1237
        %v1302 = vand.u32 2147483647, %v1238
        %v1303 = vand.u32 2147483647, %v1239
        %v1304 = vand.u32 2147483647, %v1240
        %v1305 = vand.u32 2147483647, %v1241
        %v1306 = vand.u32 2147483647, %v1242
        %v1307 = vand.u32 2147483647, %v1243
        %v1308 = vand.u32 2147483647, %v1244
        %v1309 = vand.u32 2147483647, %v1245
        %v1310 = vand.u32 2147483647, %v1246
        %v1311 = vand.u32 2147483647, %v1247
        %v1312 = vand.u32 2147483647, %v1248
        %v1313 = vand.u32 2147483647, %v1249
        %v1314 = vand.u32 2147483647, %v1250
        %v1315 = vand.u32 2147483647, %v1251
        %v1316 = vand.u32 2147483647, %v1252
        %v1317 = vand.u32 2147483647, %v1253
        %v1318 = vand.u32 2147483647, %v1254
        %v1319 = vand.u32 2147483647, %v1255
        %v1320 = vand.u32 2147483647, %v1256
        %v1321 = vand.u32 2147483647, %v1257
        %v1322 = vand.u32 2147483647, %v1258
        %v1323 = vand.u32 2147483647, %v1259
        %v1324 = vand.u32 2147483647, %v1260
        %v1325 = vand.u32 2147483647, %v1261
        %v1326 = vand.u32 2147483647, %v1262
        %v1327 = vand.u32 2147483647, %v1263
        %v1328 = vand.u32 2147483647, %v1264
        %v1329 = vand.u32 2147483647, %v1265
        %v1330 = vand.u32 2147483647, %v1266
        %v1331 = vand.u32 2147483647, %v1267
        %v1332 = vand.u32 2147483647, %v1268
        %v1333 = vand.u32 2147483647, %v1269
        %v1334 = vand.u32 2147483647, %v1270
        %v1335 = vand.u32 2147483647, %v1271
        %v1336 = vand.u32 2147483647, %v1272
        %v1337 = vand.u32 2147483647, %v1273
        %v1338 = vand.u32 2147483647, %v1274
        %v1339 = vand.u32 2147483647, %v1275
        %v1340 = vand.u32 2147483647, %v1276
        %v1341 = vand.u32 2147483647, %v1277
        %v1342 = vand.u32 2147483647, %v1278
        %v1343 = vand.u32 2147483647, %v1279
        %v1344 = vand.u32 2147483647, %v1280
        %v1345 = vand.u32 2147483647, %v1281
        %v1346 = vand.u32 2147483647, %v1282
        %v1347 = vand.u32 2147483647, %v1283
        %v1348 = vand.u32 2147483647, %v1284
        %v1349 = vand.u32 2147483647, %v1285
        %v1350 = vand.u32 2147483647, %v1286
        %v1351 = vand.u32 2147483647, %v1287
        %v1352 = vand.u32 2147483647, %v1288
        %v1353 = vand.u32 2147483647, %v1289
        %v1354 = vand.u32 2147483647, %v1290
        %v1355 = vand.u32 2147483647, %v1291
        %v1356 = vand.u32 2147483647, %v1292
        %v1357 = vand.u32 2147483647, %v1293
        %v1358 = vand.u32 2147483647, %v1294
        %v1359 = vand.u32 2147483647, %v1295
        %v1360 = vand.u32 2147483647, %v1296
        %v1361 = vand.u32 2147483647, %v1297
        %v1362 = vmul.f32 %v1298, 0.3275911
        %v1363 = vmul.f32 %v1299, 0.3275911
        %v1364 = vmul.f32 %v1300, 0.3275911
        %v1365 = vmul.f32 %v1301, 0.3275911
        %v1366 = vmul.f32 %v1302, 0.3275911
        %v1367 = vmul.f32 %v1303, 0.3275911
        %v1368 = vmul.f32 %v1304, 0.3275911
        %v1369 = vmul.f32 %v1305, 0.3275911
        %v1370 = vmul.f32 %v1306, 0.3275911
        %v1371 = vmul.f32 %v1307, 0.3275911
        %v1372 = vmul.f32 %v1308, 0.3275911
        %v1373 = vmul.f32 %v1309, 0.3275911
        %v1374 = vmul.f32 %v1310, 0.3275911
        %v1375 = vmul.f32 %v1311, 0.3275911
        %v1376 = vmul.f32 %v1312, 0.3275911
        %v1377 = vmul.f32 %v1313, 0.3275911
        %v1378 = vmul.f32 %v1314, 0.3275911
        %v1379 = vmul.f32 %v1315, 0.3275911
        %v1380 = vmul.f32 %v1316, 0.3275911
        %v1381 = vmul.f32 %v1317, 0.3275911
        %v1382 = vmul.f32 %v1318, 0.3275911
        %v1383 = vmul.f32 %v1319, 0.3275911
        %v1384 = vmul.f32 %v1320, 0.3275911
        %v1385 = vmul.f32 %v1321, 0.3275911
        %v1386 = vmul.f32 %v1322, 0.3275911
        %v1387 = vmul.f32 %v1323, 0.3275911
        %v1388 = vmul.f32 %v1324, 0.3275911
        %v1389 = vmul.f32 %v1325, 0.3275911
        %v1390 = vmul.f32 %v1326, 0.3275911
        %v1391 = vmul.f32 %v1327, 0.3275911
        %v1392 = vmul.f32 %v1328, 0.3275911
        %v1393 = vmul.f32 %v1329, 0.3275911
        %v1394 = vmul.f32 %v1330, 0.3275911
        %v1395 = vmul.f32 %v1331, 0.3275911
        %v1396 = vmul.f32 %v1332, 0.3275911
        %v1397 = vmul.f32 %v1333, 0.3275911
        %v1398 = vmul.f32 %v1334, 0.3275911
        %v1399 = vmul.f32 %v1335, 0.3275911
        %v1400 = vmul.f32 %v1336, 0.3275911
        %v1401 = vmul.f32 %v1337, 0.3275911
        %v1402 = vmul.f32 %v1338, 0.3275911
        %v1403 = vmul.f32 %v1339, 0.3275911
        %v1404 = vmul.f32 %v1340, 0.3275911
        %v1405 = vmul.f32 %v1341, 0.3275911
        %v1406 = vmul.f32 %v1342, 0.3275911
        %v1407 = vmul.f32 %v1343, 0.3275911
        %v1408 = vmul.f32 %v1344, 0.3275911
        %v1409 = vmul.f32 %v1345, 0.3275911
        %v1410 = vmul.f32 %v1346, 0.3275911
        %v1411 = vmul.f32 %v1347, 0.3275911
        %v1412 = vmul.f32 %v1348, 0.3275911
        %v1413 = vmul.f32 %v1349, 0.3275911
        %v1414 = vmul.f32 %v1350, 0.3275911
        %v1415 = vmul.f32 %v1351, 0.3275911
        %v1416 = vmul.f32 %v1352, 0.3275911
        %v1417 = vmul.f32 %v1353, 0.3275911
        %v1418 = vmul.f32 %v1354, 0.3275911
        %v1419 = vmul.f32 %v1355, 0.3275911
        %v1420 = vmul.f32 %v1356, 0.3275911
        %v1421 = vmul.f32 %v1357, 0.3275911
        %v1422 = vmul.f32 %v1358, 0.3275911
        %v1423 = vmul.f32 %v1359, 0.3275911
        %v1424 = vmul.f32 %v1360, 0.3275911
        %v1425 = vmul.f32 %v1361, 0.3275911
        %v1426 = vadd.f32 %v1362, 1.0
        %v1427 = vadd.f32 %v1363, 1.0
        %v1428 = vadd.f32 %v1364, 1.0
        %v1429 = vadd.f32 %v1365, 1.0
        %v1430 = vadd.f32 %v1366, 1.0
        %v1431 = vadd.f32 %v1367, 1.0
        %v1432 = vadd.f32 %v1368, 1.0
        %v1433 = vadd.f32 %v1369, 1.0
        %v1434 = vadd.f32 %v1370, 1.0
        %v1435 = vadd.f32 %v1371, 1.0
        %v1436 = vadd.f32 %v1372, 1.0
        %v1437 = vadd.f32 %v1373, 1.0
        %v1438 = vadd.f32 %v1374, 1.0
        %v1439 = vadd.f32 %v1375, 1.0
        %v1440 = vadd.f32 %v1376, 1.0
        %v1441 = vadd.f32 %v1377, 1.0
        %v1442 = vadd.f32 %v1378, 1.0
        %v1443 = vadd.f32 %v1379, 1.0
        %v1444 = vadd.f32 %v1380, 1.0
        %v1445 = vadd.f32 %v1381, 1.0
        %v1446 = vadd.f32 %v1382, 1.0
        %v1447 = vadd.f32 %v1383, 1.0
        %v1448 = vadd.f32 %v1384, 1.0
        %v1449 = vadd.f32 %v1385, 1.0
        %v1450 = vadd.f32 %v1386, 1.0
        %v1451 = vadd.f32 %v1387, 1.0
        %v1452 = vadd.f32 %v1388, 1.0
        %v1453 = vadd.f32 %v1389, 1.0
        %v1454 = vadd.f32 %v1390, 1.0
        %v1455 = vadd.f32 %v1391, 1.0
        %v1456 = vadd.f32 %v1392, 1.0
        %v1457 = vadd.f32 %v1393, 1.0
        %v1458 = vadd.f32 %v1394, 1.0
        %v1459 = vadd.f32 %v1395, 1.0
        %v1460 = vadd.f32 %v1396, 1.0
        %v1461 = vadd.f32 %v1397, 1.0
        %v1462 = vadd.f32 %v1398, 1.0
        %v1463 = vadd.f32 %v1399, 1.0
        %v1464 = vadd.f32 %v1400, 1.0
        %v1465 = vadd.f32 %v1401, 1.0
        %v1466 = vadd.f32 %v1402, 1.0
        %v1467 = vadd.f32 %v1403, 1.0
        %v1468 = vadd.f32 %v1404, 1.0
        %v1469 = vadd.f32 %v1405, 1.0
        %v1470 = vadd.f32 %v1406, 1.0
        %v1471 = vadd.f32 %v1407, 1.0
        %v1472 = vadd.f32 %v1408, 1.0
        %v1473 = vadd.f32 %v1409, 1.0
        %v1474 = vadd.f32 %v1410, 1.0
        %v1475 = vadd.f32 %v1411, 1.0
        %v1476 = vadd.f32 %v1412, 1.0
        %v1477 = vadd.f32 %v1413, 1.0
        %v1478 = vadd.f32 %v1414, 1.0
        %v1479 = vadd.f32 %v1415, 1.0
        %v1480 = vadd.f32 %v1416, 1.0
        %v1481 = vadd.f32 %v1417, 1.0
        %v1482 = vadd.f32 %v1418, 1.0
        %v1483 = vadd.f32 %v1419, 1.0
        %v1484 = vadd.f32 %v1420, 1.0
        %v1485 = vadd.f32 %v1421, 1.0
        %v1486 = vadd.f32 %v1422, 1.0
        %v1487 = vadd.f32 %v1423, 1.0
        %v1488 = vadd.f32 %v1424, 1.0
        %v1489 = vadd.f32 %v1425, 1.0
        %v1490 = vrcp.pop %v1426
        %v1491 = vrcp.pop %v1427
        %v1492 = vrcp.pop %v1428
        %v1493 = vrcp.pop %v1429
        %v1494 = vrcp.pop %v1430
        %v1495 = vrcp.pop %v1431
        %v1496 = vrcp.pop %v1432
        %v1497 = vrcp.pop %v1433
        %v1498 = vrcp.pop %v1434
        %v1499 = vrcp.pop %v1435
        %v1500 = vrcp.pop %v1436
        %v1501 = vrcp.pop %v1437
        %v1502 = vrcp.pop %v1438
        %v1503 = vrcp.pop %v1439
        %v1504 = vrcp.pop %v1440
        %v1505 = vrcp.pop %v1441
        %v1506 = vrcp.pop %v1442
        %v1507 = vrcp.pop %v1443
        %v1508 = vrcp.pop %v1444
        %v1509 = vrcp.pop %v1445
        %v1510 = vrcp.pop %v1446
        %v1511 = vrcp.pop %v1447
        %v1512 = vrcp.pop %v1448
        %v1513 = vrcp.pop %v1449
        %v1514 = vrcp.pop %v1450
        %v1515 = vrcp.pop %v1451
        %v1516 = vrcp.pop %v1452
        %v1517 = vrcp.pop %v1453
        %v1518 = vrcp.pop %v1454
        %v1519 = vrcp.pop %v1455
        %v1520 = vrcp.pop %v1456
        %v1521 = vrcp.pop %v1457
        %v1522 = vrcp.pop %v1458
        %v1523 = vrcp.pop %v1459
        %v1524 = vrcp.pop %v1460
        %v1525 = vrcp.pop %v1461
        %v1526 = vrcp.pop %v1462
        %v1527 = vrcp.pop %v1463
        %v1528 = vrcp.pop %v1464
        %v1529 = vrcp.pop %v1465
        %v1530 = vrcp.pop %v1466
        %v1531 = vrcp.pop %v1467
        %v1532 = vrcp.pop %v1468
        %v1533 = vrcp.pop %v1469
        %v1534 = vrcp.pop %v1470
        %v1535 = vrcp.pop %v1471
        %v1536 = vrcp.pop %v1472
        %v1537 = vrcp.pop %v1473
        %v1538 = vrcp.pop %v1474
        %v1539 = vrcp.pop %v1475
        %v1540 = vrcp.pop %v1476
        %v1541 = vrcp.pop %v1477
        %v1542 = vrcp.pop %v1478
        %v1543 = vrcp.pop %v1479
        %v1544 = vrcp.pop %v1480
        %v1545 = vrcp.pop %v1481
        %v1546 = vrcp.pop %v1482
        %v1547 = vrcp.pop %v1483
        %v1548 = vrcp.pop %v1484
        %v1549 = vrcp.pop %v1485
        %v1550 = vrcp.pop %v1486
        %v1551 = vrcp.pop %v1487
        %v1552 = vrcp.pop %v1488
        %v1553 = vrcp.pop %v1489
        %v1554 = vmul.f32 %v1490, 1.0614054
        %v1555 = vmul.f32 %v1491, 1.0614054
        %v1556 = vmul.f32 %v1492, 1.0614054
        %v1557 = vmul.f32 %v1493, 1.0614054
        %v1558 = vmul.f32 %v1494, 1.0614054
        %v1559 = vmul.f32 %v1495, 1.0614054
        %v1560 = vmul.f32 %v1496, 1.0614054
        %v1561 = vmul.f32 %v1497, 1.0614054
        %v1562 = vmul.f32 %v1498, 1.0614054
        %v1563 = vmul.f32 %v1499, 1.0614054
        %v1564 = vmul.f32 %v1500, 1.0614054
        %v1565 = vmul.f32 %v1501, 1.0614054
        %v1566 = vmul.f32 %v1502, 1.0614054
        %v1567 = vmul.f32 %v1503, 1.0614054
        %v1568 = vmul.f32 %v1504, 1.0614054
        %v1569 = vmul.f32 %v1505, 1.0614054
        %v1570 = vmul.f32 %v1506, 1.0614054
        %v1571 = vmul.f32 %v1507, 1.0614054
        %v1572 = vmul.f32 %v1508, 1.0614054
        %v1573 = vmul.f32 %v1509, 1.0614054
        %v1574 = vmul.f32 %v1510, 1.0614054
        %v1575 = vmul.f32 %v1511, 1.0614054
        %v1576 = vmul.f32 %v1512, 1.0614054
        %v1577 = vmul.f32 %v1513, 1.0614054
        %v1578 = vmul.f32 %v1514, 1.0614054
        %v1579 = vmul.f32 %v1515, 1.0614054
        %v1580 = vmul.f32 %v1516, 1.0614054
        %v1581 = vmul.f32 %v1517, 1.0614054
        %v1582 = vmul.f32 %v1518, 1.0614054
        %v1583 = vmul.f32 %v1519, 1.0614054
        %v1584 = vmul.f32 %v1520, 1.0614054
        %v1585 = vmul.f32 %v1521, 1.0614054
        %v1586 = vmul.f32 %v1522, 1.0614054
        %v1587 = vmul.f32 %v1523, 1.0614054
        %v1588 = vmul.f32 %v1524, 1.0614054
        %v1589 = vmul.f32 %v1525, 1.0614054
        %v1590 = vmul.f32 %v1526, 1.0614054
        %v1591 = vmul.f32 %v1527, 1.0614054
        %v1592 = vmul.f32 %v1528, 1.0614054
        %v1593 = vmul.f32 %v1529, 1.0614054
        %v1594 = vmul.f32 %v1530, 1.0614054
        %v1595 = vmul.f32 %v1531, 1.0614054
        %v1596 = vmul.f32 %v1532, 1.0614054
        %v1597 = vmul.f32 %v1533, 1.0614054
        %v1598 = vmul.f32 %v1534, 1.0614054
        %v1599 = vmul.f32 %v1535, 1.0614054
        %v1600 = vmul.f32 %v1536, 1.0614054
        %v1601 = vmul.f32 %v1537, 1.0614054
        %v1602 = vmul.f32 %v1538, 1.0614054
        %v1603 = vmul.f32 %v1539, 1.0614054
        %v1604 = vmul.f32 %v1540, 1.0614054
        %v1605 = vmul.f32 %v1541, 1.0614054
        %v1606 = vmul.f32 %v1542, 1.0614054
        %v1607 = vmul.f32 %v1543, 1.0614054
        %v1608 = vmul.f32 %v1544, 1.0614054
        %v1609 = vmul.f32 %v1545, 1.0614054
        %v1610 = vmul.f32 %v1546, 1.0614054
        %v1611 = vmul.f32 %v1547, 1.0614054
        %v1612 = vmul.f32 %v1548, 1.0614054
        %v1613 = vmul.f32 %v1549, 1.0614054
        %v1614 = vmul.f32 %v1550, 1.0614054
        %v1615 = vmul.f32 %v1551, 1.0614054
        %v1616 = vmul.f32 %v1552, 1.0614054
        %v1617 = vmul.f32 %v1553, 1.0614054
        %v1618 = vadd.f32 %v1554, -1.4531521
        %v1619 = vadd.f32 %v1555, -1.4531521
        %v1620 = vadd.f32 %v1556, -1.4531521
        %v1621 = vadd.f32 %v1557, -1.4531521
        %v1622 = vadd.f32 %v1558, -1.4531521
        %v1623 = vadd.f32 %v1559, -1.4531521
        %v1624 = vadd.f32 %v1560, -1.4531521
        %v1625 = vadd.f32 %v1561, -1.4531521
        %v1626 = vadd.f32 %v1562, -1.4531521
        %v1627 = vadd.f32 %v1563, -1.4531521
        %v1628 = vadd.f32 %v1564, -1.4531521
        %v1629 = vadd.f32 %v1565, -1.4531521
        %v1630 = vadd.f32 %v1566, -1.4531521
        %v1631 = vadd.f32 %v1567, -1.4531521
        %v1632 = vadd.f32 %v1568, -1.4531521
        %v1633 = vadd.f32 %v1569, -1.4531521
        %v1634 = vadd.f32 %v1570, -1.4531521
        %v1635 = vadd.f32 %v1571, -1.4531521
        %v1636 = vadd.f32 %v1572, -1.4531521
        %v1637 = vadd.f32 %v1573, -1.4531521
        %v1638 = vadd.f32 %v1574, -1.4531521
        %v1639 = vadd.f32 %v1575, -1.4531521
        %v1640 = vadd.f32 %v1576, -1.4531521
        %v1641 = vadd.f32 %v1577, -1.4531521
        %v1642 = vadd.f32 %v1578, -1.4531521
        %v1643 = vadd.f32 %v1579, -1.4531521
        %v1644 = vadd.f32 %v1580, -1.4531521
        %v1645 = vadd.f32 %v1581, -1.4531521
        %v1646 = vadd.f32 %v1582, -1.4531521
        %v1647 = vadd.f32 %v1583, -1.4531521
        %v1648 = vadd.f32 %v1584, -1.4531521
        %v1649 = vadd.f32 %v1585, -1.4531521
        %v1650 = vadd.f32 %v1586, -1.4531521
        %v1651 = vadd.f32 %v1587, -1.4531521
        %v1652 = vadd.f32 %v1588, -1.4531521
        %v1653 = vadd.f32 %v1589, -1.4531521
        %v1654 = vadd.f32 %v1590, -1.4531521
        %v1655 = vadd.f32 %v1591, -1.4531521
        %v1656 = vadd.f32 %v1592, -1.4531521
        %v1657 = vadd.f32 %v1593, -1.4531521
        %v1658 = vadd.f32 %v1594, -1.4531521
        %v1659 = vadd.f32 %v1595, -1.4531521
        %v1660 = vadd.f32 %v1596, -1.4531521
        %v1661 = vadd.f32 %v1597, -1.4531521
        %v1662 = vadd.f32 %v1598, -1.4531521
        %v1663 = vadd.f32 %v1599, -1.4531521
        %v1664 = vadd.f32 %v1600, -1.4531521
        %v1665 = vadd.f32 %v1601, -1.4531521
        %v1666 = vadd.f32 %v1602, -1.4531521
        %v1667 = vadd.f32 %v1603, -1.4531521
        %v1668 = vadd.f32 %v1604, -1.4531521
        %v1669 = vadd.f32 %v1605, -1.4531521
        %v1670 = vadd.f32 %v1606, -1.4531521
        %v1671 = vadd.f32 %v1607, -1.4531521
        %v1672 = vadd.f32 %v1608, -1.4531521
        %v1673 = vadd.f32 %v1609, -1.4531521
        %v1674 = vadd.f32 %v1610, -1.4531521
        %v1675 = vadd.f32 %v1611, -1.4531521
        %v1676 = vadd.f32 %v1612, -1.4531521
        %v1677 = vadd.f32 %v1613, -1.4531521
        %v1678 = vadd.f32 %v1614, -1.4531521
        %v1679 = vadd.f32 %v1615, -1.4531521
        %v1680 = vadd.f32 %v1616, -1.4531521
        %v1681 = vadd.f32 %v1617, -1.4531521
        %v1682 = vmul.f32 %v1618, %v1490
        %v1683 = vmul.f32 %v1619, %v1491
        %v1684 = vmul.f32 %v1620, %v1492
        %v1685 = vmul.f32 %v1621, %v1493
        %v1686 = vmul.f32 %v1622, %v1494
        %v1687 = vmul.f32 %v1623, %v1495
        %v1688 = vmul.f32 %v1624, %v1496
        %v1689 = vmul.f32 %v1625, %v1497
        %v1690 = vmul.f32 %v1626, %v1498
        %v1691 = vmul.f32 %v1627, %v1499
        %v1692 = vmul.f32 %v1628, %v1500
        %v1693 = vmul.f32 %v1629, %v1501
        %v1694 = vmul.f32 %v1630, %v1502
        %v1695 = vmul.f32 %v1631, %v1503
        %v1696 = vmul.f32 %v1632, %v1504
        %v1697 = vmul.f32 %v1633, %v1505
        %v1698 = vmul.f32 %v1634, %v1506
        %v1699 = vmul.f32 %v1635, %v1507
        %v1700 = vmul.f32 %v1636, %v1508
        %v1701 = vmul.f32 %v1637, %v1509
        %v1702 = vmul.f32 %v1638, %v1510
        %v1703 = vmul.f32 %v1639, %v1511
        %v1704 = vmul.f32 %v1640, %v1512
        %v1705 = vmul.f32 %v1641, %v1513
        %v1706 = vmul.f32 %v1642, %v1514
        %v1707 = vmul.f32 %v1643, %v1515
        %v1708 = vmul.f32 %v1644, %v1516
        %v1709 = vmul.f32 %v1645, %v1517
        %v1710 = vmul.f32 %v1646, %v1518
        %v1711 = vmul.f32 %v1647, %v1519
        %v1712 = vmul.f32 %v1648, %v1520
        %v1713 = vmul.f32 %v1649, %v1521
        %v1714 = vmul.f32 %v1650, %v1522
        %v1715 = vmul.f32 %v1651, %v1523
        %v1716 = vmul.f32 %v1652, %v1524
        %v1717 = vmul.f32 %v1653, %v1525
        %v1718 = vmul.f32 %v1654, %v1526
        %v1719 = vmul.f32 %v1655, %v1527
        %v1720 = vmul.f32 %v1656, %v1528
        %v1721 = vmul.f32 %v1657, %v1529
        %v1722 = vmul.f32 %v1658, %v1530
        %v1723 = vmul.f32 %v1659, %v1531
        %v1724 = vmul.f32 %v1660, %v1532
        %v1725 = vmul.f32 %v1661, %v1533
        %v1726 = vmul.f32 %v1662, %v1534
        %v1727 = vmul.f32 %v1663, %v1535
        %v1728 = vmul.f32 %v1664, %v1536
        %v1729 = vmul.f32 %v1665, %v1537
        %v1730 = vmul.f32 %v1666, %v1538
        %v1731 = vmul.f32 %v1667, %v1539
        %v1732 = vmul.f32 %v1668, %v1540
        %v1733 = vmul.f32 %v1669, %v1541
        %v1734 = vmul.f32 %v1670, %v1542
        %v1735 = vmul.f32 %v1671, %v1543
        %v1736 = vmul.f32 %v1672, %v1544
        %v1737 = vmul.f32 %v1673, %v1545
        %v1738 = vmul.f32 %v1674, %v1546
        %v1739 = vmul.f32 %v1675, %v1547
        %v1740 = vmul.f32 %v1676, %v1548
        %v1741 = vmul.f32 %v1677, %v1549
        %v1742 = vmul.f32 %v1678, %v1550
        %v1743 = vmul.f32 %v1679, %v1551
        %v1744 = vmul.f32 %v1680, %v1552
        %v1745 = vmul.f32 %v1681, %v1553
        %v1746 = vadd.f32 %v1682, 1.4214138
        %v1747 = vadd.f32 %v1683, 1.4214138
        %v1748 = vadd.f32 %v1684, 1.4214138
        %v1749 = vadd.f32 %v1685, 1.4214138
        %v1750 = vadd.f32 %v1686, 1.4214138
        %v1751 = vadd.f32 %v1687, 1.4214138
        %v1752 = vadd.f32 %v1688, 1.4214138
        %v1753 = vadd.f32 %v1689, 1.4214138
        %v1754 = vadd.f32 %v1690, 1.4214138
        %v1755 = vadd.f32 %v1691, 1.4214138
        %v1756 = vadd.f32 %v1692, 1.4214138
        %v1757 = vadd.f32 %v1693, 1.4214138
        %v1758 = vadd.f32 %v1694, 1.4214138
        %v1759 = vadd.f32 %v1695, 1.4214138
        %v1760 = vadd.f32 %v1696, 1.4214138
        %v1761 = vadd.f32 %v1697, 1.4214138
        %v1762 = vadd.f32 %v1698, 1.4214138
        %v1763 = vadd.f32 %v1699, 1.4214138
        %v1764 = vadd.f32 %v1700, 1.4214138
        %v1765 = vadd.f32 %v1701, 1.4214138
        %v1766 = vadd.f32 %v1702, 1.4214138
        %v1767 = vadd.f32 %v1703, 1.4214138
        %v1768 = vadd.f32 %v1704, 1.4214138
        %v1769 = vadd.f32 %v1705, 1.4214138
        %v1770 = vadd.f32 %v1706, 1.4214138
        %v1771 = vadd.f32 %v1707, 1.4214138
        %v1772 = vadd.f32 %v1708, 1.4214138
        %v1773 = vadd.f32 %v1709, 1.4214138
        %v1774 = vadd.f32 %v1710, 1.4214138
        %v1775 = vadd.f32 %v1711, 1.4214138
        %v1776 = vadd.f32 %v1712, 1.4214138
        %v1777 = vadd.f32 %v1713, 1.4214138
        %v1778 = vadd.f32 %v1714, 1.4214138
        %v1779 = vadd.f32 %v1715, 1.4214138
        %v1780 = vadd.f32 %v1716, 1.4214138
        %v1781 = vadd.f32 %v1717, 1.4214138
        %v1782 = vadd.f32 %v1718, 1.4214138
        %v1783 = vadd.f32 %v1719, 1.4214138
        %v1784 = vadd.f32 %v1720, 1.4214138
        %v1785 = vadd.f32 %v1721, 1.4214138
        %v1786 = vadd.f32 %v1722, 1.4214138
        %v1787 = vadd.f32 %v1723, 1.4214138
        %v1788 = vadd.f32 %v1724, 1.4214138
        %v1789 = vadd.f32 %v1725, 1.4214138
        %v1790 = vadd.f32 %v1726, 1.4214138
        %v1791 = vadd.f32 %v1727, 1.4214138
        %v1792 = vadd.f32 %v1728, 1.4214138
        %v1793 = vadd.f32 %v1729, 1.4214138
        %v1794 = vadd.f32 %v1730, 1.4214138
        %v1795 = vadd.f32 %v1731, 1.4214138
        %v1796 = vadd.f32 %v1732, 1.4214138
        %v1797 = vadd.f32 %v1733, 1.4214138
        %v1798 = vadd.f32 %v1734, 1.4214138
        %v1799 = vadd.f32 %v1735, 1.4214138
        %v1800 = vadd.f32 %v1736, 1.4214138
        %v1801 = vadd.f32 %v1737, 1.4214138
        %v1802 = vadd.f32 %v1738, 1.4214138
        %v1803 = vadd.f32 %v1739, 1.4214138
        %v1804 = vadd.f32 %v1740, 1.4214138
        %v1805 = vadd.f32 %v1741, 1.4214138
        %v1806 = vadd.f32 %v1742, 1.4214138
        %v1807 = vadd.f32 %v1743, 1.4214138
        %v1808 = vadd.f32 %v1744, 1.4214138
        %v1809 = vadd.f32 %v1745, 1.4214138
        %v1810 = vmul.f32 %v1746, %v1490
        %v1811 = vmul.f32 %v1747, %v1491
        %v1812 = vmul.f32 %v1748, %v1492
        %v1813 = vmul.f32 %v1749, %v1493
        %v1814 = vmul.f32 %v1750, %v1494
        %v1815 = vmul.f32 %v1751, %v1495
        %v1816 = vmul.f32 %v1752, %v1496
        %v1817 = vmul.f32 %v1753, %v1497
        %v1818 = vmul.f32 %v1754, %v1498
        %v1819 = vmul.f32 %v1755, %v1499
        %v1820 = vmul.f32 %v1756, %v1500
        %v1821 = vmul.f32 %v1757, %v1501
        %v1822 = vmul.f32 %v1758, %v1502
        %v1823 = vmul.f32 %v1759, %v1503
        %v1824 = vmul.f32 %v1760, %v1504
        %v1825 = vmul.f32 %v1761, %v1505
        %v1826 = vmul.f32 %v1762, %v1506
        %v1827 = vmul.f32 %v1763, %v1507
        %v1828 = vmul.f32 %v1764, %v1508
        %v1829 = vmul.f32 %v1765, %v1509
        %v1830 = vmul.f32 %v1766, %v1510
        %v1831 = vmul.f32 %v1767, %v1511
        %v1832 = vmul.f32 %v1768, %v1512
        %v1833 = vmul.f32 %v1769, %v1513
        %v1834 = vmul.f32 %v1770, %v1514
        %v1835 = vmul.f32 %v1771, %v1515
        %v1836 = vmul.f32 %v1772, %v1516
        %v1837 = vmul.f32 %v1773, %v1517
        %v1838 = vmul.f32 %v1774, %v1518
        %v1839 = vmul.f32 %v1775, %v1519
        %v1840 = vmul.f32 %v1776, %v1520
        %v1841 = vmul.f32 %v1777, %v1521
        %v1842 = vmul.f32 %v1778, %v1522
        %v1843 = vmul.f32 %v1779, %v1523
        %v1844 = vmul.f32 %v1780, %v1524
        %v1845 = vmul.f32 %v1781, %v1525
        %v1846 = vmul.f32 %v1782, %v1526
        %v1847 = vmul.f32 %v1783, %v1527
        %v1848 = vmul.f32 %v1784, %v1528
        %v1849 = vmul.f32 %v1785, %v1529
        %v1850 = vmul.f32 %v1786, %v1530
        %v1851 = vmul.f32 %v1787, %v1531
        %v1852 = vmul.f32 %v1788, %v1532
        %v1853 = vmul.f32 %v1789, %v1533
        %v1854 = vmul.f32 %v1790, %v1534
        %v1855 = vmul.f32 %v1791, %v1535
        %v1856 = vmul.f32 %v1792, %v1536
        %v1857 = vmul.f32 %v1793, %v1537
        %v1858 = vmul.f32 %v1794, %v1538
        %v1859 = vmul.f32 %v1795, %v1539
        %v1860 = vmul.f32 %v1796, %v1540
        %v1861 = vmul.f32 %v1797, %v1541
        %v1862 = vmul.f32 %v1798, %v1542
        %v1863 = vmul.f32 %v1799, %v1543
        %v1864 = vmul.f32 %v1800, %v1544
        %v1865 = vmul.f32 %v1801, %v1545
        %v1866 = vmul.f32 %v1802, %v1546
        %v1867 = vmul.f32 %v1803, %v1547
        %v1868 = vmul.f32 %v1804, %v1548
        %v1869 = vmul.f32 %v1805, %v1549
        %v1870 = vmul.f32 %v1806, %v1550
        %v1871 = vmul.f32 %v1807, %v1551
        %v1872 = vmul.f32 %v1808, %v1552
        %v1873 = vmul.f32 %v1809, %v1553
        %v1874 = vadd.f32 %v1810, -0.28449672
        %v1875 = vadd.f32 %v1811, -0.28449672
        %v1876 = vadd.f32 %v1812, -0.28449672
        %v1877 = vadd.f32 %v1813, -0.28449672
        %v1878 = vadd.f32 %v1814, -0.28449672
        %v1879 = vadd.f32 %v1815, -0.28449672
        %v1880 = vadd.f32 %v1816, -0.28449672
        %v1881 = vadd.f32 %v1817, -0.28449672
        %v1882 = vadd.f32 %v1818, -0.28449672
        %v1883 = vadd.f32 %v1819, -0.28449672
        %v1884 = vadd.f32 %v1820, -0.28449672
        %v1885 = vadd.f32 %v1821, -0.28449672
        %v1886 = vadd.f32 %v1822, -0.28449672
        %v1887 = vadd.f32 %v1823, -0.28449672
        %v1888 = vadd.f32 %v1824, -0.28449672
        %v1889 = vadd.f32 %v1825, -0.28449672
        %v1890 = vadd.f32 %v1826, -0.28449672
        %v1891 = vadd.f32 %v1827, -0.28449672
        %v1892 = vadd.f32 %v1828, -0.28449672
        %v1893 = vadd.f32 %v1829, -0.28449672
        %v1894 = vadd.f32 %v1830, -0.28449672
        %v1895 = vadd.f32 %v1831, -0.28449672
        %v1896 = vadd.f32 %v1832, -0.28449672
        %v1897 = vadd.f32 %v1833, -0.28449672
        %v1898 = vadd.f32 %v1834, -0.28449672
        %v1899 = vadd.f32 %v1835, -0.28449672
        %v1900 = vadd.f32 %v1836, -0.28449672
        %v1901 = vadd.f32 %v1837, -0.28449672
        %v1902 = vadd.f32 %v1838, -0.28449672
        %v1903 = vadd.f32 %v1839, -0.28449672
        %v1904 = vadd.f32 %v1840, -0.28449672
        %v1905 = vadd.f32 %v1841, -0.28449672
        %v1906 = vadd.f32 %v1842, -0.28449672
        %v1907 = vadd.f32 %v1843, -0.28449672
        %v1908 = vadd.f32 %v1844, -0.28449672
        %v1909 = vadd.f32 %v1845, -0.28449672
        %v1910 = vadd.f32 %v1846, -0.28449672
        %v1911 = vadd.f32 %v1847, -0.28449672
        %v1912 = vadd.f32 %v1848, -0.28449672
        %v1913 = vadd.f32 %v1849, -0.28449672
        %v1914 = vadd.f32 %v1850, -0.28449672
        %v1915 = vadd.f32 %v1851, -0.28449672
        %v1916 = vadd.f32 %v1852, -0.28449672
        %v1917 = vadd.f32 %v1853, -0.28449672
        %v1918 = vadd.f32 %v1854, -0.28449672
        %v1919 = vadd.f32 %v1855, -0.28449672
        %v1920 = vadd.f32 %v1856, -0.28449672
        %v1921 = vadd.f32 %v1857, -0.28449672
        %v1922 = vadd.f32 %v1858, -0.28449672
        %v1923 = vadd.f32 %v1859, -0.28449672
        %v1924 = vadd.f32 %v1860, -0.28449672
        %v1925 = vadd.f32 %v1861, -0.28449672
        %v1926 = vadd.f32 %v1862, -0.28449672
        %v1927 = vadd.f32 %v1863, -0.28449672
        %v1928 = vadd.f32 %v1864, -0.28449672
        %v1929 = vadd.f32 %v1865, -0.28449672
        %v1930 = vadd.f32 %v1866, -0.28449672
        %v1931 = vadd.f32 %v1867, -0.28449672
        %v1932 = vadd.f32 %v1868, -0.28449672
        %v1933 = vadd.f32 %v1869, -0.28449672
        %v1934 = vadd.f32 %v1870, -0.28449672
        %v1935 = vadd.f32 %v1871, -0.28449672
        %v1936 = vadd.f32 %v1872, -0.28449672
        %v1937 = vadd.f32 %v1873, -0.28449672
        %v1938 = vmul.f32 %v1874, %v1490
        %v1939 = vmul.f32 %v1875, %v1491
        %v1940 = vmul.f32 %v1876, %v1492
        %v1941 = vmul.f32 %v1877, %v1493
        %v1942 = vmul.f32 %v1878, %v1494
        %v1943 = vmul.f32 %v1879, %v1495
        %v1944 = vmul.f32 %v1880, %v1496
        %v1945 = vmul.f32 %v1881, %v1497
        %v1946 = vmul.f32 %v1882, %v1498
        %v1947 = vmul.f32 %v1883, %v1499
        %v1948 = vmul.f32 %v1884, %v1500
        %v1949 = vmul.f32 %v1885, %v1501
        %v1950 = vmul.f32 %v1886, %v1502
        %v1951 = vmul.f32 %v1887, %v1503
        %v1952 = vmul.f32 %v1888, %v1504
        %v1953 = vmul.f32 %v1889, %v1505
        %v1954 = vmul.f32 %v1890, %v1506
        %v1955 = vmul.f32 %v1891, %v1507
        %v1956 = vmul.f32 %v1892, %v1508
        %v1957 = vmul.f32 %v1893, %v1509
        %v1958 = vmul.f32 %v1894, %v1510
        %v1959 = vmul.f32 %v1895, %v1511
        %v1960 = vmul.f32 %v1896, %v1512
        %v1961 = vmul.f32 %v1897, %v1513
        %v1962 = vmul.f32 %v1898, %v1514
        %v1963 = vmul.f32 %v1899, %v1515
        %v1964 = vmul.f32 %v1900, %v1516
        %v1965 = vmul.f32 %v1901, %v1517
        %v1966 = vmul.f32 %v1902, %v1518
        %v1967 = vmul.f32 %v1903, %v1519
        %v1968 = vmul.f32 %v1904, %v1520
        %v1969 = vmul.f32 %v1905, %v1521
        %v1970 = vmul.f32 %v1906, %v1522
        %v1971 = vmul.f32 %v1907, %v1523
        %v1972 = vmul.f32 %v1908, %v1524
        %v1973 = vmul.f32 %v1909, %v1525
        %v1974 = vmul.f32 %v1910, %v1526
        %v1975 = vmul.f32 %v1911, %v1527
        %v1976 = vmul.f32 %v1912, %v1528
        %v1977 = vmul.f32 %v1913, %v1529
        %v1978 = vmul.f32 %v1914, %v1530
        %v1979 = vmul.f32 %v1915, %v1531
        %v1980 = vmul.f32 %v1916, %v1532
        %v1981 = vmul.f32 %v1917, %v1533
        %v1982 = vmul.f32 %v1918, %v1534
        %v1983 = vmul.f32 %v1919, %v1535
        %v1984 = vmul.f32 %v1920, %v1536
        %v1985 = vmul.f32 %v1921, %v1537
        %v1986 = vmul.f32 %v1922, %v1538
        %v1987 = vmul.f32 %v1923, %v1539
        %v1988 = vmul.f32 %v1924, %v1540
        %v1989 = vmul.f32 %v1925, %v1541
        %v1990 = vmul.f32 %v1926, %v1542
        %v1991 = vmul.f32 %v1927, %v1543
        %v1992 = vmul.f32 %v1928, %v1544
        %v1993 = vmul.f32 %v1929, %v1545
        %v1994 = vmul.f32 %v1930, %v1546
        %v1995 = vmul.f32 %v1931, %v1547
        %v1996 = vmul.f32 %v1932, %v1548
        %v1997 = vmul.f32 %v1933, %v1549
        %v1998 = vmul.f32 %v1934, %v1550
        %v1999 = vmul.f32 %v1935, %v1551
        %v2000 = vmul.f32 %v1936, %v1552
        %v2001 = vmul.f32 %v1937, %v1553
        %v2002 = vadd.f32 %v1938, 0.2548296
        %v2003 = vadd.f32 %v1939, 0.2548296
        %v2004 = vadd.f32 %v1940, 0.2548296
        %v2005 = vadd.f32 %v1941, 0.2548296
        %v2006 = vadd.f32 %v1942, 0.2548296
        %v2007 = vadd.f32 %v1943, 0.2548296
        %v2008 = vadd.f32 %v1944, 0.2548296
        %v2009 = vadd.f32 %v1945, 0.2548296
        %v2010 = vadd.f32 %v1946, 0.2548296
        %v2011 = vadd.f32 %v1947, 0.2548296
        %v2012 = vadd.f32 %v1948, 0.2548296
        %v2013 = vadd.f32 %v1949, 0.2548296
        %v2014 = vadd.f32 %v1950, 0.2548296
        %v2015 = vadd.f32 %v1951, 0.2548296
        %v2016 = vadd.f32 %v1952, 0.2548296
        %v2017 = vadd.f32 %v1953, 0.2548296
        %v2018 = vadd.f32 %v1954, 0.2548296
        %v2019 = vadd.f32 %v1955, 0.2548296
        %v2020 = vadd.f32 %v1956, 0.2548296
        %v2021 = vadd.f32 %v1957, 0.2548296
        %v2022 = vadd.f32 %v1958, 0.2548296
        %v2023 = vadd.f32 %v1959, 0.2548296
        %v2024 = vadd.f32 %v1960, 0.2548296
        %v2025 = vadd.f32 %v1961, 0.2548296
        %v2026 = vadd.f32 %v1962, 0.2548296
        %v2027 = vadd.f32 %v1963, 0.2548296
        %v2028 = vadd.f32 %v1964, 0.2548296
        %v2029 = vadd.f32 %v1965, 0.2548296
        %v2030 = vadd.f32 %v1966, 0.2548296
        %v2031 = vadd.f32 %v1967, 0.2548296
        %v2032 = vadd.f32 %v1968, 0.2548296
        %v2033 = vadd.f32 %v1969, 0.2548296
        %v2034 = vadd.f32 %v1970, 0.2548296
        %v2035 = vadd.f32 %v1971, 0.2548296
        %v2036 = vadd.f32 %v1972, 0.2548296
        %v2037 = vadd.f32 %v1973, 0.2548296
        %v2038 = vadd.f32 %v1974, 0.2548296
        %v2039 = vadd.f32 %v1975, 0.2548296
        %v2040 = vadd.f32 %v1976, 0.2548296
        %v2041 = vadd.f32 %v1977, 0.2548296
        %v2042 = vadd.f32 %v1978, 0.2548296
        %v2043 = vadd.f32 %v1979, 0.2548296
        %v2044 = vadd.f32 %v1980, 0.2548296
        %v2045 = vadd.f32 %v1981, 0.2548296
        %v2046 = vadd.f32 %v1982, 0.2548296
        %v2047 = vadd.f32 %v1983, 0.2548296
        %v2048 = vadd.f32 %v1984, 0.2548296
        %v2049 = vadd.f32 %v1985, 0.2548296
        %v2050 = vadd.f32 %v1986, 0.2548296
        %v2051 = vadd.f32 %v1987, 0.2548296
        %v2052 = vadd.f32 %v1988, 0.2548296
        %v2053 = vadd.f32 %v1989, 0.2548296
        %v2054 = vadd.f32 %v1990, 0.2548296
        %v2055 = vadd.f32 %v1991, 0.2548296
        %v2056 = vadd.f32 %v1992, 0.2548296
        %v2057 = vadd.f32 %v1993, 0.2548296
        %v2058 = vadd.f32 %v1994, 0.2548296
        %v2059 = vadd.f32 %v1995, 0.2548296
        %v2060 = vadd.f32 %v1996, 0.2548296
        %v2061 = vadd.f32 %v1997, 0.2548296
        %v2062 = vadd.f32 %v1998, 0.2548296
        %v2063 = vadd.f32 %v1999, 0.2548296
        %v2064 = vadd.f32 %v2000, 0.2548296
        %v2065 = vadd.f32 %v2001, 0.2548296
        %v2066 = vmul.f32 %v2002, %v1490
        %v2067 = vmul.f32 %v2003, %v1491
        %v2068 = vmul.f32 %v2004, %v1492
        %v2069 = vmul.f32 %v2005, %v1493
        %v2070 = vmul.f32 %v2006, %v1494
        %v2071 = vmul.f32 %v2007, %v1495
        %v2072 = vmul.f32 %v2008, %v1496
        %v2073 = vmul.f32 %v2009, %v1497
        %v2074 = vmul.f32 %v2010, %v1498
        %v2075 = vmul.f32 %v2011, %v1499
        %v2076 = vmul.f32 %v2012, %v1500
        %v2077 = vmul.f32 %v2013, %v1501
        %v2078 = vmul.f32 %v2014, %v1502
        %v2079 = vmul.f32 %v2015, %v1503
        %v2080 = vmul.f32 %v2016, %v1504
        %v2081 = vmul.f32 %v2017, %v1505
        %v2082 = vmul.f32 %v2018, %v1506
        %v2083 = vmul.f32 %v2019, %v1507
        %v2084 = vmul.f32 %v2020, %v1508
        %v2085 = vmul.f32 %v2021, %v1509
        %v2086 = vmul.f32 %v2022, %v1510
        %v2087 = vmul.f32 %v2023, %v1511
        %v2088 = vmul.f32 %v2024, %v1512
        %v2089 = vmul.f32 %v2025, %v1513
        %v2090 = vmul.f32 %v2026, %v1514
        %v2091 = vmul.f32 %v2027, %v1515
        %v2092 = vmul.f32 %v2028, %v1516
        %v2093 = vmul.f32 %v2029, %v1517
        %v2094 = vmul.f32 %v2030, %v1518
        %v2095 = vmul.f32 %v2031, %v1519
        %v2096 = vmul.f32 %v2032, %v1520
        %v2097 = vmul.f32 %v2033, %v1521
        %v2098 = vmul.f32 %v2034, %v1522
        %v2099 = vmul.f32 %v2035, %v1523
        %v2100 = vmul.f32 %v2036, %v1524
        %v2101 = vmul.f32 %v2037, %v1525
        %v2102 = vmul.f32 %v2038, %v1526
        %v2103 = vmul.f32 %v2039, %v1527
        %v2104 = vmul.f32 %v2040, %v1528
        %v2105 = vmul.f32 %v2041, %v1529
        %v2106 = vmul.f32 %v2042, %v1530
        %v2107 = vmul.f32 %v2043, %v1531
        %v2108 = vmul.f32 %v2044, %v1532
        %v2109 = vmul.f32 %v2045, %v1533
        %v2110 = vmul.f32 %v2046, %v1534
        %v2111 = vmul.f32 %v2047, %v1535
        %v2112 = vmul.f32 %v2048, %v1536
        %v2113 = vmul.f32 %v2049, %v1537
        %v2114 = vmul.f32 %v2050, %v1538
        %v2115 = vmul.f32 %v2051, %v1539
        %v2116 = vmul.f32 %v2052, %v1540
        %v2117 = vmul.f32 %v2053, %v1541
        %v2118 = vmul.f32 %v2054, %v1542
        %v2119 = vmul.f32 %v2055, %v1543
        %v2120 = vmul.f32 %v2056, %v1544
        %v2121 = vmul.f32 %v2057, %v1545
        %v2122 = vmul.f32 %v2058, %v1546
        %v2123 = vmul.f32 %v2059, %v1547
        %v2124 = vmul.f32 %v2060, %v1548
        %v2125 = vmul.f32 %v2061, %v1549
        %v2126 = vmul.f32 %v2062, %v1550
        %v2127 = vmul.f32 %v2063, %v1551
        %v2128 = vmul.f32 %v2064, %v1552
        %v2129 = vmul.f32 %v2065, %v1553
        %v2130 = vsub.f32 0.0, %v1298
        %v2131 = vsub.f32 0.0, %v1299
        %v2132 = vsub.f32 0.0, %v1300
        %v2133 = vsub.f32 0.0, %v1301
        %v2134 = vsub.f32 0.0, %v1302
        %v2135 = vsub.f32 0.0, %v1303
        %v2136 = vsub.f32 0.0, %v1304
        %v2137 = vsub.f32 0.0, %v1305
        %v2138 = vsub.f32 0.0, %v1306
        %v2139 = vsub.f32 0.0, %v1307
        %v2140 = vsub.f32 0.0, %v1308
        %v2141 = vsub.f32 0.0, %v1309
        %v2142 = vsub.f32 0.0, %v1310
        %v2143 = vsub.f32 0.0, %v1311
        %v2144 = vsub.f32 0.0, %v1312
        %v2145 = vsub.f32 0.0, %v1313
        %v2146 = vsub.f32 0.0, %v1314
        %v2147 = vsub.f32 0.0, %v1315
        %v2148 = vsub.f32 0.0, %v1316
        %v2149 = vsub.f32 0.0, %v1317
        %v2150 = vsub.f32 0.0, %v1318
        %v2151 = vsub.f32 0.0, %v1319
        %v2152 = vsub.f32 0.0, %v1320
        %v2153 = vsub.f32 0.0, %v1321
        %v2154 = vsub.f32 0.0, %v1322
        %v2155 = vsub.f32 0.0, %v1323
        %v2156 = vsub.f32 0.0, %v1324
        %v2157 = vsub.f32 0.0, %v1325
        %v2158 = vsub.f32 0.0, %v1326
        %v2159 = vsub.f32 0.0, %v1327
        %v2160 = vsub.f32 0.0, %v1328
        %v2161 = vsub.f32 0.0, %v1329
        %v2162 = vsub.f32 0.0, %v1330
        %v2163 = vsub.f32 0.0, %v1331
        %v2164 = vsub.f32 0.0, %v1332
        %v2165 = vsub.f32 0.0, %v1333
        %v2166 = vsub.f32 0.0, %v1334
        %v2167 = vsub.f32 0.0, %v1335
        %v2168 = vsub.f32 0.0, %v1336
        %v2169 = vsub.f32 0.0, %v1337
        %v2170 = vsub.f32 0.0, %v1338
        %v2171 = vsub.f32 0.0, %v1339
        %v2172 = vsub.f32 0.0, %v1340
        %v2173 = vsub.f32 0.0, %v1341
        %v2174 = vsub.f32 0.0, %v1342
        %v2175 = vsub.f32 0.0, %v1343
        %v2176 = vsub.f32 0.0, %v1344
        %v2177 = vsub.f32 0.0, %v1345
        %v2178 = vsub.f32 0.0, %v1346
        %v2179 = vsub.f32 0.0, %v1347
        %v2180 = vsub.f32 0.0, %v1348
        %v2181 = vsub.f32 0.0, %v1349
        %v2182 = vsub.f32 0.0, %v1350
        %v2183 = vsub.f32 0.0, %v1351
        %v2184 = vsub.f32 0.0, %v1352
        %v2185 = vsub.f32 0.0, %v1353
        %v2186 = vsub.f32 0.0, %v1354
        %v2187 = vsub.f32 0.0, %v1355
        %v2188 = vsub.f32 0.0, %v1356
        %v2189 = vsub.f32 0.0, %v1357
        %v2190 = vsub.f32 0.0, %v1358
        %v2191 = vsub.f32 0.0, %v1359
        %v2192 = vsub.f32 0.0, %v1360
        %v2193 = vsub.f32 0.0, %v1361
        %v2194 = vmul.f32 %v2130, %v1298
        %v2195 = vmul.f32 %v2131, %v1299
        %v2196 = vmul.f32 %v2132, %v1300
        %v2197 = vmul.f32 %v2133, %v1301
        %v2198 = vmul.f32 %v2134, %v1302
        %v2199 = vmul.f32 %v2135, %v1303
        %v2200 = vmul.f32 %v2136, %v1304
        %v2201 = vmul.f32 %v2137, %v1305
        %v2202 = vmul.f32 %v2138, %v1306
        %v2203 = vmul.f32 %v2139, %v1307
        %v2204 = vmul.f32 %v2140, %v1308
        %v2205 = vmul.f32 %v2141, %v1309
        %v2206 = vmul.f32 %v2142, %v1310
        %v2207 = vmul.f32 %v2143, %v1311
        %v2208 = vmul.f32 %v2144, %v1312
        %v2209 = vmul.f32 %v2145, %v1313
        %v2210 = vmul.f32 %v2146, %v1314
        %v2211 = vmul.f32 %v2147, %v1315
        %v2212 = vmul.f32 %v2148, %v1316
        %v2213 = vmul.f32 %v2149, %v1317
        %v2214 = vmul.f32 %v2150, %v1318
        %v2215 = vmul.f32 %v2151, %v1319
        %v2216 = vmul.f32 %v2152, %v1320
        %v2217 = vmul.f32 %v2153, %v1321
        %v2218 = vmul.f32 %v2154, %v1322
        %v2219 = vmul.f32 %v2155, %v1323
        %v2220 = vmul.f32 %v2156, %v1324
        %v2221 = vmul.f32 %v2157, %v1325
        %v2222 = vmul.f32 %v2158, %v1326
        %v2223 = vmul.f32 %v2159, %v1327
        %v2224 = vmul.f32 %v2160, %v1328
        %v2225 = vmul.f32 %v2161, %v1329
        %v2226 = vmul.f32 %v2162, %v1330
        %v2227 = vmul.f32 %v2163, %v1331
        %v2228 = vmul.f32 %v2164, %v1332
        %v2229 = vmul.f32 %v2165, %v1333
        %v2230 = vmul.f32 %v2166, %v1334
        %v2231 = vmul.f32 %v2167, %v1335
        %v2232 = vmul.f32 %v2168, %v1336
        %v2233 = vmul.f32 %v2169, %v1337
        %v2234 = vmul.f32 %v2170, %v1338
        %v2235 = vmul.f32 %v2171, %v1339
        %v2236 = vmul.f32 %v2172, %v1340
        %v2237 = vmul.f32 %v2173, %v1341
        %v2238 = vmul.f32 %v2174, %v1342
        %v2239 = vmul.f32 %v2175, %v1343
        %v2240 = vmul.f32 %v2176, %v1344
        %v2241 = vmul.f32 %v2177, %v1345
        %v2242 = vmul.f32 %v2178, %v1346
        %v2243 = vmul.f32 %v2179, %v1347
        %v2244 = vmul.f32 %v2180, %v1348
        %v2245 = vmul.f32 %v2181, %v1349
        %v2246 = vmul.f32 %v2182, %v1350
        %v2247 = vmul.f32 %v2183, %v1351
        %v2248 = vmul.f32 %v2184, %v1352
        %v2249 = vmul.f32 %v2185, %v1353
        %v2250 = vmul.f32 %v2186, %v1354
        %v2251 = vmul.f32 %v2187, %v1355
        %v2252 = vmul.f32 %v2188, %v1356
        %v2253 = vmul.f32 %v2189, %v1357
        %v2254 = vmul.f32 %v2190, %v1358
        %v2255 = vmul.f32 %v2191, %v1359
        %v2256 = vmul.f32 %v2192, %v1360
        %v2257 = vmul.f32 %v2193, %v1361
        %v2258 = vmul.f32 %v2194, 1.442695
        %v2259 = vpow.pop %v2258
        %v2260 = vmul.f32 %v2195, 1.442695
        %v2261 = vpow.pop %v2260
        %v2262 = vmul.f32 %v2196, 1.442695
        %v2263 = vpow.pop %v2262
        %v2264 = vmul.f32 %v2197, 1.442695
        %v2265 = vpow.pop %v2264
        %v2266 = vmul.f32 %v2198, 1.442695
        %v2267 = vpow.pop %v2266
        %v2268 = vmul.f32 %v2199, 1.442695
        %v2269 = vpow.pop %v2268
        %v2270 = vmul.f32 %v2200, 1.442695
        %v2271 = vpow.pop %v2270
        %v2272 = vmul.f32 %v2201, 1.442695
        %v2273 = vpow.pop %v2272
        %v2274 = vmul.f32 %v2202, 1.442695
        %v2275 = vpow.pop %v2274
        %v2276 = vmul.f32 %v2203, 1.442695
        %v2277 = vpow.pop %v2276
        %v2278 = vmul.f32 %v2204, 1.442695
        %v2279 = vpow.pop %v2278
        %v2280 = vmul.f32 %v2205, 1.442695
        %v2281 = vpow.pop %v2280
        %v2282 = vmul.f32 %v2206, 1.442695
        %v2283 = vpow.pop %v2282
        %v2284 = vmul.f32 %v2207, 1.442695
        %v2285 = vpow.pop %v2284
        %v2286 = vmul.f32 %v2208, 1.442695
        %v2287 = vpow.pop %v2286
        %v2288 = vmul.f32 %v2209, 1.442695
        %v2289 = vpow.pop %v2288
        %v2290 = vmul.f32 %v2210, 1.442695
        %v2291 = vpow.pop %v2290
        %v2292 = vmul.f32 %v2211, 1.442695
        %v2293 = vpow.pop %v2292
        %v2294 = vmul.f32 %v2212, 1.442695
        %v2295 = vpow.pop %v2294
        %v2296 = vmul.f32 %v2213, 1.442695
        %v2297 = vpow.pop %v2296
        %v2298 = vmul.f32 %v2214, 1.442695
        %v2299 = vpow.pop %v2298
        %v2300 = vmul.f32 %v2215, 1.442695
        %v2301 = vpow.pop %v2300
        %v2302 = vmul.f32 %v2216, 1.442695
        %v2303 = vpow.pop %v2302
        %v2304 = vmul.f32 %v2217, 1.442695
        %v2305 = vpow.pop %v2304
        %v2306 = vmul.f32 %v2218, 1.442695
        %v2307 = vpow.pop %v2306
        %v2308 = vmul.f32 %v2219, 1.442695
        %v2309 = vpow.pop %v2308
        %v2310 = vmul.f32 %v2220, 1.442695
        %v2311 = vpow.pop %v2310
        %v2312 = vmul.f32 %v2221, 1.442695
        %v2313 = vpow.pop %v2312
        %v2314 = vmul.f32 %v2222, 1.442695
        %v2315 = vpow.pop %v2314
        %v2316 = vmul.f32 %v2223, 1.442695
        %v2317 = vpow.pop %v2316
        %v2318 = vmul.f32 %v2224, 1.442695
        %v2319 = vpow.pop %v2318
        %v2320 = vmul.f32 %v2225, 1.442695
        %v2321 = vpow.pop %v2320
        %v2322 = vmul.f32 %v2226, 1.442695
        %v2323 = vpow.pop %v2322
        %v2324 = vmul.f32 %v2227, 1.442695
        %v2325 = vpow.pop %v2324
        %v2326 = vmul.f32 %v2228, 1.442695
        %v2327 = vpow.pop %v2326
        %v2328 = vmul.f32 %v2229, 1.442695
        %v2329 = vpow.pop %v2328
        %v2330 = vmul.f32 %v2230, 1.442695
        %v2331 = vpow.pop %v2330
        %v2332 = vmul.f32 %v2231, 1.442695
        %v2333 = vpow.pop %v2332
        %v2334 = vmul.f32 %v2232, 1.442695
        %v2335 = vpow.pop %v2334
        %v2336 = vmul.f32 %v2233, 1.442695
        %v2337 = vpow.pop %v2336
        %v2338 = vmul.f32 %v2234, 1.442695
        %v2339 = vpow.pop %v2338
        %v2340 = vmul.f32 %v2235, 1.442695
        %v2341 = vpow.pop %v2340
        %v2342 = vmul.f32 %v2236, 1.442695
        %v2343 = vpow.pop %v2342
        %v2344 = vmul.f32 %v2237, 1.442695
        %v2345 = vpow.pop %v2344
        %v2346 = vmul.f32 %v2238, 1.442695
        %v2347 = vpow.pop %v2346
        %v2348 = vmul.f32 %v2239, 1.442695
        %v2349 = vpow.pop %v2348
        %v2350 = vmul.f32 %v2240, 1.442695
        %v2351 = vpow.pop %v2350
        %v2352 = vmul.f32 %v2241, 1.442695
        %v2353 = vpow.pop %v2352
        %v2354 = vmul.f32 %v2242, 1.442695
        %v2355 = vpow.pop %v2354
        %v2356 = vmul.f32 %v2243, 1.442695
        %v2357 = vpow.pop %v2356
        %v2358 = vmul.f32 %v2244, 1.442695
        %v2359 = vpow.pop %v2358
        %v2360 = vmul.f32 %v2245, 1.442695
        %v2361 = vpow.pop %v2360
        %v2362 = vmul.f32 %v2246, 1.442695
        %v2363 = vpow.pop %v2362
        %v2364 = vmul.f32 %v2247, 1.442695
        %v2365 = vpow.pop %v2364
        %v2366 = vmul.f32 %v2248, 1.442695
        %v2367 = vpow.pop %v2366
        %v2368 = vmul.f32 %v2249, 1.442695
        %v2369 = vpow.pop %v2368
        %v2370 = vmul.f32 %v2250, 1.442695
        %v2371 = vpow.pop %v2370
        %v2372 = vmul.f32 %v2251, 1.442695
        %v2373 = vpow.pop %v2372
        %v2374 = vmul.f32 %v2252, 1.442695
        %v2375 = vpow.pop %v2374
        %v2376 = vmul.f32 %v2253, 1.442695
        %v2377 = vpow.pop %v2376
        %v2378 = vmul.f32 %v2254, 1.442695
        %v2379 = vpow.pop %v2378
        %v2380 = vmul.f32 %v2255, 1.442695
        %v2381 = vpow.pop %v2380
        %v2382 = vmul.f32 %v2256, 1.442695
        %v2383 = vpow.pop %v2382
        %v2384 = vmul.f32 %v2257, 1.442695
        %v2385 = vpow.pop %v2384
        %v2386 = vmul.f32 %v2066, %v2259
        %v2387 = vmul.f32 %v2067, %v2261
        %v2388 = vmul.f32 %v2068, %v2263
        %v2389 = vmul.f32 %v2069, %v2265
        %v2390 = vmul.f32 %v2070, %v2267
        %v2391 = vmul.f32 %v2071, %v2269
        %v2392 = vmul.f32 %v2072, %v2271
        %v2393 = vmul.f32 %v2073, %v2273
        %v2394 = vmul.f32 %v2074, %v2275
        %v2395 = vmul.f32 %v2075, %v2277
        %v2396 = vmul.f32 %v2076, %v2279
        %v2397 = vmul.f32 %v2077, %v2281
        %v2398 = vmul.f32 %v2078, %v2283
        %v2399 = vmul.f32 %v2079, %v2285
        %v2400 = vmul.f32 %v2080, %v2287
        %v2401 = vmul.f32 %v2081, %v2289
        %v2402 = vmul.f32 %v2082, %v2291
        %v2403 = vmul.f32 %v2083, %v2293
        %v2404 = vmul.f32 %v2084, %v2295
        %v2405 = vmul.f32 %v2085, %v2297
        %v2406 = vmul.f32 %v2086, %v2299
        %v2407 = vmul.f32 %v2087, %v2301
        %v2408 = vmul.f32 %v2088, %v2303
        %v2409 = vmul.f32 %v2089, %v2305
        %v2410 = vmul.f32 %v2090, %v2307
        %v2411 = vmul.f32 %v2091, %v2309
        %v2412 = vmul.f32 %v2092, %v2311
        %v2413 = vmul.f32 %v2093, %v2313
        %v2414 = vmul.f32 %v2094, %v2315
        %v2415 = vmul.f32 %v2095, %v2317
        %v2416 = vmul.f32 %v2096, %v2319
        %v2417 = vmul.f32 %v2097, %v2321
        %v2418 = vmul.f32 %v2098, %v2323
        %v2419 = vmul.f32 %v2099, %v2325
        %v2420 = vmul.f32 %v2100, %v2327
        %v2421 = vmul.f32 %v2101, %v2329
        %v2422 = vmul.f32 %v2102, %v2331
        %v2423 = vmul.f32 %v2103, %v2333
        %v2424 = vmul.f32 %v2104, %v2335
        %v2425 = vmul.f32 %v2105, %v2337
        %v2426 = vmul.f32 %v2106, %v2339
        %v2427 = vmul.f32 %v2107, %v2341
        %v2428 = vmul.f32 %v2108, %v2343
        %v2429 = vmul.f32 %v2109, %v2345
        %v2430 = vmul.f32 %v2110, %v2347
        %v2431 = vmul.f32 %v2111, %v2349
        %v2432 = vmul.f32 %v2112, %v2351
        %v2433 = vmul.f32 %v2113, %v2353
        %v2434 = vmul.f32 %v2114, %v2355
        %v2435 = vmul.f32 %v2115, %v2357
        %v2436 = vmul.f32 %v2116, %v2359
        %v2437 = vmul.f32 %v2117, %v2361
        %v2438 = vmul.f32 %v2118, %v2363
        %v2439 = vmul.f32 %v2119, %v2365
        %v2440 = vmul.f32 %v2120, %v2367
        %v2441 = vmul.f32 %v2121, %v2369
        %v2442 = vmul.f32 %v2122, %v2371
        %v2443 = vmul.f32 %v2123, %v2373
        %v2444 = vmul.f32 %v2124, %v2375
        %v2445 = vmul.f32 %v2125, %v2377
        %v2446 = vmul.f32 %v2126, %v2379
        %v2447 = vmul.f32 %v2127, %v2381
        %v2448 = vmul.f32 %v2128, %v2383
        %v2449 = vmul.f32 %v2129, %v2385
        %v2450 = vsub.f32 1.0, %v2386
        %v2451 = vsub.f32 1.0, %v2387
        %v2452 = vsub.f32 1.0, %v2388
        %v2453 = vsub.f32 1.0, %v2389
        %v2454 = vsub.f32 1.0, %v2390
        %v2455 = vsub.f32 1.0, %v2391
        %v2456 = vsub.f32 1.0, %v2392
        %v2457 = vsub.f32 1.0, %v2393
        %v2458 = vsub.f32 1.0, %v2394
        %v2459 = vsub.f32 1.0, %v2395
        %v2460 = vsub.f32 1.0, %v2396
        %v2461 = vsub.f32 1.0, %v2397
        %v2462 = vsub.f32 1.0, %v2398
        %v2463 = vsub.f32 1.0, %v2399
        %v2464 = vsub.f32 1.0, %v2400
        %v2465 = vsub.f32 1.0, %v2401
        %v2466 = vsub.f32 1.0, %v2402
        %v2467 = vsub.f32 1.0, %v2403
        %v2468 = vsub.f32 1.0, %v2404
        %v2469 = vsub.f32 1.0, %v2405
        %v2470 = vsub.f32 1.0, %v2406
        %v2471 = vsub.f32 1.0, %v2407
        %v2472 = vsub.f32 1.0, %v2408
        %v2473 = vsub.f32 1.0, %v2409
        %v2474 = vsub.f32 1.0, %v2410
        %v2475 = vsub.f32 1.0, %v2411
        %v2476 = vsub.f32 1.0, %v2412
        %v2477 = vsub.f32 1.0, %v2413
        %v2478 = vsub.f32 1.0, %v2414
        %v2479 = vsub.f32 1.0, %v2415
        %v2480 = vsub.f32 1.0, %v2416
        %v2481 = vsub.f32 1.0, %v2417
        %v2482 = vsub.f32 1.0, %v2418
        %v2483 = vsub.f32 1.0, %v2419
        %v2484 = vsub.f32 1.0, %v2420
        %v2485 = vsub.f32 1.0, %v2421
        %v2486 = vsub.f32 1.0, %v2422
        %v2487 = vsub.f32 1.0, %v2423
        %v2488 = vsub.f32 1.0, %v2424
        %v2489 = vsub.f32 1.0, %v2425
        %v2490 = vsub.f32 1.0, %v2426
        %v2491 = vsub.f32 1.0, %v2427
        %v2492 = vsub.f32 1.0, %v2428
        %v2493 = vsub.f32 1.0, %v2429
        %v2494 = vsub.f32 1.0, %v2430
        %v2495 = vsub.f32 1.0, %v2431
        %v2496 = vsub.f32 1.0, %v2432
        %v2497 = vsub.f32 1.0, %v2433
        %v2498 = vsub.f32 1.0, %v2434
        %v2499 = vsub.f32 1.0, %v2435
        %v2500 = vsub.f32 1.0, %v2436
        %v2501 = vsub.f32 1.0, %v2437
        %v2502 = vsub.f32 1.0, %v2438
        %v2503 = vsub.f32 1.0, %v2439
        %v2504 = vsub.f32 1.0, %v2440
        %v2505 = vsub.f32 1.0, %v2441
        %v2506 = vsub.f32 1.0, %v2442
        %v2507 = vsub.f32 1.0, %v2443
        %v2508 = vsub.f32 1.0, %v2444
        %v2509 = vsub.f32 1.0, %v2445
        %v2510 = vsub.f32 1.0, %v2446
        %v2511 = vsub.f32 1.0, %v2447
        %v2512 = vsub.f32 1.0, %v2448
        %v2513 = vsub.f32 1.0, %v2449
        %vm2514 = vcmp.ge.f32.partialorder %v1234, 0.0
        %vm2515 = vcmp.ge.f32.partialorder %v1235, 0.0
        %vm2516 = vcmp.ge.f32.partialorder %v1236, 0.0
        %vm2517 = vcmp.ge.f32.partialorder %v1237, 0.0
        %vm2518 = vcmp.ge.f32.partialorder %v1238, 0.0
        %vm2519 = vcmp.ge.f32.partialorder %v1239, 0.0
        %vm2520 = vcmp.ge.f32.partialorder %v1240, 0.0
        %vm2521 = vcmp.ge.f32.partialorder %v1241, 0.0
        %vm2522 = vcmp.ge.f32.partialorder %v1242, 0.0
        %vm2523 = vcmp.ge.f32.partialorder %v1243, 0.0
        %vm2524 = vcmp.ge.f32.partialorder %v1244, 0.0
        %vm2525 = vcmp.ge.f32.partialorder %v1245, 0.0
        %vm2526 = vcmp.ge.f32.partialorder %v1246, 0.0
        %vm2527 = vcmp.ge.f32.partialorder %v1247, 0.0
        %vm2528 = vcmp.ge.f32.partialorder %v1248, 0.0
        %vm2529 = vcmp.ge.f32.partialorder %v1249, 0.0
        %vm2530 = vcmp.ge.f32.partialorder %v1250, 0.0
        %vm2531 = vcmp.ge.f32.partialorder %v1251, 0.0
        %vm2532 = vcmp.ge.f32.partialorder %v1252, 0.0
        %vm2533 = vcmp.ge.f32.partialorder %v1253, 0.0
        %vm2534 = vcmp.ge.f32.partialorder %v1254, 0.0
        %vm2535 = vcmp.ge.f32.partialorder %v1255, 0.0
        %vm2536 = vcmp.ge.f32.partialorder %v1256, 0.0
        %vm2537 = vcmp.ge.f32.partialorder %v1257, 0.0
        %vm2538 = vcmp.ge.f32.partialorder %v1258, 0.0
        %vm2539 = vcmp.ge.f32.partialorder %v1259, 0.0
        %vm2540 = vcmp.ge.f32.partialorder %v1260, 0.0
        %vm2541 = vcmp.ge.f32.partialorder %v1261, 0.0
        %vm2542 = vcmp.ge.f32.partialorder %v1262, 0.0
        %vm2543 = vcmp.ge.f32.partialorder %v1263, 0.0
        %vm2544 = vcmp.ge.f32.partialorder %v1264, 0.0
        %vm2545 = vcmp.ge.f32.partialorder %v1265, 0.0
        %vm2546 = vcmp.ge.f32.partialorder %v1266, 0.0
        %vm2547 = vcmp.ge.f32.partialorder %v1267, 0.0
        %vm2548 = vcmp.ge.f32.partialorder %v1268, 0.0
        %vm2549 = vcmp.ge.f32.partialorder %v1269, 0.0
        %vm2550 = vcmp.ge.f32.partialorder %v1270, 0.0
        %vm2551 = vcmp.ge.f32.partialorder %v1271, 0.0
        %vm2552 = vcmp.ge.f32.partialorder %v1272, 0.0
        %vm2553 = vcmp.ge.f32.partialorder %v1273, 0.0
        %vm2554 = vcmp.ge.f32.partialorder %v1274, 0.0
        %vm2555 = vcmp.ge.f32.partialorder %v1275, 0.0
        %vm2556 = vcmp.ge.f32.partialorder %v1276, 0.0
        %vm2557 = vcmp.ge.f32.partialorder %v1277, 0.0
        %vm2558 = vcmp.ge.f32.partialorder %v1278, 0.0
        %vm2559 = vcmp.ge.f32.partialorder %v1279, 0.0
        %vm2560 = vcmp.ge.f32.partialorder %v1280, 0.0
        %vm2561 = vcmp.ge.f32.partialorder %v1281, 0.0
        %vm2562 = vcmp.ge.f32.partialorder %v1282, 0.0
        %vm2563 = vcmp.ge.f32.partialorder %v1283, 0.0
        %vm2564 = vcmp.ge.f32.partialorder %v1284, 0.0
        %vm2565 = vcmp.ge.f32.partialorder %v1285, 0.0
        %vm2566 = vcmp.ge.f32.partialorder %v1286, 0.0
        %vm2567 = vcmp.ge.f32.partialorder %v1287, 0.0
        %vm2568 = vcmp.ge.f32.partialorder %v1288, 0.0
        %vm2569 = vcmp.ge.f32.partialorder %v1289, 0.0
        %vm2570 = vcmp.ge.f32.partialorder %v1290, 0.0
        %vm2571 = vcmp.ge.f32.partialorder %v1291, 0.0
        %vm2572 = vcmp.ge.f32.partialorder %v1292, 0.0
        %vm2573 = vcmp.ge.f32.partialorder %v1293, 0.0
        %vm2574 = vcmp.ge.f32.partialorder %v1294, 0.0
        %vm2575 = vcmp.ge.f32.partialorder %v1295, 0.0
        %vm2576 = vcmp.ge.f32.partialorder %v1296, 0.0
        %vm2577 = vcmp.ge.f32.partialorder %v1297, 0.0
        %v2578 = vsub.f32 0.0, %v2450
        %v2579 = vsub.f32 0.0, %v2451
        %v2580 = vsub.f32 0.0, %v2452
        %v2581 = vsub.f32 0.0, %v2453
        %v2582 = vsub.f32 0.0, %v2454
        %v2583 = vsub.f32 0.0, %v2455
        %v2584 = vsub.f32 0.0, %v2456
        %v2585 = vsub.f32 0.0, %v2457
        %v2586 = vsub.f32 0.0, %v2458
        %v2587 = vsub.f32 0.0, %v2459
        %v2588 = vsub.f32 0.0, %v2460
        %v2589 = vsub.f32 0.0, %v2461
        %v2590 = vsub.f32 0.0, %v2462
        %v2591 = vsub.f32 0.0, %v2463
        %v2592 = vsub.f32 0.0, %v2464
        %v2593 = vsub.f32 0.0, %v2465
        %v2594 = vsub.f32 0.0, %v2466
        %v2595 = vsub.f32 0.0, %v2467
        %v2596 = vsub.f32 0.0, %v2468
        %v2597 = vsub.f32 0.0, %v2469
        %v2598 = vsub.f32 0.0, %v2470
        %v2599 = vsub.f32 0.0, %v2471
        %v2600 = vsub.f32 0.0, %v2472
        %v2601 = vsub.f32 0.0, %v2473
        %v2602 = vsub.f32 0.0, %v2474
        %v2603 = vsub.f32 0.0, %v2475
        %v2604 = vsub.f32 0.0, %v2476
        %v2605 = vsub.f32 0.0, %v2477
        %v2606 = vsub.f32 0.0, %v2478
        %v2607 = vsub.f32 0.0, %v2479
        %v2608 = vsub.f32 0.0, %v2480
        %v2609 = vsub.f32 0.0, %v2481
        %v2610 = vsub.f32 0.0, %v2482
        %v2611 = vsub.f32 0.0, %v2483
        %v2612 = vsub.f32 0.0, %v2484
        %v2613 = vsub.f32 0.0, %v2485
        %v2614 = vsub.f32 0.0, %v2486
        %v2615 = vsub.f32 0.0, %v2487
        %v2616 = vsub.f32 0.0, %v2488
        %v2617 = vsub.f32 0.0, %v2489
        %v2618 = vsub.f32 0.0, %v2490
        %v2619 = vsub.f32 0.0, %v2491
        %v2620 = vsub.f32 0.0, %v2492
        %v2621 = vsub.f32 0.0, %v2493
        %v2622 = vsub.f32 0.0, %v2494
        %v2623 = vsub.f32 0.0, %v2495
        %v2624 = vsub.f32 0.0, %v2496
        %v2625 = vsub.f32 0.0, %v2497
        %v2626 = vsub.f32 0.0, %v2498
        %v2627 = vsub.f32 0.0, %v2499
        %v2628 = vsub.f32 0.0, %v2500
        %v2629 = vsub.f32 0.0, %v2501
        %v2630 = vsub.f32 0.0, %v2502
        %v2631 = vsub.f32 0.0, %v2503
        %v2632 = vsub.f32 0.0, %v2504
        %v2633 = vsub.f32 0.0, %v2505
        %v2634 = vsub.f32 0.0, %v2506
        %v2635 = vsub.f32 0.0, %v2507
        %v2636 = vsub.f32 0.0, %v2508
        %v2637 = vsub.f32 0.0, %v2509
        %v2638 = vsub.f32 0.0, %v2510
        %v2639 = vsub.f32 0.0, %v2511
        %v2640 = vsub.f32 0.0, %v2512
        %v2641 = vsub.f32 0.0, %v2513
        %v2642 = vsel %vm2514, %v2450, %v2578
        %v2643 = vsel %vm2515, %v2451, %v2579
        %v2644 = vsel %vm2516, %v2452, %v2580
        %v2645 = vsel %vm2517, %v2453, %v2581
        %v2646 = vsel %vm2518, %v2454, %v2582
        %v2647 = vsel %vm2519, %v2455, %v2583
        %v2648 = vsel %vm2520, %v2456, %v2584
        %v2649 = vsel %vm2521, %v2457, %v2585
        %v2650 = vsel %vm2522, %v2458, %v2586
        %v2651 = vsel %vm2523, %v2459, %v2587
        %v2652 = vsel %vm2524, %v2460, %v2588
        %v2653 = vsel %vm2525, %v2461, %v2589
        %v2654 = vsel %vm2526, %v2462, %v2590
        %v2655 = vsel %vm2527, %v2463, %v2591
        %v2656 = vsel %vm2528, %v2464, %v2592
        %v2657 = vsel %vm2529, %v2465, %v2593
        %v2658 = vsel %vm2530, %v2466, %v2594
        %v2659 = vsel %vm2531, %v2467, %v2595
        %v2660 = vsel %vm2532, %v2468, %v2596
        %v2661 = vsel %vm2533, %v2469, %v2597
        %v2662 = vsel %vm2534, %v2470, %v2598
        %v2663 = vsel %vm2535, %v2471, %v2599
        %v2664 = vsel %vm2536, %v2472, %v2600
        %v2665 = vsel %vm2537, %v2473, %v2601
        %v2666 = vsel %vm2538, %v2474, %v2602
        %v2667 = vsel %vm2539, %v2475, %v2603
        %v2668 = vsel %vm2540, %v2476, %v2604
        %v2669 = vsel %vm2541, %v2477, %v2605
        %v2670 = vsel %vm2542, %v2478, %v2606
        %v2671 = vsel %vm2543, %v2479, %v2607
        %v2672 = vsel %vm2544, %v2480, %v2608
        %v2673 = vsel %vm2545, %v2481, %v2609
        %v2674 = vsel %vm2546, %v2482, %v2610
        %v2675 = vsel %vm2547, %v2483, %v2611
        %v2676 = vsel %vm2548, %v2484, %v2612
        %v2677 = vsel %vm2549, %v2485, %v2613
        %v2678 = vsel %vm2550, %v2486, %v2614
        %v2679 = vsel %vm2551, %v2487, %v2615
        %v2680 = vsel %vm2552, %v2488, %v2616
        %v2681 = vsel %vm2553, %v2489, %v2617
        %v2682 = vsel %vm2554, %v2490, %v2618
        %v2683 = vsel %vm2555, %v2491, %v2619
        %v2684 = vsel %vm2556, %v2492, %v2620
        %v2685 = vsel %vm2557, %v2493, %v2621
        %v2686 = vsel %vm2558, %v2494, %v2622
        %v2687 = vsel %vm2559, %v2495, %v2623
        %v2688 = vsel %vm2560, %v2496, %v2624
        %v2689 = vsel %vm2561, %v2497, %v2625
        %v2690 = vsel %vm2562, %v2498, %v2626
        %v2691 = vsel %vm2563, %v2499, %v2627
        %v2692 = vsel %vm2564, %v2500, %v2628
        %v2693 = vsel %vm2565, %v2501, %v2629
        %v2694 = vsel %vm2566, %v2502, %v2630
        %v2695 = vsel %vm2567, %v2503, %v2631
        %v2696 = vsel %vm2568, %v2504, %v2632
        %v2697 = vsel %vm2569, %v2505, %v2633
        %v2698 = vsel %vm2570, %v2506, %v2634
        %v2699 = vsel %vm2571, %v2507, %v2635
        %v2700 = vsel %vm2572, %v2508, %v2636
        %v2701 = vsel %vm2573, %v2509, %v2637
        %v2702 = vsel %vm2574, %v2510, %v2638
        %v2703 = vsel %vm2575, %v2511, %v2639
        %v2704 = vsel %vm2576, %v2512, %v2640
        %v2705 = vsel %vm2577, %v2513, %v2641
        %v2706 = vadd.f32 %v2642, 1.0
        %v2707 = vadd.f32 %v2643, 1.0
        %v2708 = vadd.f32 %v2644, 1.0
        %v2709 = vadd.f32 %v2645, 1.0
        %v2710 = vadd.f32 %v2646, 1.0
        %v2711 = vadd.f32 %v2647, 1.0
        %v2712 = vadd.f32 %v2648, 1.0
        %v2713 = vadd.f32 %v2649, 1.0
        %v2714 = vadd.f32 %v2650, 1.0
        %v2715 = vadd.f32 %v2651, 1.0
        %v2716 = vadd.f32 %v2652, 1.0
        %v2717 = vadd.f32 %v2653, 1.0
        %v2718 = vadd.f32 %v2654, 1.0
        %v2719 = vadd.f32 %v2655, 1.0
        %v2720 = vadd.f32 %v2656, 1.0
        %v2721 = vadd.f32 %v2657, 1.0
        %v2722 = vadd.f32 %v2658, 1.0
        %v2723 = vadd.f32 %v2659, 1.0
        %v2724 = vadd.f32 %v2660, 1.0
        %v2725 = vadd.f32 %v2661, 1.0
        %v2726 = vadd.f32 %v2662, 1.0
        %v2727 = vadd.f32 %v2663, 1.0
        %v2728 = vadd.f32 %v2664, 1.0
        %v2729 = vadd.f32 %v2665, 1.0
        %v2730 = vadd.f32 %v2666, 1.0
        %v2731 = vadd.f32 %v2667, 1.0
        %v2732 = vadd.f32 %v2668, 1.0
        %v2733 = vadd.f32 %v2669, 1.0
        %v2734 = vadd.f32 %v2670, 1.0
        %v2735 = vadd.f32 %v2671, 1.0
        %v2736 = vadd.f32 %v2672, 1.0
        %v2737 = vadd.f32 %v2673, 1.0
        %v2738 = vadd.f32 %v2674, 1.0
        %v2739 = vadd.f32 %v2675, 1.0
        %v2740 = vadd.f32 %v2676, 1.0
        %v2741 = vadd.f32 %v2677, 1.0
        %v2742 = vadd.f32 %v2678, 1.0
        %v2743 = vadd.f32 %v2679, 1.0
        %v2744 = vadd.f32 %v2680, 1.0
        %v2745 = vadd.f32 %v2681, 1.0
        %v2746 = vadd.f32 %v2682, 1.0
        %v2747 = vadd.f32 %v2683, 1.0
        %v2748 = vadd.f32 %v2684, 1.0
        %v2749 = vadd.f32 %v2685, 1.0
        %v2750 = vadd.f32 %v2686, 1.0
        %v2751 = vadd.f32 %v2687, 1.0
        %v2752 = vadd.f32 %v2688, 1.0
        %v2753 = vadd.f32 %v2689, 1.0
        %v2754 = vadd.f32 %v2690, 1.0
        %v2755 = vadd.f32 %v2691, 1.0
        %v2756 = vadd.f32 %v2692, 1.0
        %v2757 = vadd.f32 %v2693, 1.0
        %v2758 = vadd.f32 %v2694, 1.0
        %v2759 = vadd.f32 %v2695, 1.0
        %v2760 = vadd.f32 %v2696, 1.0
        %v2761 = vadd.f32 %v2697, 1.0
        %v2762 = vadd.f32 %v2698, 1.0
        %v2763 = vadd.f32 %v2699, 1.0
        %v2764 = vadd.f32 %v2700, 1.0
        %v2765 = vadd.f32 %v2701, 1.0
        %v2766 = vadd.f32 %v2702, 1.0
        %v2767 = vadd.f32 %v2703, 1.0
        %v2768 = vadd.f32 %v2704, 1.0
        %v2769 = vadd.f32 %v2705, 1.0
        %v2770 = vmul.f32 %v1170, %v2706
        %v2771 = vmul.f32 %v1171, %v2707
        %v2772 = vmul.f32 %v1172, %v2708
        %v2773 = vmul.f32 %v1173, %v2709
        %v2774 = vmul.f32 %v1174, %v2710
        %v2775 = vmul.f32 %v1175, %v2711
        %v2776 = vmul.f32 %v1176, %v2712
        %v2777 = vmul.f32 %v1177, %v2713
        %v2778 = vmul.f32 %v1178, %v2714
        %v2779 = vmul.f32 %v1179, %v2715
        %v2780 = vmul.f32 %v1180, %v2716
        %v2781 = vmul.f32 %v1181, %v2717
        %v2782 = vmul.f32 %v1182, %v2718
        %v2783 = vmul.f32 %v1183, %v2719
        %v2784 = vmul.f32 %v1184, %v2720
        %v2785 = vmul.f32 %v1185, %v2721
        %v2786 = vmul.f32 %v1186, %v2722
        %v2787 = vmul.f32 %v1187, %v2723
        %v2788 = vmul.f32 %v1188, %v2724
        %v2789 = vmul.f32 %v1189, %v2725
        %v2790 = vmul.f32 %v1190, %v2726
        %v2791 = vmul.f32 %v1191, %v2727
        %v2792 = vmul.f32 %v1192, %v2728
        %v2793 = vmul.f32 %v1193, %v2729
        %v2794 = vmul.f32 %v1194, %v2730
        %v2795 = vmul.f32 %v1195, %v2731
        %v2796 = vmul.f32 %v1196, %v2732
        %v2797 = vmul.f32 %v1197, %v2733
        %v2798 = vmul.f32 %v1198, %v2734
        %v2799 = vmul.f32 %v1199, %v2735
        %v2800 = vmul.f32 %v1200, %v2736
        %v2801 = vmul.f32 %v1201, %v2737
        %v2802 = vmul.f32 %v1202, %v2738
        %v2803 = vmul.f32 %v1203, %v2739
        %v2804 = vmul.f32 %v1204, %v2740
        %v2805 = vmul.f32 %v1205, %v2741
        %v2806 = vmul.f32 %v1206, %v2742
        %v2807 = vmul.f32 %v1207, %v2743
        %v2808 = vmul.f32 %v1208, %v2744
        %v2809 = vmul.f32 %v1209, %v2745
        %v2810 = vmul.f32 %v1210, %v2746
        %v2811 = vmul.f32 %v1211, %v2747
        %v2812 = vmul.f32 %v1212, %v2748
        %v2813 = vmul.f32 %v1213, %v2749
        %v2814 = vmul.f32 %v1214, %v2750
        %v2815 = vmul.f32 %v1215, %v2751
        %v2816 = vmul.f32 %v1216, %v2752
        %v2817 = vmul.f32 %v1217, %v2753
        %v2818 = vmul.f32 %v1218, %v2754
        %v2819 = vmul.f32 %v1219, %v2755
        %v2820 = vmul.f32 %v1220, %v2756
        %v2821 = vmul.f32 %v1221, %v2757
        %v2822 = vmul.f32 %v1222, %v2758
        %v2823 = vmul.f32 %v1223, %v2759
        %v2824 = vmul.f32 %v1224, %v2760
        %v2825 = vmul.f32 %v1225, %v2761
        %v2826 = vmul.f32 %v1226, %v2762
        %v2827 = vmul.f32 %v1227, %v2763
        %v2828 = vmul.f32 %v1228, %v2764
        %v2829 = vmul.f32 %v1229, %v2765
        %v2830 = vmul.f32 %v1230, %v2766
        %v2831 = vmul.f32 %v1231, %v2767
        %v2832 = vmul.f32 %v1232, %v2768
        %v2833 = vmul.f32 %v1233, %v2769
        %v2834 = vpack.c.bf16 %v2771, %v2770
        %v2835 = vpack.c.bf16 %v2773, %v2772
        %v2836 = vpack.c.bf16 %v2775, %v2774
        %v2837 = vpack.c.bf16 %v2777, %v2776
        %v2838 = vpack.c.bf16 %v2779, %v2778
        %v2839 = vpack.c.bf16 %v2781, %v2780
        %v2840 = vpack.c.bf16 %v2783, %v2782
        %v2841 = vpack.c.bf16 %v2785, %v2784
        %v2842 = vpack.c.bf16 %v2787, %v2786
        %v2843 = vpack.c.bf16 %v2789, %v2788
        %v2844 = vpack.c.bf16 %v2791, %v2790
        %v2845 = vpack.c.bf16 %v2793, %v2792
        %v2846 = vpack.c.bf16 %v2795, %v2794
        %v2847 = vpack.c.bf16 %v2797, %v2796
        %v2848 = vpack.c.bf16 %v2799, %v2798
        %v2849 = vpack.c.bf16 %v2801, %v2800
        %v2850 = vpack.c.bf16 %v2803, %v2802
        %v2851 = vpack.c.bf16 %v2805, %v2804
        %v2852 = vpack.c.bf16 %v2807, %v2806
        %v2853 = vpack.c.bf16 %v2809, %v2808
        %v2854 = vpack.c.bf16 %v2811, %v2810
        %v2855 = vpack.c.bf16 %v2813, %v2812
        %v2856 = vpack.c.bf16 %v2815, %v2814
        %v2857 = vpack.c.bf16 %v2817, %v2816
        %v2858 = vpack.c.bf16 %v2819, %v2818
        %v2859 = vpack.c.bf16 %v2821, %v2820
        %v2860 = vpack.c.bf16 %v2823, %v2822
        %v2861 = vpack.c.bf16 %v2825, %v2824
        %v2862 = vpack.c.bf16 %v2827, %v2826
        %v2863 = vpack.c.bf16 %v2829, %v2828
        %v2864 = vpack.c.bf16 %v2831, %v2830
        %v2865 = vpack.c.bf16 %v2833, %v2832
        %v2898 = vunpack.c.l.b16 %v2834
        %v2899 = vunpack.c.h.b16 %v2834
        %v2900 = vunpack.c.l.b16 %v2835
        %v2901 = vunpack.c.h.b16 %v2835
        %v2902 = vunpack.c.l.b16 %v2836
        %v2903 = vunpack.c.h.b16 %v2836
        %v2904 = vunpack.c.l.b16 %v2837
        %v2905 = vunpack.c.h.b16 %v2837
        %v2906 = vunpack.c.l.b16 %v2838
        %v2907 = vunpack.c.h.b16 %v2838
        %v2908 = vunpack.c.l.b16 %v2839
        %v2909 = vunpack.c.h.b16 %v2839
        %v2910 = vunpack.c.l.b16 %v2840
        %v2911 = vunpack.c.h.b16 %v2840
        %v2912 = vunpack.c.l.b16 %v2841
        %v2913 = vunpack.c.h.b16 %v2841
        %v2914 = vunpack.c.l.b16 %v2842
        %v2915 = vunpack.c.h.b16 %v2842
        %v2916 = vunpack.c.l.b16 %v2843
        %v2917 = vunpack.c.h.b16 %v2843
        %v2918 = vunpack.c.l.b16 %v2844
        %v2919 = vunpack.c.h.b16 %v2844
        %v2920 = vunpack.c.l.b16 %v2845
        %v2921 = vunpack.c.h.b16 %v2845
        %v2922 = vunpack.c.l.b16 %v2846
        %v2923 = vunpack.c.h.b16 %v2846
        %v2924 = vunpack.c.l.b16 %v2847
        %v2925 = vunpack.c.h.b16 %v2847
        %v2926 = vunpack.c.l.b16 %v2848
        %v2927 = vunpack.c.h.b16 %v2848
        %v2928 = vunpack.c.l.b16 %v2849
        %v2929 = vunpack.c.h.b16 %v2849
        %v2930 = vunpack.c.l.b16 %v2850
        %v2931 = vunpack.c.h.b16 %v2850
        %v2932 = vunpack.c.l.b16 %v2851
        %v2933 = vunpack.c.h.b16 %v2851
        %v2934 = vunpack.c.l.b16 %v2852
        %v2935 = vunpack.c.h.b16 %v2852
        %v2936 = vunpack.c.l.b16 %v2853
        %v2937 = vunpack.c.h.b16 %v2853
        %v2938 = vunpack.c.l.b16 %v2854
        %v2939 = vunpack.c.h.b16 %v2854
        %v2940 = vunpack.c.l.b16 %v2855
        %v2941 = vunpack.c.h.b16 %v2855
        %v2942 = vunpack.c.l.b16 %v2856
        %v2943 = vunpack.c.h.b16 %v2856
        %v2944 = vunpack.c.l.b16 %v2857
        %v2945 = vunpack.c.h.b16 %v2857
        %v2946 = vunpack.c.l.b16 %v2858
        %v2947 = vunpack.c.h.b16 %v2858
        %v2948 = vunpack.c.l.b16 %v2859
        %v2949 = vunpack.c.h.b16 %v2859
        %v2950 = vunpack.c.l.b16 %v2860
        %v2951 = vunpack.c.h.b16 %v2860
        %v2952 = vunpack.c.l.b16 %v2861
        %v2953 = vunpack.c.h.b16 %v2861
        %v2954 = vunpack.c.l.b16 %v2862
        %v2955 = vunpack.c.h.b16 %v2862
        %v2956 = vunpack.c.l.b16 %v2863
        %v2957 = vunpack.c.h.b16 %v2863
        %v2958 = vunpack.c.l.b16 %v2864
        %v2959 = vunpack.c.h.b16 %v2864
        %v2960 = vunpack.c.l.b16 %v2865
        %v2961 = vunpack.c.h.b16 %v2865
        %v2962 = vpack.c.b16 %v2898, %v2898
        %v2963 = vpack.c.b16 %v2899, %v2899
        %v2964 = vpack.c.b16 %v2900, %v2900
        %v2965 = vpack.c.b16 %v2901, %v2901
        %v2966 = vpack.c.b16 %v2902, %v2902
        %v2967 = vpack.c.b16 %v2903, %v2903
        %v2968 = vpack.c.b16 %v2904, %v2904
        %v2969 = vpack.c.b16 %v2905, %v2905
        %v2970 = vpack.c.b16 %v2906, %v2906
        %v2971 = vpack.c.b16 %v2907, %v2907
        %v2972 = vpack.c.b16 %v2908, %v2908
        %v2973 = vpack.c.b16 %v2909, %v2909
        %v2974 = vpack.c.b16 %v2910, %v2910
        %v2975 = vpack.c.b16 %v2911, %v2911
        %v2976 = vpack.c.b16 %v2912, %v2912
        %v2977 = vpack.c.b16 %v2913, %v2913
        %v2978 = vpack.c.b16 %v2914, %v2914
        %v2979 = vpack.c.b16 %v2915, %v2915
        %v2980 = vpack.c.b16 %v2916, %v2916
        %v2981 = vpack.c.b16 %v2917, %v2917
        %v2982 = vpack.c.b16 %v2918, %v2918
        %v2983 = vpack.c.b16 %v2919, %v2919
        %v2984 = vpack.c.b16 %v2920, %v2920
        %v2985 = vpack.c.b16 %v2921, %v2921
        %v2986 = vpack.c.b16 %v2922, %v2922
        %v2987 = vpack.c.b16 %v2923, %v2923
        %v2988 = vpack.c.b16 %v2924, %v2924
        %v2989 = vpack.c.b16 %v2925, %v2925
        %v2990 = vpack.c.b16 %v2926, %v2926
        %v2991 = vpack.c.b16 %v2927, %v2927
        %v2992 = vpack.c.b16 %v2928, %v2928
        %v2993 = vpack.c.b16 %v2929, %v2929
        %v2994 = vpack.c.b16 %v2930, %v2930
        %v2995 = vpack.c.b16 %v2931, %v2931
        %v2996 = vpack.c.b16 %v2932, %v2932
        %v2997 = vpack.c.b16 %v2933, %v2933
        %v2998 = vpack.c.b16 %v2934, %v2934
        %v2999 = vpack.c.b16 %v2935, %v2935
        %v3000 = vpack.c.b16 %v2936, %v2936
        %v3001 = vpack.c.b16 %v2937, %v2937
        %v3002 = vpack.c.b16 %v2938, %v2938
        %v3003 = vpack.c.b16 %v2939, %v2939
        %v3004 = vpack.c.b16 %v2940, %v2940
        %v3005 = vpack.c.b16 %v2941, %v2941
        %v3006 = vpack.c.b16 %v2942, %v2942
        %v3007 = vpack.c.b16 %v2943, %v2943
        %v3008 = vpack.c.b16 %v2944, %v2944
        %v3009 = vpack.c.b16 %v2945, %v2945
        %v3010 = vpack.c.b16 %v2946, %v2946
        %v3011 = vpack.c.b16 %v2947, %v2947
        %v3012 = vpack.c.b16 %v2948, %v2948
        %v3013 = vpack.c.b16 %v2949, %v2949
        %v3014 = vpack.c.b16 %v2950, %v2950
        %v3015 = vpack.c.b16 %v2951, %v2951
        %v3016 = vpack.c.b16 %v2952, %v2952
        %v3017 = vpack.c.b16 %v2953, %v2953
        %v3018 = vpack.c.b16 %v2954, %v2954
        %v3019 = vpack.c.b16 %v2955, %v2955
        %v3020 = vpack.c.b16 %v2956, %v2956
        %v3021 = vpack.c.b16 %v2957, %v2957
        %v3022 = vpack.c.b16 %v2958, %v2958
        %v3023 = vpack.c.b16 %v2959, %v2959
        %v3024 = vpack.c.b16 %v2960, %v2960
        %v3025 = vpack.c.b16 %v2961, %v2961
        %vm3090 = vcmask 257024
        %3091 = vst.msk [vmem:[%s227] sm:$0xf] %vm3090, %v2962
        %3092 = vst.msk [vmem:[%s227 + $0x4] sm:$0xf] %vm3090, %v2963
        %3093 = vst.msk [vmem:[%s227 + $0x8] sm:$0xf] %vm3090, %v2964
        %3094 = vst.msk [vmem:[%s227 + $0xc] sm:$0xf] %vm3090, %v2965
        %3095 = vst.msk [vmem:[%s227 + $0x10] sm:$0xf] %vm3090, %v2966
        %3096 = vst.msk [vmem:[%s227 + $0x14] sm:$0xf] %vm3090, %v2967
        %3097 = vst.msk [vmem:[%s227 + $0x18] sm:$0xf] %vm3090, %v2968
        %3098 = vst.msk [vmem:[%s227 + $0x1c] sm:$0xf] %vm3090, %v2969
        %3099 = vst.msk [vmem:[%s227 + $0x20] sm:$0xf] %vm3090, %v2970
        %3100 = vst.msk [vmem:[%s227 + $0x24] sm:$0xf] %vm3090, %v2971
        %3101 = vst.msk [vmem:[%s227 + $0x28] sm:$0xf] %vm3090, %v2972
        %3102 = vst.msk [vmem:[%s227 + $0x2c] sm:$0xf] %vm3090, %v2973
        %3103 = vst.msk [vmem:[%s227 + $0x30] sm:$0xf] %vm3090, %v2974
        %3104 = vst.msk [vmem:[%s227 + $0x34] sm:$0xf] %vm3090, %v2975
        %3105 = vst.msk [vmem:[%s227 + $0x38] sm:$0xf] %vm3090, %v2976
        %3106 = vst.msk [vmem:[%s227 + $0x3c] sm:$0xf] %vm3090, %v2977
        %3107 = vst.msk [vmem:[%s227 + $0x40] sm:$0xf] %vm3090, %v2978
        %3108 = vst.msk [vmem:[%s227 + $0x44] sm:$0xf] %vm3090, %v2979
        %3109 = vst.msk [vmem:[%s227 + $0x48] sm:$0xf] %vm3090, %v2980
        %3110 = vst.msk [vmem:[%s227 + $0x4c] sm:$0xf] %vm3090, %v2981
        %3111 = vst.msk [vmem:[%s227 + $0x50] sm:$0xf] %vm3090, %v2982
        %3112 = vst.msk [vmem:[%s227 + $0x54] sm:$0xf] %vm3090, %v2983
        %3113 = vst.msk [vmem:[%s227 + $0x58] sm:$0xf] %vm3090, %v2984
        %3114 = vst.msk [vmem:[%s227 + $0x5c] sm:$0xf] %vm3090, %v2985
        %3115 = vst.msk [vmem:[%s227 + $0x60] sm:$0xf] %vm3090, %v2986
        %3116 = vst.msk [vmem:[%s227 + $0x64] sm:$0xf] %vm3090, %v2987
        %3117 = vst.msk [vmem:[%s227 + $0x68] sm:$0xf] %vm3090, %v2988
        %3118 = vst.msk [vmem:[%s227 + $0x6c] sm:$0xf] %vm3090, %v2989
        %3119 = vst.msk [vmem:[%s227 + $0x70] sm:$0xf] %vm3090, %v2990
        %3120 = vst.msk [vmem:[%s227 + $0x74] sm:$0xf] %vm3090, %v2991
        %3121 = vst.msk [vmem:[%s227 + $0x78] sm:$0xf] %vm3090, %v2992
        %3122 = vst.msk [vmem:[%s227 + $0x7c] sm:$0xf] %vm3090, %v2993
        %3123 = vst.msk [vmem:[%s227 + $0x80] sm:$0xf] %vm3090, %v2994
        %3124 = vst.msk [vmem:[%s227 + $0x84] sm:$0xf] %vm3090, %v2995
        %3125 = vst.msk [vmem:[%s227 + $0x88] sm:$0xf] %vm3090, %v2996
        %3126 = vst.msk [vmem:[%s227 + $0x8c] sm:$0xf] %vm3090, %v2997
        %3127 = vst.msk [vmem:[%s227 + $0x90] sm:$0xf] %vm3090, %v2998
        %3128 = vst.msk [vmem:[%s227 + $0x94] sm:$0xf] %vm3090, %v2999
        %3129 = vst.msk [vmem:[%s227 + $0x98] sm:$0xf] %vm3090, %v3000
        %3130 = vst.msk [vmem:[%s227 + $0x9c] sm:$0xf] %vm3090, %v3001
        %3131 = vst.msk [vmem:[%s227 + $0xa0] sm:$0xf] %vm3090, %v3002
        %3132 = vst.msk [vmem:[%s227 + $0xa4] sm:$0xf] %vm3090, %v3003
        %3133 = vst.msk [vmem:[%s227 + $0xa8] sm:$0xf] %vm3090, %v3004
        %3134 = vst.msk [vmem:[%s227 + $0xac] sm:$0xf] %vm3090, %v3005
        %3135 = vst.msk [vmem:[%s227 + $0xb0] sm:$0xf] %vm3090, %v3006
        %3136 = vst.msk [vmem:[%s227 + $0xb4] sm:$0xf] %vm3090, %v3007
        %3137 = vst.msk [vmem:[%s227 + $0xb8] sm:$0xf] %vm3090, %v3008
        %3138 = vst.msk [vmem:[%s227 + $0xbc] sm:$0xf] %vm3090, %v3009
        %3139 = vst.msk [vmem:[%s227 + $0xc0] sm:$0xf] %vm3090, %v3010
        %3140 = vst.msk [vmem:[%s227 + $0xc4] sm:$0xf] %vm3090, %v3011
        %3141 = vst.msk [vmem:[%s227 + $0xc8] sm:$0xf] %vm3090, %v3012
        %3142 = vst.msk [vmem:[%s227 + $0xcc] sm:$0xf] %vm3090, %v3013
        %3143 = vst.msk [vmem:[%s227 + $0xd0] sm:$0xf] %vm3090, %v3014
        %3144 = vst.msk [vmem:[%s227 + $0xd4] sm:$0xf] %vm3090, %v3015
        %3145 = vst.msk [vmem:[%s227 + $0xd8] sm:$0xf] %vm3090, %v3016
        %3146 = vst.msk [vmem:[%s227 + $0xdc] sm:$0xf] %vm3090, %v3017
        %3147 = vst.msk [vmem:[%s227 + $0xe0] sm:$0xf] %vm3090, %v3018
        %3148 = vst.msk [vmem:[%s227 + $0xe4] sm:$0xf] %vm3090, %v3019
        %3149 = vst.msk [vmem:[%s227 + $0xe8] sm:$0xf] %vm3090, %v3020
        %3150 = vst.msk [vmem:[%s227 + $0xec] sm:$0xf] %vm3090, %v3021
        %3151 = vst.msk [vmem:[%s227 + $0xf0] sm:$0xf] %vm3090, %v3022
        %3152 = vst.msk [vmem:[%s227 + $0xf4] sm:$0xf] %vm3090, %v3023
        %3153 = vst.msk [vmem:[%s227 + $0xf8] sm:$0xf] %vm3090, %v3024
        %3154 = vst.msk [vmem:[%s227 + $0xfc] sm:$0xf] %vm3090, %v3025
        %s3155 = sand.u32 %s117, 1
        %s3156 = sand.u32 %s117, 1
        %s3157 = smul.addr %s3156, 256
        %s3158 = scalar_lea.vmem [#allocation2], %s3157
        // Predicated region
        $region37: #{fno3d_forward.8} parent=35 // pred_check
          %p3159 = pneg %p127
        $region38: #{fno3d_forward.8} parent=35 // pred_check_branch
          %3161 = sbr.rel (%p3159) target = $region40
        $region39: #{fno3d_forward.8} parent=35 // pred_region
          %s3162 = smul.u32 64, %s15
          %s3163 = ssub.s32 250, %s3162
          %p3164 = scmp.lt.s32.totalorder %s3163, 64
          %s3165 = scalar_select %p3164, %s3163, 64
          %s3166 = smul.u32 64, %s3165
          %p3167 = scmp.ne.s32.totalorder 0, %s3166
          %s3168 = smul.addr %s3162, 4
          %s3169 = scalar_lea.vmem %s4, %s3168
          // Predicated region
          $region41: #{fno3d_forward.8} parent=39 // pred_check
            %p3170 = pneg %p3167
          $region42: #{fno3d_forward.8} parent=39 // pred_check_branch
            %3172 = sbr.rel (%p3170) target = $region44
          $region43: #{fno3d_forward.8} parent=39 // pred_region
            // Predicated region
            $region45: #{fno3d_forward.8} parent=43 // pred_check
              _
            $region46: #{fno3d_forward.8} parent=43 // pred_check_branch
              %3174 = sbr.rel target = $region48
            $region47: #{fno3d_forward.8} parent=43 // pred_region
              // Predicated region
              $region67: #{fno3d_forward.8} parent=47 // pred_check
                _
              $region68: #{fno3d_forward.8} parent=47 // pred_check_branch
                %3350 = sbr.rel (0) target = $region70
              $region69: #{fno3d_forward.8} parent=47 // pred_region
                %s3352 = ssub.s32 16, 1
                %s3353 = sshrl.u32 %s3165, 6
                // While loop
                $region71: #{fno3d_forward.8} parent=69 // loop_pre_header
                  _
                $region72: #{fno3d_forward.8} parent=69 // loop_header
                  %s3355 = sphi 0, %s3357
                  %p3356 = scmp.ge.s32.totalorder %s3355, %s3353
                  %s3360 = sphi 0, %s3493
                  %s3361 = sphi %s3158, %s3496
                  %s3362 = sphi %s3169, %s3497
                $region73: #{fno3d_forward.8} parent=69 // loop_header_branch
                  %3359 = sbr.rel (%p3356) target = $region77
                $region74: #{fno3d_forward.8} parent=69 // loop_body
                  %v3363 = vld [vmem:[%s3361] sm:%s3352]
                  %3364 = vst [vmem:[%s3362] sm:%s3352] %v3363
                  %v3365 = vld [vmem:[%s3361 + $0x4] sm:%s3352]
                  %3366 = vst [vmem:[%s3362 + $0x4] sm:%s3352] %v3365
                  %v3367 = vld [vmem:[%s3361 + $0x8] sm:%s3352]
                  %3368 = vst [vmem:[%s3362 + $0x8] sm:%s3352] %v3367
                  %v3369 = vld [vmem:[%s3361 + $0xc] sm:%s3352]
                  %3370 = vst [vmem:[%s3362 + $0xc] sm:%s3352] %v3369
                  %v3371 = vld [vmem:[%s3361 + $0x10] sm:%s3352]
                  %3372 = vst [vmem:[%s3362 + $0x10] sm:%s3352] %v3371
                  %v3373 = vld [vmem:[%s3361 + $0x14] sm:%s3352]
                  %3374 = vst [vmem:[%s3362 + $0x14] sm:%s3352] %v3373
                  %v3375 = vld [vmem:[%s3361 + $0x18] sm:%s3352]
                  %3376 = vst [vmem:[%s3362 + $0x18] sm:%s3352] %v3375
                  %v3377 = vld [vmem:[%s3361 + $0x1c] sm:%s3352]
                  %3378 = vst [vmem:[%s3362 + $0x1c] sm:%s3352] %v3377
                  %v3379 = vld [vmem:[%s3361 + $0x20] sm:%s3352]
                  %3380 = vst [vmem:[%s3362 + $0x20] sm:%s3352] %v3379
                  %v3381 = vld [vmem:[%s3361 + $0x24] sm:%s3352]
                  %3382 = vst [vmem:[%s3362 + $0x24] sm:%s3352] %v3381
                  %v3383 = vld [vmem:[%s3361 + $0x28] sm:%s3352]
                  %3384 = vst [vmem:[%s3362 + $0x28] sm:%s3352] %v3383
                  %v3385 = vld [vmem:[%s3361 + $0x2c] sm:%s3352]
                  %3386 = vst [vmem:[%s3362 + $0x2c] sm:%s3352] %v3385
                  %v3387 = vld [vmem:[%s3361 + $0x30] sm:%s3352]
                  %3388 = vst [vmem:[%s3362 + $0x30] sm:%s3352] %v3387
                  %v3389 = vld [vmem:[%s3361 + $0x34] sm:%s3352]
                  %3390 = vst [vmem:[%s3362 + $0x34] sm:%s3352] %v3389
                  %v3391 = vld [vmem:[%s3361 + $0x38] sm:%s3352]
                  %3392 = vst [vmem:[%s3362 + $0x38] sm:%s3352] %v3391
                  %v3393 = vld [vmem:[%s3361 + $0x3c] sm:%s3352]
                  %3394 = vst [vmem:[%s3362 + $0x3c] sm:%s3352] %v3393
                  %v3395 = vld [vmem:[%s3361 + $0x40] sm:%s3352]
                  %3396 = vst [vmem:[%s3362 + $0x40] sm:%s3352] %v3395
                  %v3397 = vld [vmem:[%s3361 + $0x44] sm:%s3352]
                  %3398 = vst [vmem:[%s3362 + $0x44] sm:%s3352] %v3397
                  %v3399 = vld [vmem:[%s3361 + $0x48] sm:%s3352]
                  %3400 = vst [vmem:[%s3362 + $0x48] sm:%s3352] %v3399
                  %v3401 = vld [vmem:[%s3361 + $0x4c] sm:%s3352]
                  %3402 = vst [vmem:[%s3362 + $0x4c] sm:%s3352] %v3401
                  %v3403 = vld [vmem:[%s3361 + $0x50] sm:%s3352]
                  %3404 = vst [vmem:[%s3362 + $0x50] sm:%s3352] %v3403
                  %v3405 = vld [vmem:[%s3361 + $0x54] sm:%s3352]
                  %3406 = vst [vmem:[%s3362 + $0x54] sm:%s3352] %v3405
                  %v3407 = vld [vmem:[%s3361 + $0x58] sm:%s3352]
                  %3408 = vst [vmem:[%s3362 + $0x58] sm:%s3352] %v3407
                  %v3409 = vld [vmem:[%s3361 + $0x5c] sm:%s3352]
                  %3410 = vst [vmem:[%s3362 + $0x5c] sm:%s3352] %v3409
                  %v3411 = vld [vmem:[%s3361 + $0x60] sm:%s3352]
                  %3412 = vst [vmem:[%s3362 + $0x60] sm:%s3352] %v3411
                  %v3413 = vld [vmem:[%s3361 + $0x64] sm:%s3352]
                  %3414 = vst [vmem:[%s3362 + $0x64] sm:%s3352] %v3413
                  %v3415 = vld [vmem:[%s3361 + $0x68] sm:%s3352]
                  %3416 = vst [vmem:[%s3362 + $0x68] sm:%s3352] %v3415
                  %v3417 = vld [vmem:[%s3361 + $0x6c] sm:%s3352]
                  %3418 = vst [vmem:[%s3362 + $0x6c] sm:%s3352] %v3417
                  %v3419 = vld [vmem:[%s3361 + $0x70] sm:%s3352]
                  %3420 = vst [vmem:[%s3362 + $0x70] sm:%s3352] %v3419
                  %v3421 = vld [vmem:[%s3361 + $0x74] sm:%s3352]
                  %3422 = vst [vmem:[%s3362 + $0x74] sm:%s3352] %v3421
                  %v3423 = vld [vmem:[%s3361 + $0x78] sm:%s3352]
                  %3424 = vst [vmem:[%s3362 + $0x78] sm:%s3352] %v3423
                  %v3425 = vld [vmem:[%s3361 + $0x7c] sm:%s3352]
                  %3426 = vst [vmem:[%s3362 + $0x7c] sm:%s3352] %v3425
                  %v3427 = vld [vmem:[%s3361 + $0x80] sm:%s3352]
                  %3428 = vst [vmem:[%s3362 + $0x80] sm:%s3352] %v3427
                  %v3429 = vld [vmem:[%s3361 + $0x84] sm:%s3352]
                  %3430 = vst [vmem:[%s3362 + $0x84] sm:%s3352] %v3429
                  %v3431 = vld [vmem:[%s3361 + $0x88] sm:%s3352]
                  %3432 = vst [vmem:[%s3362 + $0x88] sm:%s3352] %v3431
                  %v3433 = vld [vmem:[%s3361 + $0x8c] sm:%s3352]
                  %3434 = vst [vmem:[%s3362 + $0x8c] sm:%s3352] %v3433
                  %v3435 = vld [vmem:[%s3361 + $0x90] sm:%s3352]
                  %3436 = vst [vmem:[%s3362 + $0x90] sm:%s3352] %v3435
                  %v3437 = vld [vmem:[%s3361 + $0x94] sm:%s3352]
                  %3438 = vst [vmem:[%s3362 + $0x94] sm:%s3352] %v3437
                  %v3439 = vld [vmem:[%s3361 + $0x98] sm:%s3352]
                  %3440 = vst [vmem:[%s3362 + $0x98] sm:%s3352] %v3439
                  %v3441 = vld [vmem:[%s3361 + $0x9c] sm:%s3352]
                  %3442 = vst [vmem:[%s3362 + $0x9c] sm:%s3352] %v3441
                  %v3443 = vld [vmem:[%s3361 + $0xa0] sm:%s3352]
                  %3444 = vst [vmem:[%s3362 + $0xa0] sm:%s3352] %v3443
                  %v3445 = vld [vmem:[%s3361 + $0xa4] sm:%s3352]
                  %3446 = vst [vmem:[%s3362 + $0xa4] sm:%s3352] %v3445
                  %v3447 = vld [vmem:[%s3361 + $0xa8] sm:%s3352]
                  %3448 = vst [vmem:[%s3362 + $0xa8] sm:%s3352] %v3447
                  %v3449 = vld [vmem:[%s3361 + $0xac] sm:%s3352]
                  %3450 = vst [vmem:[%s3362 + $0xac] sm:%s3352] %v3449
                  %v3451 = vld [vmem:[%s3361 + $0xb0] sm:%s3352]
                  %3452 = vst [vmem:[%s3362 + $0xb0] sm:%s3352] %v3451
                  %v3453 = vld [vmem:[%s3361 + $0xb4] sm:%s3352]
                  %3454 = vst [vmem:[%s3362 + $0xb4] sm:%s3352] %v3453
                  %v3455 = vld [vmem:[%s3361 + $0xb8] sm:%s3352]
                  %3456 = vst [vmem:[%s3362 + $0xb8] sm:%s3352] %v3455
                  %v3457 = vld [vmem:[%s3361 + $0xbc] sm:%s3352]
                  %3458 = vst [vmem:[%s3362 + $0xbc] sm:%s3352] %v3457
                  %v3459 = vld [vmem:[%s3361 + $0xc0] sm:%s3352]
                  %3460 = vst [vmem:[%s3362 + $0xc0] sm:%s3352] %v3459
                  %v3461 = vld [vmem:[%s3361 + $0xc4] sm:%s3352]
                  %3462 = vst [vmem:[%s3362 + $0xc4] sm:%s3352] %v3461
                  %v3463 = vld [vmem:[%s3361 + $0xc8] sm:%s3352]
                  %3464 = vst [vmem:[%s3362 + $0xc8] sm:%s3352] %v3463
                  %v3465 = vld [vmem:[%s3361 + $0xcc] sm:%s3352]
                  %3466 = vst [vmem:[%s3362 + $0xcc] sm:%s3352] %v3465
                  %v3467 = vld [vmem:[%s3361 + $0xd0] sm:%s3352]
                  %3468 = vst [vmem:[%s3362 + $0xd0] sm:%s3352] %v3467
                  %v3469 = vld [vmem:[%s3361 + $0xd4] sm:%s3352]
                  %3470 = vst [vmem:[%s3362 + $0xd4] sm:%s3352] %v3469
                  %v3471 = vld [vmem:[%s3361 + $0xd8] sm:%s3352]
                  %3472 = vst [vmem:[%s3362 + $0xd8] sm:%s3352] %v3471
                  %v3473 = vld [vmem:[%s3361 + $0xdc] sm:%s3352]
                  %3474 = vst [vmem:[%s3362 + $0xdc] sm:%s3352] %v3473
                  %v3475 = vld [vmem:[%s3361 + $0xe0] sm:%s3352]
                  %3476 = vst [vmem:[%s3362 + $0xe0] sm:%s3352] %v3475
                  %v3477 = vld [vmem:[%s3361 + $0xe4] sm:%s3352]
                  %3478 = vst [vmem:[%s3362 + $0xe4] sm:%s3352] %v3477
                  %v3479 = vld [vmem:[%s3361 + $0xe8] sm:%s3352]
                  %3480 = vst [vmem:[%s3362 + $0xe8] sm:%s3352] %v3479
                  %v3481 = vld [vmem:[%s3361 + $0xec] sm:%s3352]
                  %3482 = vst [vmem:[%s3362 + $0xec] sm:%s3352] %v3481
                  %v3483 = vld [vmem:[%s3361 + $0xf0] sm:%s3352]
                  %3484 = vst [vmem:[%s3362 + $0xf0] sm:%s3352] %v3483
                  %v3485 = vld [vmem:[%s3361 + $0xf4] sm:%s3352]
                  %3486 = vst [vmem:[%s3362 + $0xf4] sm:%s3352] %v3485
                  %v3487 = vld [vmem:[%s3361 + $0xf8] sm:%s3352]
                  %3488 = vst [vmem:[%s3362 + $0xf8] sm:%s3352] %v3487
                  %v3489 = vld [vmem:[%s3361 + $0xfc] sm:%s3352]
                  %3490 = vst [vmem:[%s3362 + $0xfc] sm:%s3352] %v3489
                  %s3491 = sadd.s32 1, %s3360
                  %p3492 = scmp.ge.s32.totalorder %s3491, %s3353
                  %s3493 = scalar_select %p3492, 0, %s3491
                  %s3494 = smul.u32 %s3493, 256
                  %s3495 = smul.u32 %s3493, 256
                  %s3496 = scalar_lea.vmem %s3158, %s3494 [#allocation2]
                  %s3497 = scalar_lea.vmem %s3169, %s3495
                $region75: #{fno3d_forward.8} parent=69 // loop_footer
                  %s3357 = sadd.s32 %s3355, 1
                $region76: #{fno3d_forward.8} parent=69 // loop_footer_branch
                  %3354 = sbr.rel target = $region72
                $region77: #{fno3d_forward.8} parent=69 // loop_exit
                  _
                %s3498 = sshrl.u32 %s3165, 6
                %s3499 = sand.u32 %s3165, 63
                %s3500 = smul.u32 %s3498, 64
                %s3501 = smul.u32 4, %s3500
                %s3502 = scalar_lea.vmem %s3158, %s3501 [#allocation2]
                %s3503 = smul.u32 4, %s3500
                %s3504 = scalar_lea.vmem %s3169, %s3503
                // While loop
                $region78: #{fno3d_forward.8} parent=69 // loop_pre_header
                  _
                $region79: #{fno3d_forward.8} parent=69 // loop_header
                  %s3506 = sphi 0, %s3508
                  %p3507 = scmp.ge.s32.totalorder %s3506, %s3499
                  %s3511 = sphi 0, %s3518
                  %s3512 = sphi %s3502, %s3521
                  %s3513 = sphi %s3504, %s3522
                $region80: #{fno3d_forward.8} parent=69 // loop_header_branch
                  %3510 = sbr.rel (%p3507) target = $region84
                $region81: #{fno3d_forward.8} parent=69 // loop_body
                  %v3514 = vld [vmem:[%s3512] sm:%s3352]
                  %3515 = vst [vmem:[%s3513] sm:%s3352] %v3514
                  %s3516 = sadd.s32 1, %s3511
                  %p3517 = scmp.ge.s32.totalorder %s3516, %s3499
                  %s3518 = scalar_select %p3517, 0, %s3516
                  %s3519 = smul.u32 %s3518, 4
                  %s3520 = smul.u32 %s3518, 4
                  %s3521 = scalar_lea.vmem %s3502, %s3519 [#allocation2]
                  %s3522 = scalar_lea.vmem %s3504, %s3520
                $region82: #{fno3d_forward.8} parent=69 // loop_footer
                  %s3508 = sadd.s32 %s3506, 1
                $region83: #{fno3d_forward.8} parent=69 // loop_footer_branch
                  %3505 = sbr.rel target = $region79
                $region84: #{fno3d_forward.8} parent=69 // loop_exit
                  _
              $region70: #{fno3d_forward.8} parent=47 // pred_fallthru
                _
            $region48: #{fno3d_forward.8} parent=43 // pred_fallthru
              _
            // Predicated region
            $region49: #{fno3d_forward.8} parent=43 // pred_check
              _
            $region50: #{fno3d_forward.8} parent=43 // pred_check_branch
              %3176 = sbr.rel (0) target = $region52
            $region51: #{fno3d_forward.8} parent=43 // pred_region
              %s3178 = ssub.s32 16, 1
              %s3179 = sshrl.u32 %s3165, 6
              // While loop
              $region53: #{fno3d_forward.8} parent=51 // loop_pre_header
                _
              $region54: #{fno3d_forward.8} parent=51 // loop_header
                %s3181 = sphi 0, %s3183
                %p3182 = scmp.ge.s32.totalorder %s3181, %s3179
                %s3186 = sphi 0, %s3319
                %s3187 = sphi %s3158, %s3322
                %s3188 = sphi %s3169, %s3323
              $region55: #{fno3d_forward.8} parent=51 // loop_header_branch
                %3185 = sbr.rel (%p3182) target = $region59
              $region56: #{fno3d_forward.8} parent=51 // loop_body
                %v3189 = vld [vmem:[%s3187] sm:%s3178]
                %3190 = vst [vmem:[%s3188] sm:%s3178] %v3189
                %v3191 = vld [vmem:[%s3187 + $0x4] sm:%s3178]
                %3192 = vst [vmem:[%s3188 + $0x4] sm:%s3178] %v3191
                %v3193 = vld [vmem:[%s3187 + $0x8] sm:%s3178]
                %3194 = vst [vmem:[%s3188 + $0x8] sm:%s3178] %v3193
                %v3195 = vld [vmem:[%s3187 + $0xc] sm:%s3178]
                %3196 = vst [vmem:[%s3188 + $0xc] sm:%s3178] %v3195
                %v3197 = vld [vmem:[%s3187 + $0x10] sm:%s3178]
                %3198 = vst [vmem:[%s3188 + $0x10] sm:%s3178] %v3197
                %v3199 = vld [vmem:[%s3187 + $0x14] sm:%s3178]
                %3200 = vst [vmem:[%s3188 + $0x14] sm:%s3178] %v3199
                %v3201 = vld [vmem:[%s3187 + $0x18] sm:%s3178]
                %3202 = vst [vmem:[%s3188 + $0x18] sm:%s3178] %v3201
                %v3203 = vld [vmem:[%s3187 + $0x1c] sm:%s3178]
                %3204 = vst [vmem:[%s3188 + $0x1c] sm:%s3178] %v3203
                %v3205 = vld [vmem:[%s3187 + $0x20] sm:%s3178]
                %3206 = vst [vmem:[%s3188 + $0x20] sm:%s3178] %v3205
                %v3207 = vld [vmem:[%s3187 + $0x24] sm:%s3178]
                %3208 = vst [vmem:[%s3188 + $0x24] sm:%s3178] %v3207
                %v3209 = vld [vmem:[%s3187 + $0x28] sm:%s3178]
                %3210 = vst [vmem:[%s3188 + $0x28] sm:%s3178] %v3209
                %v3211 = vld [vmem:[%s3187 + $0x2c] sm:%s3178]
                %3212 = vst [vmem:[%s3188 + $0x2c] sm:%s3178] %v3211
                %v3213 = vld [vmem:[%s3187 + $0x30] sm:%s3178]
                %3214 = vst [vmem:[%s3188 + $0x30] sm:%s3178] %v3213
                %v3215 = vld [vmem:[%s3187 + $0x34] sm:%s3178]
                %3216 = vst [vmem:[%s3188 + $0x34] sm:%s3178] %v3215
                %v3217 = vld [vmem:[%s3187 + $0x38] sm:%s3178]
                %3218 = vst [vmem:[%s3188 + $0x38] sm:%s3178] %v3217
                %v3219 = vld [vmem:[%s3187 + $0x3c] sm:%s3178]
                %3220 = vst [vmem:[%s3188 + $0x3c] sm:%s3178] %v3219
                %v3221 = vld [vmem:[%s3187 + $0x40] sm:%s3178]
                %3222 = vst [vmem:[%s3188 + $0x40] sm:%s3178] %v3221
                %v3223 = vld [vmem:[%s3187 + $0x44] sm:%s3178]
                %3224 = vst [vmem:[%s3188 + $0x44] sm:%s3178] %v3223
                %v3225 = vld [vmem:[%s3187 + $0x48] sm:%s3178]
                %3226 = vst [vmem:[%s3188 + $0x48] sm:%s3178] %v3225
                %v3227 = vld [vmem:[%s3187 + $0x4c] sm:%s3178]
                %3228 = vst [vmem:[%s3188 + $0x4c] sm:%s3178] %v3227
                %v3229 = vld [vmem:[%s3187 + $0x50] sm:%s3178]
                %3230 = vst [vmem:[%s3188 + $0x50] sm:%s3178] %v3229
                %v3231 = vld [vmem:[%s3187 + $0x54] sm:%s3178]
                %3232 = vst [vmem:[%s3188 + $0x54] sm:%s3178] %v3231
                %v3233 = vld [vmem:[%s3187 + $0x58] sm:%s3178]
                %3234 = vst [vmem:[%s3188 + $0x58] sm:%s3178] %v3233
                %v3235 = vld [vmem:[%s3187 + $0x5c] sm:%s3178]
                %3236 = vst [vmem:[%s3188 + $0x5c] sm:%s3178] %v3235
                %v3237 = vld [vmem:[%s3187 + $0x60] sm:%s3178]
                %3238 = vst [vmem:[%s3188 + $0x60] sm:%s3178] %v3237
                %v3239 = vld [vmem:[%s3187 + $0x64] sm:%s3178]
                %3240 = vst [vmem:[%s3188 + $0x64] sm:%s3178] %v3239
                %v3241 = vld [vmem:[%s3187 + $0x68] sm:%s3178]
                %3242 = vst [vmem:[%s3188 + $0x68] sm:%s3178] %v3241
                %v3243 = vld [vmem:[%s3187 + $0x6c] sm:%s3178]
                %3244 = vst [vmem:[%s3188 + $0x6c] sm:%s3178] %v3243
                %v3245 = vld [vmem:[%s3187 + $0x70] sm:%s3178]
                %3246 = vst [vmem:[%s3188 + $0x70] sm:%s3178] %v3245
                %v3247 = vld [vmem:[%s3187 + $0x74] sm:%s3178]
                %3248 = vst [vmem:[%s3188 + $0x74] sm:%s3178] %v3247
                %v3249 = vld [vmem:[%s3187 + $0x78] sm:%s3178]
                %3250 = vst [vmem:[%s3188 + $0x78] sm:%s3178] %v3249
                %v3251 = vld [vmem:[%s3187 + $0x7c] sm:%s3178]
                %3252 = vst [vmem:[%s3188 + $0x7c] sm:%s3178] %v3251
                %v3253 = vld [vmem:[%s3187 + $0x80] sm:%s3178]
                %3254 = vst [vmem:[%s3188 + $0x80] sm:%s3178] %v3253
                %v3255 = vld [vmem:[%s3187 + $0x84] sm:%s3178]
                %3256 = vst [vmem:[%s3188 + $0x84] sm:%s3178] %v3255
                %v3257 = vld [vmem:[%s3187 + $0x88] sm:%s3178]
                %3258 = vst [vmem:[%s3188 + $0x88] sm:%s3178] %v3257
                %v3259 = vld [vmem:[%s3187 + $0x8c] sm:%s3178]
                %3260 = vst [vmem:[%s3188 + $0x8c] sm:%s3178] %v3259
                %v3261 = vld [vmem:[%s3187 + $0x90] sm:%s3178]
                %3262 = vst [vmem:[%s3188 + $0x90] sm:%s3178] %v3261
                %v3263 = vld [vmem:[%s3187 + $0x94] sm:%s3178]
                %3264 = vst [vmem:[%s3188 + $0x94] sm:%s3178] %v3263
                %v3265 = vld [vmem:[%s3187 + $0x98] sm:%s3178]
                %3266 = vst [vmem:[%s3188 + $0x98] sm:%s3178] %v3265
                %v3267 = vld [vmem:[%s3187 + $0x9c] sm:%s3178]
                %3268 = vst [vmem:[%s3188 + $0x9c] sm:%s3178] %v3267
                %v3269 = vld [vmem:[%s3187 + $0xa0] sm:%s3178]
                %3270 = vst [vmem:[%s3188 + $0xa0] sm:%s3178] %v3269
                %v3271 = vld [vmem:[%s3187 + $0xa4] sm:%s3178]
                %3272 = vst [vmem:[%s3188 + $0xa4] sm:%s3178] %v3271
                %v3273 = vld [vmem:[%s3187 + $0xa8] sm:%s3178]
                %3274 = vst [vmem:[%s3188 + $0xa8] sm:%s3178] %v3273
                %v3275 = vld [vmem:[%s3187 + $0xac] sm:%s3178]
                %3276 = vst [vmem:[%s3188 + $0xac] sm:%s3178] %v3275
                %v3277 = vld [vmem:[%s3187 + $0xb0] sm:%s3178]
                %3278 = vst [vmem:[%s3188 + $0xb0] sm:%s3178] %v3277
                %v3279 = vld [vmem:[%s3187 + $0xb4] sm:%s3178]
                %3280 = vst [vmem:[%s3188 + $0xb4] sm:%s3178] %v3279
                %v3281 = vld [vmem:[%s3187 + $0xb8] sm:%s3178]
                %3282 = vst [vmem:[%s3188 + $0xb8] sm:%s3178] %v3281
                %v3283 = vld [vmem:[%s3187 + $0xbc] sm:%s3178]
                %3284 = vst [vmem:[%s3188 + $0xbc] sm:%s3178] %v3283
                %v3285 = vld [vmem:[%s3187 + $0xc0] sm:%s3178]
                %3286 = vst [vmem:[%s3188 + $0xc0] sm:%s3178] %v3285
                %v3287 = vld [vmem:[%s3187 + $0xc4] sm:%s3178]
                %3288 = vst [vmem:[%s3188 + $0xc4] sm:%s3178] %v3287
                %v3289 = vld [vmem:[%s3187 + $0xc8] sm:%s3178]
                %3290 = vst [vmem:[%s3188 + $0xc8] sm:%s3178] %v3289
                %v3291 = vld [vmem:[%s3187 + $0xcc] sm:%s3178]
                %3292 = vst [vmem:[%s3188 + $0xcc] sm:%s3178] %v3291
                %v3293 = vld [vmem:[%s3187 + $0xd0] sm:%s3178]
                %3294 = vst [vmem:[%s3188 + $0xd0] sm:%s3178] %v3293
                %v3295 = vld [vmem:[%s3187 + $0xd4] sm:%s3178]
                %3296 = vst [vmem:[%s3188 + $0xd4] sm:%s3178] %v3295
                %v3297 = vld [vmem:[%s3187 + $0xd8] sm:%s3178]
                %3298 = vst [vmem:[%s3188 + $0xd8] sm:%s3178] %v3297
                %v3299 = vld [vmem:[%s3187 + $0xdc] sm:%s3178]
                %3300 = vst [vmem:[%s3188 + $0xdc] sm:%s3178] %v3299
                %v3301 = vld [vmem:[%s3187 + $0xe0] sm:%s3178]
                %3302 = vst [vmem:[%s3188 + $0xe0] sm:%s3178] %v3301
                %v3303 = vld [vmem:[%s3187 + $0xe4] sm:%s3178]
                %3304 = vst [vmem:[%s3188 + $0xe4] sm:%s3178] %v3303
                %v3305 = vld [vmem:[%s3187 + $0xe8] sm:%s3178]
                %3306 = vst [vmem:[%s3188 + $0xe8] sm:%s3178] %v3305
                %v3307 = vld [vmem:[%s3187 + $0xec] sm:%s3178]
                %3308 = vst [vmem:[%s3188 + $0xec] sm:%s3178] %v3307
                %v3309 = vld [vmem:[%s3187 + $0xf0] sm:%s3178]
                %3310 = vst [vmem:[%s3188 + $0xf0] sm:%s3178] %v3309
                %v3311 = vld [vmem:[%s3187 + $0xf4] sm:%s3178]
                %3312 = vst [vmem:[%s3188 + $0xf4] sm:%s3178] %v3311
                %v3313 = vld [vmem:[%s3187 + $0xf8] sm:%s3178]
                %3314 = vst [vmem:[%s3188 + $0xf8] sm:%s3178] %v3313
                %v3315 = vld [vmem:[%s3187 + $0xfc] sm:%s3178]
                %3316 = vst [vmem:[%s3188 + $0xfc] sm:%s3178] %v3315
                %s3317 = sadd.s32 1, %s3186
                %p3318 = scmp.ge.s32.totalorder %s3317, %s3179
                %s3319 = scalar_select %p3318, 0, %s3317
                %s3320 = smul.u32 %s3319, 256
                %s3321 = smul.u32 %s3319, 256
                %s3322 = scalar_lea.vmem %s3158, %s3320 [#allocation2]
                %s3323 = scalar_lea.vmem %s3169, %s3321
              $region57: #{fno3d_forward.8} parent=51 // loop_footer
                %s3183 = sadd.s32 %s3181, 1
              $region58: #{fno3d_forward.8} parent=51 // loop_footer_branch
                %3180 = sbr.rel target = $region54
              $region59: #{fno3d_forward.8} parent=51 // loop_exit
                _
              %s3324 = sshrl.u32 %s3165, 6
              %s3325 = sand.u32 %s3165, 63
              %s3326 = smul.u32 %s3324, 64
              %s3327 = smul.u32 4, %s3326
              %s3328 = scalar_lea.vmem %s3158, %s3327 [#allocation2]
              %s3329 = smul.u32 4, %s3326
              %s3330 = scalar_lea.vmem %s3169, %s3329
              // While loop
              $region60: #{fno3d_forward.8} parent=51 // loop_pre_header
                _
              $region61: #{fno3d_forward.8} parent=51 // loop_header
                %s3332 = sphi 0, %s3334
                %p3333 = scmp.ge.s32.totalorder %s3332, %s3325
                %s3337 = sphi 0, %s3344
                %s3338 = sphi %s3328, %s3347
                %s3339 = sphi %s3330, %s3348
              $region62: #{fno3d_forward.8} parent=51 // loop_header_branch
                %3336 = sbr.rel (%p3333) target = $region66
              $region63: #{fno3d_forward.8} parent=51 // loop_body
                %v3340 = vld [vmem:[%s3338] sm:%s3178]
                %3341 = vst [vmem:[%s3339] sm:%s3178] %v3340
                %s3342 = sadd.s32 1, %s3337
                %p3343 = scmp.ge.s32.totalorder %s3342, %s3325
                %s3344 = scalar_select %p3343, 0, %s3342
                %s3345 = smul.u32 %s3344, 4
                %s3346 = smul.u32 %s3344, 4
                %s3347 = scalar_lea.vmem %s3328, %s3345 [#allocation2]
                %s3348 = scalar_lea.vmem %s3330, %s3346
              $region64: #{fno3d_forward.8} parent=51 // loop_footer
                %s3334 = sadd.s32 %s3332, 1
              $region65: #{fno3d_forward.8} parent=51 // loop_footer_branch
                %3331 = sbr.rel target = $region61
              $region66: #{fno3d_forward.8} parent=51 // loop_exit
                _
            $region52: #{fno3d_forward.8} parent=43 // pred_fallthru
              _
          $region44: #{fno3d_forward.8} parent=39 // pred_fallthru
            _
          %3523 = vnop
        $region40: #{fno3d_forward.8} parent=35 // pred_fallthru
          _
      $region36: #{fno3d_forward.8} parent=5 // pred_fallthru
        _
      %p3524 = scmp.le.s32.totalorder 2, %s10
      // Predicated region
      $region85: #{fno3d_forward.8} parent=5 // pred_check
        %p3525 = pneg %p3524
      $region86: #{fno3d_forward.8} parent=5 // pred_check_branch
        %3527 = sbr.rel (%p3525) target = $region88
      $region87: #{fno3d_forward.8} parent=5 // pred_region
        %s3528 = ssub.s32 %s10, 2
        // Predicated region
        $region89: #{fno3d_forward.8} parent=87 // pred_check
          %p3529 = pneg %p133
        $region90: #{fno3d_forward.8} parent=87 // pred_check_branch
          %3531 = sbr.rel (%p3529) target = $region92
        $region91: #{fno3d_forward.8} parent=87 // pred_region
          %s3532 = sand.u32 %s118, 1
          %s3533 = sand.u32 %s118, 1
          %s3534 = smul.addr %s3533, 256
          %s3535 = scalar_lea.vmem [#allocation2], %s3534
        $region92: #{fno3d_forward.8} parent=87 // pred_fallthru
          _
      $region88: #{fno3d_forward.8} parent=5 // pred_fallthru
        _
    $region6: #{fno3d_forward.8} parent=1 // loop_footer
      %s14 = sadd.s32 1, %s10
    $region7: #{fno3d_forward.8} parent=1 // loop_footer_branch
      %9 = sbr.rel target = $region3
    $region8: #{fno3d_forward.8} parent=1 // loop_exit
      _

// kernel: fno3d_forward.11
$region0: #{fno3d_forward.11}
  #allocation0 [shape = 'u32[]', space=smem, size = 0x4, offset = 0x4, fixed_abs, tag = 'smem constant byte address 0x4 - core index']
  #allocation1 [shape = 'u32[144,128]{1,0:T(1,128)}', space=vmem, size = 0x12000, scoped, tag = 'internal scratch']
  #allocation2 [shape = 'f32[1,1]{1,0:T(1,128)S(1)}', space=vmem, size = 0x200, scoped, tag = 'scoped memory for fno3d_forward.11']
  %s0 = inlined_call_operand.vmem [shape: bf16[1024,32], index: 0, kind: input, shape index: {}]
  %s1 = inlined_call_operand.vmem [shape: f32[32,128], index: 1, kind: input, shape index: {}]
  %s2 = inlined_call_operand.vmem [shape: f32[1,128], index: 2, kind: input, shape index: {}]
  %s3 = inlined_call_operand.vmem [shape: f32[1,128], index: 3, kind: input, shape index: {}]
  %s4 = inlined_call_operand.<no memory space> [shape: f32[1,1], index: 4, kind: input, shape index: {}]
  %s5 = inlined_call_operand.vmem [shape: f32[1024,1], index: 5, kind: output, shape index: {}]
  %s6 = sld [smem:[#allocation0]]
  $region53: #{fno3d_forward.11} parent=0
    _
  %s8 = ssub.s32 1, %s6
  %s9 = scalar_select 0, %s8, %s6
  %v10 = vstv %s4
  %11 = vst [vmem:[#allocation2] sm:$0x1] %v10
  loop: start=0, step=1, limit=6
  $region2: #{fno3d_forward.11} parent=0 // loop_pre_header
    _
  $region3: #{fno3d_forward.11} parent=0 // loop_header
    %s13 = sphi 0, %s17
    %p14 = scmp.ge.s32.totalorder %s13, 6
    %s23 = sphi 0, %s25
    %s26 = sphi 0, %s23
    %s27 = sphi 0, %s26
    %s43 = sphi 0, %s27
    %s47 = sphi 0, %s47
    %s49 = sphi 0, %s47
    %s50 = sphi 0, %s49
    %s64 = sphi 0, %s50
    %s68 = sphi 0, %s68
    %s70 = sphi 0, %s68
    %s71 = sphi 0, %s70
    %s85 = sphi 0, %s71
    %s89 = sphi 0, %s89
    %s91 = sphi 0, %s89
    %s92 = sphi 0, %s91
    %s106 = sphi 0, %s92
    %s110 = sphi 0, %s110
    %s112 = sphi 0, %s110
    %s113 = sphi 0, %s112
    %s127 = sphi 0, %s113
    %s133 = sphi 0, %s135
    %s136 = sphi 0, %s133
    %s137 = sphi 0, %s136
    %s153 = sphi 0, %s137
  $region4: #{fno3d_forward.11} parent=0 // loop_header_branch
    %16 = sbr.rel (%p14) target = $region8
  $region5: #{fno3d_forward.11} parent=0 // loop_body
    %s18 = ssub.s32 %s13, 1
    %s19 = ssub.s32 %s13, 2
    %s20 = sadd.s32 %s13, 1
    %s21 = ssub.s32 %s13, %s20
    %p22 = scmp.eq.s32.totalorder %s21, 0
    %s24 = sadd.s32 %s23, 1
    %s25 = scalar_select %p22, %s23, %s24
    %p28 = pneg %p22
    %p29 = scmp.eq.s32.totalorder %s13, 3
    %p30 = por %p28, %p29
    %p31 = scmp.ne.s32.totalorder %s23, %s26
    %p32 = scmp.eq.s32.totalorder %s13, 0
    %p33 = por %p31, %p32
    %p34 = scmp.ne.s32.totalorder %s23, %s26
    %p35 = scmp.eq.s32.totalorder %s18, 3
    %p36 = por %p34, %p35
    %p37 = scmp.ne.s32.totalorder %s26, %s27
    %p38 = scmp.eq.s32.totalorder %s18, 0
    %p39 = por %p37, %p38
    %p40 = scmp.ne.s32.totalorder %s26, %s27
    %p41 = scmp.eq.s32.totalorder %s19, 3
    %p42 = por %p40, %p41
    %p44 = scmp.ne.s32.totalorder %s27, %s43
    %p45 = scmp.eq.s32.totalorder %s19, 0
    %p46 = por %p44, %p45
    %s48 = sadd.s32 %s47, 1
    %p51 = scmp.eq.s32.totalorder %s13, 3
    %p52 = scmp.ne.s32.totalorder %s47, %s49
    %p53 = scmp.eq.s32.totalorder %s13, 0
    %p54 = por %p52, %p53
    %p55 = scmp.ne.s32.totalorder %s47, %s49
    %p56 = scmp.eq.s32.totalorder %s18, 3
    %p57 = por %p55, %p56
    %p58 = scmp.ne.s32.totalorder %s49, %s50
    %p59 = scmp.eq.s32.totalorder %s18, 0
    %p60 = por %p58, %p59
    %p61 = scmp.ne.s32.totalorder %s49, %s50
    %p62 = scmp.eq.s32.totalorder %s19, 3
    %p63 = por %p61, %p62
    %p65 = scmp.ne.s32.totalorder %s50, %s64
    %p66 = scmp.eq.s32.totalorder %s19, 0
    %p67 = por %p65, %p66
    %s69 = sadd.s32 %s68, 1
    %p72 = scmp.eq.s32.totalorder %s13, 3
    %p73 = scmp.ne.s32.totalorder %s68, %s70
    %p74 = scmp.eq.s32.totalorder %s13, 0
    %p75 = por %p73, %p74
    %p76 = scmp.ne.s32.totalorder %s68, %s70
    %p77 = scmp.eq.s32.totalorder %s18, 3
    %p78 = por %p76, %p77
    %p79 = scmp.ne.s32.totalorder %s70, %s71
    %p80 = scmp.eq.s32.totalorder %s18, 0
    %p81 = por %p79, %p80
    %p82 = scmp.ne.s32.totalorder %s70, %s71
    %p83 = scmp.eq.s32.totalorder %s19, 3
    %p84 = por %p82, %p83
    %p86 = scmp.ne.s32.totalorder %s71, %s85
    %p87 = scmp.eq.s32.totalorder %s19, 0
    %p88 = por %p86, %p87
    %s90 = sadd.s32 %s89, 1
    %p93 = scmp.eq.s32.totalorder %s13, 3
    %p94 = scmp.ne.s32.totalorder %s89, %s91
    %p95 = scmp.eq.s32.totalorder %s13, 0
    %p96 = por %p94, %p95
    %p97 = scmp.ne.s32.totalorder %s89, %s91
    %p98 = scmp.eq.s32.totalorder %s18, 3
    %p99 = por %p97, %p98
    %p100 = scmp.ne.s32.totalorder %s91, %s92
    %p101 = scmp.eq.s32.totalorder %s18, 0
    %p102 = por %p100, %p101
    %p103 = scmp.ne.s32.totalorder %s91, %s92
    %p104 = scmp.eq.s32.totalorder %s19, 3
    %p105 = por %p103, %p104
    %p107 = scmp.ne.s32.totalorder %s92, %s106
    %p108 = scmp.eq.s32.totalorder %s19, 0
    %p109 = por %p107, %p108
    %s111 = sadd.s32 %s110, 1
    %p114 = scmp.eq.s32.totalorder %s13, 3
    %p115 = scmp.ne.s32.totalorder %s110, %s112
    %p116 = scmp.eq.s32.totalorder %s13, 0
    %p117 = por %p115, %p116
    %p118 = scmp.ne.s32.totalorder %s110, %s112
    %p119 = scmp.eq.s32.totalorder %s18, 3
    %p120 = por %p118, %p119
    %p121 = scmp.ne.s32.totalorder %s112, %s113
    %p122 = scmp.eq.s32.totalorder %s18, 0
    %p123 = por %p121, %p122
    %p124 = scmp.ne.s32.totalorder %s112, %s113
    %p125 = scmp.eq.s32.totalorder %s19, 3
    %p126 = por %p124, %p125
    %p128 = scmp.ne.s32.totalorder %s113, %s127
    %p129 = scmp.eq.s32.totalorder %s19, 0
    %p130 = por %p128, %p129
    %s131 = ssub.s32 %s13, %s20
    %p132 = scmp.eq.s32.totalorder %s131, 0
    %s134 = sadd.s32 %s133, 1
    %s135 = scalar_select %p132, %s133, %s134
    %p138 = pneg %p132
    %p139 = scmp.eq.s32.totalorder %s13, 3
    %p140 = por %p138, %p139
    %p141 = scmp.ne.s32.totalorder %s133, %s136
    %p142 = scmp.eq.s32.totalorder %s13, 0
    %p143 = por %p141, %p142
    %p144 = scmp.ne.s32.totalorder %s133, %s136
    %p145 = scmp.eq.s32.totalorder %s18, 3
    %p146 = por %p144, %p145
    %p147 = scmp.ne.s32.totalorder %s136, %s137
    %p148 = scmp.eq.s32.totalorder %s18, 0
    %p149 = por %p147, %p148
    %p150 = scmp.ne.s32.totalorder %s136, %s137
    %p151 = scmp.eq.s32.totalorder %s19, 3
    %p152 = por %p150, %p151
    %p154 = scmp.ne.s32.totalorder %s137, %s153
    %p155 = scmp.eq.s32.totalorder %s19, 0
    %p156 = por %p154, %p155
    %p157 = scmp.le.s32.totalorder 1, %s13
    %p158 = scmp.lt.s32.totalorder %s13, 5
    %p159 = pnand %p157, %p158
    %p160 = pneg %p159
    // Predicated region
    $region9: #{fno3d_forward.11} parent=5 // pred_check
      _
    $region10: #{fno3d_forward.11} parent=5 // pred_check_branch
      %162 = sbr.rel (%p159) target = $region12
    $region11: #{fno3d_forward.11} parent=5 // pred_region
      %s163 = ssub.s32 %s13, 1
      // Predicated region
      $region13: #{fno3d_forward.11} parent=11 // pred_check
        %p164 = pneg %p60
      $region14: #{fno3d_forward.11} parent=11 // pred_check_branch
        %166 = sbr.rel (%p164) target = $region16
      $region15: #{fno3d_forward.11} parent=11 // pred_region
        _
      $region16: #{fno3d_forward.11} parent=11 // pred_fallthru
        _
      // Predicated region
      $region17: #{fno3d_forward.11} parent=11 // pred_check
        %p167 = pneg %p81
      $region18: #{fno3d_forward.11} parent=11 // pred_check_branch
        %169 = sbr.rel (%p167) target = $region20
      $region19: #{fno3d_forward.11} parent=11 // pred_region
        _
      $region20: #{fno3d_forward.11} parent=11 // pred_fallthru
        _
      // Predicated region
      $region21: #{fno3d_forward.11} parent=11 // pred_check
        %p170 = pneg %p102
      $region22: #{fno3d_forward.11} parent=11 // pred_check_branch
        %172 = sbr.rel (%p170) target = $region24
      $region23: #{fno3d_forward.11} parent=11 // pred_region
        _
      $region24: #{fno3d_forward.11} parent=11 // pred_fallthru
        _
      // Predicated region
      $region25: #{fno3d_forward.11} parent=11 // pred_check
        %p173 = pneg %p123
      $region26: #{fno3d_forward.11} parent=11 // pred_check_branch
        %175 = sbr.rel (%p173) target = $region28
      $region27: #{fno3d_forward.11} parent=11 // pred_region
        _
      $region28: #{fno3d_forward.11} parent=11 // pred_fallthru
        _
    $region12: #{fno3d_forward.11} parent=5 // pred_fallthru
      _
    %p176 = scmp.lt.s32.totalorder %s13, 4
    // Predicated region
    $region29: #{fno3d_forward.11} parent=5 // pred_check
      %p177 = pneg %p176
    $region30: #{fno3d_forward.11} parent=5 // pred_check_branch
      %179 = sbr.rel (%p177) target = $region32
    $region31: #{fno3d_forward.11} parent=5 // pred_region
      // Predicated region
      $region33: #{fno3d_forward.11} parent=31 // pred_check
        %p180 = pneg %p33
      $region34: #{fno3d_forward.11} parent=31 // pred_check_branch
        %182 = sbr.rel (%p180) target = $region36
      $region35: #{fno3d_forward.11} parent=31 // pred_region
        %s183 = smul.u32 32, %s13
        %p184 = scmp.lt.s32.totalorder %s183, 127
        %s185 = scalar_select %p184, %s183, 127
        %s186 = smul.addr %s185, 4
        %s187 = scalar_lea.vmem %s0, %s186
        %s188 = smul.u32 32, %s13
      $region36: #{fno3d_forward.11} parent=31 // pred_fallthru
        _
    $region32: #{fno3d_forward.11} parent=5 // pred_fallthru
      _
    %p189 = scmp.le.s32.totalorder 1, %s13
    %p190 = scmp.lt.s32.totalorder %s13, 5
    %p191 = pnand %p189, %p190
    %p192 = pneg %p191
    // Predicated region
    $region37: #{fno3d_forward.11} parent=5 // pred_check
      _
    $region38: #{fno3d_forward.11} parent=5 // pred_check_branch
      %194 = sbr.rel (%p191) target = $region40
    $region39: #{fno3d_forward.11} parent=5 // pred_region
      %s195 = ssub.s32 %s13, 1
      %s196 = smul.u32 32, %s18
      %p197 = scmp.lt.s32.totalorder %s196, 127
      %s198 = scalar_select %p197, %s196, 127
      %s199 = smul.addr %s198, 4
      %s200 = scalar_lea.vmem %s0, %s199
      %p201 = pneg %p39
      %p202 = pneg %p36
      %p203 = pneg %p60
      %p204 = pneg %p57
      %p205 = pneg %p81
      %p206 = pneg %p78
      %p207 = pneg %p102
      %p208 = pneg %p99
      %p209 = pneg %p123
      %p210 = pneg %p120
      %p211 = pneg %p149
      %p212 = pneg %p146
      %s213 = smul.u32 32, %s18
      %p214 = scmp.lt.s32.totalorder %s213, 127
      %s215 = scalar_select %p214, %s213, 127
      %s216 = smul.addr %s215, 8
      %s217 = scalar_lea.vmem %s5, %s216
      %s218 = smul.u32 32, %s18
      %p219 = scmp.lt.s32.totalorder %s218, 127
      %s220 = scalar_select %p219, %s218, 127
      %s221 = smul.addr %s220, 4
      %s222 = scalar_lea.vmem %s0, %s221
      %s223 = smul.u32 32, %s18
      %s224 = smul.u32 32, %s18
      %p225 = scmp.lt.s32.totalorder %s224, 127
      %s226 = scalar_select %p225, %s224, 127
      %s227 = smul.addr %s226, 8
      %s228 = scalar_lea.vmem %s5, %s227
      %s229 = smul.u32 32, %s18
      %v230 = vld [vmem:[%s222] sm:$0xf]
      %v231 = vld [vmem:[%s222 + $0x4] sm:$0xf]
      %v232 = vld [vmem:[%s222 + $0x8] sm:$0xf]
      %v233 = vld [vmem:[%s222 + $0xc] sm:$0xf]
      %v234 = vld [vmem:[%s222 + $0x10] sm:$0xf]
      %v235 = vld [vmem:[%s222 + $0x14] sm:$0xf]
      %v236 = vld [vmem:[%s222 + $0x18] sm:$0xf]
      %v237 = vld [vmem:[%s222 + $0x1c] sm:$0xf]
      %v238 = vld [vmem:[%s222 + $0x20] sm:$0xf]
      %v239 = vld [vmem:[%s222 + $0x24] sm:$0xf]
      %v240 = vld [vmem:[%s222 + $0x28] sm:$0xf]
      %v241 = vld [vmem:[%s222 + $0x2c] sm:$0xf]
      %v242 = vld [vmem:[%s222 + $0x30] sm:$0xf]
      %v243 = vld [vmem:[%s222 + $0x34] sm:$0xf]
      %v244 = vld [vmem:[%s222 + $0x38] sm:$0xf]
      %v245 = vld [vmem:[%s222 + $0x3c] sm:$0xf]
      %v246 = vld [vmem:[%s222 + $0x40] sm:$0xf]
      %v247 = vld [vmem:[%s222 + $0x44] sm:$0xf]
      %v248 = vld [vmem:[%s222 + $0x48] sm:$0xf]
      %v249 = vld [vmem:[%s222 + $0x4c] sm:$0xf]
      %v250 = vld [vmem:[%s222 + $0x50] sm:$0xf]
      %v251 = vld [vmem:[%s222 + $0x54] sm:$0xf]
      %v252 = vld [vmem:[%s222 + $0x58] sm:$0xf]
      %v253 = vld [vmem:[%s222 + $0x5c] sm:$0xf]
      %v254 = vld [vmem:[%s222 + $0x60] sm:$0xf]
      %v255 = vld [vmem:[%s222 + $0x64] sm:$0xf]
      %v256 = vld [vmem:[%s222 + $0x68] sm:$0xf]
      %v257 = vld [vmem:[%s222 + $0x6c] sm:$0xf]
      %v258 = vld [vmem:[%s222 + $0x70] sm:$0xf]
      %v259 = vld [vmem:[%s222 + $0x74] sm:$0xf]
      %v260 = vld [vmem:[%s222 + $0x78] sm:$0xf]
      %v261 = vld [vmem:[%s222 + $0x7c] sm:$0xf]
      %v262 = vunpack.c.l.bf16 %v230
      %v263 = vunpack.c.l.bf16 %v231
      %v264 = vunpack.c.l.bf16 %v232
      %v265 = vunpack.c.l.bf16 %v233
      %v266 = vunpack.c.l.bf16 %v234
      %v267 = vunpack.c.l.bf16 %v235
      %v268 = vunpack.c.l.bf16 %v236
      %v269 = vunpack.c.l.bf16 %v237
      %v270 = vunpack.c.l.bf16 %v238
      %v271 = vunpack.c.l.bf16 %v239
      %v272 = vunpack.c.l.bf16 %v240
      %v273 = vunpack.c.l.bf16 %v241
      %v274 = vunpack.c.l.bf16 %v242
      %v275 = vunpack.c.l.bf16 %v243
      %v276 = vunpack.c.l.bf16 %v244
      %v277 = vunpack.c.l.bf16 %v245
      %v278 = vunpack.c.l.bf16 %v246
      %v279 = vunpack.c.l.bf16 %v247
      %v280 = vunpack.c.l.bf16 %v248
      %v281 = vunpack.c.l.bf16 %v249
      %v282 = vunpack.c.l.bf16 %v250
      %v283 = vunpack.c.l.bf16 %v251
      %v284 = vunpack.c.l.bf16 %v252
      %v285 = vunpack.c.l.bf16 %v253
      %v286 = vunpack.c.l.bf16 %v254
      %v287 = vunpack.c.l.bf16 %v255
      %v288 = vunpack.c.l.bf16 %v256
      %v289 = vunpack.c.l.bf16 %v257
      %v290 = vunpack.c.l.bf16 %v258
      %v291 = vunpack.c.l.bf16 %v259
      %v292 = vunpack.c.l.bf16 %v260
      %v293 = vunpack.c.l.bf16 %v261
      %v294 = vld [vmem:[%s1] sm:$0xff]
      %v295 = vld [vmem:[%s1 + $0x8] sm:$0xff]
      %v296 = vld [vmem:[%s1 + $0x10] sm:$0xff]
      %v297 = vld [vmem:[%s1 + $0x18] sm:$0xff]
      %v298 = vld [vmem:[%s2] sm:$0x1]
      %v300 = vlaneseq
      %v301 = vshrl.u32 %v300, 7
      %v302 = vsub.s32 0, %v301
      %v303 = vrot.slane %v298, %v302
      %vm305 = vcmask 261120
      %v307 = vsel %vm305, %v262, 0
      %v310 = vsel %vm305, %v263, 0
      %v313 = vsel %vm305, %v264, 0
      %v316 = vsel %vm305, %v265, 0
      %v319 = vsel %vm305, %v266, 0
      %v322 = vsel %vm305, %v267, 0
      %v325 = vsel %vm305, %v268, 0
      %v328 = vsel %vm305, %v269, 0
      %v331 = vsel %vm305, %v270, 0
      %v334 = vsel %vm305, %v271, 0
      %v337 = vsel %vm305, %v272, 0
      %v340 = vsel %vm305, %v273, 0
      %v343 = vsel %vm305, %v274, 0
      %v346 = vsel %vm305, %v275, 0
      %v349 = vsel %vm305, %v276, 0
      %v352 = vsel %vm305, %v277, 0
      %v355 = vsel %vm305, %v278, 0
      %v358 = vsel %vm305, %v279, 0
      %v361 = vsel %vm305, %v280, 0
      %v364 = vsel %vm305, %v281, 0
      %v367 = vsel %vm305, %v282, 0
      %v370 = vsel %vm305, %v283, 0
      %v373 = vsel %vm305, %v284, 0
      %v376 = vsel %vm305, %v285, 0
      %v379 = vsel %vm305, %v286, 0
      %v382 = vsel %vm305, %v287, 0
      %v385 = vsel %vm305, %v288, 0
      %v388 = vsel %vm305, %v289, 0
      %v391 = vsel %vm305, %v290, 0
      %v394 = vsel %vm305, %v291, 0
      %v397 = vsel %vm305, %v292, 0
      %v400 = vsel %vm305, %v293, 0
      %402 = vmatprep.subr.mxu0 0.0
      %403 = vmatpush1.msra.mxu0 0.0
      %404 = vmatprep.subr.mxu0 0.0
      %405 = vmatpush1.msra.mxu0 0.0
      %406 = vmatprep.subr.mxu0 0.0
      %407 = vmatpush1.msra.mxu0 0.0
      %408 = vmatprep.subr.mxu0 0.0
      %409 = vmatpush1.msra.mxu0 0.0
      %410 = vmatprep.subr.mxu0 0.0
      %411 = vmatpush1.msra.mxu0 0.0
      %412 = vmatprep.subr.mxu0 0.0
      %413 = vmatpush1.msra.mxu0 0.0
      %414 = vmatprep.subr.mxu0 0.0
      %415 = vmatpush1.msra.mxu0 0.0
      %416 = vmatprep.subr.mxu0 0.0
      %417 = vmatpush1.msra.mxu0 0.0
      %418 = vmatprep.subr.mxu0 0.0
      %419 = vmatpush1.msra.mxu0 0.0
      %420 = vmatprep.subr.mxu0 0.0
      %421 = vmatpush1.msra.mxu0 0.0
      %422 = vmatprep.subr.mxu0 0.0
      %423 = vmatpush1.msra.mxu0 0.0
      %424 = vmatprep.subr.mxu0 0.0
      %425 = vmatpush1.msra.mxu0 0.0
      %426 = vmatprep.subr.mxu0 0.0
      %427 = vmatpush1.msra.mxu0 %v297
      %428 = vmatprep.subr.mxu0 0.0
      %429 = vmatpush1.msra.mxu0 %v296
      %430 = vmatprep.subr.mxu0 0.0
      %431 = vmatpush1.msra.mxu0 %v295
      %432 = vmatprep.subr.mxu0 0.0
      %433 = vmatpush1.msra.mxu0 %v294
      %434 = vmatprep.subr.mxu0 0.0
      %435 = vmatpush2.msra.mxu0 0.0
      %436 = vmatprep.subr.mxu0 0.0
      %437 = vmatpush2.msra.mxu0 0.0
      %438 = vmatprep.subr.mxu0 0.0
      %439 = vmatpush2.msra.mxu0 0.0
      %440 = vmatprep.subr.mxu0 0.0
      %441 = vmatpush2.msra.mxu0 0.0
      %442 = vmatprep.subr.mxu0 0.0
      %443 = vmatpush2.msra.mxu0 0.0
      %444 = vmatprep.subr.mxu0 0.0
      %445 = vmatpush2.msra.mxu0 0.0
      %446 = vmatprep.subr.mxu0 0.0
      %447 = vmatpush2.msra.mxu0 0.0
      %448 = vmatprep.subr.mxu0 0.0
      %449 = vmatpush2.msra.mxu0 0.0
      %450 = vmatprep.subr.mxu0 0.0
      %451 = vmatpush2.msra.mxu0 0.0
      %452 = vmatprep.subr.mxu0 0.0
      %453 = vmatpush2.msra.mxu0 0.0
      %454 = vmatprep.subr.mxu0 0.0
      %455 = vmatpush2.msra.mxu0 0.0
      %456 = vmatprep.subr.mxu0 0.0
      %457 = vmatpush2.msra.mxu0 0.0
      %458 = vmatprep.subr.mxu0 0.0
      %459 = vmatpush2.msra.mxu0 0.0
      %460 = vmatprep.subr.mxu0 0.0
      %461 = vmatpush2.msra.mxu0 0.0
      %462 = vmatprep.subr.mxu0 0.0
      %463 = vmatpush2.msra.mxu0 0.0
      %464 = vmatprep.subr.mxu0 0.0
      %465 = vmatpush2.msra.mxu0 0.0
      %466 = vmatprep.mubr.f32.mxu0 0.0
      %467 = vmatmul.mubr.f32.gmra.mxu0 %v307
      %v468 = vpop.f32.mrf.mxu0
      %v469 = vadd.f32 %v303, %v468
      %v470 = vpop.f32.mrf.mxu0
      %471 = vmatprep.mubr.f32.mxu0 0.0
      %472 = vmatmul.mubr.f32.gmra.mxu0 %v310
      %v473 = vpop.f32.mrf.mxu0
      %v474 = vadd.f32 %v303, %v473
      %v475 = vpop.f32.mrf.mxu0
      %476 = vmatprep.mubr.f32.mxu0 0.0
      %477 = vmatmul.mubr.f32.gmra.mxu0 %v313
      %v478 = vpop.f32.mrf.mxu0
      %v479 = vadd.f32 %v303, %v478
      %v480 = vpop.f32.mrf.mxu0
      %481 = vmatprep.mubr.f32.mxu0 0.0
      %482 = vmatmul.mubr.f32.gmra.mxu0 %v316
      %v483 = vpop.f32.mrf.mxu0
      %v484 = vadd.f32 %v303, %v483
      %v485 = vpop.f32.mrf.mxu0
      %486 = vmatprep.mubr.f32.mxu0 0.0
      %487 = vmatmul.mubr.f32.gmra.mxu0 %v319
      %v488 = vpop.f32.mrf.mxu0
      %v489 = vadd.f32 %v303, %v488
      %v490 = vpop.f32.mrf.mxu0
      %491 = vmatprep.mubr.f32.mxu0 0.0
      %492 = vmatmul.mubr.f32.gmra.mxu0 %v322
      %v493 = vpop.f32.mrf.mxu0
      %v494 = vadd.f32 %v303, %v493
      %v495 = vpop.f32.mrf.mxu0
      %496 = vmatprep.mubr.f32.mxu0 0.0
      %497 = vmatmul.mubr.f32.gmra.mxu0 %v325
      %v498 = vpop.f32.mrf.mxu0
      %v499 = vadd.f32 %v303, %v498
      %v500 = vpop.f32.mrf.mxu0
      %501 = vmatprep.mubr.f32.mxu0 0.0
      %502 = vmatmul.mubr.f32.gmra.mxu0 %v328
      %v503 = vpop.f32.mrf.mxu0
      %v504 = vadd.f32 %v303, %v503
      %v505 = vpop.f32.mrf.mxu0
      %506 = vmatprep.mubr.f32.mxu0 0.0
      %507 = vmatmul.mubr.f32.gmra.mxu0 %v331
      %v508 = vpop.f32.mrf.mxu0
      %v509 = vadd.f32 %v303, %v508
      %v510 = vpop.f32.mrf.mxu0
      %511 = vmatprep.mubr.f32.mxu0 0.0
      %512 = vmatmul.mubr.f32.gmra.mxu0 %v334
      %v513 = vpop.f32.mrf.mxu0
      %v514 = vadd.f32 %v303, %v513
      %v515 = vpop.f32.mrf.mxu0
      %516 = vmatprep.mubr.f32.mxu0 0.0
      %517 = vmatmul.mubr.f32.gmra.mxu0 %v337
      %v518 = vpop.f32.mrf.mxu0
      %v519 = vadd.f32 %v303, %v518
      %v520 = vpop.f32.mrf.mxu0
      %521 = vmatprep.mubr.f32.mxu0 0.0
      %522 = vmatmul.mubr.f32.gmra.mxu0 %v340
      %v523 = vpop.f32.mrf.mxu0
      %v524 = vadd.f32 %v303, %v523
      %v525 = vpop.f32.mrf.mxu0
      %526 = vmatprep.mubr.f32.mxu0 0.0
      %527 = vmatmul.mubr.f32.gmra.mxu0 %v343
      %v528 = vpop.f32.mrf.mxu0
      %v529 = vadd.f32 %v303, %v528
      %v530 = vpop.f32.mrf.mxu0
      %531 = vmatprep.mubr.f32.mxu0 0.0
      %532 = vmatmul.mubr.f32.gmra.mxu0 %v346
      %v533 = vpop.f32.mrf.mxu0
      %v534 = vadd.f32 %v303, %v533
      %v535 = vpop.f32.mrf.mxu0
      %536 = vmatprep.mubr.f32.mxu0 0.0
      %537 = vmatmul.mubr.f32.gmra.mxu0 %v349
      %v538 = vpop.f32.mrf.mxu0
      %v539 = vadd.f32 %v303, %v538
      %v540 = vpop.f32.mrf.mxu0
      %541 = vmatprep.mubr.f32.mxu0 0.0
      %542 = vmatmul.mubr.f32.gmra.mxu0 %v352
      %v543 = vpop.f32.mrf.mxu0
      %v544 = vadd.f32 %v303, %v543
      %v545 = vpop.f32.mrf.mxu0
      %546 = vmatprep.mubr.f32.mxu0 0.0
      %547 = vmatmul.mubr.f32.gmra.mxu0 %v355
      %v548 = vpop.f32.mrf.mxu0
      %v549 = vadd.f32 %v303, %v548
      %v550 = vpop.f32.mrf.mxu0
      %551 = vmatprep.mubr.f32.mxu0 0.0
      %552 = vmatmul.mubr.f32.gmra.mxu0 %v358
      %v553 = vpop.f32.mrf.mxu0
      %v554 = vadd.f32 %v303, %v553
      %v555 = vpop.f32.mrf.mxu0
      %556 = vmatprep.mubr.f32.mxu0 0.0
      %557 = vmatmul.mubr.f32.gmra.mxu0 %v361
      %v558 = vpop.f32.mrf.mxu0
      %v559 = vadd.f32 %v303, %v558
      %v560 = vpop.f32.mrf.mxu0
      %561 = vmatprep.mubr.f32.mxu0 0.0
      %562 = vmatmul.mubr.f32.gmra.mxu0 %v364
      %v563 = vpop.f32.mrf.mxu0
      %v564 = vadd.f32 %v303, %v563
      %v565 = vpop.f32.mrf.mxu0
      %566 = vmatprep.mubr.f32.mxu0 0.0
      %567 = vmatmul.mubr.f32.gmra.mxu0 %v367
      %v568 = vpop.f32.mrf.mxu0
      %v569 = vadd.f32 %v303, %v568
      %v570 = vpop.f32.mrf.mxu0
      %571 = vmatprep.mubr.f32.mxu0 0.0
      %572 = vmatmul.mubr.f32.gmra.mxu0 %v370
      %v573 = vpop.f32.mrf.mxu0
      %v574 = vadd.f32 %v303, %v573
      %v575 = vpop.f32.mrf.mxu0
      %576 = vmatprep.mubr.f32.mxu0 0.0
      %577 = vmatmul.mubr.f32.gmra.mxu0 %v373
      %v578 = vpop.f32.mrf.mxu0
      %v579 = vadd.f32 %v303, %v578
      %v580 = vpop.f32.mrf.mxu0
      %581 = vmatprep.mubr.f32.mxu0 0.0
      %582 = vmatmul.mubr.f32.gmra.mxu0 %v376
      %v583 = vpop.f32.mrf.mxu0
      %v584 = vadd.f32 %v303, %v583
      %v585 = vpop.f32.mrf.mxu0
      %586 = vmatprep.mubr.f32.mxu0 0.0
      %587 = vmatmul.mubr.f32.gmra.mxu0 %v379
      %v588 = vpop.f32.mrf.mxu0
      %v589 = vadd.f32 %v303, %v588
      %v590 = vpop.f32.mrf.mxu0
      %591 = vmatprep.mubr.f32.mxu0 0.0
      %592 = vmatmul.mubr.f32.gmra.mxu0 %v382
      %v593 = vpop.f32.mrf.mxu0
      %v594 = vadd.f32 %v303, %v593
      %v595 = vpop.f32.mrf.mxu0
      %596 = vmatprep.mubr.f32.mxu0 0.0
      %597 = vmatmul.mubr.f32.gmra.mxu0 %v385
      %v598 = vpop.f32.mrf.mxu0
      %v599 = vadd.f32 %v303, %v598
      %v600 = vpop.f32.mrf.mxu0
      %601 = vmatprep.mubr.f32.mxu0 0.0
      %602 = vmatmul.mubr.f32.gmra.mxu0 %v388
      %v603 = vpop.f32.mrf.mxu0
      %v604 = vadd.f32 %v303, %v603
      %v605 = vpop.f32.mrf.mxu0
      %606 = vmatprep.mubr.f32.mxu0 0.0
      %607 = vmatmul.mubr.f32.gmra.mxu0 %v391
      %v608 = vpop.f32.mrf.mxu0
      %v609 = vadd.f32 %v303, %v608
      %v610 = vpop.f32.mrf.mxu0
      %611 = vmatprep.mubr.f32.mxu0 0.0
      %612 = vmatmul.mubr.f32.gmra.mxu0 %v394
      %v613 = vpop.f32.mrf.mxu0
      %v614 = vadd.f32 %v303, %v613
      %v615 = vpop.f32.mrf.mxu0
      %616 = vmatprep.mubr.f32.mxu0 0.0
      %617 = vmatmul.mubr.f32.gmra.mxu0 %v397
      %v618 = vpop.f32.mrf.mxu0
      %v619 = vadd.f32 %v303, %v618
      %v620 = vpop.f32.mrf.mxu0
      %621 = vmatprep.mubr.f32.mxu0 0.0
      %622 = vmatmul.mubr.f32.gmra.mxu0 %v400
      %v623 = vpop.f32.mrf.mxu0
      %v624 = vadd.f32 %v303, %v623
      %v625 = vpop.f32.mrf.mxu0
      %626 = vdwg.mxu0
      %v627 = vmul.f32 %v469, 0.5
      %v628 = vmul.f32 %v474, 0.5
      %v629 = vmul.f32 %v479, 0.5
      %v630 = vmul.f32 %v484, 0.5
      %v631 = vmul.f32 %v489, 0.5
      %v632 = vmul.f32 %v494, 0.5
      %v633 = vmul.f32 %v499, 0.5
      %v634 = vmul.f32 %v504, 0.5
      %v635 = vmul.f32 %v509, 0.5
      %v636 = vmul.f32 %v514, 0.5
      %v637 = vmul.f32 %v519, 0.5
      %v638 = vmul.f32 %v524, 0.5
      %v639 = vmul.f32 %v529, 0.5
      %v640 = vmul.f32 %v534, 0.5
      %v641 = vmul.f32 %v539, 0.5
      %v642 = vmul.f32 %v544, 0.5
      %v643 = vmul.f32 %v549, 0.5
      %v644 = vmul.f32 %v554, 0.5
      %v645 = vmul.f32 %v559, 0.5
      %v646 = vmul.f32 %v564, 0.5
      %v647 = vmul.f32 %v569, 0.5
      %v648 = vmul.f32 %v574, 0.5
      %v649 = vmul.f32 %v579, 0.5
      %v650 = vmul.f32 %v584, 0.5
      %v651 = vmul.f32 %v589, 0.5
      %v652 = vmul.f32 %v594, 0.5
      %v653 = vmul.f32 %v599, 0.5
      %v654 = vmul.f32 %v604, 0.5
      %v655 = vmul.f32 %v609, 0.5
      %v656 = vmul.f32 %v614, 0.5
      %v657 = vmul.f32 %v619, 0.5
      %v658 = vmul.f32 %v624, 0.5
      %v659 = vmul.f32 %v469, 0.70710677
      %v660 = vmul.f32 %v474, 0.70710677
      %v661 = vmul.f32 %v479, 0.70710677
      %v662 = vmul.f32 %v484, 0.70710677
      %v663 = vmul.f32 %v489, 0.70710677
      %v664 = vmul.f32 %v494, 0.70710677
      %v665 = vmul.f32 %v499, 0.70710677
      %v666 = vmul.f32 %v504, 0.70710677
      %v667 = vmul.f32 %v509, 0.70710677
      %v668 = vmul.f32 %v514, 0.70710677
      %v669 = vmul.f32 %v519, 0.70710677
      %v670 = vmul.f32 %v524, 0.70710677
      %v671 = vmul.f32 %v529, 0.70710677
      %v672 = vmul.f32 %v534, 0.70710677
      %v673 = vmul.f32 %v539, 0.70710677
      %v674 = vmul.f32 %v544, 0.70710677
      %v675 = vmul.f32 %v549, 0.70710677
      %v676 = vmul.f32 %v554, 0.70710677
      %v677 = vmul.f32 %v559, 0.70710677
      %v678 = vmul.f32 %v564, 0.70710677
      %v679 = vmul.f32 %v569, 0.70710677
      %v680 = vmul.f32 %v574, 0.70710677
      %v681 = vmul.f32 %v579, 0.70710677
      %v682 = vmul.f32 %v584, 0.70710677
      %v683 = vmul.f32 %v589, 0.70710677
      %v684 = vmul.f32 %v594, 0.70710677
      %v685 = vmul.f32 %v599, 0.70710677
      %v686 = vmul.f32 %v604, 0.70710677
      %v687 = vmul.f32 %v609, 0.70710677
      %v688 = vmul.f32 %v614, 0.70710677
      %v689 = vmul.f32 %v619, 0.70710677
      %v690 = vmul.f32 %v624, 0.70710677
      %v691 = vand.u32 2147483647, %v659
      %v692 = vand.u32 2147483647, %v660
      %v693 = vand.u32 2147483647, %v661
      %v694 = vand.u32 2147483647, %v662
      %v695 = vand.u32 2147483647, %v663
      %v696 = vand.u32 2147483647, %v664
      %v697 = vand.u32 2147483647, %v665
      %v698 = vand.u32 2147483647, %v666
      %v699 = vand.u32 2147483647, %v667
      %v700 = vand.u32 2147483647, %v668
      %v701 = vand.u32 2147483647, %v669
      %v702 = vand.u32 2147483647, %v670
      %v703 = vand.u32 2147483647, %v671
      %v704 = vand.u32 2147483647, %v672
      %v705 = vand.u32 2147483647, %v673
      %v706 = vand.u32 2147483647, %v674
      %v707 = vand.u32 2147483647, %v675
      %v708 = vand.u32 2147483647, %v676
      %v709 = vand.u32 2147483647, %v677
      %v710 = vand.u32 2147483647, %v678
      %v711 = vand.u32 2147483647, %v679
      %v712 = vand.u32 2147483647, %v680
      %v713 = vand.u32 2147483647, %v681
      %v714 = vand.u32 2147483647, %v682
      %v715 = vand.u32 2147483647, %v683
      %v716 = vand.u32 2147483647, %v684
      %v717 = vand.u32 2147483647, %v685
      %v718 = vand.u32 2147483647, %v686
      %v719 = vand.u32 2147483647, %v687
      %v720 = vand.u32 2147483647, %v688
      %v721 = vand.u32 2147483647, %v689
      %v722 = vand.u32 2147483647, %v690
      %v723 = vmul.f32 %v691, 0.3275911
      %v724 = vmul.f32 %v692, 0.3275911
      %v725 = vmul.f32 %v693, 0.3275911
      %v726 = vmul.f32 %v694, 0.3275911
      %v727 = vmul.f32 %v695, 0.3275911
      %v728 = vmul.f32 %v696, 0.3275911
      %v729 = vmul.f32 %v697, 0.3275911
      %v730 = vmul.f32 %v698, 0.3275911
      %v731 = vmul.f32 %v699, 0.3275911
      %v732 = vmul.f32 %v700, 0.3275911
      %v733 = vmul.f32 %v701, 0.3275911
      %v734 = vmul.f32 %v702, 0.3275911
      %v735 = vmul.f32 %v703, 0.3275911
      %v736 = vmul.f32 %v704, 0.3275911
      %v737 = vmul.f32 %v705, 0.3275911
      %v738 = vmul.f32 %v706, 0.3275911
      %v739 = vmul.f32 %v707, 0.3275911
      %v740 = vmul.f32 %v708, 0.3275911
      %v741 = vmul.f32 %v709, 0.3275911
      %v742 = vmul.f32 %v710, 0.3275911
      %v743 = vmul.f32 %v711, 0.3275911
      %v744 = vmul.f32 %v712, 0.3275911
      %v745 = vmul.f32 %v713, 0.3275911
      %v746 = vmul.f32 %v714, 0.3275911
      %v747 = vmul.f32 %v715, 0.3275911
      %v748 = vmul.f32 %v716, 0.3275911
      %v749 = vmul.f32 %v717, 0.3275911
      %v750 = vmul.f32 %v718, 0.3275911
      %v751 = vmul.f32 %v719, 0.3275911
      %v752 = vmul.f32 %v720, 0.3275911
      %v753 = vmul.f32 %v721, 0.3275911
      %v754 = vmul.f32 %v722, 0.3275911
      %v755 = vadd.f32 %v723, 1.0
      %v756 = vadd.f32 %v724, 1.0
      %v757 = vadd.f32 %v725, 1.0
      %v758 = vadd.f32 %v726, 1.0
      %v759 = vadd.f32 %v727, 1.0
      %v760 = vadd.f32 %v728, 1.0
      %v761 = vadd.f32 %v729, 1.0
      %v762 = vadd.f32 %v730, 1.0
      %v763 = vadd.f32 %v731, 1.0
      %v764 = vadd.f32 %v732, 1.0
      %v765 = vadd.f32 %v733, 1.0
      %v766 = vadd.f32 %v734, 1.0
      %v767 = vadd.f32 %v735, 1.0
      %v768 = vadd.f32 %v736, 1.0
      %v769 = vadd.f32 %v737, 1.0
      %v770 = vadd.f32 %v738, 1.0
      %v771 = vadd.f32 %v739, 1.0
      %v772 = vadd.f32 %v740, 1.0
      %v773 = vadd.f32 %v741, 1.0
      %v774 = vadd.f32 %v742, 1.0
      %v775 = vadd.f32 %v743, 1.0
      %v776 = vadd.f32 %v744, 1.0
      %v777 = vadd.f32 %v745, 1.0
      %v778 = vadd.f32 %v746, 1.0
      %v779 = vadd.f32 %v747, 1.0
      %v780 = vadd.f32 %v748, 1.0
      %v781 = vadd.f32 %v749, 1.0
      %v782 = vadd.f32 %v750, 1.0
      %v783 = vadd.f32 %v751, 1.0
      %v784 = vadd.f32 %v752, 1.0
      %v785 = vadd.f32 %v753, 1.0
      %v786 = vadd.f32 %v754, 1.0
      %v787 = vrcp.pop %v755
      %v788 = vrcp.pop %v756
      %v789 = vrcp.pop %v757
      %v790 = vrcp.pop %v758
      %v791 = vrcp.pop %v759
      %v792 = vrcp.pop %v760
      %v793 = vrcp.pop %v761
      %v794 = vrcp.pop %v762
      %v795 = vrcp.pop %v763
      %v796 = vrcp.pop %v764
      %v797 = vrcp.pop %v765
      %v798 = vrcp.pop %v766
      %v799 = vrcp.pop %v767
      %v800 = vrcp.pop %v768
      %v801 = vrcp.pop %v769
      %v802 = vrcp.pop %v770
      %v803 = vrcp.pop %v771
      %v804 = vrcp.pop %v772
      %v805 = vrcp.pop %v773
      %v806 = vrcp.pop %v774
      %v807 = vrcp.pop %v775
      %v808 = vrcp.pop %v776
      %v809 = vrcp.pop %v777
      %v810 = vrcp.pop %v778
      %v811 = vrcp.pop %v779
      %v812 = vrcp.pop %v780
      %v813 = vrcp.pop %v781
      %v814 = vrcp.pop %v782
      %v815 = vrcp.pop %v783
      %v816 = vrcp.pop %v784
      %v817 = vrcp.pop %v785
      %v818 = vrcp.pop %v786
      %v819 = vmul.f32 %v787, 1.0614054
      %v820 = vmul.f32 %v788, 1.0614054
      %v821 = vmul.f32 %v789, 1.0614054
      %v822 = vmul.f32 %v790, 1.0614054
      %v823 = vmul.f32 %v791, 1.0614054
      %v824 = vmul.f32 %v792, 1.0614054
      %v825 = vmul.f32 %v793, 1.0614054
      %v826 = vmul.f32 %v794, 1.0614054
      %v827 = vmul.f32 %v795, 1.0614054
      %v828 = vmul.f32 %v796, 1.0614054
      %v829 = vmul.f32 %v797, 1.0614054
      %v830 = vmul.f32 %v798, 1.0614054
      %v831 = vmul.f32 %v799, 1.0614054
      %v832 = vmul.f32 %v800, 1.0614054
      %v833 = vmul.f32 %v801, 1.0614054
      %v834 = vmul.f32 %v802, 1.0614054
      %v835 = vmul.f32 %v803, 1.0614054
      %v836 = vmul.f32 %v804, 1.0614054
      %v837 = vmul.f32 %v805, 1.0614054
      %v838 = vmul.f32 %v806, 1.0614054
      %v839 = vmul.f32 %v807, 1.0614054
      %v840 = vmul.f32 %v808, 1.0614054
      %v841 = vmul.f32 %v809, 1.0614054
      %v842 = vmul.f32 %v810, 1.0614054
      %v843 = vmul.f32 %v811, 1.0614054
      %v844 = vmul.f32 %v812, 1.0614054
      %v845 = vmul.f32 %v813, 1.0614054
      %v846 = vmul.f32 %v814, 1.0614054
      %v847 = vmul.f32 %v815, 1.0614054
      %v848 = vmul.f32 %v816, 1.0614054
      %v849 = vmul.f32 %v817, 1.0614054
      %v850 = vmul.f32 %v818, 1.0614054
      %v851 = vadd.f32 %v819, -1.4531521
      %v852 = vadd.f32 %v820, -1.4531521
      %v853 = vadd.f32 %v821, -1.4531521
      %v854 = vadd.f32 %v822, -1.4531521
      %v855 = vadd.f32 %v823, -1.4531521
      %v856 = vadd.f32 %v824, -1.4531521
      %v857 = vadd.f32 %v825, -1.4531521
      %v858 = vadd.f32 %v826, -1.4531521
      %v859 = vadd.f32 %v827, -1.4531521
      %v860 = vadd.f32 %v828, -1.4531521
      %v861 = vadd.f32 %v829, -1.4531521
      %v862 = vadd.f32 %v830, -1.4531521
      %v863 = vadd.f32 %v831, -1.4531521
      %v864 = vadd.f32 %v832, -1.4531521
      %v865 = vadd.f32 %v833, -1.4531521
      %v866 = vadd.f32 %v834, -1.4531521
      %v867 = vadd.f32 %v835, -1.4531521
      %v868 = vadd.f32 %v836, -1.4531521
      %v869 = vadd.f32 %v837, -1.4531521
      %v870 = vadd.f32 %v838, -1.4531521
      %v871 = vadd.f32 %v839, -1.4531521
      %v872 = vadd.f32 %v840, -1.4531521
      %v873 = vadd.f32 %v841, -1.4531521
      %v874 = vadd.f32 %v842, -1.4531521
      %v875 = vadd.f32 %v843, -1.4531521
      %v876 = vadd.f32 %v844, -1.4531521
      %v877 = vadd.f32 %v845, -1.4531521
      %v878 = vadd.f32 %v846, -1.4531521
      %v879 = vadd.f32 %v847, -1.4531521
      %v880 = vadd.f32 %v848, -1.4531521
      %v881 = vadd.f32 %v849, -1.4531521
      %v882 = vadd.f32 %v850, -1.4531521
      %v883 = vmul.f32 %v851, %v787
      %v884 = vmul.f32 %v852, %v788
      %v885 = vmul.f32 %v853, %v789
      %v886 = vmul.f32 %v854, %v790
      %v887 = vmul.f32 %v855, %v791
      %v888 = vmul.f32 %v856, %v792
      %v889 = vmul.f32 %v857, %v793
      %v890 = vmul.f32 %v858, %v794
      %v891 = vmul.f32 %v859, %v795
      %v892 = vmul.f32 %v860, %v796
      %v893 = vmul.f32 %v861, %v797
      %v894 = vmul.f32 %v862, %v798
      %v895 = vmul.f32 %v863, %v799
      %v896 = vmul.f32 %v864, %v800
      %v897 = vmul.f32 %v865, %v801
      %v898 = vmul.f32 %v866, %v802
      %v899 = vmul.f32 %v867, %v803
      %v900 = vmul.f32 %v868, %v804
      %v901 = vmul.f32 %v869, %v805
      %v902 = vmul.f32 %v870, %v806
      %v903 = vmul.f32 %v871, %v807
      %v904 = vmul.f32 %v872, %v808
      %v905 = vmul.f32 %v873, %v809
      %v906 = vmul.f32 %v874, %v810
      %v907 = vmul.f32 %v875, %v811
      %v908 = vmul.f32 %v876, %v812
      %v909 = vmul.f32 %v877, %v813
      %v910 = vmul.f32 %v878, %v814
      %v911 = vmul.f32 %v879, %v815
      %v912 = vmul.f32 %v880, %v816
      %v913 = vmul.f32 %v881, %v817
      %v914 = vmul.f32 %v882, %v818
      %v915 = vadd.f32 %v883, 1.4214138
      %v916 = vadd.f32 %v884, 1.4214138
      %v917 = vadd.f32 %v885, 1.4214138
      %v918 = vadd.f32 %v886, 1.4214138
      %v919 = vadd.f32 %v887, 1.4214138
      %v920 = vadd.f32 %v888, 1.4214138
      %v921 = vadd.f32 %v889, 1.4214138
      %v922 = vadd.f32 %v890, 1.4214138
      %v923 = vadd.f32 %v891, 1.4214138
      %v924 = vadd.f32 %v892, 1.4214138
      %v925 = vadd.f32 %v893, 1.4214138
      %v926 = vadd.f32 %v894, 1.4214138
      %v927 = vadd.f32 %v895, 1.4214138
      %v928 = vadd.f32 %v896, 1.4214138
      %v929 = vadd.f32 %v897, 1.4214138
      %v930 = vadd.f32 %v898, 1.4214138
      %v931 = vadd.f32 %v899, 1.4214138
      %v932 = vadd.f32 %v900, 1.4214138
      %v933 = vadd.f32 %v901, 1.4214138
      %v934 = vadd.f32 %v902, 1.4214138
      %v935 = vadd.f32 %v903, 1.4214138
      %v936 = vadd.f32 %v904, 1.4214138
      %v937 = vadd.f32 %v905, 1.4214138
      %v938 = vadd.f32 %v906, 1.4214138
      %v939 = vadd.f32 %v907, 1.4214138
      %v940 = vadd.f32 %v908, 1.4214138
      %v941 = vadd.f32 %v909, 1.4214138
      %v942 = vadd.f32 %v910, 1.4214138
      %v943 = vadd.f32 %v911, 1.4214138
      %v944 = vadd.f32 %v912, 1.4214138
      %v945 = vadd.f32 %v913, 1.4214138
      %v946 = vadd.f32 %v914, 1.4214138
      %v947 = vmul.f32 %v915, %v787
      %v948 = vmul.f32 %v916, %v788
      %v949 = vmul.f32 %v917, %v789
      %v950 = vmul.f32 %v918, %v790
      %v951 = vmul.f32 %v919, %v791
      %v952 = vmul.f32 %v920, %v792
      %v953 = vmul.f32 %v921, %v793
      %v954 = vmul.f32 %v922, %v794
      %v955 = vmul.f32 %v923, %v795
      %v956 = vmul.f32 %v924, %v796
      %v957 = vmul.f32 %v925, %v797
      %v958 = vmul.f32 %v926, %v798
      %v959 = vmul.f32 %v927, %v799
      %v960 = vmul.f32 %v928, %v800
      %v961 = vmul.f32 %v929, %v801
      %v962 = vmul.f32 %v930, %v802
      %v963 = vmul.f32 %v931, %v803
      %v964 = vmul.f32 %v932, %v804
      %v965 = vmul.f32 %v933, %v805
      %v966 = vmul.f32 %v934, %v806
      %v967 = vmul.f32 %v935, %v807
      %v968 = vmul.f32 %v936, %v808
      %v969 = vmul.f32 %v937, %v809
      %v970 = vmul.f32 %v938, %v810
      %v971 = vmul.f32 %v939, %v811
      %v972 = vmul.f32 %v940, %v812
      %v973 = vmul.f32 %v941, %v813
      %v974 = vmul.f32 %v942, %v814
      %v975 = vmul.f32 %v943, %v815
      %v976 = vmul.f32 %v944, %v816
      %v977 = vmul.f32 %v945, %v817
      %v978 = vmul.f32 %v946, %v818
      %v979 = vadd.f32 %v947, -0.28449672
      %v980 = vadd.f32 %v948, -0.28449672
      %v981 = vadd.f32 %v949, -0.28449672
      %v982 = vadd.f32 %v950, -0.28449672
      %v983 = vadd.f32 %v951, -0.28449672
      %v984 = vadd.f32 %v952, -0.28449672
      %v985 = vadd.f32 %v953, -0.28449672
      %v986 = vadd.f32 %v954, -0.28449672
      %v987 = vadd.f32 %v955, -0.28449672
      %v988 = vadd.f32 %v956, -0.28449672
      %v989 = vadd.f32 %v957, -0.28449672
      %v990 = vadd.f32 %v958, -0.28449672
      %v991 = vadd.f32 %v959, -0.28449672
      %v992 = vadd.f32 %v960, -0.28449672
      %v993 = vadd.f32 %v961, -0.28449672
      %v994 = vadd.f32 %v962, -0.28449672
      %v995 = vadd.f32 %v963, -0.28449672
      %v996 = vadd.f32 %v964, -0.28449672
      %v997 = vadd.f32 %v965, -0.28449672
      %v998 = vadd.f32 %v966, -0.28449672
      %v999 = vadd.f32 %v967, -0.28449672
      %v1000 = vadd.f32 %v968, -0.28449672
      %v1001 = vadd.f32 %v969, -0.28449672
      %v1002 = vadd.f32 %v970, -0.28449672
      %v1003 = vadd.f32 %v971, -0.28449672
      %v1004 = vadd.f32 %v972, -0.28449672
      %v1005 = vadd.f32 %v973, -0.28449672
      %v1006 = vadd.f32 %v974, -0.28449672
      %v1007 = vadd.f32 %v975, -0.28449672
      %v1008 = vadd.f32 %v976, -0.28449672
      %v1009 = vadd.f32 %v977, -0.28449672
      %v1010 = vadd.f32 %v978, -0.28449672
      %v1011 = vmul.f32 %v979, %v787
      %v1012 = vmul.f32 %v980, %v788
      %v1013 = vmul.f32 %v981, %v789
      %v1014 = vmul.f32 %v982, %v790
      %v1015 = vmul.f32 %v983, %v791
      %v1016 = vmul.f32 %v984, %v792
      %v1017 = vmul.f32 %v985, %v793
      %v1018 = vmul.f32 %v986, %v794
      %v1019 = vmul.f32 %v987, %v795
      %v1020 = vmul.f32 %v988, %v796
      %v1021 = vmul.f32 %v989, %v797
      %v1022 = vmul.f32 %v990, %v798
      %v1023 = vmul.f32 %v991, %v799
      %v1024 = vmul.f32 %v992, %v800
      %v1025 = vmul.f32 %v993, %v801
      %v1026 = vmul.f32 %v994, %v802
      %v1027 = vmul.f32 %v995, %v803
      %v1028 = vmul.f32 %v996, %v804
      %v1029 = vmul.f32 %v997, %v805
      %v1030 = vmul.f32 %v998, %v806
      %v1031 = vmul.f32 %v999, %v807
      %v1032 = vmul.f32 %v1000, %v808
      %v1033 = vmul.f32 %v1001, %v809
      %v1034 = vmul.f32 %v1002, %v810
      %v1035 = vmul.f32 %v1003, %v811
      %v1036 = vmul.f32 %v1004, %v812
      %v1037 = vmul.f32 %v1005, %v813
      %v1038 = vmul.f32 %v1006, %v814
      %v1039 = vmul.f32 %v1007, %v815
      %v1040 = vmul.f32 %v1008, %v816
      %v1041 = vmul.f32 %v1009, %v817
      %v1042 = vmul.f32 %v1010, %v818
      %v1043 = vadd.f32 %v1011, 0.2548296
      %v1044 = vadd.f32 %v1012, 0.2548296
      %v1045 = vadd.f32 %v1013, 0.2548296
      %v1046 = vadd.f32 %v1014, 0.2548296
      %v1047 = vadd.f32 %v1015, 0.2548296
      %v1048 = vadd.f32 %v1016, 0.2548296
      %v1049 = vadd.f32 %v1017, 0.2548296
      %v1050 = vadd.f32 %v1018, 0.2548296
      %v1051 = vadd.f32 %v1019, 0.2548296
      %v1052 = vadd.f32 %v1020, 0.2548296
      %v1053 = vadd.f32 %v1021, 0.2548296
      %v1054 = vadd.f32 %v1022, 0.2548296
      %v1055 = vadd.f32 %v1023, 0.2548296
      %v1056 = vadd.f32 %v1024, 0.2548296
      %v1057 = vadd.f32 %v1025, 0.2548296
      %v1058 = vadd.f32 %v1026, 0.2548296
      %v1059 = vadd.f32 %v1027, 0.2548296
      %v1060 = vadd.f32 %v1028, 0.2548296
      %v1061 = vadd.f32 %v1029, 0.2548296
      %v1062 = vadd.f32 %v1030, 0.2548296
      %v1063 = vadd.f32 %v1031, 0.2548296
      %v1064 = vadd.f32 %v1032, 0.2548296
      %v1065 = vadd.f32 %v1033, 0.2548296
      %v1066 = vadd.f32 %v1034, 0.2548296
      %v1067 = vadd.f32 %v1035, 0.2548296
      %v1068 = vadd.f32 %v1036, 0.2548296
      %v1069 = vadd.f32 %v1037, 0.2548296
      %v1070 = vadd.f32 %v1038, 0.2548296
      %v1071 = vadd.f32 %v1039, 0.2548296
      %v1072 = vadd.f32 %v1040, 0.2548296
      %v1073 = vadd.f32 %v1041, 0.2548296
      %v1074 = vadd.f32 %v1042, 0.2548296
      %v1075 = vmul.f32 %v1043, %v787
      %v1076 = vmul.f32 %v1044, %v788
      %v1077 = vmul.f32 %v1045, %v789
      %v1078 = vmul.f32 %v1046, %v790
      %v1079 = vmul.f32 %v1047, %v791
      %v1080 = vmul.f32 %v1048, %v792
      %v1081 = vmul.f32 %v1049, %v793
      %v1082 = vmul.f32 %v1050, %v794
      %v1083 = vmul.f32 %v1051, %v795
      %v1084 = vmul.f32 %v1052, %v796
      %v1085 = vmul.f32 %v1053, %v797
      %v1086 = vmul.f32 %v1054, %v798
      %v1087 = vmul.f32 %v1055, %v799
      %v1088 = vmul.f32 %v1056, %v800
      %v1089 = vmul.f32 %v1057, %v801
      %v1090 = vmul.f32 %v1058, %v802
      %v1091 = vmul.f32 %v1059, %v803
      %v1092 = vmul.f32 %v1060, %v804
      %v1093 = vmul.f32 %v1061, %v805
      %v1094 = vmul.f32 %v1062, %v806
      %v1095 = vmul.f32 %v1063, %v807
      %v1096 = vmul.f32 %v1064, %v808
      %v1097 = vmul.f32 %v1065, %v809
      %v1098 = vmul.f32 %v1066, %v810
      %v1099 = vmul.f32 %v1067, %v811
      %v1100 = vmul.f32 %v1068, %v812
      %v1101 = vmul.f32 %v1069, %v813
      %v1102 = vmul.f32 %v1070, %v814
      %v1103 = vmul.f32 %v1071, %v815
      %v1104 = vmul.f32 %v1072, %v816
      %v1105 = vmul.f32 %v1073, %v817
      %v1106 = vmul.f32 %v1074, %v818
      %v1107 = vsub.f32 0.0, %v691
      %v1108 = vsub.f32 0.0, %v692
      %v1109 = vsub.f32 0.0, %v693
      %v1110 = vsub.f32 0.0, %v694
      %v1111 = vsub.f32 0.0, %v695
      %v1112 = vsub.f32 0.0, %v696
      %v1113 = vsub.f32 0.0, %v697
      %v1114 = vsub.f32 0.0, %v698
      %v1115 = vsub.f32 0.0, %v699
      %v1116 = vsub.f32 0.0, %v700
      %v1117 = vsub.f32 0.0, %v701
      %v1118 = vsub.f32 0.0, %v702
      %v1119 = vsub.f32 0.0, %v703
      %v1120 = vsub.f32 0.0, %v704
      %v1121 = vsub.f32 0.0, %v705
      %v1122 = vsub.f32 0.0, %v706
      %v1123 = vsub.f32 0.0, %v707
      %v1124 = vsub.f32 0.0, %v708
      %v1125 = vsub.f32 0.0, %v709
      %v1126 = vsub.f32 0.0, %v710
      %v1127 = vsub.f32 0.0, %v711
      %v1128 = vsub.f32 0.0, %v712
      %v1129 = vsub.f32 0.0, %v713
      %v1130 = vsub.f32 0.0, %v714
      %v1131 = vsub.f32 0.0, %v715
      %v1132 = vsub.f32 0.0, %v716
      %v1133 = vsub.f32 0.0, %v717
      %v1134 = vsub.f32 0.0, %v718
      %v1135 = vsub.f32 0.0, %v719
      %v1136 = vsub.f32 0.0, %v720
      %v1137 = vsub.f32 0.0, %v721
      %v1138 = vsub.f32 0.0, %v722
      %v1139 = vmul.f32 %v1107, %v691
      %v1140 = vmul.f32 %v1108, %v692
      %v1141 = vmul.f32 %v1109, %v693
      %v1142 = vmul.f32 %v1110, %v694
      %v1143 = vmul.f32 %v1111, %v695
      %v1144 = vmul.f32 %v1112, %v696
      %v1145 = vmul.f32 %v1113, %v697
      %v1146 = vmul.f32 %v1114, %v698
      %v1147 = vmul.f32 %v1115, %v699
      %v1148 = vmul.f32 %v1116, %v700
      %v1149 = vmul.f32 %v1117, %v701
      %v1150 = vmul.f32 %v1118, %v702
      %v1151 = vmul.f32 %v1119, %v703
      %v1152 = vmul.f32 %v1120, %v704
      %v1153 = vmul.f32 %v1121, %v705
      %v1154 = vmul.f32 %v1122, %v706
      %v1155 = vmul.f32 %v1123, %v707
      %v1156 = vmul.f32 %v1124, %v708
      %v1157 = vmul.f32 %v1125, %v709
      %v1158 = vmul.f32 %v1126, %v710
      %v1159 = vmul.f32 %v1127, %v711
      %v1160 = vmul.f32 %v1128, %v712
      %v1161 = vmul.f32 %v1129, %v713
      %v1162 = vmul.f32 %v1130, %v714
      %v1163 = vmul.f32 %v1131, %v715
      %v1164 = vmul.f32 %v1132, %v716
      %v1165 = vmul.f32 %v1133, %v717
      %v1166 = vmul.f32 %v1134, %v718
      %v1167 = vmul.f32 %v1135, %v719
      %v1168 = vmul.f32 %v1136, %v720
      %v1169 = vmul.f32 %v1137, %v721
      %v1170 = vmul.f32 %v1138, %v722
      %v1171 = vmul.f32 %v1139, 1.442695
      %v1172 = vpow.pop %v1171
      %v1173 = vmul.f32 %v1140, 1.442695
      %v1174 = vpow.pop %v1173
      %v1175 = vmul.f32 %v1141, 1.442695
      %v1176 = vpow.pop %v1175
      %v1177 = vmul.f32 %v1142, 1.442695
      %v1178 = vpow.pop %v1177
      %v1179 = vmul.f32 %v1143, 1.442695
      %v1180 = vpow.pop %v1179
      %v1181 = vmul.f32 %v1144, 1.442695
      %v1182 = vpow.pop %v1181
      %v1183 = vmul.f32 %v1145, 1.442695
      %v1184 = vpow.pop %v1183
      %v1185 = vmul.f32 %v1146, 1.442695
      %v1186 = vpow.pop %v1185
      %v1187 = vmul.f32 %v1147, 1.442695
      %v1188 = vpow.pop %v1187
      %v1189 = vmul.f32 %v1148, 1.442695
      %v1190 = vpow.pop %v1189
      %v1191 = vmul.f32 %v1149, 1.442695
      %v1192 = vpow.pop %v1191
      %v1193 = vmul.f32 %v1150, 1.442695
      %v1194 = vpow.pop %v1193
      %v1195 = vmul.f32 %v1151, 1.442695
      %v1196 = vpow.pop %v1195
      %v1197 = vmul.f32 %v1152, 1.442695
      %v1198 = vpow.pop %v1197
      %v1199 = vmul.f32 %v1153, 1.442695
      %v1200 = vpow.pop %v1199
      %v1201 = vmul.f32 %v1154, 1.442695
      %v1202 = vpow.pop %v1201
      %v1203 = vmul.f32 %v1155, 1.442695
      %v1204 = vpow.pop %v1203
      %v1205 = vmul.f32 %v1156, 1.442695
      %v1206 = vpow.pop %v1205
      %v1207 = vmul.f32 %v1157, 1.442695
      %v1208 = vpow.pop %v1207
      %v1209 = vmul.f32 %v1158, 1.442695
      %v1210 = vpow.pop %v1209
      %v1211 = vmul.f32 %v1159, 1.442695
      %v1212 = vpow.pop %v1211
      %v1213 = vmul.f32 %v1160, 1.442695
      %v1214 = vpow.pop %v1213
      %v1215 = vmul.f32 %v1161, 1.442695
      %v1216 = vpow.pop %v1215
      %v1217 = vmul.f32 %v1162, 1.442695
      %v1218 = vpow.pop %v1217
      %v1219 = vmul.f32 %v1163, 1.442695
      %v1220 = vpow.pop %v1219
      %v1221 = vmul.f32 %v1164, 1.442695
      %v1222 = vpow.pop %v1221
      %v1223 = vmul.f32 %v1165, 1.442695
      %v1224 = vpow.pop %v1223
      %v1225 = vmul.f32 %v1166, 1.442695
      %v1226 = vpow.pop %v1225
      %v1227 = vmul.f32 %v1167, 1.442695
      %v1228 = vpow.pop %v1227
      %v1229 = vmul.f32 %v1168, 1.442695
      %v1230 = vpow.pop %v1229
      %v1231 = vmul.f32 %v1169, 1.442695
      %v1232 = vpow.pop %v1231
      %v1233 = vmul.f32 %v1170, 1.442695
      %v1234 = vpow.pop %v1233
      %v1235 = vmul.f32 %v1075, %v1172
      %v1236 = vmul.f32 %v1076, %v1174
      %v1237 = vmul.f32 %v1077, %v1176
      %v1238 = vmul.f32 %v1078, %v1178
      %v1239 = vmul.f32 %v1079, %v1180
      %v1240 = vmul.f32 %v1080, %v1182
      %v1241 = vmul.f32 %v1081, %v1184
      %v1242 = vmul.f32 %v1082, %v1186
      %v1243 = vmul.f32 %v1083, %v1188
      %v1244 = vmul.f32 %v1084, %v1190
      %v1245 = vmul.f32 %v1085, %v1192
      %v1246 = vmul.f32 %v1086, %v1194
      %v1247 = vmul.f32 %v1087, %v1196
      %v1248 = vmul.f32 %v1088, %v1198
      %v1249 = vmul.f32 %v1089, %v1200
      %v1250 = vmul.f32 %v1090, %v1202
      %v1251 = vmul.f32 %v1091, %v1204
      %v1252 = vmul.f32 %v1092, %v1206
      %v1253 = vmul.f32 %v1093, %v1208
      %v1254 = vmul.f32 %v1094, %v1210
      %v1255 = vmul.f32 %v1095, %v1212
      %v1256 = vmul.f32 %v1096, %v1214
      %v1257 = vmul.f32 %v1097, %v1216
      %v1258 = vmul.f32 %v1098, %v1218
      %v1259 = vmul.f32 %v1099, %v1220
      %v1260 = vmul.f32 %v1100, %v1222
      %v1261 = vmul.f32 %v1101, %v1224
      %v1262 = vmul.f32 %v1102, %v1226
      %v1263 = vmul.f32 %v1103, %v1228
      %v1264 = vmul.f32 %v1104, %v1230
      %v1265 = vmul.f32 %v1105, %v1232
      %v1266 = vmul.f32 %v1106, %v1234
      %v1267 = vsub.f32 1.0, %v1235
      %v1268 = vsub.f32 1.0, %v1236
      %v1269 = vsub.f32 1.0, %v1237
      %v1270 = vsub.f32 1.0, %v1238
      %v1271 = vsub.f32 1.0, %v1239
      %v1272 = vsub.f32 1.0, %v1240
      %v1273 = vsub.f32 1.0, %v1241
      %v1274 = vsub.f32 1.0, %v1242
      %v1275 = vsub.f32 1.0, %v1243
      %v1276 = vsub.f32 1.0, %v1244
      %v1277 = vsub.f32 1.0, %v1245
      %v1278 = vsub.f32 1.0, %v1246
      %v1279 = vsub.f32 1.0, %v1247
      %v1280 = vsub.f32 1.0, %v1248
      %v1281 = vsub.f32 1.0, %v1249
      %v1282 = vsub.f32 1.0, %v1250
      %v1283 = vsub.f32 1.0, %v1251
      %v1284 = vsub.f32 1.0, %v1252
      %v1285 = vsub.f32 1.0, %v1253
      %v1286 = vsub.f32 1.0, %v1254
      %v1287 = vsub.f32 1.0, %v1255
      %v1288 = vsub.f32 1.0, %v1256
      %v1289 = vsub.f32 1.0, %v1257
      %v1290 = vsub.f32 1.0, %v1258
      %v1291 = vsub.f32 1.0, %v1259
      %v1292 = vsub.f32 1.0, %v1260
      %v1293 = vsub.f32 1.0, %v1261
      %v1294 = vsub.f32 1.0, %v1262
      %v1295 = vsub.f32 1.0, %v1263
      %v1296 = vsub.f32 1.0, %v1264
      %v1297 = vsub.f32 1.0, %v1265
      %v1298 = vsub.f32 1.0, %v1266
      %vm1299 = vcmp.ge.f32.partialorder %v659, 0.0
      %vm1300 = vcmp.ge.f32.partialorder %v660, 0.0
      %vm1301 = vcmp.ge.f32.partialorder %v661, 0.0
      %vm1302 = vcmp.ge.f32.partialorder %v662, 0.0
      %vm1303 = vcmp.ge.f32.partialorder %v663, 0.0
      %vm1304 = vcmp.ge.f32.partialorder %v664, 0.0
      %vm1305 = vcmp.ge.f32.partialorder %v665, 0.0
      %vm1306 = vcmp.ge.f32.partialorder %v666, 0.0
      %vm1307 = vcmp.ge.f32.partialorder %v667, 0.0
      %vm1308 = vcmp.ge.f32.partialorder %v668, 0.0
      %vm1309 = vcmp.ge.f32.partialorder %v669, 0.0
      %vm1310 = vcmp.ge.f32.partialorder %v670, 0.0
      %vm1311 = vcmp.ge.f32.partialorder %v671, 0.0
      %vm1312 = vcmp.ge.f32.partialorder %v672, 0.0
      %vm1313 = vcmp.ge.f32.partialorder %v673, 0.0
      %vm1314 = vcmp.ge.f32.partialorder %v674, 0.0
      %vm1315 = vcmp.ge.f32.partialorder %v675, 0.0
      %vm1316 = vcmp.ge.f32.partialorder %v676, 0.0
      %vm1317 = vcmp.ge.f32.partialorder %v677, 0.0
      %vm1318 = vcmp.ge.f32.partialorder %v678, 0.0
      %vm1319 = vcmp.ge.f32.partialorder %v679, 0.0
      %vm1320 = vcmp.ge.f32.partialorder %v680, 0.0
      %vm1321 = vcmp.ge.f32.partialorder %v681, 0.0
      %vm1322 = vcmp.ge.f32.partialorder %v682, 0.0
      %vm1323 = vcmp.ge.f32.partialorder %v683, 0.0
      %vm1324 = vcmp.ge.f32.partialorder %v684, 0.0
      %vm1325 = vcmp.ge.f32.partialorder %v685, 0.0
      %vm1326 = vcmp.ge.f32.partialorder %v686, 0.0
      %vm1327 = vcmp.ge.f32.partialorder %v687, 0.0
      %vm1328 = vcmp.ge.f32.partialorder %v688, 0.0
      %vm1329 = vcmp.ge.f32.partialorder %v689, 0.0
      %vm1330 = vcmp.ge.f32.partialorder %v690, 0.0
      %v1331 = vsub.f32 0.0, %v1267
      %v1332 = vsub.f32 0.0, %v1268
      %v1333 = vsub.f32 0.0, %v1269
      %v1334 = vsub.f32 0.0, %v1270
      %v1335 = vsub.f32 0.0, %v1271
      %v1336 = vsub.f32 0.0, %v1272
      %v1337 = vsub.f32 0.0, %v1273
      %v1338 = vsub.f32 0.0, %v1274
      %v1339 = vsub.f32 0.0, %v1275
      %v1340 = vsub.f32 0.0, %v1276
      %v1341 = vsub.f32 0.0, %v1277
      %v1342 = vsub.f32 0.0, %v1278
      %v1343 = vsub.f32 0.0, %v1279
      %v1344 = vsub.f32 0.0, %v1280
      %v1345 = vsub.f32 0.0, %v1281
      %v1346 = vsub.f32 0.0, %v1282
      %v1347 = vsub.f32 0.0, %v1283
      %v1348 = vsub.f32 0.0, %v1284
      %v1349 = vsub.f32 0.0, %v1285
      %v1350 = vsub.f32 0.0, %v1286
      %v1351 = vsub.f32 0.0, %v1287
      %v1352 = vsub.f32 0.0, %v1288
      %v1353 = vsub.f32 0.0, %v1289
      %v1354 = vsub.f32 0.0, %v1290
      %v1355 = vsub.f32 0.0, %v1291
      %v1356 = vsub.f32 0.0, %v1292
      %v1357 = vsub.f32 0.0, %v1293
      %v1358 = vsub.f32 0.0, %v1294
      %v1359 = vsub.f32 0.0, %v1295
      %v1360 = vsub.f32 0.0, %v1296
      %v1361 = vsub.f32 0.0, %v1297
      %v1362 = vsub.f32 0.0, %v1298
      %v1363 = vsel %vm1299, %v1267, %v1331
      %v1364 = vsel %vm1300, %v1268, %v1332
      %v1365 = vsel %vm1301, %v1269, %v1333
      %v1366 = vsel %vm1302, %v1270, %v1334
      %v1367 = vsel %vm1303, %v1271, %v1335
      %v1368 = vsel %vm1304, %v1272, %v1336
      %v1369 = vsel %vm1305, %v1273, %v1337
      %v1370 = vsel %vm1306, %v1274, %v1338
      %v1371 = vsel %vm1307, %v1275, %v1339
      %v1372 = vsel %vm1308, %v1276, %v1340
      %v1373 = vsel %vm1309, %v1277, %v1341
      %v1374 = vsel %vm1310, %v1278, %v1342
      %v1375 = vsel %vm1311, %v1279, %v1343
      %v1376 = vsel %vm1312, %v1280, %v1344
      %v1377 = vsel %vm1313, %v1281, %v1345
      %v1378 = vsel %vm1314, %v1282, %v1346
      %v1379 = vsel %vm1315, %v1283, %v1347
      %v1380 = vsel %vm1316, %v1284, %v1348
      %v1381 = vsel %vm1317, %v1285, %v1349
      %v1382 = vsel %vm1318, %v1286, %v1350
      %v1383 = vsel %vm1319, %v1287, %v1351
      %v1384 = vsel %vm1320, %v1288, %v1352
      %v1385 = vsel %vm1321, %v1289, %v1353
      %v1386 = vsel %vm1322, %v1290, %v1354
      %v1387 = vsel %vm1323, %v1291, %v1355
      %v1388 = vsel %vm1324, %v1292, %v1356
      %v1389 = vsel %vm1325, %v1293, %v1357
      %v1390 = vsel %vm1326, %v1294, %v1358
      %v1391 = vsel %vm1327, %v1295, %v1359
      %v1392 = vsel %vm1328, %v1296, %v1360
      %v1393 = vsel %vm1329, %v1297, %v1361
      %v1394 = vsel %vm1330, %v1298, %v1362
      %v1395 = vadd.f32 %v1363, 1.0
      %v1396 = vadd.f32 %v1364, 1.0
      %v1397 = vadd.f32 %v1365, 1.0
      %v1398 = vadd.f32 %v1366, 1.0
      %v1399 = vadd.f32 %v1367, 1.0
      %v1400 = vadd.f32 %v1368, 1.0
      %v1401 = vadd.f32 %v1369, 1.0
      %v1402 = vadd.f32 %v1370, 1.0
      %v1403 = vadd.f32 %v1371, 1.0
      %v1404 = vadd.f32 %v1372, 1.0
      %v1405 = vadd.f32 %v1373, 1.0
      %v1406 = vadd.f32 %v1374, 1.0
      %v1407 = vadd.f32 %v1375, 1.0
      %v1408 = vadd.f32 %v1376, 1.0
      %v1409 = vadd.f32 %v1377, 1.0
      %v1410 = vadd.f32 %v1378, 1.0
      %v1411 = vadd.f32 %v1379, 1.0
      %v1412 = vadd.f32 %v1380, 1.0
      %v1413 = vadd.f32 %v1381, 1.0
      %v1414 = vadd.f32 %v1382, 1.0
      %v1415 = vadd.f32 %v1383, 1.0
      %v1416 = vadd.f32 %v1384, 1.0
      %v1417 = vadd.f32 %v1385, 1.0
      %v1418 = vadd.f32 %v1386, 1.0
      %v1419 = vadd.f32 %v1387, 1.0
      %v1420 = vadd.f32 %v1388, 1.0
      %v1421 = vadd.f32 %v1389, 1.0
      %v1422 = vadd.f32 %v1390, 1.0
      %v1423 = vadd.f32 %v1391, 1.0
      %v1424 = vadd.f32 %v1392, 1.0
      %v1425 = vadd.f32 %v1393, 1.0
      %v1426 = vadd.f32 %v1394, 1.0
      %v1427 = vmul.f32 %v627, %v1395
      %v1428 = vmul.f32 %v628, %v1396
      %v1429 = vmul.f32 %v629, %v1397
      %v1430 = vmul.f32 %v630, %v1398
      %v1431 = vmul.f32 %v631, %v1399
      %v1432 = vmul.f32 %v632, %v1400
      %v1433 = vmul.f32 %v633, %v1401
      %v1434 = vmul.f32 %v634, %v1402
      %v1435 = vmul.f32 %v635, %v1403
      %v1436 = vmul.f32 %v636, %v1404
      %v1437 = vmul.f32 %v637, %v1405
      %v1438 = vmul.f32 %v638, %v1406
      %v1439 = vmul.f32 %v639, %v1407
      %v1440 = vmul.f32 %v640, %v1408
      %v1441 = vmul.f32 %v641, %v1409
      %v1442 = vmul.f32 %v642, %v1410
      %v1443 = vmul.f32 %v643, %v1411
      %v1444 = vmul.f32 %v644, %v1412
      %v1445 = vmul.f32 %v645, %v1413
      %v1446 = vmul.f32 %v646, %v1414
      %v1447 = vmul.f32 %v647, %v1415
      %v1448 = vmul.f32 %v648, %v1416
      %v1449 = vmul.f32 %v649, %v1417
      %v1450 = vmul.f32 %v650, %v1418
      %v1451 = vmul.f32 %v651, %v1419
      %v1452 = vmul.f32 %v652, %v1420
      %v1453 = vmul.f32 %v653, %v1421
      %v1454 = vmul.f32 %v654, %v1422
      %v1455 = vmul.f32 %v655, %v1423
      %v1456 = vmul.f32 %v656, %v1424
      %v1457 = vmul.f32 %v657, %v1425
      %v1458 = vmul.f32 %v658, %v1426
      %v1459 = vld [vmem:[%s3] sm:$0x1]
      %v1461 = vlaneseq
      %v1462 = vshrl.u32 %v1461, 7
      %v1463 = vsub.s32 0, %v1462
      %v1464 = vrot.slane %v1459, %v1463
      %v1466 = vmul.f32 %v1427, %v1464
      %v1467 = vmul.f32 %v1428, %v1464
      %v1468 = vmul.f32 %v1429, %v1464
      %v1469 = vmul.f32 %v1430, %v1464
      %v1470 = vmul.f32 %v1431, %v1464
      %v1471 = vmul.f32 %v1432, %v1464
      %v1472 = vmul.f32 %v1433, %v1464
      %v1473 = vmul.f32 %v1434, %v1464
      %v1474 = vmul.f32 %v1435, %v1464
      %v1475 = vmul.f32 %v1436, %v1464
      %v1476 = vmul.f32 %v1437, %v1464
      %v1477 = vmul.f32 %v1438, %v1464
      %v1478 = vmul.f32 %v1439, %v1464
      %v1479 = vmul.f32 %v1440, %v1464
      %v1480 = vmul.f32 %v1441, %v1464
      %v1481 = vmul.f32 %v1442, %v1464
      %v1482 = vmul.f32 %v1443, %v1464
      %v1483 = vmul.f32 %v1444, %v1464
      %v1484 = vmul.f32 %v1445, %v1464
      %v1485 = vmul.f32 %v1446, %v1464
      %v1486 = vmul.f32 %v1447, %v1464
      %v1487 = vmul.f32 %v1448, %v1464
      %v1488 = vmul.f32 %v1449, %v1464
      %v1489 = vmul.f32 %v1450, %v1464
      %v1490 = vmul.f32 %v1451, %v1464
      %v1491 = vmul.f32 %v1452, %v1464
      %v1492 = vmul.f32 %v1453, %v1464
      %v1493 = vmul.f32 %v1454, %v1464
      %v1494 = vmul.f32 %v1455, %v1464
      %v1495 = vmul.f32 %v1456, %v1464
      %v1496 = vmul.f32 %v1457, %v1464
      %v1497 = vmul.f32 %v1458, %v1464
      %1498 = vadd.xlane.f32.xlu0 %v1466
      %v1499 = vpop.xlane.xlu0 %1498
      %1500 = vadd.xlane.f32.xlu0 %v1467
      %v1501 = vpop.xlane.xlu0 %1500
      %1502 = vadd.xlane.f32.xlu0 %v1468
      %v1503 = vpop.xlane.xlu0 %1502
      %1504 = vadd.xlane.f32.xlu0 %v1469
      %v1505 = vpop.xlane.xlu0 %1504
      %1506 = vadd.xlane.f32.xlu0 %v1470
      %v1507 = vpop.xlane.xlu0 %1506
      %1508 = vadd.xlane.f32.xlu0 %v1471
      %v1509 = vpop.xlane.xlu0 %1508
      %1510 = vadd.xlane.f32.xlu0 %v1472
      %v1511 = vpop.xlane.xlu0 %1510
      %1512 = vadd.xlane.f32.xlu0 %v1473
      %v1513 = vpop.xlane.xlu0 %1512
      %1514 = vadd.xlane.f32.xlu0 %v1474
      %v1515 = vpop.xlane.xlu0 %1514
      %1516 = vadd.xlane.f32.xlu0 %v1475
      %v1517 = vpop.xlane.xlu0 %1516
      %1518 = vadd.xlane.f32.xlu0 %v1476
      %v1519 = vpop.xlane.xlu0 %1518
      %1520 = vadd.xlane.f32.xlu0 %v1477
      %v1521 = vpop.xlane.xlu0 %1520
      %1522 = vadd.xlane.f32.xlu0 %v1478
      %v1523 = vpop.xlane.xlu0 %1522
      %1524 = vadd.xlane.f32.xlu0 %v1479
      %v1525 = vpop.xlane.xlu0 %1524
      %1526 = vadd.xlane.f32.xlu0 %v1480
      %v1527 = vpop.xlane.xlu0 %1526
      %1528 = vadd.xlane.f32.xlu0 %v1481
      %v1529 = vpop.xlane.xlu0 %1528
      %1530 = vadd.xlane.f32.xlu0 %v1482
      %v1531 = vpop.xlane.xlu0 %1530
      %1532 = vadd.xlane.f32.xlu0 %v1483
      %v1533 = vpop.xlane.xlu0 %1532
      %1534 = vadd.xlane.f32.xlu0 %v1484
      %v1535 = vpop.xlane.xlu0 %1534
      %1536 = vadd.xlane.f32.xlu0 %v1485
      %v1537 = vpop.xlane.xlu0 %1536
      %1538 = vadd.xlane.f32.xlu0 %v1486
      %v1539 = vpop.xlane.xlu0 %1538
      %1540 = vadd.xlane.f32.xlu0 %v1487
      %v1541 = vpop.xlane.xlu0 %1540
      %1542 = vadd.xlane.f32.xlu0 %v1488
      %v1543 = vpop.xlane.xlu0 %1542
      %1544 = vadd.xlane.f32.xlu0 %v1489
      %v1545 = vpop.xlane.xlu0 %1544
      %1546 = vadd.xlane.f32.xlu0 %v1490
      %v1547 = vpop.xlane.xlu0 %1546
      %1548 = vadd.xlane.f32.xlu0 %v1491
      %v1549 = vpop.xlane.xlu0 %1548
      %1550 = vadd.xlane.f32.xlu0 %v1492
      %v1551 = vpop.xlane.xlu0 %1550
      %1552 = vadd.xlane.f32.xlu0 %v1493
      %v1553 = vpop.xlane.xlu0 %1552
      %1554 = vadd.xlane.f32.xlu0 %v1494
      %v1555 = vpop.xlane.xlu0 %1554
      %1556 = vadd.xlane.f32.xlu0 %v1495
      %v1557 = vpop.xlane.xlu0 %1556
      %1558 = vadd.xlane.f32.xlu0 %v1496
      %v1559 = vpop.xlane.xlu0 %1558
      %1560 = vadd.xlane.f32.xlu0 %v1497
      %v1561 = vpop.xlane.xlu0 %1560
      %v1562 = vld [vmem:[#allocation2] sm:$0x1]
      %v1564 = vlaneseq
      %v1565 = vshrl.u32 %v1564, 7
      %v1566 = vsub.s32 0, %v1565
      %v1567 = vrot.slane %v1562, %v1566
      %v1569 = vadd.f32 %v1499, %v1567
      %v1570 = vadd.f32 %v1501, %v1567
      %v1571 = vadd.f32 %v1503, %v1567
      %v1572 = vadd.f32 %v1505, %v1567
      %v1573 = vadd.f32 %v1507, %v1567
      %v1574 = vadd.f32 %v1509, %v1567
      %v1575 = vadd.f32 %v1511, %v1567
      %v1576 = vadd.f32 %v1513, %v1567
      %v1577 = vadd.f32 %v1515, %v1567
      %v1578 = vadd.f32 %v1517, %v1567
      %v1579 = vadd.f32 %v1519, %v1567
      %v1580 = vadd.f32 %v1521, %v1567
      %v1581 = vadd.f32 %v1523, %v1567
      %v1582 = vadd.f32 %v1525, %v1567
      %v1583 = vadd.f32 %v1527, %v1567
      %v1584 = vadd.f32 %v1529, %v1567
      %v1585 = vadd.f32 %v1531, %v1567
      %v1586 = vadd.f32 %v1533, %v1567
      %v1587 = vadd.f32 %v1535, %v1567
      %v1588 = vadd.f32 %v1537, %v1567
      %v1589 = vadd.f32 %v1539, %v1567
      %v1590 = vadd.f32 %v1541, %v1567
      %v1591 = vadd.f32 %v1543, %v1567
      %v1592 = vadd.f32 %v1545, %v1567
      %v1593 = vadd.f32 %v1547, %v1567
      %v1594 = vadd.f32 %v1549, %v1567
      %v1595 = vadd.f32 %v1551, %v1567
      %v1596 = vadd.f32 %v1553, %v1567
      %v1597 = vadd.f32 %v1555, %v1567
      %v1598 = vadd.f32 %v1557, %v1567
      %v1599 = vadd.f32 %v1559, %v1567
      %v1600 = vadd.f32 %v1561, %v1567
      %vm1601 = vcmask 7168
      %1602 = vst.msk [vmem:[%s228] sm:$0xff] %vm1601, %v1569
      %1603 = vst.msk [vmem:[%s228 + $0x8] sm:$0xff] %vm1601, %v1570
      %1604 = vst.msk [vmem:[%s228 + $0x10] sm:$0xff] %vm1601, %v1571
      %1605 = vst.msk [vmem:[%s228 + $0x18] sm:$0xff] %vm1601, %v1572
      %1606 = vst.msk [vmem:[%s228 + $0x20] sm:$0xff] %vm1601, %v1573
      %1607 = vst.msk [vmem:[%s228 + $0x28] sm:$0xff] %vm1601, %v1574
      %1608 = vst.msk [vmem:[%s228 + $0x30] sm:$0xff] %vm1601, %v1575
      %1609 = vst.msk [vmem:[%s228 + $0x38] sm:$0xff] %vm1601, %v1576
      %1610 = vst.msk [vmem:[%s228 + $0x40] sm:$0xff] %vm1601, %v1577
      %1611 = vst.msk [vmem:[%s228 + $0x48] sm:$0xff] %vm1601, %v1578
      %1612 = vst.msk [vmem:[%s228 + $0x50] sm:$0xff] %vm1601, %v1579
      %1613 = vst.msk [vmem:[%s228 + $0x58] sm:$0xff] %vm1601, %v1580
      %1614 = vst.msk [vmem:[%s228 + $0x60] sm:$0xff] %vm1601, %v1581
      %1615 = vst.msk [vmem:[%s228 + $0x68] sm:$0xff] %vm1601, %v1582
      %1616 = vst.msk [vmem:[%s228 + $0x70] sm:$0xff] %vm1601, %v1583
      %1617 = vst.msk [vmem:[%s228 + $0x78] sm:$0xff] %vm1601, %v1584
      %1618 = vst.msk [vmem:[%s228 + $0x80] sm:$0xff] %vm1601, %v1585
      %1619 = vst.msk [vmem:[%s228 + $0x88] sm:$0xff] %vm1601, %v1586
      %1620 = vst.msk [vmem:[%s228 + $0x90] sm:$0xff] %vm1601, %v1587
      %1621 = vst.msk [vmem:[%s228 + $0x98] sm:$0xff] %vm1601, %v1588
      %1622 = vst.msk [vmem:[%s228 + $0xa0] sm:$0xff] %vm1601, %v1589
      %1623 = vst.msk [vmem:[%s228 + $0xa8] sm:$0xff] %vm1601, %v1590
      %1624 = vst.msk [vmem:[%s228 + $0xb0] sm:$0xff] %vm1601, %v1591
      %1625 = vst.msk [vmem:[%s228 + $0xb8] sm:$0xff] %vm1601, %v1592
      %1626 = vst.msk [vmem:[%s228 + $0xc0] sm:$0xff] %vm1601, %v1593
      %1627 = vst.msk [vmem:[%s228 + $0xc8] sm:$0xff] %vm1601, %v1594
      %1628 = vst.msk [vmem:[%s228 + $0xd0] sm:$0xff] %vm1601, %v1595
      %1629 = vst.msk [vmem:[%s228 + $0xd8] sm:$0xff] %vm1601, %v1596
      %1630 = vst.msk [vmem:[%s228 + $0xe0] sm:$0xff] %vm1601, %v1597
      %1631 = vst.msk [vmem:[%s228 + $0xe8] sm:$0xff] %vm1601, %v1598
      %1632 = vst.msk [vmem:[%s228 + $0xf0] sm:$0xff] %vm1601, %v1599
      %1633 = vst.msk [vmem:[%s228 + $0xf8] sm:$0xff] %vm1601, %v1600
      %s1634 = smul.u32 32, %s18
      %p1635 = scmp.lt.s32.totalorder %s1634, 127
      %s1636 = scalar_select %p1635, %s1634, 127
      %s1637 = smul.addr %s1636, 8
      %s1638 = scalar_lea.vmem %s5, %s1637
      // Predicated region
      $region41: #{fno3d_forward.11} parent=39 // pred_check
        %p1639 = pneg %p146
      $region42: #{fno3d_forward.11} parent=39 // pred_check_branch
        %1641 = sbr.rel (%p1639) target = $region44
      $region43: #{fno3d_forward.11} parent=39 // pred_region
        %s1642 = smul.u32 32, %s18
      $region44: #{fno3d_forward.11} parent=39 // pred_fallthru
        _
    $region40: #{fno3d_forward.11} parent=5 // pred_fallthru
      _
    %p1643 = scmp.le.s32.totalorder 2, %s13
    // Predicated region
    $region45: #{fno3d_forward.11} parent=5 // pred_check
      %p1644 = pneg %p1643
    $region46: #{fno3d_forward.11} parent=5 // pred_check_branch
      %1646 = sbr.rel (%p1644) target = $region48
    $region47: #{fno3d_forward.11} parent=5 // pred_region
      %s1647 = ssub.s32 %s13, 2
      // Predicated region
      $region49: #{fno3d_forward.11} parent=47 // pred_check
        %p1648 = pneg %p152
      $region50: #{fno3d_forward.11} parent=47 // pred_check_branch
        %1650 = sbr.rel (%p1648) target = $region52
      $region51: #{fno3d_forward.11} parent=47 // pred_region
        %s1651 = smul.u32 32, %s19
        %p1652 = scmp.lt.s32.totalorder %s1651, 127
        %s1653 = scalar_select %p1652, %s1651, 127
        %s1654 = smul.addr %s1653, 8
        %s1655 = scalar_lea.vmem %s5, %s1654
      $region52: #{fno3d_forward.11} parent=47 // pred_fallthru
        _
    $region48: #{fno3d_forward.11} parent=5 // pred_fallthru
      _
  $region6: #{fno3d_forward.11} parent=0 // loop_footer
    %s17 = sadd.s32 1, %s13
  $region7: #{fno3d_forward.11} parent=0 // loop_footer_branch
    %12 = sbr.rel target = $region3
  $region8: #{fno3d_forward.11} parent=0 // loop_exit
    _

</llo_original>
